<compile_context>
chip_gen: v7x
topology: tpu7x:2x2x1
jax: 0.10.0
libtpu: 0.0.40
codegen_flags: <defaults>
</compile_context>

<pallas_src>
import jax
import jax.numpy as jnp
from jax import lax
from jax.experimental import pallas as pl
from jax.experimental.pallas import tpu as pltpu


def lstm_model_kernel(x_ref, wih_ref, b_ref, wlin_ref, blin_ref, whh_hbm_ref,
                      out_ref,
                      whh_vmem, xw_ref, h_seq_ref, dma_sem):
    """Shapes (f32; Hp = lane-padded hidden, Dp = lane-padded input dim):
       x:(T,Dp) wih:(Dp,4Hp) b:(1,4Hp) wlin:(1,Hp) blin:(1,1)
       whh_hbm:(Hp,4Hp) raw (pl.ANY)   out:(T,1)
       scratch: whh_vmem:(Hp,4Hp)  xw:(T,4Hp)  h_seq:(T,Hp)  DMA sem."""
    T = x_ref.shape[0]
    Hp = h_seq_ref.shape[1]

    # Kick off the whh HBM->VMEM copy, then hide it behind the input projection.
    whh_copy = pltpu.make_async_copy(whh_hbm_ref, whh_vmem, dma_sem)
    whh_copy.start()

    # Hoisted input projection with fused bias: one batched MXU matmul over all
    # timesteps, written to VMEM scratch so per-step reads are plain sublane vlds.
    xw_ref[...] = (jnp.dot(x_ref[...], wih_ref[...],
                           preferred_element_type=jnp.float32) + b_ref[...])

    whh_copy.wait()

    h = jnp.zeros((1, Hp), jnp.float32)
    c = jnp.zeros((1, Hp), jnp.float32)

    # T is small & static: fully unrolled serial recurrence.  Gate matmuls are
    # split per gate (lane-aligned (Hp,Hp) slabs of whh) and ordered i,f,g,o so
    # sigmoid/tanh (EUP) and the cell update (VPU) overlap the o-gate MXU work.
    for t in range(T):
        g_i = xw_ref[t:t + 1, 0 * Hp:1 * Hp] + jnp.dot(
            h, whh_vmem[:, 0 * Hp:1 * Hp], preferred_element_type=jnp.float32)
        g_f = xw_ref[t:t + 1, 1 * Hp:2 * Hp] + jnp.dot(
            h, whh_vmem[:, 1 * Hp:2 * Hp], preferred_element_type=jnp.float32)
        g_g = xw_ref[t:t + 1, 2 * Hp:3 * Hp] + jnp.dot(
            h, whh_vmem[:, 2 * Hp:3 * Hp], preferred_element_type=jnp.float32)
        g_o = xw_ref[t:t + 1, 3 * Hp:4 * Hp] + jnp.dot(
            h, whh_vmem[:, 3 * Hp:4 * Hp], preferred_element_type=jnp.float32)

        s_i = jax.nn.sigmoid(g_i)
        s_f = jax.nn.sigmoid(g_f)
        t_g = jnp.tanh(g_g)
        c = s_f * c + s_i * t_g           # cell update can start before sigmoid(o)
        tanh_c = jnp.tanh(c)
        s_o = jax.nn.sigmoid(g_o)
        h = s_o * tanh_c
        h_seq_ref[t:t + 1, :] = h          # static-row store to scratch

    # Linear(hidden -> 1) + Sigmoid, hoisted out of the loop.  N=1 output column
    # would waste the MXU, so: VPU broadcast-multiply + XLU lane reduction.
    logits = (jnp.sum(h_seq_ref[...] * wlin_ref[...], axis=-1, keepdims=True)
              + blin_ref[...])                                     # (T, 1)
    out_ref[...] = jax.nn.sigmoid(logits).astype(out_ref.dtype)


def lstm_model_forward(x, params):
    """x: (T, input_dim).  Returns sigmoid(Linear(LSTM(x))) of shape (T, 1)."""
    w_ih, w_hh, b_ih, b_hh, w_lin, b_lin = params
    T, D = x.shape
    H = w_hh.shape[1]
    Hp = ((H + 127) // 128) * 128                       # 200 -> 256 (lane-aligned)
    Dp = ((D + 127) // 128) * 128                       # 120 -> 128 (lane-aligned)

    def pad_gate_rows(w):  # (4H, X) -> (4Hp, X): zero-pad each gate block
        X = w.shape[1]
        return jnp.pad(w.reshape(4, H, X),
                       ((0, 0), (0, Hp - H), (0, 0))).reshape(4 * Hp, X)

    # Pre-transpose / zero-pad / fuse biases (glue stays in plain JAX).
    # Zero padding keeps padded state lanes exactly 0 through the recurrence
    # (gates=0 -> g=tanh(0)=0, c0=0 -> c=h=0) and they contribute 0 downstream.
    x_p = jnp.pad(x, ((0, 0), (0, Dp - D)))                              # (T, Dp)
    wih_p = jnp.pad(pad_gate_rows(w_ih).T, ((0, Dp - D), (0, 0)))        # (Dp, 4Hp)
    whh_p = jnp.pad(pad_gate_rows(w_hh).T, ((0, Hp - H), (0, 0)))        # (Hp, 4Hp)
    b_p = jnp.pad((b_ih + b_hh).reshape(4, H),
                  ((0, 0), (0, Hp - H))).reshape(1, 4 * Hp)              # (1, 4Hp)
    wlin_p = jnp.pad(w_lin, ((0, 0), (0, Hp - H)))                       # (1, Hp)
    blin = b_lin[None, :]                                                # (1, 1)

    vmem = pl.BlockSpec(memory_space=pltpu.MemorySpace.VMEM)
    anyspace = pl.BlockSpec(memory_space=pl.ANY)   # raw ref; DMA'd manually in-kernel
    return pl.pallas_call(
        lstm_model_kernel,
        out_shape=jax.ShapeDtypeStruct((T, 1), jnp.float32),
        in_specs=[vmem, vmem, vmem, vmem, vmem, anyspace],
        out_specs=vmem,
        scratch_shapes=[
            pltpu.VMEM((Hp, 4 * Hp), jnp.float32),   # whh staged in VMEM
            pltpu.VMEM((T, 4 * Hp), jnp.float32),    # xw (hoisted input projection)
            pltpu.VMEM((T, Hp), jnp.float32),        # h_seq
            pltpu.SemaphoreType.DMA,                 # whh copy completion
        ],
    )(x_p, wih_p, b_p, wlin_p, blin, whh_p)


def init_params(key, input_dim, hidden_dim, output_dim):
    """PyTorch-style uniform(-1/sqrt(H), 1/sqrt(H)) init, deterministic."""
    k = 1.0 / jnp.sqrt(hidden_dim)
    keys = jax.random.split(key, 6)
    w_ih = jax.random.uniform(keys[0], (4 * hidden_dim, input_dim), jnp.float32, -k, k)
    w_hh = jax.random.uniform(keys[1], (4 * hidden_dim, hidden_dim), jnp.float32, -k, k)
    b_ih = jax.random.uniform(keys[2], (4 * hidden_dim,), jnp.float32, -k, k)
    b_hh = jax.random.uniform(keys[3], (4 * hidden_dim,), jnp.float32, -k, k)
    w_lin = jax.random.uniform(keys[4], (output_dim, hidden_dim), jnp.float32, -k, k)
    b_lin = jax.random.uniform(keys[5], (output_dim,), jnp.float32, -k, k)
    return w_ih, w_hh, b_ih, b_hh, w_lin, b_lin


def reference_forward(x, params):
    """Pure-JAX reference of the PyTorch forward (batch=1, h0=c0=0)."""
    w_ih, w_hh, b_ih, b_hh, w_lin, b_lin = params
    H = w_hh.shape[1]

    def step(carry, x_t):
        h, c = carry
        gates = x_t @ w_ih.T + b_ih + h @ w_hh.T + b_hh
        i = jax.nn.sigmoid(gates[0 * H:1 * H])
        f = jax.nn.sigmoid(gates[1 * H:2 * H])
        g = jnp.tanh(gates[2 * H:3 * H])
        o = jax.nn.sigmoid(gates[3 * H:4 * H])
        c = f * c + i * g
        h = o * jnp.tanh(c)
        return (h, c), h

    (_, _), hs = lax.scan(step, (jnp.zeros(H), jnp.zeros(H)), x)
    return jax.nn.sigmoid(hs @ w_lin.T + b_lin)


if __name__ == "__main__":
    # Module constants: input_dim = 10 * 12 = 120, hidden_dim = 200, output_dim = 1.
    input_dim, hidden_dim, output_dim = 120, 200, 1
    seq_len = 8

    key = jax.random.PRNGKey(0)
    k_x, k_p = jax.random.split(key)
    x = jax.random.normal(k_x, (seq_len, input_dim), jnp.float32)
    params = init_params(k_p, input_dim, hidden_dim, output_dim)

    out = jax.block_until_ready(lstm_model_forward(x, params))
    ref = jax.block_until_ready(reference_forward(x, params))

    assert out.shape == (seq_len, output_dim), out.shape
    assert jnp.allclose(out, ref, atol=1e-5, rtol=1e-5), (out, ref)
    print("KERNEL_OK")
</pallas_src>

<mosaic_0001>
module attributes {stable_mosaic.version = 11 : i64} {
  func.func @lstm_model_kernel(%arg0: memref<8x128xf32, #tpu.memory_space<vmem>>, %arg1: memref<128x1024xf32, #tpu.memory_space<vmem>>, %arg2: memref<1x1024xf32, #tpu.memory_space<vmem>>, %arg3: memref<1x256xf32, #tpu.memory_space<vmem>>, %arg4: memref<1x1xf32, #tpu.memory_space<vmem>>, %arg5: memref<256x1024xf32, #tpu.memory_space<any>>, %arg6: memref<8x1xf32, #tpu.memory_space<vmem>>, %arg7: memref<256x1024xf32, #tpu.memory_space<vmem>>, %arg8: memref<8x1024xf32, #tpu.memory_space<vmem>>, %arg9: memref<8x256xf32, #tpu.memory_space<vmem>>, %arg10: memref<!tpu.dma_semaphore, #tpu.memory_space<semaphore_mem>>) attributes {dimension_semantics = [], scalar_prefetch = 0 : i64, scratch_operands = 4 : i64, tpu.core_type = #tpu.core_type<tc>} {
    tpu.enqueue_dma source(%arg5 : memref<256x1024xf32, #tpu.memory_space<any>>) target(%arg7 : memref<256x1024xf32, #tpu.memory_space<vmem>>) target_semaphore(%arg10 : memref<!tpu.dma_semaphore, #tpu.memory_space<semaphore_mem>>)
    %c0 = arith.constant 0 : index
    %c0_0 = arith.constant 0 : index
    %0 = vector.load %arg0[%c0, %c0_0] : memref<8x128xf32, #tpu.memory_space<vmem>>, vector<8x128xf32>
    %c0_1 = arith.constant 0 : index
    %c0_2 = arith.constant 0 : index
    %1 = vector.load %arg1[%c0_1, %c0_2] : memref<128x1024xf32, #tpu.memory_space<vmem>>, vector<128x1024xf32>
    %cst = arith.constant dense<0.000000e+00> : vector<8x1024xf32>
    %2 = tpu.matmul %0, %1, %cst {dimension_numbers = #tpu.dot_dimension_numbers<[1], [0], [0], [1], [0, 0, 1, 1], [], []>} : vector<8x128xf32>, vector<128x1024xf32>, vector<8x1024xf32> -> vector<8x1024xf32>
    %c0_3 = arith.constant 0 : index
    %c0_4 = arith.constant 0 : index
    %3 = vector.load %arg2[%c0_3, %c0_4] : memref<1x1024xf32, #tpu.memory_space<vmem>>, vector<1x1024xf32>
    %4 = vector.broadcast %3 : vector<1x1024xf32> to vector<8x1024xf32>
    %5 = arith.addf %2, %4 : vector<8x1024xf32>
    %c0_5 = arith.constant 0 : index
    %c0_6 = arith.constant 0 : index
    %6 = vector.load %arg8[%c0_5, %c0_6] : memref<8x1024xf32, #tpu.memory_space<vmem>>, vector<8x1024xf32>
    tpu.vector_store %arg8[%c0_5, %c0_6], %5 {strides = array<i32>} : memref<8x1024xf32, #tpu.memory_space<vmem>>, vector<8x1024xf32>,
    tpu.wait_dma2 semaphore(%arg10 : memref<!tpu.dma_semaphore, #tpu.memory_space<semaphore_mem>>) src(%arg5 : memref<256x1024xf32, #tpu.memory_space<any>>) dst(%arg7 : memref<256x1024xf32, #tpu.memory_space<vmem>>)
    %cst_7 = arith.constant 0.000000e+00 : f32
    %7 = vector.broadcast %cst_7 : f32 to vector<1x256xf32>
    %cst_8 = arith.constant 0.000000e+00 : f32
    %8 = vector.broadcast %cst_8 : f32 to vector<1x256xf32>
    %c0_9 = arith.constant 0 : index
    %c0_10 = arith.constant 0 : index
    %9 = vector.load %arg8[%c0_9, %c0_10] : memref<8x1024xf32, #tpu.memory_space<vmem>>, vector<1x256xf32>
    %c0_11 = arith.constant 0 : index
    %c0_12 = arith.constant 0 : index
    %10 = vector.load %arg7[%c0_11, %c0_12] : memref<256x1024xf32, #tpu.memory_space<vmem>>, vector<256x256xf32>
    %cst_13 = arith.constant dense<0.000000e+00> : vector<1x256xf32>
    %11 = tpu.matmul %7, %10, %cst_13 {dimension_numbers = #tpu.dot_dimension_numbers<[1], [0], [0], [1], [0, 0, 1, 1], [], []>} : vector<1x256xf32>, vector<256x256xf32>, vector<1x256xf32> -> vector<1x256xf32>
    %12 = arith.addf %9, %11 : vector<1x256xf32>
    %c0_14 = arith.constant 0 : index
    %c256 = arith.constant 256 : index
    %13 = vector.load %arg8[%c0_14, %c256] : memref<8x1024xf32, #tpu.memory_space<vmem>>, vector<1x256xf32>
    %c0_15 = arith.constant 0 : index
    %c256_16 = arith.constant 256 : index
    %14 = vector.load %arg7[%c0_15, %c256_16] : memref<256x1024xf32, #tpu.memory_space<vmem>>, vector<256x256xf32>
    %cst_17 = arith.constant dense<0.000000e+00> : vector<1x256xf32>
    %15 = tpu.matmul %7, %14, %cst_17 {dimension_numbers = #tpu.dot_dimension_numbers<[1], [0], [0], [1], [0, 0, 1, 1], [], []>} : vector<1x256xf32>, vector<256x256xf32>, vector<1x256xf32> -> vector<1x256xf32>
    %16 = arith.addf %13, %15 : vector<1x256xf32>
    %c0_18 = arith.constant 0 : index
    %c512 = arith.constant 512 : index
    %17 = vector.load %arg8[%c0_18, %c512] : memref<8x1024xf32, #tpu.memory_space<vmem>>, vector<1x256xf32>
    %c0_19 = arith.constant 0 : index
    %c512_20 = arith.constant 512 : index
    %18 = vector.load %arg7[%c0_19, %c512_20] : memref<256x1024xf32, #tpu.memory_space<vmem>>, vector<256x256xf32>
    %cst_21 = arith.constant dense<0.000000e+00> : vector<1x256xf32>
    %19 = tpu.matmul %7, %18, %cst_21 {dimension_numbers = #tpu.dot_dimension_numbers<[1], [0], [0], [1], [0, 0, 1, 1], [], []>} : vector<1x256xf32>, vector<256x256xf32>, vector<1x256xf32> -> vector<1x256xf32>
    %20 = arith.addf %17, %19 : vector<1x256xf32>
    %c0_22 = arith.constant 0 : index
    %c768 = arith.constant 768 : index
    %21 = vector.load %arg8[%c0_22, %c768] : memref<8x1024xf32, #tpu.memory_space<vmem>>, vector<1x256xf32>
    %c0_23 = arith.constant 0 : index
    %c768_24 = arith.constant 768 : index
    %22 = vector.load %arg7[%c0_23, %c768_24] : memref<256x1024xf32, #tpu.memory_space<vmem>>, vector<256x256xf32>
    %cst_25 = arith.constant dense<0.000000e+00> : vector<1x256xf32>
    %23 = tpu.matmul %7, %22, %cst_25 {dimension_numbers = #tpu.dot_dimension_numbers<[1], [0], [0], [1], [0, 0, 1, 1], [], []>} : vector<1x256xf32>, vector<256x256xf32>, vector<1x256xf32> -> vector<1x256xf32>
    %24 = arith.addf %21, %23 : vector<1x256xf32>
    %25 = arith.negf %12 : vector<1x256xf32>
    %26 = math.exp %25 : vector<1x256xf32>
    %cst_26 = arith.constant 1.000000e+00 : f32
    %27 = vector.broadcast %cst_26 : f32 to vector<1x256xf32>
    %28 = arith.addf %27, %26 : vector<1x256xf32>
    %29 = arith.divf %27, %28 : vector<1x256xf32>
    %30 = arith.negf %16 : vector<1x256xf32>
    %31 = math.exp %30 : vector<1x256xf32>
    %cst_27 = arith.constant 1.000000e+00 : f32
    %32 = vector.broadcast %cst_27 : f32 to vector<1x256xf32>
    %33 = arith.addf %32, %31 : vector<1x256xf32>
    %34 = arith.divf %32, %33 : vector<1x256xf32>
    %35 = math.tanh %20 : vector<1x256xf32>
    %36 = arith.mulf %34, %8 : vector<1x256xf32>
    %37 = arith.mulf %29, %35 : vector<1x256xf32>
    %38 = arith.addf %36, %37 : vector<1x256xf32>
    %39 = math.tanh %38 : vector<1x256xf32>
    %40 = arith.negf %24 : vector<1x256xf32>
    %41 = math.exp %40 : vector<1x256xf32>
    %cst_28 = arith.constant 1.000000e+00 : f32
    %42 = vector.broadcast %cst_28 : f32 to vector<1x256xf32>
    %43 = arith.addf %42, %41 : vector<1x256xf32>
    %44 = arith.divf %42, %43 : vector<1x256xf32>
    %45 = arith.mulf %44, %39 : vector<1x256xf32>
    %c0_29 = arith.constant 0 : index
    %c0_30 = arith.constant 0 : index
    %46 = vector.load %arg9[%c0_29, %c0_30] : memref<8x256xf32, #tpu.memory_space<vmem>>, vector<1x256xf32>
    tpu.vector_store %arg9[%c0_29, %c0_30], %45 {strides = array<i32>} : memref<8x256xf32, #tpu.memory_space<vmem>>, vector<1x256xf32>,
    %c1 = arith.constant 1 : index
    %c0_31 = arith.constant 0 : index
    %47 = vector.load %arg8[%c1, %c0_31] : memref<8x1024xf32, #tpu.memory_space<vmem>>, vector<1x256xf32>
    %c0_32 = arith.constant 0 : index
    %c0_33 = arith.constant 0 : index
    %48 = vector.load %arg7[%c0_32, %c0_33] : memref<256x1024xf32, #tpu.memory_space<vmem>>, vector<256x256xf32>
    %cst_34 = arith.constant dense<0.000000e+00> : vector<1x256xf32>
    %49 = tpu.matmul %45, %48, %cst_34 {dimension_numbers = #tpu.dot_dimension_numbers<[1], [0], [0], [1], [0, 0, 1, 1], [], []>} : vector<1x256xf32>, vector<256x256xf32>, vector<1x256xf32> -> vector<1x256xf32>
    %50 = arith.addf %47, %49 : vector<1x256xf32>
    %c1_35 = arith.constant 1 : index
    %c256_36 = arith.constant 256 : index
    %51 = vector.load %arg8[%c1_35, %c256_36] : memref<8x1024xf32, #tpu.memory_space<vmem>>, vector<1x256xf32>
    %c0_37 = arith.constant 0 : index
    %c256_38 = arith.constant 256 : index
    %52 = vector.load %arg7[%c0_37, %c256_38] : memref<256x1024xf32, #tpu.memory_space<vmem>>, vector<256x256xf32>
    %cst_39 = arith.constant dense<0.000000e+00> : vector<1x256xf32>
    %53 = tpu.matmul %45, %52, %cst_39 {dimension_numbers = #tpu.dot_dimension_numbers<[1], [0], [0], [1], [0, 0, 1, 1], [], []>} : vector<1x256xf32>, vector<256x256xf32>, vector<1x256xf32> -> vector<1x256xf32>
    %54 = arith.addf %51, %53 : vector<1x256xf32>
    %c1_40 = arith.constant 1 : index
    %c512_41 = arith.constant 512 : index
    %55 = vector.load %arg8[%c1_40, %c512_41] : memref<8x1024xf32, #tpu.memory_space<vmem>>, vector<1x256xf32>
    %c0_42 = arith.constant 0 : index
    %c512_43 = arith.constant 512 : index
    %56 = vector.load %arg7[%c0_42, %c512_43] : memref<256x1024xf32, #tpu.memory_space<vmem>>, vector<256x256xf32>
    %cst_44 = arith.constant dense<0.000000e+00> : vector<1x256xf32>
    %57 = tpu.matmul %45, %56, %cst_44 {dimension_numbers = #tpu.dot_dimension_numbers<[1], [0], [0], [1], [0, 0, 1, 1], [], []>} : vector<1x256xf32>, vector<256x256xf32>, vector<1x256xf32> -> vector<1x256xf32>
    %58 = arith.addf %55, %57 : vector<1x256xf32>
    %c1_45 = arith.constant 1 : index
    %c768_46 = arith.constant 768 : index
    %59 = vector.load %arg8[%c1_45, %c768_46] : memref<8x1024xf32, #tpu.memory_space<vmem>>, vector<1x256xf32>
    %c0_47 = arith.constant 0 : index
    %c768_48 = arith.constant 768 : index
    %60 = vector.load %arg7[%c0_47, %c768_48] : memref<256x1024xf32, #tpu.memory_space<vmem>>, vector<256x256xf32>
    %cst_49 = arith.constant dense<0.000000e+00> : vector<1x256xf32>
    %61 = tpu.matmul %45, %60, %cst_49 {dimension_numbers = #tpu.dot_dimension_numbers<[1], [0], [0], [1], [0, 0, 1, 1], [], []>} : vector<1x256xf32>, vector<256x256xf32>, vector<1x256xf32> -> vector<1x256xf32>
    %62 = arith.addf %59, %61 : vector<1x256xf32>
    %63 = arith.negf %50 : vector<1x256xf32>
    %64 = math.exp %63 : vector<1x256xf32>
    %cst_50 = arith.constant 1.000000e+00 : f32
    %65 = vector.broadcast %cst_50 : f32 to vector<1x256xf32>
    %66 = arith.addf %65, %64 : vector<1x256xf32>
    %67 = arith.divf %65, %66 : vector<1x256xf32>
    %68 = arith.negf %54 : vector<1x256xf32>
    %69 = math.exp %68 : vector<1x256xf32>
    %cst_51 = arith.constant 1.000000e+00 : f32
    %70 = vector.broadcast %cst_51 : f32 to vector<1x256xf32>
    %71 = arith.addf %70, %69 : vector<1x256xf32>
    %72 = arith.divf %70, %71 : vector<1x256xf32>
    %73 = math.tanh %58 : vector<1x256xf32>
    %74 = arith.mulf %72, %38 : vector<1x256xf32>
    %75 = arith.mulf %67, %73 : vector<1x256xf32>
    %76 = arith.addf %74, %75 : vector<1x256xf32>
    %77 = math.tanh %76 : vector<1x256xf32>
    %78 = arith.negf %62 : vector<1x256xf32>
    %79 = math.exp %78 : vector<1x256xf32>
    %cst_52 = arith.constant 1.000000e+00 : f32
    %80 = vector.broadcast %cst_52 : f32 to vector<1x256xf32>
    %81 = arith.addf %80, %79 : vector<1x256xf32>
    %82 = arith.divf %80, %81 : vector<1x256xf32>
    %83 = arith.mulf %82, %77 : vector<1x256xf32>
    %c1_53 = arith.constant 1 : index
    %c0_54 = arith.constant 0 : index
    %84 = vector.load %arg9[%c1_53, %c0_54] : memref<8x256xf32, #tpu.memory_space<vmem>>, vector<1x256xf32>
    tpu.vector_store %arg9[%c1_53, %c0_54], %83 {strides = array<i32>} : memref<8x256xf32, #tpu.memory_space<vmem>>, vector<1x256xf32>,
    %c2 = arith.constant 2 : index
    %c0_55 = arith.constant 0 : index
    %85 = vector.load %arg8[%c2, %c0_55] : memref<8x1024xf32, #tpu.memory_space<vmem>>, vector<1x256xf32>
    %c0_56 = arith.constant 0 : index
    %c0_57 = arith.constant 0 : index
    %86 = vector.load %arg7[%c0_56, %c0_57] : memref<256x1024xf32, #tpu.memory_space<vmem>>, vector<256x256xf32>
    %cst_58 = arith.constant dense<0.000000e+00> : vector<1x256xf32>
    %87 = tpu.matmul %83, %86, %cst_58 {dimension_numbers = #tpu.dot_dimension_numbers<[1], [0], [0], [1], [0, 0, 1, 1], [], []>} : vector<1x256xf32>, vector<256x256xf32>, vector<1x256xf32> -> vector<1x256xf32>
    %88 = arith.addf %85, %87 : vector<1x256xf32>
    %c2_59 = arith.constant 2 : index
    %c256_60 = arith.constant 256 : index
    %89 = vector.load %arg8[%c2_59, %c256_60] : memref<8x1024xf32, #tpu.memory_space<vmem>>, vector<1x256xf32>
    %c0_61 = arith.constant 0 : index
    %c256_62 = arith.constant 256 : index
    %90 = vector.load %arg7[%c0_61, %c256_62] : memref<256x1024xf32, #tpu.memory_space<vmem>>, vector<256x256xf32>
    %cst_63 = arith.constant dense<0.000000e+00> : vector<1x256xf32>
    %91 = tpu.matmul %83, %90, %cst_63 {dimension_numbers = #tpu.dot_dimension_numbers<[1], [0], [0], [1], [0, 0, 1, 1], [], []>} : vector<1x256xf32>, vector<256x256xf32>, vector<1x256xf32> -> vector<1x256xf32>
    %92 = arith.addf %89, %91 : vector<1x256xf32>
    %c2_64 = arith.constant 2 : index
    %c512_65 = arith.constant 512 : index
    %93 = vector.load %arg8[%c2_64, %c512_65] : memref<8x1024xf32, #tpu.memory_space<vmem>>, vector<1x256xf32>
    %c0_66 = arith.constant 0 : index
    %c512_67 = arith.constant 512 : index
    %94 = vector.load %arg7[%c0_66, %c512_67] : memref<256x1024xf32, #tpu.memory_space<vmem>>, vector<256x256xf32>
    %cst_68 = arith.constant dense<0.000000e+00> : vector<1x256xf32>
    %95 = tpu.matmul %83, %94, %cst_68 {dimension_numbers = #tpu.dot_dimension_numbers<[1], [0], [0], [1], [0, 0, 1, 1], [], []>} : vector<1x256xf32>, vector<256x256xf32>, vector<1x256xf32> -> vector<1x256xf32>
    %96 = arith.addf %93, %95 : vector<1x256xf32>
    %c2_69 = arith.constant 2 : index
    %c768_70 = arith.constant 768 : index
    %97 = vector.load %arg8[%c2_69, %c768_70] : memref<8x1024xf32, #tpu.memory_space<vmem>>, vector<1x256xf32>
    %c0_71 = arith.constant 0 : index
    %c768_72 = arith.constant 768 : index
    %98 = vector.load %arg7[%c0_71, %c768_72] : memref<256x1024xf32, #tpu.memory_space<vmem>>, vector<256x256xf32>
    %cst_73 = arith.constant dense<0.000000e+00> : vector<1x256xf32>
    %99 = tpu.matmul %83, %98, %cst_73 {dimension_numbers = #tpu.dot_dimension_numbers<[1], [0], [0], [1], [0, 0, 1, 1], [], []>} : vector<1x256xf32>, vector<256x256xf32>, vector<1x256xf32> -> vector<1x256xf32>
    %100 = arith.addf %97, %99 : vector<1x256xf32>
    %101 = arith.negf %88 : vector<1x256xf32>
    %102 = math.exp %101 : vector<1x256xf32>
    %cst_74 = arith.constant 1.000000e+00 : f32
    %103 = vector.broadcast %cst_74 : f32 to vector<1x256xf32>
    %104 = arith.addf %103, %102 : vector<1x256xf32>
    %105 = arith.divf %103, %104 : vector<1x256xf32>
    %106 = arith.negf %92 : vector<1x256xf32>
    %107 = math.exp %106 : vector<1x256xf32>
    %cst_75 = arith.constant 1.000000e+00 : f32
    %108 = vector.broadcast %cst_75 : f32 to vector<1x256xf32>
    %109 = arith.addf %108, %107 : vector<1x256xf32>
    %110 = arith.divf %108, %109 : vector<1x256xf32>
    %111 = math.tanh %96 : vector<1x256xf32>
    %112 = arith.mulf %110, %76 : vector<1x256xf32>
    %113 = arith.mulf %105, %111 : vector<1x256xf32>
    %114 = arith.addf %112, %113 : vector<1x256xf32>
    %115 = math.tanh %114 : vector<1x256xf32>
    %116 = arith.negf %100 : vector<1x256xf32>
    %117 = math.exp %116 : vector<1x256xf32>
    %cst_76 = arith.constant 1.000000e+00 : f32
    %118 = vector.broadcast %cst_76 : f32 to vector<1x256xf32>
    %119 = arith.addf %118, %117 : vector<1x256xf32>
    %120 = arith.divf %118, %119 : vector<1x256xf32>
    %121 = arith.mulf %120, %115 : vector<1x256xf32>
    %c2_77 = arith.constant 2 : index
    %c0_78 = arith.constant 0 : index
    %122 = vector.load %arg9[%c2_77, %c0_78] : memref<8x256xf32, #tpu.memory_space<vmem>>, vector<1x256xf32>
    tpu.vector_store %arg9[%c2_77, %c0_78], %121 {strides = array<i32>} : memref<8x256xf32, #tpu.memory_space<vmem>>, vector<1x256xf32>,
    %c3 = arith.constant 3 : index
    %c0_79 = arith.constant 0 : index
    %123 = vector.load %arg8[%c3, %c0_79] : memref<8x1024xf32, #tpu.memory_space<vmem>>, vector<1x256xf32>
    %c0_80 = arith.constant 0 : index
    %c0_81 = arith.constant 0 : index
    %124 = vector.load %arg7[%c0_80, %c0_81] : memref<256x1024xf32, #tpu.memory_space<vmem>>, vector<256x256xf32>
    %cst_82 = arith.constant dense<0.000000e+00> : vector<1x256xf32>
    %125 = tpu.matmul %121, %124, %cst_82 {dimension_numbers = #tpu.dot_dimension_numbers<[1], [0], [0], [1], [0, 0, 1, 1], [], []>} : vector<1x256xf32>, vector<256x256xf32>, vector<1x256xf32> -> vector<1x256xf32>
    %126 = arith.addf %123, %125 : vector<1x256xf32>
    %c3_83 = arith.constant 3 : index
    %c256_84 = arith.constant 256 : index
    %127 = vector.load %arg8[%c3_83, %c256_84] : memref<8x1024xf32, #tpu.memory_space<vmem>>, vector<1x256xf32>
    %c0_85 = arith.constant 0 : index
    %c256_86 = arith.constant 256 : index
    %128 = vector.load %arg7[%c0_85, %c256_86] : memref<256x1024xf32, #tpu.memory_space<vmem>>, vector<256x256xf32>
    %cst_87 = arith.constant dense<0.000000e+00> : vector<1x256xf32>
    %129 = tpu.matmul %121, %128, %cst_87 {dimension_numbers = #tpu.dot_dimension_numbers<[1], [0], [0], [1], [0, 0, 1, 1], [], []>} : vector<1x256xf32>, vector<256x256xf32>, vector<1x256xf32> -> vector<1x256xf32>
    %130 = arith.addf %127, %129 : vector<1x256xf32>
    %c3_88 = arith.constant 3 : index
    %c512_89 = arith.constant 512 : index
    %131 = vector.load %arg8[%c3_88, %c512_89] : memref<8x1024xf32, #tpu.memory_space<vmem>>, vector<1x256xf32>
    %c0_90 = arith.constant 0 : index
    %c512_91 = arith.constant 512 : index
    %132 = vector.load %arg7[%c0_90, %c512_91] : memref<256x1024xf32, #tpu.memory_space<vmem>>, vector<256x256xf32>
    %cst_92 = arith.constant dense<0.000000e+00> : vector<1x256xf32>
    %133 = tpu.matmul %121, %132, %cst_92 {dimension_numbers = #tpu.dot_dimension_numbers<[1], [0], [0], [1], [0, 0, 1, 1], [], []>} : vector<1x256xf32>, vector<256x256xf32>, vector<1x256xf32> -> vector<1x256xf32>
    %134 = arith.addf %131, %133 : vector<1x256xf32>
    %c3_93 = arith.constant 3 : index
    %c768_94 = arith.constant 768 : index
    %135 = vector.load %arg8[%c3_93, %c768_94] : memref<8x1024xf32, #tpu.memory_space<vmem>>, vector<1x256xf32>
    %c0_95 = arith.constant 0 : index
    %c768_96 = arith.constant 768 : index
    %136 = vector.load %arg7[%c0_95, %c768_96] : memref<256x1024xf32, #tpu.memory_space<vmem>>, vector<256x256xf32>
    %cst_97 = arith.constant dense<0.000000e+00> : vector<1x256xf32>
    %137 = tpu.matmul %121, %136, %cst_97 {dimension_numbers = #tpu.dot_dimension_numbers<[1], [0], [0], [1], [0, 0, 1, 1], [], []>} : vector<1x256xf32>, vector<256x256xf32>, vector<1x256xf32> -> vector<1x256xf32>
    %138 = arith.addf %135, %137 : vector<1x256xf32>
    %139 = arith.negf %126 : vector<1x256xf32>
    %140 = math.exp %139 : vector<1x256xf32>
    %cst_98 = arith.constant 1.000000e+00 : f32
    %141 = vector.broadcast %cst_98 : f32 to vector<1x256xf32>
    %142 = arith.addf %141, %140 : vector<1x256xf32>
    %143 = arith.divf %141, %142 : vector<1x256xf32>
    %144 = arith.negf %130 : vector<1x256xf32>
    %145 = math.exp %144 : vector<1x256xf32>
    %cst_99 = arith.constant 1.000000e+00 : f32
    %146 = vector.broadcast %cst_99 : f32 to vector<1x256xf32>
    %147 = arith.addf %146, %145 : vector<1x256xf32>
    %148 = arith.divf %146, %147 : vector<1x256xf32>
    %149 = math.tanh %134 : vector<1x256xf32>
    %150 = arith.mulf %148, %114 : vector<1x256xf32>
    %151 = arith.mulf %143, %149 : vector<1x256xf32>
    %152 = arith.addf %150, %151 : vector<1x256xf32>
    %153 = math.tanh %152 : vector<1x256xf32>
    %154 = arith.negf %138 : vector<1x256xf32>
    %155 = math.exp %154 : vector<1x256xf32>
    %cst_100 = arith.constant 1.000000e+00 : f32
    %156 = vector.broadcast %cst_100 : f32 to vector<1x256xf32>
    %157 = arith.addf %156, %155 : vector<1x256xf32>
    %158 = arith.divf %156, %157 : vector<1x256xf32>
    %159 = arith.mulf %158, %153 : vector<1x256xf32>
    %c3_101 = arith.constant 3 : index
    %c0_102 = arith.constant 0 : index
    %160 = vector.load %arg9[%c3_101, %c0_102] : memref<8x256xf32, #tpu.memory_space<vmem>>, vector<1x256xf32>
    tpu.vector_store %arg9[%c3_101, %c0_102], %159 {strides = array<i32>} : memref<8x256xf32, #tpu.memory_space<vmem>>, vector<1x256xf32>,
    %c4 = arith.constant 4 : index
    %c0_103 = arith.constant 0 : index
    %161 = vector.load %arg8[%c4, %c0_103] : memref<8x1024xf32, #tpu.memory_space<vmem>>, vector<1x256xf32>
    %c0_104 = arith.constant 0 : index
    %c0_105 = arith.constant 0 : index
    %162 = vector.load %arg7[%c0_104, %c0_105] : memref<256x1024xf32, #tpu.memory_space<vmem>>, vector<256x256xf32>
    %cst_106 = arith.constant dense<0.000000e+00> : vector<1x256xf32>
    %163 = tpu.matmul %159, %162, %cst_106 {dimension_numbers = #tpu.dot_dimension_numbers<[1], [0], [0], [1], [0, 0, 1, 1], [], []>} : vector<1x256xf32>, vector<256x256xf32>, vector<1x256xf32> -> vector<1x256xf32>
    %164 = arith.addf %161, %163 : vector<1x256xf32>
    %c4_107 = arith.constant 4 : index
    %c256_108 = arith.constant 256 : index
    %165 = vector.load %arg8[%c4_107, %c256_108] : memref<8x1024xf32, #tpu.memory_space<vmem>>, vector<1x256xf32>
    %c0_109 = arith.constant 0 : index
    %c256_110 = arith.constant 256 : index
    %166 = vector.load %arg7[%c0_109, %c256_110] : memref<256x1024xf32, #tpu.memory_space<vmem>>, vector<256x256xf32>
    %cst_111 = arith.constant dense<0.000000e+00> : vector<1x256xf32>
    %167 = tpu.matmul %159, %166, %cst_111 {dimension_numbers = #tpu.dot_dimension_numbers<[1], [0], [0], [1], [0, 0, 1, 1], [], []>} : vector<1x256xf32>, vector<256x256xf32>, vector<1x256xf32> -> vector<1x256xf32>
    %168 = arith.addf %165, %167 : vector<1x256xf32>
    %c4_112 = arith.constant 4 : index
    %c512_113 = arith.constant 512 : index
    %169 = vector.load %arg8[%c4_112, %c512_113] : memref<8x1024xf32, #tpu.memory_space<vmem>>, vector<1x256xf32>
    %c0_114 = arith.constant 0 : index
    %c512_115 = arith.constant 512 : index
    %170 = vector.load %arg7[%c0_114, %c512_115] : memref<256x1024xf32, #tpu.memory_space<vmem>>, vector<256x256xf32>
    %cst_116 = arith.constant dense<0.000000e+00> : vector<1x256xf32>
    %171 = tpu.matmul %159, %170, %cst_116 {dimension_numbers = #tpu.dot_dimension_numbers<[1], [0], [0], [1], [0, 0, 1, 1], [], []>} : vector<1x256xf32>, vector<256x256xf32>, vector<1x256xf32> -> vector<1x256xf32>
    %172 = arith.addf %169, %171 : vector<1x256xf32>
    %c4_117 = arith.constant 4 : index
    %c768_118 = arith.constant 768 : index
    %173 = vector.load %arg8[%c4_117, %c768_118] : memref<8x1024xf32, #tpu.memory_space<vmem>>, vector<1x256xf32>
    %c0_119 = arith.constant 0 : index
    %c768_120 = arith.constant 768 : index
    %174 = vector.load %arg7[%c0_119, %c768_120] : memref<256x1024xf32, #tpu.memory_space<vmem>>, vector<256x256xf32>
    %cst_121 = arith.constant dense<0.000000e+00> : vector<1x256xf32>
    %175 = tpu.matmul %159, %174, %cst_121 {dimension_numbers = #tpu.dot_dimension_numbers<[1], [0], [0], [1], [0, 0, 1, 1], [], []>} : vector<1x256xf32>, vector<256x256xf32>, vector<1x256xf32> -> vector<1x256xf32>
    %176 = arith.addf %173, %175 : vector<1x256xf32>
    %177 = arith.negf %164 : vector<1x256xf32>
    %178 = math.exp %177 : vector<1x256xf32>
    %cst_122 = arith.constant 1.000000e+00 : f32
    %179 = vector.broadcast %cst_122 : f32 to vector<1x256xf32>
    %180 = arith.addf %179, %178 : vector<1x256xf32>
    %181 = arith.divf %179, %180 : vector<1x256xf32>
    %182 = arith.negf %168 : vector<1x256xf32>
    %183 = math.exp %182 : vector<1x256xf32>
    %cst_123 = arith.constant 1.000000e+00 : f32
    %184 = vector.broadcast %cst_123 : f32 to vector<1x256xf32>
    %185 = arith.addf %184, %183 : vector<1x256xf32>
    %186 = arith.divf %184, %185 : vector<1x256xf32>
    %187 = math.tanh %172 : vector<1x256xf32>
    %188 = arith.mulf %186, %152 : vector<1x256xf32>
    %189 = arith.mulf %181, %187 : vector<1x256xf32>
    %190 = arith.addf %188, %189 : vector<1x256xf32>
    %191 = math.tanh %190 : vector<1x256xf32>
    %192 = arith.negf %176 : vector<1x256xf32>
    %193 = math.exp %192 : vector<1x256xf32>
    %cst_124 = arith.constant 1.000000e+00 : f32
    %194 = vector.broadcast %cst_124 : f32 to vector<1x256xf32>
    %195 = arith.addf %194, %193 : vector<1x256xf32>
    %196 = arith.divf %194, %195 : vector<1x256xf32>
    %197 = arith.mulf %196, %191 : vector<1x256xf32>
    %c4_125 = arith.constant 4 : index
    %c0_126 = arith.constant 0 : index
    %198 = vector.load %arg9[%c4_125, %c0_126] : memref<8x256xf32, #tpu.memory_space<vmem>>, vector<1x256xf32>
    tpu.vector_store %arg9[%c4_125, %c0_126], %197 {strides = array<i32>} : memref<8x256xf32, #tpu.memory_space<vmem>>, vector<1x256xf32>,
    %c5 = arith.constant 5 : index
    %c0_127 = arith.constant 0 : index
    %199 = vector.load %arg8[%c5, %c0_127] : memref<8x1024xf32, #tpu.memory_space<vmem>>, vector<1x256xf32>
    %c0_128 = arith.constant 0 : index
    %c0_129 = arith.constant 0 : index
    %200 = vector.load %arg7[%c0_128, %c0_129] : memref<256x1024xf32, #tpu.memory_space<vmem>>, vector<256x256xf32>
    %cst_130 = arith.constant dense<0.000000e+00> : vector<1x256xf32>
    %201 = tpu.matmul %197, %200, %cst_130 {dimension_numbers = #tpu.dot_dimension_numbers<[1], [0], [0], [1], [0, 0, 1, 1], [], []>} : vector<1x256xf32>, vector<256x256xf32>, vector<1x256xf32> -> vector<1x256xf32>
    %202 = arith.addf %199, %201 : vector<1x256xf32>
    %c5_131 = arith.constant 5 : index
    %c256_132 = arith.constant 256 : index
    %203 = vector.load %arg8[%c5_131, %c256_132] : memref<8x1024xf32, #tpu.memory_space<vmem>>, vector<1x256xf32>
    %c0_133 = arith.constant 0 : index
    %c256_134 = arith.constant 256 : index
    %204 = vector.load %arg7[%c0_133, %c256_134] : memref<256x1024xf32, #tpu.memory_space<vmem>>, vector<256x256xf32>
    %cst_135 = arith.constant dense<0.000000e+00> : vector<1x256xf32>
    %205 = tpu.matmul %197, %204, %cst_135 {dimension_numbers = #tpu.dot_dimension_numbers<[1], [0], [0], [1], [0, 0, 1, 1], [], []>} : vector<1x256xf32>, vector<256x256xf32>, vector<1x256xf32> -> vector<1x256xf32>
    %206 = arith.addf %203, %205 : vector<1x256xf32>
    %c5_136 = arith.constant 5 : index
    %c512_137 = arith.constant 512 : index
    %207 = vector.load %arg8[%c5_136, %c512_137] : memref<8x1024xf32, #tpu.memory_space<vmem>>, vector<1x256xf32>
    %c0_138 = arith.constant 0 : index
    %c512_139 = arith.constant 512 : index
    %208 = vector.load %arg7[%c0_138, %c512_139] : memref<256x1024xf32, #tpu.memory_space<vmem>>, vector<256x256xf32>
    %cst_140 = arith.constant dense<0.000000e+00> : vector<1x256xf32>
    %209 = tpu.matmul %197, %208, %cst_140 {dimension_numbers = #tpu.dot_dimension_numbers<[1], [0], [0], [1], [0, 0, 1, 1], [], []>} : vector<1x256xf32>, vector<256x256xf32>, vector<1x256xf32> -> vector<1x256xf32>
    %210 = arith.addf %207, %209 : vector<1x256xf32>
    %c5_141 = arith.constant 5 : index
    %c768_142 = arith.constant 768 : index
    %211 = vector.load %arg8[%c5_141, %c768_142] : memref<8x1024xf32, #tpu.memory_space<vmem>>, vector<1x256xf32>
    %c0_143 = arith.constant 0 : index
    %c768_144 = arith.constant 768 : index
    %212 = vector.load %arg7[%c0_143, %c768_144] : memref<256x1024xf32, #tpu.memory_space<vmem>>, vector<256x256xf32>
    %cst_145 = arith.constant dense<0.000000e+00> : vector<1x256xf32>
    %213 = tpu.matmul %197, %212, %cst_145 {dimension_numbers = #tpu.dot_dimension_numbers<[1], [0], [0], [1], [0, 0, 1, 1], [], []>} : vector<1x256xf32>, vector<256x256xf32>, vector<1x256xf32> -> vector<1x256xf32>
    %214 = arith.addf %211, %213 : vector<1x256xf32>
    %215 = arith.negf %202 : vector<1x256xf32>
    %216 = math.exp %215 : vector<1x256xf32>
    %cst_146 = arith.constant 1.000000e+00 : f32
    %217 = vector.broadcast %cst_146 : f32 to vector<1x256xf32>
    %218 = arith.addf %217, %216 : vector<1x256xf32>
    %219 = arith.divf %217, %218 : vector<1x256xf32>
    %220 = arith.negf %206 : vector<1x256xf32>
    %221 = math.exp %220 : vector<1x256xf32>
    %cst_147 = arith.constant 1.000000e+00 : f32
    %222 = vector.broadcast %cst_147 : f32 to vector<1x256xf32>
    %223 = arith.addf %222, %221 : vector<1x256xf32>
    %224 = arith.divf %222, %223 : vector<1x256xf32>
    %225 = math.tanh %210 : vector<1x256xf32>
    %226 = arith.mulf %224, %190 : vector<1x256xf32>
    %227 = arith.mulf %219, %225 : vector<1x256xf32>
    %228 = arith.addf %226, %227 : vector<1x256xf32>
    %229 = math.tanh %228 : vector<1x256xf32>
    %230 = arith.negf %214 : vector<1x256xf32>
    %231 = math.exp %230 : vector<1x256xf32>
    %cst_148 = arith.constant 1.000000e+00 : f32
    %232 = vector.broadcast %cst_148 : f32 to vector<1x256xf32>
    %233 = arith.addf %232, %231 : vector<1x256xf32>
    %234 = arith.divf %232, %233 : vector<1x256xf32>
    %235 = arith.mulf %234, %229 : vector<1x256xf32>
    %c5_149 = arith.constant 5 : index
    %c0_150 = arith.constant 0 : index
    %236 = vector.load %arg9[%c5_149, %c0_150] : memref<8x256xf32, #tpu.memory_space<vmem>>, vector<1x256xf32>
    tpu.vector_store %arg9[%c5_149, %c0_150], %235 {strides = array<i32>} : memref<8x256xf32, #tpu.memory_space<vmem>>, vector<1x256xf32>,
    %c6 = arith.constant 6 : index
    %c0_151 = arith.constant 0 : index
    %237 = vector.load %arg8[%c6, %c0_151] : memref<8x1024xf32, #tpu.memory_space<vmem>>, vector<1x256xf32>
    %c0_152 = arith.constant 0 : index
    %c0_153 = arith.constant 0 : index
    %238 = vector.load %arg7[%c0_152, %c0_153] : memref<256x1024xf32, #tpu.memory_space<vmem>>, vector<256x256xf32>
    %cst_154 = arith.constant dense<0.000000e+00> : vector<1x256xf32>
    %239 = tpu.matmul %235, %238, %cst_154 {dimension_numbers = #tpu.dot_dimension_numbers<[1], [0], [0], [1], [0, 0, 1, 1], [], []>} : vector<1x256xf32>, vector<256x256xf32>, vector<1x256xf32> -> vector<1x256xf32>
    %240 = arith.addf %237, %239 : vector<1x256xf32>
    %c6_155 = arith.constant 6 : index
    %c256_156 = arith.constant 256 : index
    %241 = vector.load %arg8[%c6_155, %c256_156] : memref<8x1024xf32, #tpu.memory_space<vmem>>, vector<1x256xf32>
    %c0_157 = arith.constant 0 : index
    %c256_158 = arith.constant 256 : index
    %242 = vector.load %arg7[%c0_157, %c256_158] : memref<256x1024xf32, #tpu.memory_space<vmem>>, vector<256x256xf32>
    %cst_159 = arith.constant dense<0.000000e+00> : vector<1x256xf32>
    %243 = tpu.matmul %235, %242, %cst_159 {dimension_numbers = #tpu.dot_dimension_numbers<[1], [0], [0], [1], [0, 0, 1, 1], [], []>} : vector<1x256xf32>, vector<256x256xf32>, vector<1x256xf32> -> vector<1x256xf32>
    %244 = arith.addf %241, %243 : vector<1x256xf32>
    %c6_160 = arith.constant 6 : index
    %c512_161 = arith.constant 512 : index
    %245 = vector.load %arg8[%c6_160, %c512_161] : memref<8x1024xf32, #tpu.memory_space<vmem>>, vector<1x256xf32>
    %c0_162 = arith.constant 0 : index
    %c512_163 = arith.constant 512 : index
    %246 = vector.load %arg7[%c0_162, %c512_163] : memref<256x1024xf32, #tpu.memory_space<vmem>>, vector<256x256xf32>
    %cst_164 = arith.constant dense<0.000000e+00> : vector<1x256xf32>
    %247 = tpu.matmul %235, %246, %cst_164 {dimension_numbers = #tpu.dot_dimension_numbers<[1], [0], [0], [1], [0, 0, 1, 1], [], []>} : vector<1x256xf32>, vector<256x256xf32>, vector<1x256xf32> -> vector<1x256xf32>
    %248 = arith.addf %245, %247 : vector<1x256xf32>
    %c6_165 = arith.constant 6 : index
    %c768_166 = arith.constant 768 : index
    %249 = vector.load %arg8[%c6_165, %c768_166] : memref<8x1024xf32, #tpu.memory_space<vmem>>, vector<1x256xf32>
    %c0_167 = arith.constant 0 : index
    %c768_168 = arith.constant 768 : index
    %250 = vector.load %arg7[%c0_167, %c768_168] : memref<256x1024xf32, #tpu.memory_space<vmem>>, vector<256x256xf32>
    %cst_169 = arith.constant dense<0.000000e+00> : vector<1x256xf32>
    %251 = tpu.matmul %235, %250, %cst_169 {dimension_numbers = #tpu.dot_dimension_numbers<[1], [0], [0], [1], [0, 0, 1, 1], [], []>} : vector<1x256xf32>, vector<256x256xf32>, vector<1x256xf32> -> vector<1x256xf32>
    %252 = arith.addf %249, %251 : vector<1x256xf32>
    %253 = arith.negf %240 : vector<1x256xf32>
    %254 = math.exp %253 : vector<1x256xf32>
    %cst_170 = arith.constant 1.000000e+00 : f32
    %255 = vector.broadcast %cst_170 : f32 to vector<1x256xf32>
    %256 = arith.addf %255, %254 : vector<1x256xf32>
    %257 = arith.divf %255, %256 : vector<1x256xf32>
    %258 = arith.negf %244 : vector<1x256xf32>
    %259 = math.exp %258 : vector<1x256xf32>
    %cst_171 = arith.constant 1.000000e+00 : f32
    %260 = vector.broadcast %cst_171 : f32 to vector<1x256xf32>
    %261 = arith.addf %260, %259 : vector<1x256xf32>
    %262 = arith.divf %260, %261 : vector<1x256xf32>
    %263 = math.tanh %248 : vector<1x256xf32>
    %264 = arith.mulf %262, %228 : vector<1x256xf32>
    %265 = arith.mulf %257, %263 : vector<1x256xf32>
    %266 = arith.addf %264, %265 : vector<1x256xf32>
    %267 = math.tanh %266 : vector<1x256xf32>
    %268 = arith.negf %252 : vector<1x256xf32>
    %269 = math.exp %268 : vector<1x256xf32>
    %cst_172 = arith.constant 1.000000e+00 : f32
    %270 = vector.broadcast %cst_172 : f32 to vector<1x256xf32>
    %271 = arith.addf %270, %269 : vector<1x256xf32>
    %272 = arith.divf %270, %271 : vector<1x256xf32>
    %273 = arith.mulf %272, %267 : vector<1x256xf32>
    %c6_173 = arith.constant 6 : index
    %c0_174 = arith.constant 0 : index
    %274 = vector.load %arg9[%c6_173, %c0_174] : memref<8x256xf32, #tpu.memory_space<vmem>>, vector<1x256xf32>
    tpu.vector_store %arg9[%c6_173, %c0_174], %273 {strides = array<i32>} : memref<8x256xf32, #tpu.memory_space<vmem>>, vector<1x256xf32>,
    %c7 = arith.constant 7 : index
    %c0_175 = arith.constant 0 : index
    %275 = vector.load %arg8[%c7, %c0_175] : memref<8x1024xf32, #tpu.memory_space<vmem>>, vector<1x256xf32>
    %c0_176 = arith.constant 0 : index
    %c0_177 = arith.constant 0 : index
    %276 = vector.load %arg7[%c0_176, %c0_177] : memref<256x1024xf32, #tpu.memory_space<vmem>>, vector<256x256xf32>
    %cst_178 = arith.constant dense<0.000000e+00> : vector<1x256xf32>
    %277 = tpu.matmul %273, %276, %cst_178 {dimension_numbers = #tpu.dot_dimension_numbers<[1], [0], [0], [1], [0, 0, 1, 1], [], []>} : vector<1x256xf32>, vector<256x256xf32>, vector<1x256xf32> -> vector<1x256xf32>
    %278 = arith.addf %275, %277 : vector<1x256xf32>
    %c7_179 = arith.constant 7 : index
    %c256_180 = arith.constant 256 : index
    %279 = vector.load %arg8[%c7_179, %c256_180] : memref<8x1024xf32, #tpu.memory_space<vmem>>, vector<1x256xf32>
    %c0_181 = arith.constant 0 : index
    %c256_182 = arith.constant 256 : index
    %280 = vector.load %arg7[%c0_181, %c256_182] : memref<256x1024xf32, #tpu.memory_space<vmem>>, vector<256x256xf32>
    %cst_183 = arith.constant dense<0.000000e+00> : vector<1x256xf32>
    %281 = tpu.matmul %273, %280, %cst_183 {dimension_numbers = #tpu.dot_dimension_numbers<[1], [0], [0], [1], [0, 0, 1, 1], [], []>} : vector<1x256xf32>, vector<256x256xf32>, vector<1x256xf32> -> vector<1x256xf32>
    %282 = arith.addf %279, %281 : vector<1x256xf32>
    %c7_184 = arith.constant 7 : index
    %c512_185 = arith.constant 512 : index
    %283 = vector.load %arg8[%c7_184, %c512_185] : memref<8x1024xf32, #tpu.memory_space<vmem>>, vector<1x256xf32>
    %c0_186 = arith.constant 0 : index
    %c512_187 = arith.constant 512 : index
    %284 = vector.load %arg7[%c0_186, %c512_187] : memref<256x1024xf32, #tpu.memory_space<vmem>>, vector<256x256xf32>
    %cst_188 = arith.constant dense<0.000000e+00> : vector<1x256xf32>
    %285 = tpu.matmul %273, %284, %cst_188 {dimension_numbers = #tpu.dot_dimension_numbers<[1], [0], [0], [1], [0, 0, 1, 1], [], []>} : vector<1x256xf32>, vector<256x256xf32>, vector<1x256xf32> -> vector<1x256xf32>
    %286 = arith.addf %283, %285 : vector<1x256xf32>
    %c7_189 = arith.constant 7 : index
    %c768_190 = arith.constant 768 : index
    %287 = vector.load %arg8[%c7_189, %c768_190] : memref<8x1024xf32, #tpu.memory_space<vmem>>, vector<1x256xf32>
    %c0_191 = arith.constant 0 : index
    %c768_192 = arith.constant 768 : index
    %288 = vector.load %arg7[%c0_191, %c768_192] : memref<256x1024xf32, #tpu.memory_space<vmem>>, vector<256x256xf32>
    %cst_193 = arith.constant dense<0.000000e+00> : vector<1x256xf32>
    %289 = tpu.matmul %273, %288, %cst_193 {dimension_numbers = #tpu.dot_dimension_numbers<[1], [0], [0], [1], [0, 0, 1, 1], [], []>} : vector<1x256xf32>, vector<256x256xf32>, vector<1x256xf32> -> vector<1x256xf32>
    %290 = arith.addf %287, %289 : vector<1x256xf32>
    %291 = arith.negf %278 : vector<1x256xf32>
    %292 = math.exp %291 : vector<1x256xf32>
    %cst_194 = arith.constant 1.000000e+00 : f32
    %293 = vector.broadcast %cst_194 : f32 to vector<1x256xf32>
    %294 = arith.addf %293, %292 : vector<1x256xf32>
    %295 = arith.divf %293, %294 : vector<1x256xf32>
    %296 = arith.negf %282 : vector<1x256xf32>
    %297 = math.exp %296 : vector<1x256xf32>
    %cst_195 = arith.constant 1.000000e+00 : f32
    %298 = vector.broadcast %cst_195 : f32 to vector<1x256xf32>
    %299 = arith.addf %298, %297 : vector<1x256xf32>
    %300 = arith.divf %298, %299 : vector<1x256xf32>
    %301 = math.tanh %286 : vector<1x256xf32>
    %302 = arith.mulf %300, %266 : vector<1x256xf32>
    %303 = arith.mulf %295, %301 : vector<1x256xf32>
    %304 = arith.addf %302, %303 : vector<1x256xf32>
    %305 = math.tanh %304 : vector<1x256xf32>
    %306 = arith.negf %290 : vector<1x256xf32>
    %307 = math.exp %306 : vector<1x256xf32>
    %cst_196 = arith.constant 1.000000e+00 : f32
    %308 = vector.broadcast %cst_196 : f32 to vector<1x256xf32>
    %309 = arith.addf %308, %307 : vector<1x256xf32>
    %310 = arith.divf %308, %309 : vector<1x256xf32>
    %311 = arith.mulf %310, %305 : vector<1x256xf32>
    %c7_197 = arith.constant 7 : index
    %c0_198 = arith.constant 0 : index
    %312 = vector.load %arg9[%c7_197, %c0_198] : memref<8x256xf32, #tpu.memory_space<vmem>>, vector<1x256xf32>
    tpu.vector_store %arg9[%c7_197, %c0_198], %311 {strides = array<i32>} : memref<8x256xf32, #tpu.memory_space<vmem>>, vector<1x256xf32>,
    %c0_199 = arith.constant 0 : index
    %c0_200 = arith.constant 0 : index
    %313 = vector.load %arg9[%c0_199, %c0_200] : memref<8x256xf32, #tpu.memory_space<vmem>>, vector<8x256xf32>
    %c0_201 = arith.constant 0 : index
    %c0_202 = arith.constant 0 : index
    %314 = vector.load %arg3[%c0_201, %c0_202] : memref<1x256xf32, #tpu.memory_space<vmem>>, vector<1x256xf32>
    %315 = vector.broadcast %314 : vector<1x256xf32> to vector<8x256xf32>
    %316 = arith.mulf %313, %315 : vector<8x256xf32>
    %cst_203 = arith.constant dense<0.000000e+00> : vector<8xf32>
    %317 = vector.multi_reduction <add>, %316, %cst_203 [1] : vector<8x256xf32> to vector<8xf32>
    %318 = vector.shape_cast %317 : vector<8xf32> to vector<8x1xf32>
    %c0_204 = arith.constant 0 : index
    %c0_205 = arith.constant 0 : index
    %319 = vector.load %arg4[%c0_204, %c0_205] : memref<1x1xf32, #tpu.memory_space<vmem>>, vector<1x1xf32>
    %320 = vector.broadcast %319 : vector<1x1xf32> to vector<8x1xf32>
    %321 = arith.addf %318, %320 : vector<8x1xf32>
    %322 = arith.negf %321 : vector<8x1xf32>
    %323 = math.exp %322 : vector<8x1xf32>
    %cst_206 = arith.constant 1.000000e+00 : f32
    %324 = vector.broadcast %cst_206 : f32 to vector<8x1xf32>
    %325 = arith.addf %324, %323 : vector<8x1xf32>
    %326 = arith.divf %324, %325 : vector<8x1xf32>
    %c0_207 = arith.constant 0 : index
    %c0_208 = arith.constant 0 : index
    %327 = vector.load %arg6[%c0_207, %c0_208] : memref<8x1xf32, #tpu.memory_space<vmem>>, vector<8x1xf32>
    tpu.vector_store %arg6[%c0_207, %c0_208], %326 {strides = array<i32>} : memref<8x1xf32, #tpu.memory_space<vmem>>, vector<8x1xf32>,
    return
  }
}

</mosaic_0001>

<llo_original>
// kernel: tpu_custom_call.1
$region0: #{tpu_custom_call.1}
  #allocation0 [shape = 'u32[]', space=smem, size = 0x4, offset = 0x4, fixed_abs, tag = 'smem constant byte address 0x4 - core index']
  #allocation1 [shape = 'u32[144,128]{1,0:T(1,128)}', space=vmem, size = 0x12000, scoped, tag = 'internal scratch']
  #allocation2 [shape = 'f32[256,1024]{1,0:T(8,128)}', space=vmem, size = 0x100000, scoped, tag = 'scratch operand']
  #allocation3 [shape = 'f32[8,1024]{1,0:T(8,128)}', space=vmem, size = 0x8000, scoped, tag = 'scratch operand']
  #allocation4 [shape = 'f32[8,256]{1,0:T(8,128)}', space=vmem, size = 0x2000, scoped, tag = 'scratch operand']
  #allocation5 [shape = 's32[1]{0}', space=sflag, size = 0x4, scoped, tag = 'scratch operand']
  #allocation6 [shape = 'f32[1,1]{1,0:T(1,128)S(1)}', space=vmem, size = 0x200, scoped, tag = 'scoped memory for tpu_custom_call.1']
  #allocation11 [shape = 's32[]', space=sflag, size = 0x4, offset = 0, fixed_abs, tag = 'sflag constant byte address 0x0 - dummy sync flag']
  #allocation12 [shape = 's32[]', space=sflag, size = 0x4, offset = 0, fixed_abs, tag = 'sflag constant byte address 0x0 - dummy sync flag']
  #allocation13 [shape = 'u32[]', space=smem, size = 0x4, offset = 0x44, fixed_abs, tag = 'smem constant byte address 0x44 - assertion arg 0']
  #allocation14 [shape = 'u32[]', space=smem, size = 0x4, offset = 0x48, fixed_abs, tag = 'smem constant byte address 0x48 - assertion arg 1']
  %s0 = inlined_call_operand.hbm [shape: f32[8,128], index: 0, kind: input, shape index: {}]
  %s1 = inlined_call_operand.hbm [shape: f32[128,1024], index: 1, kind: input, shape index: {}]
  %s2 = inlined_call_operand.vmem [shape: f32[1,1024], index: 2, kind: input, shape index: {}]
  %s3 = inlined_call_operand.vmem [shape: f32[1,256], index: 3, kind: input, shape index: {}]
  %s4 = inlined_call_operand.<no memory space> [shape: f32[1,1], index: 4, kind: input, shape index: {}]
  %s5 = inlined_call_operand.hbm [shape: f32[256,1024], index: 5, kind: input, shape index: {}]
  %s6 = inlined_call_operand.vmem [shape: f32[8,1], index: 6, kind: output, shape index: {}]
  %s7 = sld [smem:[#allocation0]]
  $region42: #{tpu_custom_call.1} parent=0
    _
  %s9 = ssub.s32 1, %s7
  %s10 = scalar_select 0, %s9, %s7
  %v11 = vstv %s4
  %12 = vst [vmem:[#allocation6] sm:$0x1] %v11
  $region1: #{tpu_custom_call.1} parent=0
    #allocation7 [shape = 'u8[4096]{0}', space=vmem, size = 0x1000, scoped, tag = 'input window, operand 0, single buffered']
    #allocation8 [shape = 's32[1]{0}', space=sflag, size = 0x4, scoped, tag = 'scoped memory for tpu_custom_call.1']
    #allocation9 [shape = 'u8[524288]{0}', space=vmem, size = 0x80000, scoped, tag = 'input window, operand 1, single buffered']
    #allocation10 [shape = 's32[1]{0}', space=sflag, size = 0x4, scoped, tag = 'scoped memory for tpu_custom_call.1']
    %13 = vsyncpa [#allocation8], 0
    %14 = vsyncpa [#allocation10], 0
    // Predicated region
    $region2: #{tpu_custom_call.1} parent=1 // pred_check
      _
    $region3: #{tpu_custom_call.1} parent=1 // pred_check_branch
      %16 = sbr.rel (0) target = $region5
    $region4: #{tpu_custom_call.1} parent=1 // pred_region
      %s18 = ssub.s32 128, 128
      %19 = vsyncadd [#allocation8], %s18
      %s21 = sshll.u32 [#allocation7], 4
      %s22 = int_to_ptr.vmem [resolvable:$true] %s21
      %24 = dma.hbm_to_vmem [thread:$0]  %s0, 128, %s22, [#allocation8]
    $region5: #{tpu_custom_call.1} parent=1 // pred_fallthru
      _
    // Predicated region
    $region6: #{tpu_custom_call.1} parent=1 // pred_check
      _
    $region7: #{tpu_custom_call.1} parent=1 // pred_check_branch
      %26 = sbr.rel (0) target = $region9
    $region8: #{tpu_custom_call.1} parent=1 // pred_region
      %s28 = ssub.s32 16384, 16384
      %29 = vsyncadd [#allocation10], %s28
      %s30 = sshll.u32 [#allocation9], 4
      %s31 = int_to_ptr.vmem [resolvable:$true] %s30
      %36 = dma.hbm_to_vmem [thread:$0]  %s1, 16384, %s31, [#allocation10], 1024, 1024, 64
    $region9: #{tpu_custom_call.1} parent=1 // pred_fallthru
      _
    // Predicated region
    $region10: #{tpu_custom_call.1} parent=1 // pred_check
      _
    $region11: #{tpu_custom_call.1} parent=1 // pred_check_branch
      %38 = sbr.rel (0) target = $region13
    $region12: #{tpu_custom_call.1} parent=1 // pred_region
      _
    $region13: #{tpu_custom_call.1} parent=1 // pred_fallthru
      _
    // Predicated region
    $region14: #{tpu_custom_call.1} parent=1 // pred_check
      _
    $region15: #{tpu_custom_call.1} parent=1 // pred_check_branch
      %40 = sbr.rel (0) target = $region17
    $region16: #{tpu_custom_call.1} parent=1 // pred_region
      _
    $region17: #{tpu_custom_call.1} parent=1 // pred_fallthru
      _
    // Predicated region
    $region18: #{tpu_custom_call.1} parent=1 // pred_check
      _
    $region19: #{tpu_custom_call.1} parent=1 // pred_check_branch
      %42 = sbr.rel (0) target = $region21
    $region20: #{tpu_custom_call.1} parent=1 // pred_region
      _
    $region21: #{tpu_custom_call.1} parent=1 // pred_fallthru
      _
    // Predicated region
    $region22: #{tpu_custom_call.1} parent=1 // pred_check
      _
    $region23: #{tpu_custom_call.1} parent=1 // pred_check_branch
      %44 = sbr.rel (0) target = $region25
    $region24: #{tpu_custom_call.1} parent=1 // pred_region
      %45 = dma.done [#allocation8], 128
    $region25: #{tpu_custom_call.1} parent=1 // pred_fallthru
      _
    // Predicated region
    $region26: #{tpu_custom_call.1} parent=1 // pred_check
      _
    $region27: #{tpu_custom_call.1} parent=1 // pred_check_branch
      %47 = sbr.rel (0) target = $region29
    $region28: #{tpu_custom_call.1} parent=1 // pred_region
      %48 = dma.done [#allocation10], 16384
    $region29: #{tpu_custom_call.1} parent=1 // pred_fallthru
      _
    // Predicated region
    $region30: #{tpu_custom_call.1} parent=1 // pred_check
      _
    $region31: #{tpu_custom_call.1} parent=1 // pred_check_branch
      %50 = sbr.rel target = $region33
    $region32: #{tpu_custom_call.1} parent=1 // pred_region
      %51 = sst [smem:[#allocation13]] [#allocation12]
      %52 = sst [smem:[#allocation14]] [#allocation11]
    $region33: #{tpu_custom_call.1} parent=1 // pred_fallthru
      _
    %54 = shalt.err (0)
    %s56 = sshll.u32 [#allocation2], 4
    %s57 = int_to_ptr.vmem [resolvable:$true] %s56
    %59 = dma.hbm_to_vmem [thread:$0]  %s5, 32768, %s57, [#allocation5]
    %v60 = vld [vmem:[#allocation7] sm:$0xff]
    %v61 = vld [vmem:[#allocation9] sm:$0xff]
    %v62 = vld [vmem:[#allocation9 + $0x8] sm:$0xff]
    %v63 = vld [vmem:[#allocation9 + $0x10] sm:$0xff]
    %v64 = vld [vmem:[#allocation9 + $0x18] sm:$0xff]
    %v65 = vld [vmem:[#allocation9 + $0x20] sm:$0xff]
    %v66 = vld [vmem:[#allocation9 + $0x28] sm:$0xff]
    %v67 = vld [vmem:[#allocation9 + $0x30] sm:$0xff]
    %v68 = vld [vmem:[#allocation9 + $0x38] sm:$0xff]
    %v69 = vld [vmem:[#allocation9 + $0x40] sm:$0xff]
    %v70 = vld [vmem:[#allocation9 + $0x48] sm:$0xff]
    %v71 = vld [vmem:[#allocation9 + $0x50] sm:$0xff]
    %v72 = vld [vmem:[#allocation9 + $0x58] sm:$0xff]
    %v73 = vld [vmem:[#allocation9 + $0x60] sm:$0xff]
    %v74 = vld [vmem:[#allocation9 + $0x68] sm:$0xff]
    %v75 = vld [vmem:[#allocation9 + $0x70] sm:$0xff]
    %v76 = vld [vmem:[#allocation9 + $0x78] sm:$0xff]
    %v77 = vld [vmem:[#allocation9 + $0x80] sm:$0xff]
    %v78 = vld [vmem:[#allocation9 + $0x88] sm:$0xff]
    %v79 = vld [vmem:[#allocation9 + $0x90] sm:$0xff]
    %v80 = vld [vmem:[#allocation9 + $0x98] sm:$0xff]
    %v81 = vld [vmem:[#allocation9 + $0xa0] sm:$0xff]
    %v82 = vld [vmem:[#allocation9 + $0xa8] sm:$0xff]
    %v83 = vld [vmem:[#allocation9 + $0xb0] sm:$0xff]
    %v84 = vld [vmem:[#allocation9 + $0xb8] sm:$0xff]
    %v85 = vld [vmem:[#allocation9 + $0xc0] sm:$0xff]
    %v86 = vld [vmem:[#allocation9 + $0xc8] sm:$0xff]
    %v87 = vld [vmem:[#allocation9 + $0xd0] sm:$0xff]
    %v88 = vld [vmem:[#allocation9 + $0xd8] sm:$0xff]
    %v89 = vld [vmem:[#allocation9 + $0xe0] sm:$0xff]
    %v90 = vld [vmem:[#allocation9 + $0xe8] sm:$0xff]
    %v91 = vld [vmem:[#allocation9 + $0xf0] sm:$0xff]
    %v92 = vld [vmem:[#allocation9 + $0xf8] sm:$0xff]
    %v93 = vld [vmem:[#allocation9 + $0x100] sm:$0xff]
    %v94 = vld [vmem:[#allocation9 + $0x108] sm:$0xff]
    %v95 = vld [vmem:[#allocation9 + $0x110] sm:$0xff]
    %v96 = vld [vmem:[#allocation9 + $0x118] sm:$0xff]
    %v97 = vld [vmem:[#allocation9 + $0x120] sm:$0xff]
    %v98 = vld [vmem:[#allocation9 + $0x128] sm:$0xff]
    %v99 = vld [vmem:[#allocation9 + $0x130] sm:$0xff]
    %v100 = vld [vmem:[#allocation9 + $0x138] sm:$0xff]
    %v101 = vld [vmem:[#allocation9 + $0x140] sm:$0xff]
    %v102 = vld [vmem:[#allocation9 + $0x148] sm:$0xff]
    %v103 = vld [vmem:[#allocation9 + $0x150] sm:$0xff]
    %v104 = vld [vmem:[#allocation9 + $0x158] sm:$0xff]
    %v105 = vld [vmem:[#allocation9 + $0x160] sm:$0xff]
    %v106 = vld [vmem:[#allocation9 + $0x168] sm:$0xff]
    %v107 = vld [vmem:[#allocation9 + $0x170] sm:$0xff]
    %v108 = vld [vmem:[#allocation9 + $0x178] sm:$0xff]
    %v109 = vld [vmem:[#allocation9 + $0x180] sm:$0xff]
    %v110 = vld [vmem:[#allocation9 + $0x188] sm:$0xff]
    %v111 = vld [vmem:[#allocation9 + $0x190] sm:$0xff]
    %v112 = vld [vmem:[#allocation9 + $0x198] sm:$0xff]
    %v113 = vld [vmem:[#allocation9 + $0x1a0] sm:$0xff]
    %v114 = vld [vmem:[#allocation9 + $0x1a8] sm:$0xff]
    %v115 = vld [vmem:[#allocation9 + $0x1b0] sm:$0xff]
    %v116 = vld [vmem:[#allocation9 + $0x1b8] sm:$0xff]
    %v117 = vld [vmem:[#allocation9 + $0x1c0] sm:$0xff]
    %v118 = vld [vmem:[#allocation9 + $0x1c8] sm:$0xff]
    %v119 = vld [vmem:[#allocation9 + $0x1d0] sm:$0xff]
    %v120 = vld [vmem:[#allocation9 + $0x1d8] sm:$0xff]
    %v121 = vld [vmem:[#allocation9 + $0x1e0] sm:$0xff]
    %v122 = vld [vmem:[#allocation9 + $0x1e8] sm:$0xff]
    %v123 = vld [vmem:[#allocation9 + $0x1f0] sm:$0xff]
    %v124 = vld [vmem:[#allocation9 + $0x1f8] sm:$0xff]
    %v125 = vld [vmem:[#allocation9 + $0x200] sm:$0xff]
    %v126 = vld [vmem:[#allocation9 + $0x208] sm:$0xff]
    %v127 = vld [vmem:[#allocation9 + $0x210] sm:$0xff]
    %v128 = vld [vmem:[#allocation9 + $0x218] sm:$0xff]
    %v129 = vld [vmem:[#allocation9 + $0x220] sm:$0xff]
    %v130 = vld [vmem:[#allocation9 + $0x228] sm:$0xff]
    %v131 = vld [vmem:[#allocation9 + $0x230] sm:$0xff]
    %v132 = vld [vmem:[#allocation9 + $0x238] sm:$0xff]
    %v133 = vld [vmem:[#allocation9 + $0x240] sm:$0xff]
    %v134 = vld [vmem:[#allocation9 + $0x248] sm:$0xff]
    %v135 = vld [vmem:[#allocation9 + $0x250] sm:$0xff]
    %v136 = vld [vmem:[#allocation9 + $0x258] sm:$0xff]
    %v137 = vld [vmem:[#allocation9 + $0x260] sm:$0xff]
    %v138 = vld [vmem:[#allocation9 + $0x268] sm:$0xff]
    %v139 = vld [vmem:[#allocation9 + $0x270] sm:$0xff]
    %v140 = vld [vmem:[#allocation9 + $0x278] sm:$0xff]
    %v141 = vld [vmem:[#allocation9 + $0x280] sm:$0xff]
    %v142 = vld [vmem:[#allocation9 + $0x288] sm:$0xff]
    %v143 = vld [vmem:[#allocation9 + $0x290] sm:$0xff]
    %v144 = vld [vmem:[#allocation9 + $0x298] sm:$0xff]
    %v145 = vld [vmem:[#allocation9 + $0x2a0] sm:$0xff]
    %v146 = vld [vmem:[#allocation9 + $0x2a8] sm:$0xff]
    %v147 = vld [vmem:[#allocation9 + $0x2b0] sm:$0xff]
    %v148 = vld [vmem:[#allocation9 + $0x2b8] sm:$0xff]
    %v149 = vld [vmem:[#allocation9 + $0x2c0] sm:$0xff]
    %v150 = vld [vmem:[#allocation9 + $0x2c8] sm:$0xff]
    %v151 = vld [vmem:[#allocation9 + $0x2d0] sm:$0xff]
    %v152 = vld [vmem:[#allocation9 + $0x2d8] sm:$0xff]
    %v153 = vld [vmem:[#allocation9 + $0x2e0] sm:$0xff]
    %v154 = vld [vmem:[#allocation9 + $0x2e8] sm:$0xff]
    %v155 = vld [vmem:[#allocation9 + $0x2f0] sm:$0xff]
    %v156 = vld [vmem:[#allocation9 + $0x2f8] sm:$0xff]
    %v157 = vld [vmem:[#allocation9 + $0x300] sm:$0xff]
    %v158 = vld [vmem:[#allocation9 + $0x308] sm:$0xff]
    %v159 = vld [vmem:[#allocation9 + $0x310] sm:$0xff]
    %v160 = vld [vmem:[#allocation9 + $0x318] sm:$0xff]
    %v161 = vld [vmem:[#allocation9 + $0x320] sm:$0xff]
    %v162 = vld [vmem:[#allocation9 + $0x328] sm:$0xff]
    %v163 = vld [vmem:[#allocation9 + $0x330] sm:$0xff]
    %v164 = vld [vmem:[#allocation9 + $0x338] sm:$0xff]
    %v165 = vld [vmem:[#allocation9 + $0x340] sm:$0xff]
    %v166 = vld [vmem:[#allocation9 + $0x348] sm:$0xff]
    %v167 = vld [vmem:[#allocation9 + $0x350] sm:$0xff]
    %v168 = vld [vmem:[#allocation9 + $0x358] sm:$0xff]
    %v169 = vld [vmem:[#allocation9 + $0x360] sm:$0xff]
    %v170 = vld [vmem:[#allocation9 + $0x368] sm:$0xff]
    %v171 = vld [vmem:[#allocation9 + $0x370] sm:$0xff]
    %v172 = vld [vmem:[#allocation9 + $0x378] sm:$0xff]
    %v173 = vld [vmem:[#allocation9 + $0x380] sm:$0xff]
    %v174 = vld [vmem:[#allocation9 + $0x388] sm:$0xff]
    %v175 = vld [vmem:[#allocation9 + $0x390] sm:$0xff]
    %v176 = vld [vmem:[#allocation9 + $0x398] sm:$0xff]
    %v177 = vld [vmem:[#allocation9 + $0x3a0] sm:$0xff]
    %v178 = vld [vmem:[#allocation9 + $0x3a8] sm:$0xff]
    %v179 = vld [vmem:[#allocation9 + $0x3b0] sm:$0xff]
    %v180 = vld [vmem:[#allocation9 + $0x3b8] sm:$0xff]
    %v181 = vld [vmem:[#allocation9 + $0x3c0] sm:$0xff]
    %v182 = vld [vmem:[#allocation9 + $0x3c8] sm:$0xff]
    %v183 = vld [vmem:[#allocation9 + $0x3d0] sm:$0xff]
    %v184 = vld [vmem:[#allocation9 + $0x3d8] sm:$0xff]
    %v185 = vld [vmem:[#allocation9 + $0x3e0] sm:$0xff]
    %v186 = vld [vmem:[#allocation9 + $0x3e8] sm:$0xff]
    %v187 = vld [vmem:[#allocation9 + $0x3f0] sm:$0xff]
    %v188 = vld [vmem:[#allocation9 + $0x3f8] sm:$0xff]
    %v189 = vld [vmem:[%s2] sm:$0xff]
    %v191 = vlaneseq
    %v192 = vshrl.u32 %v191, 7
    %v193 = vsub.s32 0, %v192
    %v194 = vrot.slane %v189, %v193
    %v195 = vlaneseq
    %v196 = vshrl.u32 %v195, 7
    %v197 = vsub.s32 1, %v196
    %v198 = vrot.slane %v189, %v197
    %v199 = vlaneseq
    %v200 = vshrl.u32 %v199, 7
    %v201 = vsub.s32 2, %v200
    %v202 = vrot.slane %v189, %v201
    %v203 = vlaneseq
    %v204 = vshrl.u32 %v203, 7
    %v205 = vsub.s32 3, %v204
    %v206 = vrot.slane %v189, %v205
    %v207 = vlaneseq
    %v208 = vshrl.u32 %v207, 7
    %v209 = vsub.s32 4, %v208
    %v210 = vrot.slane %v189, %v209
    %v211 = vlaneseq
    %v212 = vshrl.u32 %v211, 7
    %v213 = vsub.s32 5, %v212
    %v214 = vrot.slane %v189, %v213
    %v215 = vlaneseq
    %v216 = vshrl.u32 %v215, 7
    %v217 = vsub.s32 6, %v216
    %v218 = vrot.slane %v189, %v217
    %v219 = vlaneseq
    %v220 = vshrl.u32 %v219, 7
    %v221 = vsub.s32 7, %v220
    %v222 = vrot.slane %v189, %v221
    %231 = vmatprep.subr.mxu0 %v62
    %232 = vmatpush1.msra.mxu0 %v61
    %233 = vmatprep.subr.mxu0 %v70
    %234 = vmatpush1.msra.mxu0 %v69
    %235 = vmatprep.subr.mxu0 %v78
    %236 = vmatpush1.msra.mxu0 %v77
    %237 = vmatprep.subr.mxu0 %v86
    %238 = vmatpush1.msra.mxu0 %v85
    %239 = vmatprep.subr.mxu0 %v94
    %240 = vmatpush1.msra.mxu0 %v93
    %241 = vmatprep.subr.mxu0 %v102
    %242 = vmatpush1.msra.mxu0 %v101
    %243 = vmatprep.subr.mxu0 %v110
    %244 = vmatpush1.msra.mxu0 %v109
    %245 = vmatprep.subr.mxu0 %v118
    %246 = vmatpush1.msra.mxu0 %v117
    %247 = vmatprep.subr.mxu0 %v126
    %248 = vmatpush1.msra.mxu0 %v125
    %249 = vmatprep.subr.mxu0 %v134
    %250 = vmatpush1.msra.mxu0 %v133
    %251 = vmatprep.subr.mxu0 %v142
    %252 = vmatpush1.msra.mxu0 %v141
    %253 = vmatprep.subr.mxu0 %v150
    %254 = vmatpush1.msra.mxu0 %v149
    %255 = vmatprep.subr.mxu0 %v158
    %256 = vmatpush1.msra.mxu0 %v157
    %257 = vmatprep.subr.mxu0 %v166
    %258 = vmatpush1.msra.mxu0 %v165
    %259 = vmatprep.subr.mxu0 %v174
    %260 = vmatpush1.msra.mxu0 %v173
    %261 = vmatprep.subr.mxu0 %v182
    %262 = vmatpush1.msra.mxu0 %v181
    %263 = vmatprep.subr.mxu0 0.0
    %264 = vmatpush1.msra.mxu0 0.0
    %265 = vmatprep.subr.mxu0 0.0
    %266 = vmatpush1.msra.mxu0 0.0
    %267 = vmatprep.subr.mxu0 0.0
    %268 = vmatpush1.msra.mxu0 0.0
    %269 = vmatprep.subr.mxu0 0.0
    %270 = vmatpush1.msra.mxu0 0.0
    %271 = vmatprep.subr.mxu0 0.0
    %272 = vmatpush1.msra.mxu0 0.0
    %273 = vmatprep.subr.mxu0 0.0
    %274 = vmatpush1.msra.mxu0 0.0
    %275 = vmatprep.subr.mxu0 0.0
    %276 = vmatpush1.msra.mxu0 0.0
    %277 = vmatprep.subr.mxu0 0.0
    %278 = vmatpush1.msra.mxu0 0.0
    %279 = vmatprep.subr.mxu0 0.0
    %280 = vmatpush1.msra.mxu0 0.0
    %281 = vmatprep.subr.mxu0 0.0
    %282 = vmatpush1.msra.mxu0 0.0
    %283 = vmatprep.subr.mxu0 0.0
    %284 = vmatpush1.msra.mxu0 0.0
    %285 = vmatprep.subr.mxu0 0.0
    %286 = vmatpush1.msra.mxu0 0.0
    %287 = vmatprep.subr.mxu0 0.0
    %288 = vmatpush1.msra.mxu0 0.0
    %289 = vmatprep.subr.mxu0 0.0
    %290 = vmatpush1.msra.mxu0 0.0
    %291 = vmatprep.subr.mxu0 0.0
    %292 = vmatpush1.msra.mxu0 0.0
    %293 = vmatprep.subr.mxu0 0.0
    %294 = vmatpush1.msra.mxu0 0.0
    %295 = vmatprep.mubr.f32.mxu0 0.0
    %296 = vmatmul.mubr.f32.gmra.mrb[0].mxu0 %v60
    %v297 = vpop.f32.mrb[0].mxu0
    %v298 = vadd.f32 %v194, %v297
    %v299 = vpop.f32.mrb[0].mxu0
    %v300 = vadd.f32 %v198, %v299
    %301 = vdwg.mxu0
    %302 = vmatprep.subr.mxu0 %v64
    %303 = vmatpush1.msra.mxu0 %v63
    %304 = vmatprep.subr.mxu0 %v72
    %305 = vmatpush1.msra.mxu0 %v71
    %306 = vmatprep.subr.mxu0 %v80
    %307 = vmatpush1.msra.mxu0 %v79
    %308 = vmatprep.subr.mxu0 %v88
    %309 = vmatpush1.msra.mxu0 %v87
    %310 = vmatprep.subr.mxu0 %v96
    %311 = vmatpush1.msra.mxu0 %v95
    %312 = vmatprep.subr.mxu0 %v104
    %313 = vmatpush1.msra.mxu0 %v103
    %314 = vmatprep.subr.mxu0 %v112
    %315 = vmatpush1.msra.mxu0 %v111
    %316 = vmatprep.subr.mxu0 %v120
    %317 = vmatpush1.msra.mxu0 %v119
    %318 = vmatprep.subr.mxu0 %v128
    %319 = vmatpush1.msra.mxu0 %v127
    %320 = vmatprep.subr.mxu0 %v136
    %321 = vmatpush1.msra.mxu0 %v135
    %322 = vmatprep.subr.mxu0 %v144
    %323 = vmatpush1.msra.mxu0 %v143
    %324 = vmatprep.subr.mxu0 %v152
    %325 = vmatpush1.msra.mxu0 %v151
    %326 = vmatprep.subr.mxu0 %v160
    %327 = vmatpush1.msra.mxu0 %v159
    %328 = vmatprep.subr.mxu0 %v168
    %329 = vmatpush1.msra.mxu0 %v167
    %330 = vmatprep.subr.mxu0 %v176
    %331 = vmatpush1.msra.mxu0 %v175
    %332 = vmatprep.subr.mxu0 %v184
    %333 = vmatpush1.msra.mxu0 %v183
    %334 = vmatprep.subr.mxu0 0.0
    %335 = vmatpush1.msra.mxu0 0.0
    %336 = vmatprep.subr.mxu0 0.0
    %337 = vmatpush1.msra.mxu0 0.0
    %338 = vmatprep.subr.mxu0 0.0
    %339 = vmatpush1.msra.mxu0 0.0
    %340 = vmatprep.subr.mxu0 0.0
    %341 = vmatpush1.msra.mxu0 0.0
    %342 = vmatprep.subr.mxu0 0.0
    %343 = vmatpush1.msra.mxu0 0.0
    %344 = vmatprep.subr.mxu0 0.0
    %345 = vmatpush1.msra.mxu0 0.0
    %346 = vmatprep.subr.mxu0 0.0
    %347 = vmatpush1.msra.mxu0 0.0
    %348 = vmatprep.subr.mxu0 0.0
    %349 = vmatpush1.msra.mxu0 0.0
    %350 = vmatprep.subr.mxu0 0.0
    %351 = vmatpush1.msra.mxu0 0.0
    %352 = vmatprep.subr.mxu0 0.0
    %353 = vmatpush1.msra.mxu0 0.0
    %354 = vmatprep.subr.mxu0 0.0
    %355 = vmatpush1.msra.mxu0 0.0
    %356 = vmatprep.subr.mxu0 0.0
    %357 = vmatpush1.msra.mxu0 0.0
    %358 = vmatprep.subr.mxu0 0.0
    %359 = vmatpush1.msra.mxu0 0.0
    %360 = vmatprep.subr.mxu0 0.0
    %361 = vmatpush1.msra.mxu0 0.0
    %362 = vmatprep.subr.mxu0 0.0
    %363 = vmatpush1.msra.mxu0 0.0
    %364 = vmatprep.subr.mxu0 0.0
    %365 = vmatpush1.msra.mxu0 0.0
    %366 = vmatprep.mubr.f32.mxu0 0.0
    %367 = vmatmul.mubr.f32.gmra.mrb[0].mxu0 %v60
    %v368 = vpop.f32.mrb[0].mxu0
    %v369 = vadd.f32 %v202, %v368
    %v370 = vpop.f32.mrb[0].mxu0
    %v371 = vadd.f32 %v206, %v370
    %372 = vdwg.mxu0
    %373 = vmatprep.subr.mxu0 %v66
    %374 = vmatpush1.msra.mxu0 %v65
    %375 = vmatprep.subr.mxu0 %v74
    %376 = vmatpush1.msra.mxu0 %v73
    %377 = vmatprep.subr.mxu0 %v82
    %378 = vmatpush1.msra.mxu0 %v81
    %379 = vmatprep.subr.mxu0 %v90
    %380 = vmatpush1.msra.mxu0 %v89
    %381 = vmatprep.subr.mxu0 %v98
    %382 = vmatpush1.msra.mxu0 %v97
    %383 = vmatprep.subr.mxu0 %v106
    %384 = vmatpush1.msra.mxu0 %v105
    %385 = vmatprep.subr.mxu0 %v114
    %386 = vmatpush1.msra.mxu0 %v113
    %387 = vmatprep.subr.mxu0 %v122
    %388 = vmatpush1.msra.mxu0 %v121
    %389 = vmatprep.subr.mxu0 %v130
    %390 = vmatpush1.msra.mxu0 %v129
    %391 = vmatprep.subr.mxu0 %v138
    %392 = vmatpush1.msra.mxu0 %v137
    %393 = vmatprep.subr.mxu0 %v146
    %394 = vmatpush1.msra.mxu0 %v145
    %395 = vmatprep.subr.mxu0 %v154
    %396 = vmatpush1.msra.mxu0 %v153
    %397 = vmatprep.subr.mxu0 %v162
    %398 = vmatpush1.msra.mxu0 %v161
    %399 = vmatprep.subr.mxu0 %v170
    %400 = vmatpush1.msra.mxu0 %v169
    %401 = vmatprep.subr.mxu0 %v178
    %402 = vmatpush1.msra.mxu0 %v177
    %403 = vmatprep.subr.mxu0 %v186
    %404 = vmatpush1.msra.mxu0 %v185
    %405 = vmatprep.subr.mxu0 0.0
    %406 = vmatpush1.msra.mxu0 0.0
    %407 = vmatprep.subr.mxu0 0.0
    %408 = vmatpush1.msra.mxu0 0.0
    %409 = vmatprep.subr.mxu0 0.0
    %410 = vmatpush1.msra.mxu0 0.0
    %411 = vmatprep.subr.mxu0 0.0
    %412 = vmatpush1.msra.mxu0 0.0
    %413 = vmatprep.subr.mxu0 0.0
    %414 = vmatpush1.msra.mxu0 0.0
    %415 = vmatprep.subr.mxu0 0.0
    %416 = vmatpush1.msra.mxu0 0.0
    %417 = vmatprep.subr.mxu0 0.0
    %418 = vmatpush1.msra.mxu0 0.0
    %419 = vmatprep.subr.mxu0 0.0
    %420 = vmatpush1.msra.mxu0 0.0
    %421 = vmatprep.subr.mxu0 0.0
    %422 = vmatpush1.msra.mxu0 0.0
    %423 = vmatprep.subr.mxu0 0.0
    %424 = vmatpush1.msra.mxu0 0.0
    %425 = vmatprep.subr.mxu0 0.0
    %426 = vmatpush1.msra.mxu0 0.0
    %427 = vmatprep.subr.mxu0 0.0
    %428 = vmatpush1.msra.mxu0 0.0
    %429 = vmatprep.subr.mxu0 0.0
    %430 = vmatpush1.msra.mxu0 0.0
    %431 = vmatprep.subr.mxu0 0.0
    %432 = vmatpush1.msra.mxu0 0.0
    %433 = vmatprep.subr.mxu0 0.0
    %434 = vmatpush1.msra.mxu0 0.0
    %435 = vmatprep.subr.mxu0 0.0
    %436 = vmatpush1.msra.mxu0 0.0
    %437 = vmatprep.mubr.f32.mxu0 0.0
    %438 = vmatmul.mubr.f32.gmra.mrb[0].mxu0 %v60
    %v439 = vpop.f32.mrb[0].mxu0
    %v440 = vadd.f32 %v210, %v439
    %v441 = vpop.f32.mrb[0].mxu0
    %v442 = vadd.f32 %v214, %v441
    %443 = vdwg.mxu0
    %444 = vmatprep.subr.mxu0 %v68
    %445 = vmatpush1.msra.mxu0 %v67
    %446 = vmatprep.subr.mxu0 %v76
    %447 = vmatpush1.msra.mxu0 %v75
    %448 = vmatprep.subr.mxu0 %v84
    %449 = vmatpush1.msra.mxu0 %v83
    %450 = vmatprep.subr.mxu0 %v92
    %451 = vmatpush1.msra.mxu0 %v91
    %452 = vmatprep.subr.mxu0 %v100
    %453 = vmatpush1.msra.mxu0 %v99
    %454 = vmatprep.subr.mxu0 %v108
    %455 = vmatpush1.msra.mxu0 %v107
    %456 = vmatprep.subr.mxu0 %v116
    %457 = vmatpush1.msra.mxu0 %v115
    %458 = vmatprep.subr.mxu0 %v124
    %459 = vmatpush1.msra.mxu0 %v123
    %460 = vmatprep.subr.mxu0 %v132
    %461 = vmatpush1.msra.mxu0 %v131
    %462 = vmatprep.subr.mxu0 %v140
    %463 = vmatpush1.msra.mxu0 %v139
    %464 = vmatprep.subr.mxu0 %v148
    %465 = vmatpush1.msra.mxu0 %v147
    %466 = vmatprep.subr.mxu0 %v156
    %467 = vmatpush1.msra.mxu0 %v155
    %468 = vmatprep.subr.mxu0 %v164
    %469 = vmatpush1.msra.mxu0 %v163
    %470 = vmatprep.subr.mxu0 %v172
    %471 = vmatpush1.msra.mxu0 %v171
    %472 = vmatprep.subr.mxu0 %v180
    %473 = vmatpush1.msra.mxu0 %v179
    %474 = vmatprep.subr.mxu0 %v188
    %475 = vmatpush1.msra.mxu0 %v187
    %476 = vmatprep.subr.mxu0 0.0
    %477 = vmatpush1.msra.mxu0 0.0
    %478 = vmatprep.subr.mxu0 0.0
    %479 = vmatpush1.msra.mxu0 0.0
    %480 = vmatprep.subr.mxu0 0.0
    %481 = vmatpush1.msra.mxu0 0.0
    %482 = vmatprep.subr.mxu0 0.0
    %483 = vmatpush1.msra.mxu0 0.0
    %484 = vmatprep.subr.mxu0 0.0
    %485 = vmatpush1.msra.mxu0 0.0
    %486 = vmatprep.subr.mxu0 0.0
    %487 = vmatpush1.msra.mxu0 0.0
    %488 = vmatprep.subr.mxu0 0.0
    %489 = vmatpush1.msra.mxu0 0.0
    %490 = vmatprep.subr.mxu0 0.0
    %491 = vmatpush1.msra.mxu0 0.0
    %492 = vmatprep.subr.mxu0 0.0
    %493 = vmatpush1.msra.mxu0 0.0
    %494 = vmatprep.subr.mxu0 0.0
    %495 = vmatpush1.msra.mxu0 0.0
    %496 = vmatprep.subr.mxu0 0.0
    %497 = vmatpush1.msra.mxu0 0.0
    %498 = vmatprep.subr.mxu0 0.0
    %499 = vmatpush1.msra.mxu0 0.0
    %500 = vmatprep.subr.mxu0 0.0
    %501 = vmatpush1.msra.mxu0 0.0
    %502 = vmatprep.subr.mxu0 0.0
    %503 = vmatpush1.msra.mxu0 0.0
    %504 = vmatprep.subr.mxu0 0.0
    %505 = vmatpush1.msra.mxu0 0.0
    %506 = vmatprep.subr.mxu0 0.0
    %507 = vmatpush1.msra.mxu0 0.0
    %508 = vmatprep.mubr.f32.mxu0 0.0
    %509 = vmatmul.mubr.f32.gmra.mrb[0].mxu0 %v60
    %v510 = vpop.f32.mrb[0].mxu0
    %v511 = vadd.f32 %v218, %v510
    %v512 = vpop.f32.mrb[0].mxu0
    %v513 = vadd.f32 %v222, %v512
    %514 = vdwg.mxu0
    %515 = vst [vmem:[#allocation3] sm:$0xff] %v298
    %516 = vst [vmem:[#allocation3 + $0x8] sm:$0xff] %v300
    %517 = vst [vmem:[#allocation3 + $0x10] sm:$0xff] %v369
    %518 = vst [vmem:[#allocation3 + $0x18] sm:$0xff] %v371
    %519 = vst [vmem:[#allocation3 + $0x20] sm:$0xff] %v440
    %520 = vst [vmem:[#allocation3 + $0x28] sm:$0xff] %v442
    %521 = vst [vmem:[#allocation3 + $0x30] sm:$0xff] %v511
    %522 = vst [vmem:[#allocation3 + $0x38] sm:$0xff] %v513
    %s523 = smul.u32 8, 32
    %s524 = smul.u32 %s523, 8
    %s525 = sshll.u32 %s524, 4
    %526 = dma.done [#allocation5], %s525
    %v527 = vld [vmem:[#allocation3] ss:$8 sm:$0x3]
    %v528 = vld [vmem:[#allocation2] sm:$0xff]
    %v529 = vld [vmem:[#allocation2 + $0x8] sm:$0xff]
    %v530 = vld [vmem:[#allocation2 + $0x40] sm:$0xff]
    %v531 = vld [vmem:[#allocation2 + $0x48] sm:$0xff]
    %v532 = vld [vmem:[#allocation2 + $0x80] sm:$0xff]
    %v533 = vld [vmem:[#allocation2 + $0x88] sm:$0xff]
    %v534 = vld [vmem:[#allocation2 + $0xc0] sm:$0xff]
    %v535 = vld [vmem:[#allocation2 + $0xc8] sm:$0xff]
    %v536 = vld [vmem:[#allocation2 + $0x100] sm:$0xff]
    %v537 = vld [vmem:[#allocation2 + $0x108] sm:$0xff]
    %v538 = vld [vmem:[#allocation2 + $0x140] sm:$0xff]
    %v539 = vld [vmem:[#allocation2 + $0x148] sm:$0xff]
    %v540 = vld [vmem:[#allocation2 + $0x180] sm:$0xff]
    %v541 = vld [vmem:[#allocation2 + $0x188] sm:$0xff]
    %v542 = vld [vmem:[#allocation2 + $0x1c0] sm:$0xff]
    %v543 = vld [vmem:[#allocation2 + $0x1c8] sm:$0xff]
    %v544 = vld [vmem:[#allocation2 + $0x200] sm:$0xff]
    %v545 = vld [vmem:[#allocation2 + $0x208] sm:$0xff]
    %v546 = vld [vmem:[#allocation2 + $0x240] sm:$0xff]
    %v547 = vld [vmem:[#allocation2 + $0x248] sm:$0xff]
    %v548 = vld [vmem:[#allocation2 + $0x280] sm:$0xff]
    %v549 = vld [vmem:[#allocation2 + $0x288] sm:$0xff]
    %v550 = vld [vmem:[#allocation2 + $0x2c0] sm:$0xff]
    %v551 = vld [vmem:[#allocation2 + $0x2c8] sm:$0xff]
    %v552 = vld [vmem:[#allocation2 + $0x300] sm:$0xff]
    %v553 = vld [vmem:[#allocation2 + $0x308] sm:$0xff]
    %v554 = vld [vmem:[#allocation2 + $0x340] sm:$0xff]
    %v555 = vld [vmem:[#allocation2 + $0x348] sm:$0xff]
    %v556 = vld [vmem:[#allocation2 + $0x380] sm:$0xff]
    %v557 = vld [vmem:[#allocation2 + $0x388] sm:$0xff]
    %v558 = vld [vmem:[#allocation2 + $0x3c0] sm:$0xff]
    %v559 = vld [vmem:[#allocation2 + $0x3c8] sm:$0xff]
    %v560 = vld [vmem:[#allocation2 + $0x400] sm:$0xff]
    %v561 = vld [vmem:[#allocation2 + $0x408] sm:$0xff]
    %v562 = vld [vmem:[#allocation2 + $0x440] sm:$0xff]
    %v563 = vld [vmem:[#allocation2 + $0x448] sm:$0xff]
    %v564 = vld [vmem:[#allocation2 + $0x480] sm:$0xff]
    %v565 = vld [vmem:[#allocation2 + $0x488] sm:$0xff]
    %v566 = vld [vmem:[#allocation2 + $0x4c0] sm:$0xff]
    %v567 = vld [vmem:[#allocation2 + $0x4c8] sm:$0xff]
    %v568 = vld [vmem:[#allocation2 + $0x500] sm:$0xff]
    %v569 = vld [vmem:[#allocation2 + $0x508] sm:$0xff]
    %v570 = vld [vmem:[#allocation2 + $0x540] sm:$0xff]
    %v571 = vld [vmem:[#allocation2 + $0x548] sm:$0xff]
    %v572 = vld [vmem:[#allocation2 + $0x580] sm:$0xff]
    %v573 = vld [vmem:[#allocation2 + $0x588] sm:$0xff]
    %v574 = vld [vmem:[#allocation2 + $0x5c0] sm:$0xff]
    %v575 = vld [vmem:[#allocation2 + $0x5c8] sm:$0xff]
    %v576 = vld [vmem:[#allocation2 + $0x600] sm:$0xff]
    %v577 = vld [vmem:[#allocation2 + $0x608] sm:$0xff]
    %v578 = vld [vmem:[#allocation2 + $0x640] sm:$0xff]
    %v579 = vld [vmem:[#allocation2 + $0x648] sm:$0xff]
    %v580 = vld [vmem:[#allocation2 + $0x680] sm:$0xff]
    %v581 = vld [vmem:[#allocation2 + $0x688] sm:$0xff]
    %v582 = vld [vmem:[#allocation2 + $0x6c0] sm:$0xff]
    %v583 = vld [vmem:[#allocation2 + $0x6c8] sm:$0xff]
    %v584 = vld [vmem:[#allocation2 + $0x700] sm:$0xff]
    %v585 = vld [vmem:[#allocation2 + $0x708] sm:$0xff]
    %v586 = vld [vmem:[#allocation2 + $0x740] sm:$0xff]
    %v587 = vld [vmem:[#allocation2 + $0x748] sm:$0xff]
    %v588 = vld [vmem:[#allocation2 + $0x780] sm:$0xff]
    %v589 = vld [vmem:[#allocation2 + $0x788] sm:$0xff]
    %v590 = vld [vmem:[#allocation2 + $0x7c0] sm:$0xff]
    %v591 = vld [vmem:[#allocation2 + $0x7c8] sm:$0xff]
    %592 = vmatprep.subr.mxu0 %v529
    %593 = vmatpush1.msra.mxu0 %v528
    %594 = vmatprep.subr.mxu0 %v531
    %595 = vmatpush1.msra.mxu0 %v530
    %596 = vmatprep.subr.mxu0 %v533
    %597 = vmatpush1.msra.mxu0 %v532
    %598 = vmatprep.subr.mxu0 %v535
    %599 = vmatpush1.msra.mxu0 %v534
    %600 = vmatprep.subr.mxu0 %v537
    %601 = vmatpush1.msra.mxu0 %v536
    %602 = vmatprep.subr.mxu0 %v539
    %603 = vmatpush1.msra.mxu0 %v538
    %604 = vmatprep.subr.mxu0 %v541
    %605 = vmatpush1.msra.mxu0 %v540
    %606 = vmatprep.subr.mxu0 %v543
    %607 = vmatpush1.msra.mxu0 %v542
    %608 = vmatprep.subr.mxu0 %v545
    %609 = vmatpush1.msra.mxu0 %v544
    %610 = vmatprep.subr.mxu0 %v547
    %611 = vmatpush1.msra.mxu0 %v546
    %612 = vmatprep.subr.mxu0 %v549
    %613 = vmatpush1.msra.mxu0 %v548
    %614 = vmatprep.subr.mxu0 %v551
    %615 = vmatpush1.msra.mxu0 %v550
    %616 = vmatprep.subr.mxu0 %v553
    %617 = vmatpush1.msra.mxu0 %v552
    %618 = vmatprep.subr.mxu0 %v555
    %619 = vmatpush1.msra.mxu0 %v554
    %620 = vmatprep.subr.mxu0 %v557
    %621 = vmatpush1.msra.mxu0 %v556
    %622 = vmatprep.subr.mxu0 %v559
    %623 = vmatpush1.msra.mxu0 %v558
    %624 = vmatprep.subr.mxu0 %v561
    %625 = vmatpush1.msra.mxu0 %v560
    %626 = vmatprep.subr.mxu0 %v563
    %627 = vmatpush1.msra.mxu0 %v562
    %628 = vmatprep.subr.mxu0 %v565
    %629 = vmatpush1.msra.mxu0 %v564
    %630 = vmatprep.subr.mxu0 %v567
    %631 = vmatpush1.msra.mxu0 %v566
    %632 = vmatprep.subr.mxu0 %v569
    %633 = vmatpush1.msra.mxu0 %v568
    %634 = vmatprep.subr.mxu0 %v571
    %635 = vmatpush1.msra.mxu0 %v570
    %636 = vmatprep.subr.mxu0 %v573
    %637 = vmatpush1.msra.mxu0 %v572
    %638 = vmatprep.subr.mxu0 %v575
    %639 = vmatpush1.msra.mxu0 %v574
    %640 = vmatprep.subr.mxu0 %v577
    %641 = vmatpush1.msra.mxu0 %v576
    %642 = vmatprep.subr.mxu0 %v579
    %643 = vmatpush1.msra.mxu0 %v578
    %644 = vmatprep.subr.mxu0 %v581
    %645 = vmatpush1.msra.mxu0 %v580
    %646 = vmatprep.subr.mxu0 %v583
    %647 = vmatpush1.msra.mxu0 %v582
    %648 = vmatprep.subr.mxu0 %v585
    %649 = vmatpush1.msra.mxu0 %v584
    %650 = vmatprep.subr.mxu0 %v587
    %651 = vmatpush1.msra.mxu0 %v586
    %652 = vmatprep.subr.mxu0 %v589
    %653 = vmatpush1.msra.mxu0 %v588
    %654 = vmatprep.subr.mxu0 %v591
    %655 = vmatpush1.msra.mxu0 %v590
    %656 = vmatprep.mubr.f32.mxu0 0.0
    %657 = vmatmul.mubr.f32.gmra.mrb[0].mxu0 0.0
    %v658 = vpop.f32.mrb[0].mxu0
    %v659 = vadd.f32 0.0, %v658
    %v660 = vpop.f32.mrb[0].mxu0
    %v661 = vadd.f32 0.0, %v660
    %662 = vdwg.mxu0
    %v665 = vcombine.low %v659, %v661
    %v667 = vunpack.c.l.s4 1966171168
    %v668 = vunpack.c.0.s8 %v667
    %v669 = vlaneseq
    %v670 = vshrl.u32 %v669, 7
    %v671 = vsub.s32 %v668, %v670
    %v672 = vrot.slane %v665, %v671
    %v674 = vunpack.c.l.s4 1966171168
    %v675 = vunpack.c.0.s8 %v674
    %v676 = vlaneseq
    %v677 = vshrl.u32 %v676, 7
    %v678 = vsub.s32 %v675, %v677
    %v679 = vrot.slane %v672, %v678
    %v681 = vadd.f32 %v527, %v679
    %s682 = scalar_lea.vmem [#allocation3], 16
    %v683 = vld [vmem:[%s682] ss:$8 sm:$0x3]
    %v684 = vld [vmem:[#allocation2 + $0x10] sm:$0xff]
    %v685 = vld [vmem:[#allocation2 + $0x18] sm:$0xff]
    %v686 = vld [vmem:[#allocation2 + $0x50] sm:$0xff]
    %v687 = vld [vmem:[#allocation2 + $0x58] sm:$0xff]
    %v688 = vld [vmem:[#allocation2 + $0x90] sm:$0xff]
    %v689 = vld [vmem:[#allocation2 + $0x98] sm:$0xff]
    %v690 = vld [vmem:[#allocation2 + $0xd0] sm:$0xff]
    %v691 = vld [vmem:[#allocation2 + $0xd8] sm:$0xff]
    %v692 = vld [vmem:[#allocation2 + $0x110] sm:$0xff]
    %v693 = vld [vmem:[#allocation2 + $0x118] sm:$0xff]
    %v694 = vld [vmem:[#allocation2 + $0x150] sm:$0xff]
    %v695 = vld [vmem:[#allocation2 + $0x158] sm:$0xff]
    %v696 = vld [vmem:[#allocation2 + $0x190] sm:$0xff]
    %v697 = vld [vmem:[#allocation2 + $0x198] sm:$0xff]
    %v698 = vld [vmem:[#allocation2 + $0x1d0] sm:$0xff]
    %v699 = vld [vmem:[#allocation2 + $0x1d8] sm:$0xff]
    %v700 = vld [vmem:[#allocation2 + $0x210] sm:$0xff]
    %v701 = vld [vmem:[#allocation2 + $0x218] sm:$0xff]
    %v702 = vld [vmem:[#allocation2 + $0x250] sm:$0xff]
    %v703 = vld [vmem:[#allocation2 + $0x258] sm:$0xff]
    %v704 = vld [vmem:[#allocation2 + $0x290] sm:$0xff]
    %v705 = vld [vmem:[#allocation2 + $0x298] sm:$0xff]
    %v706 = vld [vmem:[#allocation2 + $0x2d0] sm:$0xff]
    %v707 = vld [vmem:[#allocation2 + $0x2d8] sm:$0xff]
    %v708 = vld [vmem:[#allocation2 + $0x310] sm:$0xff]
    %v709 = vld [vmem:[#allocation2 + $0x318] sm:$0xff]
    %v710 = vld [vmem:[#allocation2 + $0x350] sm:$0xff]
    %v711 = vld [vmem:[#allocation2 + $0x358] sm:$0xff]
    %v712 = vld [vmem:[#allocation2 + $0x390] sm:$0xff]
    %v713 = vld [vmem:[#allocation2 + $0x398] sm:$0xff]
    %v714 = vld [vmem:[#allocation2 + $0x3d0] sm:$0xff]
    %v715 = vld [vmem:[#allocation2 + $0x3d8] sm:$0xff]
    %v716 = vld [vmem:[#allocation2 + $0x410] sm:$0xff]
    %v717 = vld [vmem:[#allocation2 + $0x418] sm:$0xff]
    %v718 = vld [vmem:[#allocation2 + $0x450] sm:$0xff]
    %v719 = vld [vmem:[#allocation2 + $0x458] sm:$0xff]
    %v720 = vld [vmem:[#allocation2 + $0x490] sm:$0xff]
    %v721 = vld [vmem:[#allocation2 + $0x498] sm:$0xff]
    %v722 = vld [vmem:[#allocation2 + $0x4d0] sm:$0xff]
    %v723 = vld [vmem:[#allocation2 + $0x4d8] sm:$0xff]
    %v724 = vld [vmem:[#allocation2 + $0x510] sm:$0xff]
    %v725 = vld [vmem:[#allocation2 + $0x518] sm:$0xff]
    %v726 = vld [vmem:[#allocation2 + $0x550] sm:$0xff]
    %v727 = vld [vmem:[#allocation2 + $0x558] sm:$0xff]
    %v728 = vld [vmem:[#allocation2 + $0x590] sm:$0xff]
    %v729 = vld [vmem:[#allocation2 + $0x598] sm:$0xff]
    %v730 = vld [vmem:[#allocation2 + $0x5d0] sm:$0xff]
    %v731 = vld [vmem:[#allocation2 + $0x5d8] sm:$0xff]
    %v732 = vld [vmem:[#allocation2 + $0x610] sm:$0xff]
    %v733 = vld [vmem:[#allocation2 + $0x618] sm:$0xff]
    %v734 = vld [vmem:[#allocation2 + $0x650] sm:$0xff]
    %v735 = vld [vmem:[#allocation2 + $0x658] sm:$0xff]
    %v736 = vld [vmem:[#allocation2 + $0x690] sm:$0xff]
    %v737 = vld [vmem:[#allocation2 + $0x698] sm:$0xff]
    %v738 = vld [vmem:[#allocation2 + $0x6d0] sm:$0xff]
    %v739 = vld [vmem:[#allocation2 + $0x6d8] sm:$0xff]
    %v740 = vld [vmem:[#allocation2 + $0x710] sm:$0xff]
    %v741 = vld [vmem:[#allocation2 + $0x718] sm:$0xff]
    %v742 = vld [vmem:[#allocation2 + $0x750] sm:$0xff]
    %v743 = vld [vmem:[#allocation2 + $0x758] sm:$0xff]
    %v744 = vld [vmem:[#allocation2 + $0x790] sm:$0xff]
    %v745 = vld [vmem:[#allocation2 + $0x798] sm:$0xff]
    %v746 = vld [vmem:[#allocation2 + $0x7d0] sm:$0xff]
    %v747 = vld [vmem:[#allocation2 + $0x7d8] sm:$0xff]
    %748 = vmatprep.subr.mxu0 %v685
    %749 = vmatpush1.msra.mxu0 %v684
    %750 = vmatprep.subr.mxu0 %v687
    %751 = vmatpush1.msra.mxu0 %v686
    %752 = vmatprep.subr.mxu0 %v689
    %753 = vmatpush1.msra.mxu0 %v688
    %754 = vmatprep.subr.mxu0 %v691
    %755 = vmatpush1.msra.mxu0 %v690
    %756 = vmatprep.subr.mxu0 %v693
    %757 = vmatpush1.msra.mxu0 %v692
    %758 = vmatprep.subr.mxu0 %v695
    %759 = vmatpush1.msra.mxu0 %v694
    %760 = vmatprep.subr.mxu0 %v697
    %761 = vmatpush1.msra.mxu0 %v696
    %762 = vmatprep.subr.mxu0 %v699
    %763 = vmatpush1.msra.mxu0 %v698
    %764 = vmatprep.subr.mxu0 %v701
    %765 = vmatpush1.msra.mxu0 %v700
    %766 = vmatprep.subr.mxu0 %v703
    %767 = vmatpush1.msra.mxu0 %v702
    %768 = vmatprep.subr.mxu0 %v705
    %769 = vmatpush1.msra.mxu0 %v704
    %770 = vmatprep.subr.mxu0 %v707
    %771 = vmatpush1.msra.mxu0 %v706
    %772 = vmatprep.subr.mxu0 %v709
    %773 = vmatpush1.msra.mxu0 %v708
    %774 = vmatprep.subr.mxu0 %v711
    %775 = vmatpush1.msra.mxu0 %v710
    %776 = vmatprep.subr.mxu0 %v713
    %777 = vmatpush1.msra.mxu0 %v712
    %778 = vmatprep.subr.mxu0 %v715
    %779 = vmatpush1.msra.mxu0 %v714
    %780 = vmatprep.subr.mxu0 %v717
    %781 = vmatpush1.msra.mxu0 %v716
    %782 = vmatprep.subr.mxu0 %v719
    %783 = vmatpush1.msra.mxu0 %v718
    %784 = vmatprep.subr.mxu0 %v721
    %785 = vmatpush1.msra.mxu0 %v720
    %786 = vmatprep.subr.mxu0 %v723
    %787 = vmatpush1.msra.mxu0 %v722
    %788 = vmatprep.subr.mxu0 %v725
    %789 = vmatpush1.msra.mxu0 %v724
    %790 = vmatprep.subr.mxu0 %v727
    %791 = vmatpush1.msra.mxu0 %v726
    %792 = vmatprep.subr.mxu0 %v729
    %793 = vmatpush1.msra.mxu0 %v728
    %794 = vmatprep.subr.mxu0 %v731
    %795 = vmatpush1.msra.mxu0 %v730
    %796 = vmatprep.subr.mxu0 %v733
    %797 = vmatpush1.msra.mxu0 %v732
    %798 = vmatprep.subr.mxu0 %v735
    %799 = vmatpush1.msra.mxu0 %v734
    %800 = vmatprep.subr.mxu0 %v737
    %801 = vmatpush1.msra.mxu0 %v736
    %802 = vmatprep.subr.mxu0 %v739
    %803 = vmatpush1.msra.mxu0 %v738
    %804 = vmatprep.subr.mxu0 %v741
    %805 = vmatpush1.msra.mxu0 %v740
    %806 = vmatprep.subr.mxu0 %v743
    %807 = vmatpush1.msra.mxu0 %v742
    %808 = vmatprep.subr.mxu0 %v745
    %809 = vmatpush1.msra.mxu0 %v744
    %810 = vmatprep.subr.mxu0 %v747
    %811 = vmatpush1.msra.mxu0 %v746
    %812 = vmatprep.mubr.f32.mxu0 0.0
    %813 = vmatmul.mubr.f32.gmra.mrb[0].mxu0 0.0
    %v814 = vpop.f32.mrb[0].mxu0
    %v815 = vadd.f32 0.0, %v814
    %v816 = vpop.f32.mrb[0].mxu0
    %v817 = vadd.f32 0.0, %v816
    %818 = vdwg.mxu0
    %v821 = vcombine.low %v815, %v817
    %v823 = vunpack.c.l.s4 1966171168
    %v824 = vunpack.c.0.s8 %v823
    %v825 = vlaneseq
    %v826 = vshrl.u32 %v825, 7
    %v827 = vsub.s32 %v824, %v826
    %v828 = vrot.slane %v821, %v827
    %v830 = vunpack.c.l.s4 1966171168
    %v831 = vunpack.c.0.s8 %v830
    %v832 = vlaneseq
    %v833 = vshrl.u32 %v832, 7
    %v834 = vsub.s32 %v831, %v833
    %v835 = vrot.slane %v828, %v834
    %v837 = vadd.f32 %v683, %v835
    %s838 = scalar_lea.vmem [#allocation3], 32
    %v839 = vld [vmem:[%s838] ss:$8 sm:$0x3]
    %v840 = vld [vmem:[#allocation2 + $0x20] sm:$0xff]
    %v841 = vld [vmem:[#allocation2 + $0x28] sm:$0xff]
    %v842 = vld [vmem:[#allocation2 + $0x60] sm:$0xff]
    %v843 = vld [vmem:[#allocation2 + $0x68] sm:$0xff]
    %v844 = vld [vmem:[#allocation2 + $0xa0] sm:$0xff]
    %v845 = vld [vmem:[#allocation2 + $0xa8] sm:$0xff]
    %v846 = vld [vmem:[#allocation2 + $0xe0] sm:$0xff]
    %v847 = vld [vmem:[#allocation2 + $0xe8] sm:$0xff]
    %v848 = vld [vmem:[#allocation2 + $0x120] sm:$0xff]
    %v849 = vld [vmem:[#allocation2 + $0x128] sm:$0xff]
    %v850 = vld [vmem:[#allocation2 + $0x160] sm:$0xff]
    %v851 = vld [vmem:[#allocation2 + $0x168] sm:$0xff]
    %v852 = vld [vmem:[#allocation2 + $0x1a0] sm:$0xff]
    %v853 = vld [vmem:[#allocation2 + $0x1a8] sm:$0xff]
    %v854 = vld [vmem:[#allocation2 + $0x1e0] sm:$0xff]
    %v855 = vld [vmem:[#allocation2 + $0x1e8] sm:$0xff]
    %v856 = vld [vmem:[#allocation2 + $0x220] sm:$0xff]
    %v857 = vld [vmem:[#allocation2 + $0x228] sm:$0xff]
    %v858 = vld [vmem:[#allocation2 + $0x260] sm:$0xff]
    %v859 = vld [vmem:[#allocation2 + $0x268] sm:$0xff]
    %v860 = vld [vmem:[#allocation2 + $0x2a0] sm:$0xff]
    %v861 = vld [vmem:[#allocation2 + $0x2a8] sm:$0xff]
    %v862 = vld [vmem:[#allocation2 + $0x2e0] sm:$0xff]
    %v863 = vld [vmem:[#allocation2 + $0x2e8] sm:$0xff]
    %v864 = vld [vmem:[#allocation2 + $0x320] sm:$0xff]
    %v865 = vld [vmem:[#allocation2 + $0x328] sm:$0xff]
    %v866 = vld [vmem:[#allocation2 + $0x360] sm:$0xff]
    %v867 = vld [vmem:[#allocation2 + $0x368] sm:$0xff]
    %v868 = vld [vmem:[#allocation2 + $0x3a0] sm:$0xff]
    %v869 = vld [vmem:[#allocation2 + $0x3a8] sm:$0xff]
    %v870 = vld [vmem:[#allocation2 + $0x3e0] sm:$0xff]
    %v871 = vld [vmem:[#allocation2 + $0x3e8] sm:$0xff]
    %v872 = vld [vmem:[#allocation2 + $0x420] sm:$0xff]
    %v873 = vld [vmem:[#allocation2 + $0x428] sm:$0xff]
    %v874 = vld [vmem:[#allocation2 + $0x460] sm:$0xff]
    %v875 = vld [vmem:[#allocation2 + $0x468] sm:$0xff]
    %v876 = vld [vmem:[#allocation2 + $0x4a0] sm:$0xff]
    %v877 = vld [vmem:[#allocation2 + $0x4a8] sm:$0xff]
    %v878 = vld [vmem:[#allocation2 + $0x4e0] sm:$0xff]
    %v879 = vld [vmem:[#allocation2 + $0x4e8] sm:$0xff]
    %v880 = vld [vmem:[#allocation2 + $0x520] sm:$0xff]
    %v881 = vld [vmem:[#allocation2 + $0x528] sm:$0xff]
    %v882 = vld [vmem:[#allocation2 + $0x560] sm:$0xff]
    %v883 = vld [vmem:[#allocation2 + $0x568] sm:$0xff]
    %v884 = vld [vmem:[#allocation2 + $0x5a0] sm:$0xff]
    %v885 = vld [vmem:[#allocation2 + $0x5a8] sm:$0xff]
    %v886 = vld [vmem:[#allocation2 + $0x5e0] sm:$0xff]
    %v887 = vld [vmem:[#allocation2 + $0x5e8] sm:$0xff]
    %v888 = vld [vmem:[#allocation2 + $0x620] sm:$0xff]
    %v889 = vld [vmem:[#allocation2 + $0x628] sm:$0xff]
    %v890 = vld [vmem:[#allocation2 + $0x660] sm:$0xff]
    %v891 = vld [vmem:[#allocation2 + $0x668] sm:$0xff]
    %v892 = vld [vmem:[#allocation2 + $0x6a0] sm:$0xff]
    %v893 = vld [vmem:[#allocation2 + $0x6a8] sm:$0xff]
    %v894 = vld [vmem:[#allocation2 + $0x6e0] sm:$0xff]
    %v895 = vld [vmem:[#allocation2 + $0x6e8] sm:$0xff]
    %v896 = vld [vmem:[#allocation2 + $0x720] sm:$0xff]
    %v897 = vld [vmem:[#allocation2 + $0x728] sm:$0xff]
    %v898 = vld [vmem:[#allocation2 + $0x760] sm:$0xff]
    %v899 = vld [vmem:[#allocation2 + $0x768] sm:$0xff]
    %v900 = vld [vmem:[#allocation2 + $0x7a0] sm:$0xff]
    %v901 = vld [vmem:[#allocation2 + $0x7a8] sm:$0xff]
    %v902 = vld [vmem:[#allocation2 + $0x7e0] sm:$0xff]
    %v903 = vld [vmem:[#allocation2 + $0x7e8] sm:$0xff]
    %904 = vmatprep.subr.mxu0 %v841
    %905 = vmatpush1.msra.mxu0 %v840
    %906 = vmatprep.subr.mxu0 %v843
    %907 = vmatpush1.msra.mxu0 %v842
    %908 = vmatprep.subr.mxu0 %v845
    %909 = vmatpush1.msra.mxu0 %v844
    %910 = vmatprep.subr.mxu0 %v847
    %911 = vmatpush1.msra.mxu0 %v846
    %912 = vmatprep.subr.mxu0 %v849
    %913 = vmatpush1.msra.mxu0 %v848
    %914 = vmatprep.subr.mxu0 %v851
    %915 = vmatpush1.msra.mxu0 %v850
    %916 = vmatprep.subr.mxu0 %v853
    %917 = vmatpush1.msra.mxu0 %v852
    %918 = vmatprep.subr.mxu0 %v855
    %919 = vmatpush1.msra.mxu0 %v854
    %920 = vmatprep.subr.mxu0 %v857
    %921 = vmatpush1.msra.mxu0 %v856
    %922 = vmatprep.subr.mxu0 %v859
    %923 = vmatpush1.msra.mxu0 %v858
    %924 = vmatprep.subr.mxu0 %v861
    %925 = vmatpush1.msra.mxu0 %v860
    %926 = vmatprep.subr.mxu0 %v863
    %927 = vmatpush1.msra.mxu0 %v862
    %928 = vmatprep.subr.mxu0 %v865
    %929 = vmatpush1.msra.mxu0 %v864
    %930 = vmatprep.subr.mxu0 %v867
    %931 = vmatpush1.msra.mxu0 %v866
    %932 = vmatprep.subr.mxu0 %v869
    %933 = vmatpush1.msra.mxu0 %v868
    %934 = vmatprep.subr.mxu0 %v871
    %935 = vmatpush1.msra.mxu0 %v870
    %936 = vmatprep.subr.mxu0 %v873
    %937 = vmatpush1.msra.mxu0 %v872
    %938 = vmatprep.subr.mxu0 %v875
    %939 = vmatpush1.msra.mxu0 %v874
    %940 = vmatprep.subr.mxu0 %v877
    %941 = vmatpush1.msra.mxu0 %v876
    %942 = vmatprep.subr.mxu0 %v879
    %943 = vmatpush1.msra.mxu0 %v878
    %944 = vmatprep.subr.mxu0 %v881
    %945 = vmatpush1.msra.mxu0 %v880
    %946 = vmatprep.subr.mxu0 %v883
    %947 = vmatpush1.msra.mxu0 %v882
    %948 = vmatprep.subr.mxu0 %v885
    %949 = vmatpush1.msra.mxu0 %v884
    %950 = vmatprep.subr.mxu0 %v887
    %951 = vmatpush1.msra.mxu0 %v886
    %952 = vmatprep.subr.mxu0 %v889
    %953 = vmatpush1.msra.mxu0 %v888
    %954 = vmatprep.subr.mxu0 %v891
    %955 = vmatpush1.msra.mxu0 %v890
    %956 = vmatprep.subr.mxu0 %v893
    %957 = vmatpush1.msra.mxu0 %v892
    %958 = vmatprep.subr.mxu0 %v895
    %959 = vmatpush1.msra.mxu0 %v894
    %960 = vmatprep.subr.mxu0 %v897
    %961 = vmatpush1.msra.mxu0 %v896
    %962 = vmatprep.subr.mxu0 %v899
    %963 = vmatpush1.msra.mxu0 %v898
    %964 = vmatprep.subr.mxu0 %v901
    %965 = vmatpush1.msra.mxu0 %v900
    %966 = vmatprep.subr.mxu0 %v903
    %967 = vmatpush1.msra.mxu0 %v902
    %968 = vmatprep.mubr.f32.mxu0 0.0
    %969 = vmatmul.mubr.f32.gmra.mrb[0].mxu0 0.0
    %v970 = vpop.f32.mrb[0].mxu0
    %v971 = vadd.f32 0.0, %v970
    %v972 = vpop.f32.mrb[0].mxu0
    %v973 = vadd.f32 0.0, %v972
    %974 = vdwg.mxu0
    %v977 = vcombine.low %v971, %v973
    %v979 = vunpack.c.l.s4 1966171168
    %v980 = vunpack.c.0.s8 %v979
    %v981 = vlaneseq
    %v982 = vshrl.u32 %v981, 7
    %v983 = vsub.s32 %v980, %v982
    %v984 = vrot.slane %v977, %v983
    %v986 = vunpack.c.l.s4 1966171168
    %v987 = vunpack.c.0.s8 %v986
    %v988 = vlaneseq
    %v989 = vshrl.u32 %v988, 7
    %v990 = vsub.s32 %v987, %v989
    %v991 = vrot.slane %v984, %v990
    %v993 = vadd.f32 %v839, %v991
    %s994 = scalar_lea.vmem [#allocation3], 48
    %v995 = vld [vmem:[%s994] ss:$8 sm:$0x3]
    %v996 = vld [vmem:[#allocation2 + $0x30] sm:$0xff]
    %v997 = vld [vmem:[#allocation2 + $0x38] sm:$0xff]
    %v998 = vld [vmem:[#allocation2 + $0x70] sm:$0xff]
    %v999 = vld [vmem:[#allocation2 + $0x78] sm:$0xff]
    %v1000 = vld [vmem:[#allocation2 + $0xb0] sm:$0xff]
    %v1001 = vld [vmem:[#allocation2 + $0xb8] sm:$0xff]
    %v1002 = vld [vmem:[#allocation2 + $0xf0] sm:$0xff]
    %v1003 = vld [vmem:[#allocation2 + $0xf8] sm:$0xff]
    %v1004 = vld [vmem:[#allocation2 + $0x130] sm:$0xff]
    %v1005 = vld [vmem:[#allocation2 + $0x138] sm:$0xff]
    %v1006 = vld [vmem:[#allocation2 + $0x170] sm:$0xff]
    %v1007 = vld [vmem:[#allocation2 + $0x178] sm:$0xff]
    %v1008 = vld [vmem:[#allocation2 + $0x1b0] sm:$0xff]
    %v1009 = vld [vmem:[#allocation2 + $0x1b8] sm:$0xff]
    %v1010 = vld [vmem:[#allocation2 + $0x1f0] sm:$0xff]
    %v1011 = vld [vmem:[#allocation2 + $0x1f8] sm:$0xff]
    %v1012 = vld [vmem:[#allocation2 + $0x230] sm:$0xff]
    %v1013 = vld [vmem:[#allocation2 + $0x238] sm:$0xff]
    %v1014 = vld [vmem:[#allocation2 + $0x270] sm:$0xff]
    %v1015 = vld [vmem:[#allocation2 + $0x278] sm:$0xff]
    %v1016 = vld [vmem:[#allocation2 + $0x2b0] sm:$0xff]
    %v1017 = vld [vmem:[#allocation2 + $0x2b8] sm:$0xff]
    %v1018 = vld [vmem:[#allocation2 + $0x2f0] sm:$0xff]
    %v1019 = vld [vmem:[#allocation2 + $0x2f8] sm:$0xff]
    %v1020 = vld [vmem:[#allocation2 + $0x330] sm:$0xff]
    %v1021 = vld [vmem:[#allocation2 + $0x338] sm:$0xff]
    %v1022 = vld [vmem:[#allocation2 + $0x370] sm:$0xff]
    %v1023 = vld [vmem:[#allocation2 + $0x378] sm:$0xff]
    %v1024 = vld [vmem:[#allocation2 + $0x3b0] sm:$0xff]
    %v1025 = vld [vmem:[#allocation2 + $0x3b8] sm:$0xff]
    %v1026 = vld [vmem:[#allocation2 + $0x3f0] sm:$0xff]
    %v1027 = vld [vmem:[#allocation2 + $0x3f8] sm:$0xff]
    %v1028 = vld [vmem:[#allocation2 + $0x430] sm:$0xff]
    %v1029 = vld [vmem:[#allocation2 + $0x438] sm:$0xff]
    %v1030 = vld [vmem:[#allocation2 + $0x470] sm:$0xff]
    %v1031 = vld [vmem:[#allocation2 + $0x478] sm:$0xff]
    %v1032 = vld [vmem:[#allocation2 + $0x4b0] sm:$0xff]
    %v1033 = vld [vmem:[#allocation2 + $0x4b8] sm:$0xff]
    %v1034 = vld [vmem:[#allocation2 + $0x4f0] sm:$0xff]
    %v1035 = vld [vmem:[#allocation2 + $0x4f8] sm:$0xff]
    %v1036 = vld [vmem:[#allocation2 + $0x530] sm:$0xff]
    %v1037 = vld [vmem:[#allocation2 + $0x538] sm:$0xff]
    %v1038 = vld [vmem:[#allocation2 + $0x570] sm:$0xff]
    %v1039 = vld [vmem:[#allocation2 + $0x578] sm:$0xff]
    %v1040 = vld [vmem:[#allocation2 + $0x5b0] sm:$0xff]
    %v1041 = vld [vmem:[#allocation2 + $0x5b8] sm:$0xff]
    %v1042 = vld [vmem:[#allocation2 + $0x5f0] sm:$0xff]
    %v1043 = vld [vmem:[#allocation2 + $0x5f8] sm:$0xff]
    %v1044 = vld [vmem:[#allocation2 + $0x630] sm:$0xff]
    %v1045 = vld [vmem:[#allocation2 + $0x638] sm:$0xff]
    %v1046 = vld [vmem:[#allocation2 + $0x670] sm:$0xff]
    %v1047 = vld [vmem:[#allocation2 + $0x678] sm:$0xff]
    %v1048 = vld [vmem:[#allocation2 + $0x6b0] sm:$0xff]
    %v1049 = vld [vmem:[#allocation2 + $0x6b8] sm:$0xff]
    %v1050 = vld [vmem:[#allocation2 + $0x6f0] sm:$0xff]
    %v1051 = vld [vmem:[#allocation2 + $0x6f8] sm:$0xff]
    %v1052 = vld [vmem:[#allocation2 + $0x730] sm:$0xff]
    %v1053 = vld [vmem:[#allocation2 + $0x738] sm:$0xff]
    %v1054 = vld [vmem:[#allocation2 + $0x770] sm:$0xff]
    %v1055 = vld [vmem:[#allocation2 + $0x778] sm:$0xff]
    %v1056 = vld [vmem:[#allocation2 + $0x7b0] sm:$0xff]
    %v1057 = vld [vmem:[#allocation2 + $0x7b8] sm:$0xff]
    %v1058 = vld [vmem:[#allocation2 + $0x7f0] sm:$0xff]
    %v1059 = vld [vmem:[#allocation2 + $0x7f8] sm:$0xff]
    %1060 = vmatprep.subr.mxu0 %v997
    %1061 = vmatpush1.msra.mxu0 %v996
    %1062 = vmatprep.subr.mxu0 %v999
    %1063 = vmatpush1.msra.mxu0 %v998
    %1064 = vmatprep.subr.mxu0 %v1001
    %1065 = vmatpush1.msra.mxu0 %v1000
    %1066 = vmatprep.subr.mxu0 %v1003
    %1067 = vmatpush1.msra.mxu0 %v1002
    %1068 = vmatprep.subr.mxu0 %v1005
    %1069 = vmatpush1.msra.mxu0 %v1004
    %1070 = vmatprep.subr.mxu0 %v1007
    %1071 = vmatpush1.msra.mxu0 %v1006
    %1072 = vmatprep.subr.mxu0 %v1009
    %1073 = vmatpush1.msra.mxu0 %v1008
    %1074 = vmatprep.subr.mxu0 %v1011
    %1075 = vmatpush1.msra.mxu0 %v1010
    %1076 = vmatprep.subr.mxu0 %v1013
    %1077 = vmatpush1.msra.mxu0 %v1012
    %1078 = vmatprep.subr.mxu0 %v1015
    %1079 = vmatpush1.msra.mxu0 %v1014
    %1080 = vmatprep.subr.mxu0 %v1017
    %1081 = vmatpush1.msra.mxu0 %v1016
    %1082 = vmatprep.subr.mxu0 %v1019
    %1083 = vmatpush1.msra.mxu0 %v1018
    %1084 = vmatprep.subr.mxu0 %v1021
    %1085 = vmatpush1.msra.mxu0 %v1020
    %1086 = vmatprep.subr.mxu0 %v1023
    %1087 = vmatpush1.msra.mxu0 %v1022
    %1088 = vmatprep.subr.mxu0 %v1025
    %1089 = vmatpush1.msra.mxu0 %v1024
    %1090 = vmatprep.subr.mxu0 %v1027
    %1091 = vmatpush1.msra.mxu0 %v1026
    %1092 = vmatprep.subr.mxu0 %v1029
    %1093 = vmatpush1.msra.mxu0 %v1028
    %1094 = vmatprep.subr.mxu0 %v1031
    %1095 = vmatpush1.msra.mxu0 %v1030
    %1096 = vmatprep.subr.mxu0 %v1033
    %1097 = vmatpush1.msra.mxu0 %v1032
    %1098 = vmatprep.subr.mxu0 %v1035
    %1099 = vmatpush1.msra.mxu0 %v1034
    %1100 = vmatprep.subr.mxu0 %v1037
    %1101 = vmatpush1.msra.mxu0 %v1036
    %1102 = vmatprep.subr.mxu0 %v1039
    %1103 = vmatpush1.msra.mxu0 %v1038
    %1104 = vmatprep.subr.mxu0 %v1041
    %1105 = vmatpush1.msra.mxu0 %v1040
    %1106 = vmatprep.subr.mxu0 %v1043
    %1107 = vmatpush1.msra.mxu0 %v1042
    %1108 = vmatprep.subr.mxu0 %v1045
    %1109 = vmatpush1.msra.mxu0 %v1044
    %1110 = vmatprep.subr.mxu0 %v1047
    %1111 = vmatpush1.msra.mxu0 %v1046
    %1112 = vmatprep.subr.mxu0 %v1049
    %1113 = vmatpush1.msra.mxu0 %v1048
    %1114 = vmatprep.subr.mxu0 %v1051
    %1115 = vmatpush1.msra.mxu0 %v1050
    %1116 = vmatprep.subr.mxu0 %v1053
    %1117 = vmatpush1.msra.mxu0 %v1052
    %1118 = vmatprep.subr.mxu0 %v1055
    %1119 = vmatpush1.msra.mxu0 %v1054
    %1120 = vmatprep.subr.mxu0 %v1057
    %1121 = vmatpush1.msra.mxu0 %v1056
    %1122 = vmatprep.subr.mxu0 %v1059
    %1123 = vmatpush1.msra.mxu0 %v1058
    %1124 = vmatprep.mubr.f32.mxu0 0.0
    %1125 = vmatmul.mubr.f32.gmra.mrb[0].mxu0 0.0
    %v1126 = vpop.f32.mrb[0].mxu0
    %v1127 = vadd.f32 0.0, %v1126
    %v1128 = vpop.f32.mrb[0].mxu0
    %v1129 = vadd.f32 0.0, %v1128
    %1130 = vdwg.mxu0
    %v1133 = vcombine.low %v1127, %v1129
    %v1135 = vunpack.c.l.s4 1966171168
    %v1136 = vunpack.c.0.s8 %v1135
    %v1137 = vlaneseq
    %v1138 = vshrl.u32 %v1137, 7
    %v1139 = vsub.s32 %v1136, %v1138
    %v1140 = vrot.slane %v1133, %v1139
    %v1142 = vunpack.c.l.s4 1966171168
    %v1143 = vunpack.c.0.s8 %v1142
    %v1144 = vlaneseq
    %v1145 = vshrl.u32 %v1144, 7
    %v1146 = vsub.s32 %v1143, %v1145
    %v1147 = vrot.slane %v1140, %v1146
    %v1149 = vadd.f32 %v995, %v1147
    %v1150 = vxor.u32 %v681, 2147483648
    %v1151 = vmul.f32 %v1150, 1.442695
    %v1152 = vpow.pop %v1151
    %v1153 = vadd.f32 %v1152, 1.0
    %v1154 = vrcp.pop %v1153
    %v1155 = vmul.f32 1.0, %v1154
    %v1156 = vxor.u32 %v837, 2147483648
    %v1157 = vmul.f32 %v1156, 1.442695
    %v1158 = vpow.pop %v1157
    %v1159 = vadd.f32 %v1158, 1.0
    %v1160 = vrcp.pop %v1159
    %v1161 = vmul.f32 1.0, %v1160
    %v1162 = vtanh.pop %v993
    %v1163 = vmul.f32 %v1161, 0.0
    %v1164 = vmul.f32 %v1155, %v1162
    %v1165 = vadd.f32 %v1163, %v1164
    %v1166 = vtanh.pop %v1165
    %v1167 = vxor.u32 %v1149, 2147483648
    %v1168 = vmul.f32 %v1167, 1.442695
    %v1169 = vpow.pop %v1168
    %v1170 = vadd.f32 %v1169, 1.0
    %v1171 = vrcp.pop %v1170
    %v1172 = vmul.f32 1.0, %v1171
    %v1173 = vmul.f32 %v1172, %v1166
    %v1174 = vlaneseq
    %vm1175 = vcmp.ge.s32.totalorder %v1174, 0
    %vm1176 = vcmp.lt.s32.totalorder %v1174, 256
    %vm1177 = vmand %vm1175, %vm1176
    %1178 = vst.msk [vmem:[#allocation4] ss:$8 sm:$0x3] %vm1177, %v1173
    %1179 = vst.msk [vmem:[#allocation4] ss:$8 sm:$0x0] %vm1177, %v1173
    %s1180 = scalar_lea.vmem [#allocation3], 1
    %v1181 = vld [vmem:[%s1180] ss:$8 sm:$0x3]
    %v1182 = vld [vmem:[#allocation2] sm:$0xff]
    %v1183 = vld [vmem:[#allocation2 + $0x8] sm:$0xff]
    %v1184 = vld [vmem:[#allocation2 + $0x40] sm:$0xff]
    %v1185 = vld [vmem:[#allocation2 + $0x48] sm:$0xff]
    %v1186 = vld [vmem:[#allocation2 + $0x80] sm:$0xff]
    %v1187 = vld [vmem:[#allocation2 + $0x88] sm:$0xff]
    %v1188 = vld [vmem:[#allocation2 + $0xc0] sm:$0xff]
    %v1189 = vld [vmem:[#allocation2 + $0xc8] sm:$0xff]
    %v1190 = vld [vmem:[#allocation2 + $0x100] sm:$0xff]
    %v1191 = vld [vmem:[#allocation2 + $0x108] sm:$0xff]
    %v1192 = vld [vmem:[#allocation2 + $0x140] sm:$0xff]
    %v1193 = vld [vmem:[#allocation2 + $0x148] sm:$0xff]
    %v1194 = vld [vmem:[#allocation2 + $0x180] sm:$0xff]
    %v1195 = vld [vmem:[#allocation2 + $0x188] sm:$0xff]
    %v1196 = vld [vmem:[#allocation2 + $0x1c0] sm:$0xff]
    %v1197 = vld [vmem:[#allocation2 + $0x1c8] sm:$0xff]
    %v1198 = vld [vmem:[#allocation2 + $0x200] sm:$0xff]
    %v1199 = vld [vmem:[#allocation2 + $0x208] sm:$0xff]
    %v1200 = vld [vmem:[#allocation2 + $0x240] sm:$0xff]
    %v1201 = vld [vmem:[#allocation2 + $0x248] sm:$0xff]
    %v1202 = vld [vmem:[#allocation2 + $0x280] sm:$0xff]
    %v1203 = vld [vmem:[#allocation2 + $0x288] sm:$0xff]
    %v1204 = vld [vmem:[#allocation2 + $0x2c0] sm:$0xff]
    %v1205 = vld [vmem:[#allocation2 + $0x2c8] sm:$0xff]
    %v1206 = vld [vmem:[#allocation2 + $0x300] sm:$0xff]
    %v1207 = vld [vmem:[#allocation2 + $0x308] sm:$0xff]
    %v1208 = vld [vmem:[#allocation2 + $0x340] sm:$0xff]
    %v1209 = vld [vmem:[#allocation2 + $0x348] sm:$0xff]
    %v1210 = vld [vmem:[#allocation2 + $0x380] sm:$0xff]
    %v1211 = vld [vmem:[#allocation2 + $0x388] sm:$0xff]
    %v1212 = vld [vmem:[#allocation2 + $0x3c0] sm:$0xff]
    %v1213 = vld [vmem:[#allocation2 + $0x3c8] sm:$0xff]
    %v1214 = vld [vmem:[#allocation2 + $0x400] sm:$0xff]
    %v1215 = vld [vmem:[#allocation2 + $0x408] sm:$0xff]
    %v1216 = vld [vmem:[#allocation2 + $0x440] sm:$0xff]
    %v1217 = vld [vmem:[#allocation2 + $0x448] sm:$0xff]
    %v1218 = vld [vmem:[#allocation2 + $0x480] sm:$0xff]
    %v1219 = vld [vmem:[#allocation2 + $0x488] sm:$0xff]
    %v1220 = vld [vmem:[#allocation2 + $0x4c0] sm:$0xff]
    %v1221 = vld [vmem:[#allocation2 + $0x4c8] sm:$0xff]
    %v1222 = vld [vmem:[#allocation2 + $0x500] sm:$0xff]
    %v1223 = vld [vmem:[#allocation2 + $0x508] sm:$0xff]
    %v1224 = vld [vmem:[#allocation2 + $0x540] sm:$0xff]
    %v1225 = vld [vmem:[#allocation2 + $0x548] sm:$0xff]
    %v1226 = vld [vmem:[#allocation2 + $0x580] sm:$0xff]
    %v1227 = vld [vmem:[#allocation2 + $0x588] sm:$0xff]
    %v1228 = vld [vmem:[#allocation2 + $0x5c0] sm:$0xff]
    %v1229 = vld [vmem:[#allocation2 + $0x5c8] sm:$0xff]
    %v1230 = vld [vmem:[#allocation2 + $0x600] sm:$0xff]
    %v1231 = vld [vmem:[#allocation2 + $0x608] sm:$0xff]
    %v1232 = vld [vmem:[#allocation2 + $0x640] sm:$0xff]
    %v1233 = vld [vmem:[#allocation2 + $0x648] sm:$0xff]
    %v1234 = vld [vmem:[#allocation2 + $0x680] sm:$0xff]
    %v1235 = vld [vmem:[#allocation2 + $0x688] sm:$0xff]
    %v1236 = vld [vmem:[#allocation2 + $0x6c0] sm:$0xff]
    %v1237 = vld [vmem:[#allocation2 + $0x6c8] sm:$0xff]
    %v1238 = vld [vmem:[#allocation2 + $0x700] sm:$0xff]
    %v1239 = vld [vmem:[#allocation2 + $0x708] sm:$0xff]
    %v1240 = vld [vmem:[#allocation2 + $0x740] sm:$0xff]
    %v1241 = vld [vmem:[#allocation2 + $0x748] sm:$0xff]
    %v1242 = vld [vmem:[#allocation2 + $0x780] sm:$0xff]
    %v1243 = vld [vmem:[#allocation2 + $0x788] sm:$0xff]
    %v1244 = vld [vmem:[#allocation2 + $0x7c0] sm:$0xff]
    %v1245 = vld [vmem:[#allocation2 + $0x7c8] sm:$0xff]
    %v1247 = vlaneseq
    %v1248 = vshrl.u32 %v1247, 7
    %v1249 = vsub.s32 0, %v1248
    %v1250 = vrot.slane %v1173, %v1249
    %v1251 = vlaneseq
    %v1252 = vshrl.u32 %v1251, 7
    %v1253 = vsub.s32 1, %v1252
    %v1254 = vrot.slane %v1173, %v1253
    %1257 = vmatprep.subr.mxu0 %v1183
    %1258 = vmatpush1.msra.mxu0 %v1182
    %1259 = vmatprep.subr.mxu0 %v1185
    %1260 = vmatpush1.msra.mxu0 %v1184
    %1261 = vmatprep.subr.mxu0 %v1187
    %1262 = vmatpush1.msra.mxu0 %v1186
    %1263 = vmatprep.subr.mxu0 %v1189
    %1264 = vmatpush1.msra.mxu0 %v1188
    %1265 = vmatprep.subr.mxu0 %v1191
    %1266 = vmatpush1.msra.mxu0 %v1190
    %1267 = vmatprep.subr.mxu0 %v1193
    %1268 = vmatpush1.msra.mxu0 %v1192
    %1269 = vmatprep.subr.mxu0 %v1195
    %1270 = vmatpush1.msra.mxu0 %v1194
    %1271 = vmatprep.subr.mxu0 %v1197
    %1272 = vmatpush1.msra.mxu0 %v1196
    %1273 = vmatprep.subr.mxu0 %v1199
    %1274 = vmatpush1.msra.mxu0 %v1198
    %1275 = vmatprep.subr.mxu0 %v1201
    %1276 = vmatpush1.msra.mxu0 %v1200
    %1277 = vmatprep.subr.mxu0 %v1203
    %1278 = vmatpush1.msra.mxu0 %v1202
    %1279 = vmatprep.subr.mxu0 %v1205
    %1280 = vmatpush1.msra.mxu0 %v1204
    %1281 = vmatprep.subr.mxu0 %v1207
    %1282 = vmatpush1.msra.mxu0 %v1206
    %1283 = vmatprep.subr.mxu0 %v1209
    %1284 = vmatpush1.msra.mxu0 %v1208
    %1285 = vmatprep.subr.mxu0 %v1211
    %1286 = vmatpush1.msra.mxu0 %v1210
    %1287 = vmatprep.subr.mxu0 %v1213
    %1288 = vmatpush1.msra.mxu0 %v1212
    %1289 = vmatprep.subr.mxu0 %v1215
    %1290 = vmatpush1.msra.mxu0 %v1214
    %1291 = vmatprep.subr.mxu0 %v1217
    %1292 = vmatpush1.msra.mxu0 %v1216
    %1293 = vmatprep.subr.mxu0 %v1219
    %1294 = vmatpush1.msra.mxu0 %v1218
    %1295 = vmatprep.subr.mxu0 %v1221
    %1296 = vmatpush1.msra.mxu0 %v1220
    %1297 = vmatprep.subr.mxu0 %v1223
    %1298 = vmatpush1.msra.mxu0 %v1222
    %1299 = vmatprep.subr.mxu0 %v1225
    %1300 = vmatpush1.msra.mxu0 %v1224
    %1301 = vmatprep.subr.mxu0 %v1227
    %1302 = vmatpush1.msra.mxu0 %v1226
    %1303 = vmatprep.subr.mxu0 %v1229
    %1304 = vmatpush1.msra.mxu0 %v1228
    %1305 = vmatprep.subr.mxu0 %v1231
    %1306 = vmatpush1.msra.mxu0 %v1230
    %1307 = vmatprep.subr.mxu0 %v1233
    %1308 = vmatpush1.msra.mxu0 %v1232
    %1309 = vmatprep.subr.mxu0 %v1235
    %1310 = vmatpush1.msra.mxu0 %v1234
    %1311 = vmatprep.subr.mxu0 %v1237
    %1312 = vmatpush1.msra.mxu0 %v1236
    %1313 = vmatprep.subr.mxu0 %v1239
    %1314 = vmatpush1.msra.mxu0 %v1238
    %1315 = vmatprep.subr.mxu0 %v1241
    %1316 = vmatpush1.msra.mxu0 %v1240
    %1317 = vmatprep.subr.mxu0 %v1243
    %1318 = vmatpush1.msra.mxu0 %v1242
    %1319 = vmatprep.subr.mxu0 %v1245
    %1320 = vmatpush1.msra.mxu0 %v1244
    %1321 = vmatprep.mubr.f32.mxu0 %v1254
    %1322 = vmatmul.mubr.f32.gmra.mrb[0].mxu0 %v1250
    %v1323 = vpop.f32.mrb[0].mxu0
    %v1324 = vadd.f32 0.0, %v1323
    %v1325 = vpop.f32.mrb[0].mxu0
    %v1326 = vadd.f32 0.0, %v1325
    %1327 = vdwg.mxu0
    %v1330 = vcombine.low %v1324, %v1326
    %v1332 = vunpack.c.l.s4 1966171168
    %v1333 = vunpack.c.0.s8 %v1332
    %v1334 = vlaneseq
    %v1335 = vshrl.u32 %v1334, 7
    %v1336 = vsub.s32 %v1333, %v1335
    %v1337 = vrot.slane %v1330, %v1336
    %v1339 = vunpack.c.l.s4 1966171168
    %v1340 = vunpack.c.0.s8 %v1339
    %v1341 = vlaneseq
    %v1342 = vshrl.u32 %v1341, 7
    %v1343 = vsub.s32 %v1340, %v1342
    %v1344 = vrot.slane %v1337, %v1343
    %v1346 = vadd.f32 %v1181, %v1344
    %s1347 = scalar_lea.vmem [#allocation3], 17
    %v1348 = vld [vmem:[%s1347] ss:$8 sm:$0x3]
    %v1349 = vld [vmem:[#allocation2 + $0x10] sm:$0xff]
    %v1350 = vld [vmem:[#allocation2 + $0x18] sm:$0xff]
    %v1351 = vld [vmem:[#allocation2 + $0x50] sm:$0xff]
    %v1352 = vld [vmem:[#allocation2 + $0x58] sm:$0xff]
    %v1353 = vld [vmem:[#allocation2 + $0x90] sm:$0xff]
    %v1354 = vld [vmem:[#allocation2 + $0x98] sm:$0xff]
    %v1355 = vld [vmem:[#allocation2 + $0xd0] sm:$0xff]
    %v1356 = vld [vmem:[#allocation2 + $0xd8] sm:$0xff]
    %v1357 = vld [vmem:[#allocation2 + $0x110] sm:$0xff]
    %v1358 = vld [vmem:[#allocation2 + $0x118] sm:$0xff]
    %v1359 = vld [vmem:[#allocation2 + $0x150] sm:$0xff]
    %v1360 = vld [vmem:[#allocation2 + $0x158] sm:$0xff]
    %v1361 = vld [vmem:[#allocation2 + $0x190] sm:$0xff]
    %v1362 = vld [vmem:[#allocation2 + $0x198] sm:$0xff]
    %v1363 = vld [vmem:[#allocation2 + $0x1d0] sm:$0xff]
    %v1364 = vld [vmem:[#allocation2 + $0x1d8] sm:$0xff]
    %v1365 = vld [vmem:[#allocation2 + $0x210] sm:$0xff]
    %v1366 = vld [vmem:[#allocation2 + $0x218] sm:$0xff]
    %v1367 = vld [vmem:[#allocation2 + $0x250] sm:$0xff]
    %v1368 = vld [vmem:[#allocation2 + $0x258] sm:$0xff]
    %v1369 = vld [vmem:[#allocation2 + $0x290] sm:$0xff]
    %v1370 = vld [vmem:[#allocation2 + $0x298] sm:$0xff]
    %v1371 = vld [vmem:[#allocation2 + $0x2d0] sm:$0xff]
    %v1372 = vld [vmem:[#allocation2 + $0x2d8] sm:$0xff]
    %v1373 = vld [vmem:[#allocation2 + $0x310] sm:$0xff]
    %v1374 = vld [vmem:[#allocation2 + $0x318] sm:$0xff]
    %v1375 = vld [vmem:[#allocation2 + $0x350] sm:$0xff]
    %v1376 = vld [vmem:[#allocation2 + $0x358] sm:$0xff]
    %v1377 = vld [vmem:[#allocation2 + $0x390] sm:$0xff]
    %v1378 = vld [vmem:[#allocation2 + $0x398] sm:$0xff]
    %v1379 = vld [vmem:[#allocation2 + $0x3d0] sm:$0xff]
    %v1380 = vld [vmem:[#allocation2 + $0x3d8] sm:$0xff]
    %v1381 = vld [vmem:[#allocation2 + $0x410] sm:$0xff]
    %v1382 = vld [vmem:[#allocation2 + $0x418] sm:$0xff]
    %v1383 = vld [vmem:[#allocation2 + $0x450] sm:$0xff]
    %v1384 = vld [vmem:[#allocation2 + $0x458] sm:$0xff]
    %v1385 = vld [vmem:[#allocation2 + $0x490] sm:$0xff]
    %v1386 = vld [vmem:[#allocation2 + $0x498] sm:$0xff]
    %v1387 = vld [vmem:[#allocation2 + $0x4d0] sm:$0xff]
    %v1388 = vld [vmem:[#allocation2 + $0x4d8] sm:$0xff]
    %v1389 = vld [vmem:[#allocation2 + $0x510] sm:$0xff]
    %v1390 = vld [vmem:[#allocation2 + $0x518] sm:$0xff]
    %v1391 = vld [vmem:[#allocation2 + $0x550] sm:$0xff]
    %v1392 = vld [vmem:[#allocation2 + $0x558] sm:$0xff]
    %v1393 = vld [vmem:[#allocation2 + $0x590] sm:$0xff]
    %v1394 = vld [vmem:[#allocation2 + $0x598] sm:$0xff]
    %v1395 = vld [vmem:[#allocation2 + $0x5d0] sm:$0xff]
    %v1396 = vld [vmem:[#allocation2 + $0x5d8] sm:$0xff]
    %v1397 = vld [vmem:[#allocation2 + $0x610] sm:$0xff]
    %v1398 = vld [vmem:[#allocation2 + $0x618] sm:$0xff]
    %v1399 = vld [vmem:[#allocation2 + $0x650] sm:$0xff]
    %v1400 = vld [vmem:[#allocation2 + $0x658] sm:$0xff]
    %v1401 = vld [vmem:[#allocation2 + $0x690] sm:$0xff]
    %v1402 = vld [vmem:[#allocation2 + $0x698] sm:$0xff]
    %v1403 = vld [vmem:[#allocation2 + $0x6d0] sm:$0xff]
    %v1404 = vld [vmem:[#allocation2 + $0x6d8] sm:$0xff]
    %v1405 = vld [vmem:[#allocation2 + $0x710] sm:$0xff]
    %v1406 = vld [vmem:[#allocation2 + $0x718] sm:$0xff]
    %v1407 = vld [vmem:[#allocation2 + $0x750] sm:$0xff]
    %v1408 = vld [vmem:[#allocation2 + $0x758] sm:$0xff]
    %v1409 = vld [vmem:[#allocation2 + $0x790] sm:$0xff]
    %v1410 = vld [vmem:[#allocation2 + $0x798] sm:$0xff]
    %v1411 = vld [vmem:[#allocation2 + $0x7d0] sm:$0xff]
    %v1412 = vld [vmem:[#allocation2 + $0x7d8] sm:$0xff]
    %1413 = vmatprep.subr.mxu0 %v1350
    %1414 = vmatpush1.msra.mxu0 %v1349
    %1415 = vmatprep.subr.mxu0 %v1352
    %1416 = vmatpush1.msra.mxu0 %v1351
    %1417 = vmatprep.subr.mxu0 %v1354
    %1418 = vmatpush1.msra.mxu0 %v1353
    %1419 = vmatprep.subr.mxu0 %v1356
    %1420 = vmatpush1.msra.mxu0 %v1355
    %1421 = vmatprep.subr.mxu0 %v1358
    %1422 = vmatpush1.msra.mxu0 %v1357
    %1423 = vmatprep.subr.mxu0 %v1360
    %1424 = vmatpush1.msra.mxu0 %v1359
    %1425 = vmatprep.subr.mxu0 %v1362
    %1426 = vmatpush1.msra.mxu0 %v1361
    %1427 = vmatprep.subr.mxu0 %v1364
    %1428 = vmatpush1.msra.mxu0 %v1363
    %1429 = vmatprep.subr.mxu0 %v1366
    %1430 = vmatpush1.msra.mxu0 %v1365
    %1431 = vmatprep.subr.mxu0 %v1368
    %1432 = vmatpush1.msra.mxu0 %v1367
    %1433 = vmatprep.subr.mxu0 %v1370
    %1434 = vmatpush1.msra.mxu0 %v1369
    %1435 = vmatprep.subr.mxu0 %v1372
    %1436 = vmatpush1.msra.mxu0 %v1371
    %1437 = vmatprep.subr.mxu0 %v1374
    %1438 = vmatpush1.msra.mxu0 %v1373
    %1439 = vmatprep.subr.mxu0 %v1376
    %1440 = vmatpush1.msra.mxu0 %v1375
    %1441 = vmatprep.subr.mxu0 %v1378
    %1442 = vmatpush1.msra.mxu0 %v1377
    %1443 = vmatprep.subr.mxu0 %v1380
    %1444 = vmatpush1.msra.mxu0 %v1379
    %1445 = vmatprep.subr.mxu0 %v1382
    %1446 = vmatpush1.msra.mxu0 %v1381
    %1447 = vmatprep.subr.mxu0 %v1384
    %1448 = vmatpush1.msra.mxu0 %v1383
    %1449 = vmatprep.subr.mxu0 %v1386
    %1450 = vmatpush1.msra.mxu0 %v1385
    %1451 = vmatprep.subr.mxu0 %v1388
    %1452 = vmatpush1.msra.mxu0 %v1387
    %1453 = vmatprep.subr.mxu0 %v1390
    %1454 = vmatpush1.msra.mxu0 %v1389
    %1455 = vmatprep.subr.mxu0 %v1392
    %1456 = vmatpush1.msra.mxu0 %v1391
    %1457 = vmatprep.subr.mxu0 %v1394
    %1458 = vmatpush1.msra.mxu0 %v1393
    %1459 = vmatprep.subr.mxu0 %v1396
    %1460 = vmatpush1.msra.mxu0 %v1395
    %1461 = vmatprep.subr.mxu0 %v1398
    %1462 = vmatpush1.msra.mxu0 %v1397
    %1463 = vmatprep.subr.mxu0 %v1400
    %1464 = vmatpush1.msra.mxu0 %v1399
    %1465 = vmatprep.subr.mxu0 %v1402
    %1466 = vmatpush1.msra.mxu0 %v1401
    %1467 = vmatprep.subr.mxu0 %v1404
    %1468 = vmatpush1.msra.mxu0 %v1403
    %1469 = vmatprep.subr.mxu0 %v1406
    %1470 = vmatpush1.msra.mxu0 %v1405
    %1471 = vmatprep.subr.mxu0 %v1408
    %1472 = vmatpush1.msra.mxu0 %v1407
    %1473 = vmatprep.subr.mxu0 %v1410
    %1474 = vmatpush1.msra.mxu0 %v1409
    %1475 = vmatprep.subr.mxu0 %v1412
    %1476 = vmatpush1.msra.mxu0 %v1411
    %1477 = vmatprep.mubr.f32.mxu0 %v1254
    %1478 = vmatmul.mubr.f32.gmra.mrb[0].mxu0 %v1250
    %v1479 = vpop.f32.mrb[0].mxu0
    %v1480 = vadd.f32 0.0, %v1479
    %v1481 = vpop.f32.mrb[0].mxu0
    %v1482 = vadd.f32 0.0, %v1481
    %1483 = vdwg.mxu0
    %v1486 = vcombine.low %v1480, %v1482
    %v1488 = vunpack.c.l.s4 1966171168
    %v1489 = vunpack.c.0.s8 %v1488
    %v1490 = vlaneseq
    %v1491 = vshrl.u32 %v1490, 7
    %v1492 = vsub.s32 %v1489, %v1491
    %v1493 = vrot.slane %v1486, %v1492
    %v1495 = vunpack.c.l.s4 1966171168
    %v1496 = vunpack.c.0.s8 %v1495
    %v1497 = vlaneseq
    %v1498 = vshrl.u32 %v1497, 7
    %v1499 = vsub.s32 %v1496, %v1498
    %v1500 = vrot.slane %v1493, %v1499
    %v1502 = vadd.f32 %v1348, %v1500
    %s1503 = scalar_lea.vmem [#allocation3], 33
    %v1504 = vld [vmem:[%s1503] ss:$8 sm:$0x3]
    %v1505 = vld [vmem:[#allocation2 + $0x20] sm:$0xff]
    %v1506 = vld [vmem:[#allocation2 + $0x28] sm:$0xff]
    %v1507 = vld [vmem:[#allocation2 + $0x60] sm:$0xff]
    %v1508 = vld [vmem:[#allocation2 + $0x68] sm:$0xff]
    %v1509 = vld [vmem:[#allocation2 + $0xa0] sm:$0xff]
    %v1510 = vld [vmem:[#allocation2 + $0xa8] sm:$0xff]
    %v1511 = vld [vmem:[#allocation2 + $0xe0] sm:$0xff]
    %v1512 = vld [vmem:[#allocation2 + $0xe8] sm:$0xff]
    %v1513 = vld [vmem:[#allocation2 + $0x120] sm:$0xff]
    %v1514 = vld [vmem:[#allocation2 + $0x128] sm:$0xff]
    %v1515 = vld [vmem:[#allocation2 + $0x160] sm:$0xff]
    %v1516 = vld [vmem:[#allocation2 + $0x168] sm:$0xff]
    %v1517 = vld [vmem:[#allocation2 + $0x1a0] sm:$0xff]
    %v1518 = vld [vmem:[#allocation2 + $0x1a8] sm:$0xff]
    %v1519 = vld [vmem:[#allocation2 + $0x1e0] sm:$0xff]
    %v1520 = vld [vmem:[#allocation2 + $0x1e8] sm:$0xff]
    %v1521 = vld [vmem:[#allocation2 + $0x220] sm:$0xff]
    %v1522 = vld [vmem:[#allocation2 + $0x228] sm:$0xff]
    %v1523 = vld [vmem:[#allocation2 + $0x260] sm:$0xff]
    %v1524 = vld [vmem:[#allocation2 + $0x268] sm:$0xff]
    %v1525 = vld [vmem:[#allocation2 + $0x2a0] sm:$0xff]
    %v1526 = vld [vmem:[#allocation2 + $0x2a8] sm:$0xff]
    %v1527 = vld [vmem:[#allocation2 + $0x2e0] sm:$0xff]
    %v1528 = vld [vmem:[#allocation2 + $0x2e8] sm:$0xff]
    %v1529 = vld [vmem:[#allocation2 + $0x320] sm:$0xff]
    %v1530 = vld [vmem:[#allocation2 + $0x328] sm:$0xff]
    %v1531 = vld [vmem:[#allocation2 + $0x360] sm:$0xff]
    %v1532 = vld [vmem:[#allocation2 + $0x368] sm:$0xff]
    %v1533 = vld [vmem:[#allocation2 + $0x3a0] sm:$0xff]
    %v1534 = vld [vmem:[#allocation2 + $0x3a8] sm:$0xff]
    %v1535 = vld [vmem:[#allocation2 + $0x3e0] sm:$0xff]
    %v1536 = vld [vmem:[#allocation2 + $0x3e8] sm:$0xff]
    %v1537 = vld [vmem:[#allocation2 + $0x420] sm:$0xff]
    %v1538 = vld [vmem:[#allocation2 + $0x428] sm:$0xff]
    %v1539 = vld [vmem:[#allocation2 + $0x460] sm:$0xff]
    %v1540 = vld [vmem:[#allocation2 + $0x468] sm:$0xff]
    %v1541 = vld [vmem:[#allocation2 + $0x4a0] sm:$0xff]
    %v1542 = vld [vmem:[#allocation2 + $0x4a8] sm:$0xff]
    %v1543 = vld [vmem:[#allocation2 + $0x4e0] sm:$0xff]
    %v1544 = vld [vmem:[#allocation2 + $0x4e8] sm:$0xff]
    %v1545 = vld [vmem:[#allocation2 + $0x520] sm:$0xff]
    %v1546 = vld [vmem:[#allocation2 + $0x528] sm:$0xff]
    %v1547 = vld [vmem:[#allocation2 + $0x560] sm:$0xff]
    %v1548 = vld [vmem:[#allocation2 + $0x568] sm:$0xff]
    %v1549 = vld [vmem:[#allocation2 + $0x5a0] sm:$0xff]
    %v1550 = vld [vmem:[#allocation2 + $0x5a8] sm:$0xff]
    %v1551 = vld [vmem:[#allocation2 + $0x5e0] sm:$0xff]
    %v1552 = vld [vmem:[#allocation2 + $0x5e8] sm:$0xff]
    %v1553 = vld [vmem:[#allocation2 + $0x620] sm:$0xff]
    %v1554 = vld [vmem:[#allocation2 + $0x628] sm:$0xff]
    %v1555 = vld [vmem:[#allocation2 + $0x660] sm:$0xff]
    %v1556 = vld [vmem:[#allocation2 + $0x668] sm:$0xff]
    %v1557 = vld [vmem:[#allocation2 + $0x6a0] sm:$0xff]
    %v1558 = vld [vmem:[#allocation2 + $0x6a8] sm:$0xff]
    %v1559 = vld [vmem:[#allocation2 + $0x6e0] sm:$0xff]
    %v1560 = vld [vmem:[#allocation2 + $0x6e8] sm:$0xff]
    %v1561 = vld [vmem:[#allocation2 + $0x720] sm:$0xff]
    %v1562 = vld [vmem:[#allocation2 + $0x728] sm:$0xff]
    %v1563 = vld [vmem:[#allocation2 + $0x760] sm:$0xff]
    %v1564 = vld [vmem:[#allocation2 + $0x768] sm:$0xff]
    %v1565 = vld [vmem:[#allocation2 + $0x7a0] sm:$0xff]
    %v1566 = vld [vmem:[#allocation2 + $0x7a8] sm:$0xff]
    %v1567 = vld [vmem:[#allocation2 + $0x7e0] sm:$0xff]
    %v1568 = vld [vmem:[#allocation2 + $0x7e8] sm:$0xff]
    %1569 = vmatprep.subr.mxu0 %v1506
    %1570 = vmatpush1.msra.mxu0 %v1505
    %1571 = vmatprep.subr.mxu0 %v1508
    %1572 = vmatpush1.msra.mxu0 %v1507
    %1573 = vmatprep.subr.mxu0 %v1510
    %1574 = vmatpush1.msra.mxu0 %v1509
    %1575 = vmatprep.subr.mxu0 %v1512
    %1576 = vmatpush1.msra.mxu0 %v1511
    %1577 = vmatprep.subr.mxu0 %v1514
    %1578 = vmatpush1.msra.mxu0 %v1513
    %1579 = vmatprep.subr.mxu0 %v1516
    %1580 = vmatpush1.msra.mxu0 %v1515
    %1581 = vmatprep.subr.mxu0 %v1518
    %1582 = vmatpush1.msra.mxu0 %v1517
    %1583 = vmatprep.subr.mxu0 %v1520
    %1584 = vmatpush1.msra.mxu0 %v1519
    %1585 = vmatprep.subr.mxu0 %v1522
    %1586 = vmatpush1.msra.mxu0 %v1521
    %1587 = vmatprep.subr.mxu0 %v1524
    %1588 = vmatpush1.msra.mxu0 %v1523
    %1589 = vmatprep.subr.mxu0 %v1526
    %1590 = vmatpush1.msra.mxu0 %v1525
    %1591 = vmatprep.subr.mxu0 %v1528
    %1592 = vmatpush1.msra.mxu0 %v1527
    %1593 = vmatprep.subr.mxu0 %v1530
    %1594 = vmatpush1.msra.mxu0 %v1529
    %1595 = vmatprep.subr.mxu0 %v1532
    %1596 = vmatpush1.msra.mxu0 %v1531
    %1597 = vmatprep.subr.mxu0 %v1534
    %1598 = vmatpush1.msra.mxu0 %v1533
    %1599 = vmatprep.subr.mxu0 %v1536
    %1600 = vmatpush1.msra.mxu0 %v1535
    %1601 = vmatprep.subr.mxu0 %v1538
    %1602 = vmatpush1.msra.mxu0 %v1537
    %1603 = vmatprep.subr.mxu0 %v1540
    %1604 = vmatpush1.msra.mxu0 %v1539
    %1605 = vmatprep.subr.mxu0 %v1542
    %1606 = vmatpush1.msra.mxu0 %v1541
    %1607 = vmatprep.subr.mxu0 %v1544
    %1608 = vmatpush1.msra.mxu0 %v1543
    %1609 = vmatprep.subr.mxu0 %v1546
    %1610 = vmatpush1.msra.mxu0 %v1545
    %1611 = vmatprep.subr.mxu0 %v1548
    %1612 = vmatpush1.msra.mxu0 %v1547
    %1613 = vmatprep.subr.mxu0 %v1550
    %1614 = vmatpush1.msra.mxu0 %v1549
    %1615 = vmatprep.subr.mxu0 %v1552
    %1616 = vmatpush1.msra.mxu0 %v1551
    %1617 = vmatprep.subr.mxu0 %v1554
    %1618 = vmatpush1.msra.mxu0 %v1553
    %1619 = vmatprep.subr.mxu0 %v1556
    %1620 = vmatpush1.msra.mxu0 %v1555
    %1621 = vmatprep.subr.mxu0 %v1558
    %1622 = vmatpush1.msra.mxu0 %v1557
    %1623 = vmatprep.subr.mxu0 %v1560
    %1624 = vmatpush1.msra.mxu0 %v1559
    %1625 = vmatprep.subr.mxu0 %v1562
    %1626 = vmatpush1.msra.mxu0 %v1561
    %1627 = vmatprep.subr.mxu0 %v1564
    %1628 = vmatpush1.msra.mxu0 %v1563
    %1629 = vmatprep.subr.mxu0 %v1566
    %1630 = vmatpush1.msra.mxu0 %v1565
    %1631 = vmatprep.subr.mxu0 %v1568
    %1632 = vmatpush1.msra.mxu0 %v1567
    %1633 = vmatprep.mubr.f32.mxu0 %v1254
    %1634 = vmatmul.mubr.f32.gmra.mrb[0].mxu0 %v1250
    %v1635 = vpop.f32.mrb[0].mxu0
    %v1636 = vadd.f32 0.0, %v1635
    %v1637 = vpop.f32.mrb[0].mxu0
    %v1638 = vadd.f32 0.0, %v1637
    %1639 = vdwg.mxu0
    %v1642 = vcombine.low %v1636, %v1638
    %v1644 = vunpack.c.l.s4 1966171168
    %v1645 = vunpack.c.0.s8 %v1644
    %v1646 = vlaneseq
    %v1647 = vshrl.u32 %v1646, 7
    %v1648 = vsub.s32 %v1645, %v1647
    %v1649 = vrot.slane %v1642, %v1648
    %v1651 = vunpack.c.l.s4 1966171168
    %v1652 = vunpack.c.0.s8 %v1651
    %v1653 = vlaneseq
    %v1654 = vshrl.u32 %v1653, 7
    %v1655 = vsub.s32 %v1652, %v1654
    %v1656 = vrot.slane %v1649, %v1655
    %v1658 = vadd.f32 %v1504, %v1656
    %s1659 = scalar_lea.vmem [#allocation3], 49
    %v1660 = vld [vmem:[%s1659] ss:$8 sm:$0x3]
    %v1661 = vld [vmem:[#allocation2 + $0x30] sm:$0xff]
    %v1662 = vld [vmem:[#allocation2 + $0x38] sm:$0xff]
    %v1663 = vld [vmem:[#allocation2 + $0x70] sm:$0xff]
    %v1664 = vld [vmem:[#allocation2 + $0x78] sm:$0xff]
    %v1665 = vld [vmem:[#allocation2 + $0xb0] sm:$0xff]
    %v1666 = vld [vmem:[#allocation2 + $0xb8] sm:$0xff]
    %v1667 = vld [vmem:[#allocation2 + $0xf0] sm:$0xff]
    %v1668 = vld [vmem:[#allocation2 + $0xf8] sm:$0xff]
    %v1669 = vld [vmem:[#allocation2 + $0x130] sm:$0xff]
    %v1670 = vld [vmem:[#allocation2 + $0x138] sm:$0xff]
    %v1671 = vld [vmem:[#allocation2 + $0x170] sm:$0xff]
    %v1672 = vld [vmem:[#allocation2 + $0x178] sm:$0xff]
    %v1673 = vld [vmem:[#allocation2 + $0x1b0] sm:$0xff]
    %v1674 = vld [vmem:[#allocation2 + $0x1b8] sm:$0xff]
    %v1675 = vld [vmem:[#allocation2 + $0x1f0] sm:$0xff]
    %v1676 = vld [vmem:[#allocation2 + $0x1f8] sm:$0xff]
    %v1677 = vld [vmem:[#allocation2 + $0x230] sm:$0xff]
    %v1678 = vld [vmem:[#allocation2 + $0x238] sm:$0xff]
    %v1679 = vld [vmem:[#allocation2 + $0x270] sm:$0xff]
    %v1680 = vld [vmem:[#allocation2 + $0x278] sm:$0xff]
    %v1681 = vld [vmem:[#allocation2 + $0x2b0] sm:$0xff]
    %v1682 = vld [vmem:[#allocation2 + $0x2b8] sm:$0xff]
    %v1683 = vld [vmem:[#allocation2 + $0x2f0] sm:$0xff]
    %v1684 = vld [vmem:[#allocation2 + $0x2f8] sm:$0xff]
    %v1685 = vld [vmem:[#allocation2 + $0x330] sm:$0xff]
    %v1686 = vld [vmem:[#allocation2 + $0x338] sm:$0xff]
    %v1687 = vld [vmem:[#allocation2 + $0x370] sm:$0xff]
    %v1688 = vld [vmem:[#allocation2 + $0x378] sm:$0xff]
    %v1689 = vld [vmem:[#allocation2 + $0x3b0] sm:$0xff]
    %v1690 = vld [vmem:[#allocation2 + $0x3b8] sm:$0xff]
    %v1691 = vld [vmem:[#allocation2 + $0x3f0] sm:$0xff]
    %v1692 = vld [vmem:[#allocation2 + $0x3f8] sm:$0xff]
    %v1693 = vld [vmem:[#allocation2 + $0x430] sm:$0xff]
    %v1694 = vld [vmem:[#allocation2 + $0x438] sm:$0xff]
    %v1695 = vld [vmem:[#allocation2 + $0x470] sm:$0xff]
    %v1696 = vld [vmem:[#allocation2 + $0x478] sm:$0xff]
    %v1697 = vld [vmem:[#allocation2 + $0x4b0] sm:$0xff]
    %v1698 = vld [vmem:[#allocation2 + $0x4b8] sm:$0xff]
    %v1699 = vld [vmem:[#allocation2 + $0x4f0] sm:$0xff]
    %v1700 = vld [vmem:[#allocation2 + $0x4f8] sm:$0xff]
    %v1701 = vld [vmem:[#allocation2 + $0x530] sm:$0xff]
    %v1702 = vld [vmem:[#allocation2 + $0x538] sm:$0xff]
    %v1703 = vld [vmem:[#allocation2 + $0x570] sm:$0xff]
    %v1704 = vld [vmem:[#allocation2 + $0x578] sm:$0xff]
    %v1705 = vld [vmem:[#allocation2 + $0x5b0] sm:$0xff]
    %v1706 = vld [vmem:[#allocation2 + $0x5b8] sm:$0xff]
    %v1707 = vld [vmem:[#allocation2 + $0x5f0] sm:$0xff]
    %v1708 = vld [vmem:[#allocation2 + $0x5f8] sm:$0xff]
    %v1709 = vld [vmem:[#allocation2 + $0x630] sm:$0xff]
    %v1710 = vld [vmem:[#allocation2 + $0x638] sm:$0xff]
    %v1711 = vld [vmem:[#allocation2 + $0x670] sm:$0xff]
    %v1712 = vld [vmem:[#allocation2 + $0x678] sm:$0xff]
    %v1713 = vld [vmem:[#allocation2 + $0x6b0] sm:$0xff]
    %v1714 = vld [vmem:[#allocation2 + $0x6b8] sm:$0xff]
    %v1715 = vld [vmem:[#allocation2 + $0x6f0] sm:$0xff]
    %v1716 = vld [vmem:[#allocation2 + $0x6f8] sm:$0xff]
    %v1717 = vld [vmem:[#allocation2 + $0x730] sm:$0xff]
    %v1718 = vld [vmem:[#allocation2 + $0x738] sm:$0xff]
    %v1719 = vld [vmem:[#allocation2 + $0x770] sm:$0xff]
    %v1720 = vld [vmem:[#allocation2 + $0x778] sm:$0xff]
    %v1721 = vld [vmem:[#allocation2 + $0x7b0] sm:$0xff]
    %v1722 = vld [vmem:[#allocation2 + $0x7b8] sm:$0xff]
    %v1723 = vld [vmem:[#allocation2 + $0x7f0] sm:$0xff]
    %v1724 = vld [vmem:[#allocation2 + $0x7f8] sm:$0xff]
    %1725 = vmatprep.subr.mxu0 %v1662
    %1726 = vmatpush1.msra.mxu0 %v1661
    %1727 = vmatprep.subr.mxu0 %v1664
    %1728 = vmatpush1.msra.mxu0 %v1663
    %1729 = vmatprep.subr.mxu0 %v1666
    %1730 = vmatpush1.msra.mxu0 %v1665
    %1731 = vmatprep.subr.mxu0 %v1668
    %1732 = vmatpush1.msra.mxu0 %v1667
    %1733 = vmatprep.subr.mxu0 %v1670
    %1734 = vmatpush1.msra.mxu0 %v1669
    %1735 = vmatprep.subr.mxu0 %v1672
    %1736 = vmatpush1.msra.mxu0 %v1671
    %1737 = vmatprep.subr.mxu0 %v1674
    %1738 = vmatpush1.msra.mxu0 %v1673
    %1739 = vmatprep.subr.mxu0 %v1676
    %1740 = vmatpush1.msra.mxu0 %v1675
    %1741 = vmatprep.subr.mxu0 %v1678
    %1742 = vmatpush1.msra.mxu0 %v1677
    %1743 = vmatprep.subr.mxu0 %v1680
    %1744 = vmatpush1.msra.mxu0 %v1679
    %1745 = vmatprep.subr.mxu0 %v1682
    %1746 = vmatpush1.msra.mxu0 %v1681
    %1747 = vmatprep.subr.mxu0 %v1684
    %1748 = vmatpush1.msra.mxu0 %v1683
    %1749 = vmatprep.subr.mxu0 %v1686
    %1750 = vmatpush1.msra.mxu0 %v1685
    %1751 = vmatprep.subr.mxu0 %v1688
    %1752 = vmatpush1.msra.mxu0 %v1687
    %1753 = vmatprep.subr.mxu0 %v1690
    %1754 = vmatpush1.msra.mxu0 %v1689
    %1755 = vmatprep.subr.mxu0 %v1692
    %1756 = vmatpush1.msra.mxu0 %v1691
    %1757 = vmatprep.subr.mxu0 %v1694
    %1758 = vmatpush1.msra.mxu0 %v1693
    %1759 = vmatprep.subr.mxu0 %v1696
    %1760 = vmatpush1.msra.mxu0 %v1695
    %1761 = vmatprep.subr.mxu0 %v1698
    %1762 = vmatpush1.msra.mxu0 %v1697
    %1763 = vmatprep.subr.mxu0 %v1700
    %1764 = vmatpush1.msra.mxu0 %v1699
    %1765 = vmatprep.subr.mxu0 %v1702
    %1766 = vmatpush1.msra.mxu0 %v1701
    %1767 = vmatprep.subr.mxu0 %v1704
    %1768 = vmatpush1.msra.mxu0 %v1703
    %1769 = vmatprep.subr.mxu0 %v1706
    %1770 = vmatpush1.msra.mxu0 %v1705
    %1771 = vmatprep.subr.mxu0 %v1708
    %1772 = vmatpush1.msra.mxu0 %v1707
    %1773 = vmatprep.subr.mxu0 %v1710
    %1774 = vmatpush1.msra.mxu0 %v1709
    %1775 = vmatprep.subr.mxu0 %v1712
    %1776 = vmatpush1.msra.mxu0 %v1711
    %1777 = vmatprep.subr.mxu0 %v1714
    %1778 = vmatpush1.msra.mxu0 %v1713
    %1779 = vmatprep.subr.mxu0 %v1716
    %1780 = vmatpush1.msra.mxu0 %v1715
    %1781 = vmatprep.subr.mxu0 %v1718
    %1782 = vmatpush1.msra.mxu0 %v1717
    %1783 = vmatprep.subr.mxu0 %v1720
    %1784 = vmatpush1.msra.mxu0 %v1719
    %1785 = vmatprep.subr.mxu0 %v1722
    %1786 = vmatpush1.msra.mxu0 %v1721
    %1787 = vmatprep.subr.mxu0 %v1724
    %1788 = vmatpush1.msra.mxu0 %v1723
    %1789 = vmatprep.mubr.f32.mxu0 %v1254
    %1790 = vmatmul.mubr.f32.gmra.mrb[0].mxu0 %v1250
    %v1791 = vpop.f32.mrb[0].mxu0
    %v1792 = vadd.f32 0.0, %v1791
    %v1793 = vpop.f32.mrb[0].mxu0
    %v1794 = vadd.f32 0.0, %v1793
    %1795 = vdwg.mxu0
    %v1798 = vcombine.low %v1792, %v1794
    %v1800 = vunpack.c.l.s4 1966171168
    %v1801 = vunpack.c.0.s8 %v1800
    %v1802 = vlaneseq
    %v1803 = vshrl.u32 %v1802, 7
    %v1804 = vsub.s32 %v1801, %v1803
    %v1805 = vrot.slane %v1798, %v1804
    %v1807 = vunpack.c.l.s4 1966171168
    %v1808 = vunpack.c.0.s8 %v1807
    %v1809 = vlaneseq
    %v1810 = vshrl.u32 %v1809, 7
    %v1811 = vsub.s32 %v1808, %v1810
    %v1812 = vrot.slane %v1805, %v1811
    %v1814 = vadd.f32 %v1660, %v1812
    %v1815 = vxor.u32 %v1346, 2147483648
    %v1816 = vmul.f32 %v1815, 1.442695
    %v1817 = vpow.pop %v1816
    %v1818 = vadd.f32 %v1817, 1.0
    %v1819 = vrcp.pop %v1818
    %v1820 = vmul.f32 1.0, %v1819
    %v1821 = vxor.u32 %v1502, 2147483648
    %v1822 = vmul.f32 %v1821, 1.442695
    %v1823 = vpow.pop %v1822
    %v1824 = vadd.f32 %v1823, 1.0
    %v1825 = vrcp.pop %v1824
    %v1826 = vmul.f32 1.0, %v1825
    %v1827 = vtanh.pop %v1658
    %v1828 = vmul.f32 %v1826, %v1165
    %v1829 = vmul.f32 %v1820, %v1827
    %v1830 = vadd.f32 %v1828, %v1829
    %v1831 = vtanh.pop %v1830
    %v1832 = vxor.u32 %v1814, 2147483648
    %v1833 = vmul.f32 %v1832, 1.442695
    %v1834 = vpow.pop %v1833
    %v1835 = vadd.f32 %v1834, 1.0
    %v1836 = vrcp.pop %v1835
    %v1837 = vmul.f32 1.0, %v1836
    %v1838 = vmul.f32 %v1837, %v1831
    %s1839 = scalar_lea.vmem [#allocation4], 1
    %1840 = vst.msk [vmem:[%s1839] ss:$8 sm:$0x3] %vm1177, %v1838
    %1841 = vst.msk [vmem:[%s1839] ss:$8 sm:$0x0] %vm1177, %v1838
    %s1842 = scalar_lea.vmem [#allocation3], 2
    %v1843 = vld [vmem:[%s1842] ss:$8 sm:$0x3]
    %v1844 = vld [vmem:[#allocation2] sm:$0xff]
    %v1845 = vld [vmem:[#allocation2 + $0x8] sm:$0xff]
    %v1846 = vld [vmem:[#allocation2 + $0x40] sm:$0xff]
    %v1847 = vld [vmem:[#allocation2 + $0x48] sm:$0xff]
    %v1848 = vld [vmem:[#allocation2 + $0x80] sm:$0xff]
    %v1849 = vld [vmem:[#allocation2 + $0x88] sm:$0xff]
    %v1850 = vld [vmem:[#allocation2 + $0xc0] sm:$0xff]
    %v1851 = vld [vmem:[#allocation2 + $0xc8] sm:$0xff]
    %v1852 = vld [vmem:[#allocation2 + $0x100] sm:$0xff]
    %v1853 = vld [vmem:[#allocation2 + $0x108] sm:$0xff]
    %v1854 = vld [vmem:[#allocation2 + $0x140] sm:$0xff]
    %v1855 = vld [vmem:[#allocation2 + $0x148] sm:$0xff]
    %v1856 = vld [vmem:[#allocation2 + $0x180] sm:$0xff]
    %v1857 = vld [vmem:[#allocation2 + $0x188] sm:$0xff]
    %v1858 = vld [vmem:[#allocation2 + $0x1c0] sm:$0xff]
    %v1859 = vld [vmem:[#allocation2 + $0x1c8] sm:$0xff]
    %v1860 = vld [vmem:[#allocation2 + $0x200] sm:$0xff]
    %v1861 = vld [vmem:[#allocation2 + $0x208] sm:$0xff]
    %v1862 = vld [vmem:[#allocation2 + $0x240] sm:$0xff]
    %v1863 = vld [vmem:[#allocation2 + $0x248] sm:$0xff]
    %v1864 = vld [vmem:[#allocation2 + $0x280] sm:$0xff]
    %v1865 = vld [vmem:[#allocation2 + $0x288] sm:$0xff]
    %v1866 = vld [vmem:[#allocation2 + $0x2c0] sm:$0xff]
    %v1867 = vld [vmem:[#allocation2 + $0x2c8] sm:$0xff]
    %v1868 = vld [vmem:[#allocation2 + $0x300] sm:$0xff]
    %v1869 = vld [vmem:[#allocation2 + $0x308] sm:$0xff]
    %v1870 = vld [vmem:[#allocation2 + $0x340] sm:$0xff]
    %v1871 = vld [vmem:[#allocation2 + $0x348] sm:$0xff]
    %v1872 = vld [vmem:[#allocation2 + $0x380] sm:$0xff]
    %v1873 = vld [vmem:[#allocation2 + $0x388] sm:$0xff]
    %v1874 = vld [vmem:[#allocation2 + $0x3c0] sm:$0xff]
    %v1875 = vld [vmem:[#allocation2 + $0x3c8] sm:$0xff]
    %v1876 = vld [vmem:[#allocation2 + $0x400] sm:$0xff]
    %v1877 = vld [vmem:[#allocation2 + $0x408] sm:$0xff]
    %v1878 = vld [vmem:[#allocation2 + $0x440] sm:$0xff]
    %v1879 = vld [vmem:[#allocation2 + $0x448] sm:$0xff]
    %v1880 = vld [vmem:[#allocation2 + $0x480] sm:$0xff]
    %v1881 = vld [vmem:[#allocation2 + $0x488] sm:$0xff]
    %v1882 = vld [vmem:[#allocation2 + $0x4c0] sm:$0xff]
    %v1883 = vld [vmem:[#allocation2 + $0x4c8] sm:$0xff]
    %v1884 = vld [vmem:[#allocation2 + $0x500] sm:$0xff]
    %v1885 = vld [vmem:[#allocation2 + $0x508] sm:$0xff]
    %v1886 = vld [vmem:[#allocation2 + $0x540] sm:$0xff]
    %v1887 = vld [vmem:[#allocation2 + $0x548] sm:$0xff]
    %v1888 = vld [vmem:[#allocation2 + $0x580] sm:$0xff]
    %v1889 = vld [vmem:[#allocation2 + $0x588] sm:$0xff]
    %v1890 = vld [vmem:[#allocation2 + $0x5c0] sm:$0xff]
    %v1891 = vld [vmem:[#allocation2 + $0x5c8] sm:$0xff]
    %v1892 = vld [vmem:[#allocation2 + $0x600] sm:$0xff]
    %v1893 = vld [vmem:[#allocation2 + $0x608] sm:$0xff]
    %v1894 = vld [vmem:[#allocation2 + $0x640] sm:$0xff]
    %v1895 = vld [vmem:[#allocation2 + $0x648] sm:$0xff]
    %v1896 = vld [vmem:[#allocation2 + $0x680] sm:$0xff]
    %v1897 = vld [vmem:[#allocation2 + $0x688] sm:$0xff]
    %v1898 = vld [vmem:[#allocation2 + $0x6c0] sm:$0xff]
    %v1899 = vld [vmem:[#allocation2 + $0x6c8] sm:$0xff]
    %v1900 = vld [vmem:[#allocation2 + $0x700] sm:$0xff]
    %v1901 = vld [vmem:[#allocation2 + $0x708] sm:$0xff]
    %v1902 = vld [vmem:[#allocation2 + $0x740] sm:$0xff]
    %v1903 = vld [vmem:[#allocation2 + $0x748] sm:$0xff]
    %v1904 = vld [vmem:[#allocation2 + $0x780] sm:$0xff]
    %v1905 = vld [vmem:[#allocation2 + $0x788] sm:$0xff]
    %v1906 = vld [vmem:[#allocation2 + $0x7c0] sm:$0xff]
    %v1907 = vld [vmem:[#allocation2 + $0x7c8] sm:$0xff]
    %v1909 = vlaneseq
    %v1910 = vshrl.u32 %v1909, 7
    %v1911 = vsub.s32 0, %v1910
    %v1912 = vrot.slane %v1838, %v1911
    %v1913 = vlaneseq
    %v1914 = vshrl.u32 %v1913, 7
    %v1915 = vsub.s32 1, %v1914
    %v1916 = vrot.slane %v1838, %v1915
    %1919 = vmatprep.subr.mxu0 %v1845
    %1920 = vmatpush1.msra.mxu0 %v1844
    %1921 = vmatprep.subr.mxu0 %v1847
    %1922 = vmatpush1.msra.mxu0 %v1846
    %1923 = vmatprep.subr.mxu0 %v1849
    %1924 = vmatpush1.msra.mxu0 %v1848
    %1925 = vmatprep.subr.mxu0 %v1851
    %1926 = vmatpush1.msra.mxu0 %v1850
    %1927 = vmatprep.subr.mxu0 %v1853
    %1928 = vmatpush1.msra.mxu0 %v1852
    %1929 = vmatprep.subr.mxu0 %v1855
    %1930 = vmatpush1.msra.mxu0 %v1854
    %1931 = vmatprep.subr.mxu0 %v1857
    %1932 = vmatpush1.msra.mxu0 %v1856
    %1933 = vmatprep.subr.mxu0 %v1859
    %1934 = vmatpush1.msra.mxu0 %v1858
    %1935 = vmatprep.subr.mxu0 %v1861
    %1936 = vmatpush1.msra.mxu0 %v1860
    %1937 = vmatprep.subr.mxu0 %v1863
    %1938 = vmatpush1.msra.mxu0 %v1862
    %1939 = vmatprep.subr.mxu0 %v1865
    %1940 = vmatpush1.msra.mxu0 %v1864
    %1941 = vmatprep.subr.mxu0 %v1867
    %1942 = vmatpush1.msra.mxu0 %v1866
    %1943 = vmatprep.subr.mxu0 %v1869
    %1944 = vmatpush1.msra.mxu0 %v1868
    %1945 = vmatprep.subr.mxu0 %v1871
    %1946 = vmatpush1.msra.mxu0 %v1870
    %1947 = vmatprep.subr.mxu0 %v1873
    %1948 = vmatpush1.msra.mxu0 %v1872
    %1949 = vmatprep.subr.mxu0 %v1875
    %1950 = vmatpush1.msra.mxu0 %v1874
    %1951 = vmatprep.subr.mxu0 %v1877
    %1952 = vmatpush1.msra.mxu0 %v1876
    %1953 = vmatprep.subr.mxu0 %v1879
    %1954 = vmatpush1.msra.mxu0 %v1878
    %1955 = vmatprep.subr.mxu0 %v1881
    %1956 = vmatpush1.msra.mxu0 %v1880
    %1957 = vmatprep.subr.mxu0 %v1883
    %1958 = vmatpush1.msra.mxu0 %v1882
    %1959 = vmatprep.subr.mxu0 %v1885
    %1960 = vmatpush1.msra.mxu0 %v1884
    %1961 = vmatprep.subr.mxu0 %v1887
    %1962 = vmatpush1.msra.mxu0 %v1886
    %1963 = vmatprep.subr.mxu0 %v1889
    %1964 = vmatpush1.msra.mxu0 %v1888
    %1965 = vmatprep.subr.mxu0 %v1891
    %1966 = vmatpush1.msra.mxu0 %v1890
    %1967 = vmatprep.subr.mxu0 %v1893
    %1968 = vmatpush1.msra.mxu0 %v1892
    %1969 = vmatprep.subr.mxu0 %v1895
    %1970 = vmatpush1.msra.mxu0 %v1894
    %1971 = vmatprep.subr.mxu0 %v1897
    %1972 = vmatpush1.msra.mxu0 %v1896
    %1973 = vmatprep.subr.mxu0 %v1899
    %1974 = vmatpush1.msra.mxu0 %v1898
    %1975 = vmatprep.subr.mxu0 %v1901
    %1976 = vmatpush1.msra.mxu0 %v1900
    %1977 = vmatprep.subr.mxu0 %v1903
    %1978 = vmatpush1.msra.mxu0 %v1902
    %1979 = vmatprep.subr.mxu0 %v1905
    %1980 = vmatpush1.msra.mxu0 %v1904
    %1981 = vmatprep.subr.mxu0 %v1907
    %1982 = vmatpush1.msra.mxu0 %v1906
    %1983 = vmatprep.mubr.f32.mxu0 %v1916
    %1984 = vmatmul.mubr.f32.gmra.mrb[0].mxu0 %v1912
    %v1985 = vpop.f32.mrb[0].mxu0
    %v1986 = vadd.f32 0.0, %v1985
    %v1987 = vpop.f32.mrb[0].mxu0
    %v1988 = vadd.f32 0.0, %v1987
    %1989 = vdwg.mxu0
    %v1992 = vcombine.low %v1986, %v1988
    %v1994 = vunpack.c.l.s4 1966171168
    %v1995 = vunpack.c.0.s8 %v1994
    %v1996 = vlaneseq
    %v1997 = vshrl.u32 %v1996, 7
    %v1998 = vsub.s32 %v1995, %v1997
    %v1999 = vrot.slane %v1992, %v1998
    %v2001 = vunpack.c.l.s4 1966171168
    %v2002 = vunpack.c.0.s8 %v2001
    %v2003 = vlaneseq
    %v2004 = vshrl.u32 %v2003, 7
    %v2005 = vsub.s32 %v2002, %v2004
    %v2006 = vrot.slane %v1999, %v2005
    %v2008 = vadd.f32 %v1843, %v2006
    %s2009 = scalar_lea.vmem [#allocation3], 18
    %v2010 = vld [vmem:[%s2009] ss:$8 sm:$0x3]
    %v2011 = vld [vmem:[#allocation2 + $0x10] sm:$0xff]
    %v2012 = vld [vmem:[#allocation2 + $0x18] sm:$0xff]
    %v2013 = vld [vmem:[#allocation2 + $0x50] sm:$0xff]
    %v2014 = vld [vmem:[#allocation2 + $0x58] sm:$0xff]
    %v2015 = vld [vmem:[#allocation2 + $0x90] sm:$0xff]
    %v2016 = vld [vmem:[#allocation2 + $0x98] sm:$0xff]
    %v2017 = vld [vmem:[#allocation2 + $0xd0] sm:$0xff]
    %v2018 = vld [vmem:[#allocation2 + $0xd8] sm:$0xff]
    %v2019 = vld [vmem:[#allocation2 + $0x110] sm:$0xff]
    %v2020 = vld [vmem:[#allocation2 + $0x118] sm:$0xff]
    %v2021 = vld [vmem:[#allocation2 + $0x150] sm:$0xff]
    %v2022 = vld [vmem:[#allocation2 + $0x158] sm:$0xff]
    %v2023 = vld [vmem:[#allocation2 + $0x190] sm:$0xff]
    %v2024 = vld [vmem:[#allocation2 + $0x198] sm:$0xff]
    %v2025 = vld [vmem:[#allocation2 + $0x1d0] sm:$0xff]
    %v2026 = vld [vmem:[#allocation2 + $0x1d8] sm:$0xff]
    %v2027 = vld [vmem:[#allocation2 + $0x210] sm:$0xff]
    %v2028 = vld [vmem:[#allocation2 + $0x218] sm:$0xff]
    %v2029 = vld [vmem:[#allocation2 + $0x250] sm:$0xff]
    %v2030 = vld [vmem:[#allocation2 + $0x258] sm:$0xff]
    %v2031 = vld [vmem:[#allocation2 + $0x290] sm:$0xff]
    %v2032 = vld [vmem:[#allocation2 + $0x298] sm:$0xff]
    %v2033 = vld [vmem:[#allocation2 + $0x2d0] sm:$0xff]
    %v2034 = vld [vmem:[#allocation2 + $0x2d8] sm:$0xff]
    %v2035 = vld [vmem:[#allocation2 + $0x310] sm:$0xff]
    %v2036 = vld [vmem:[#allocation2 + $0x318] sm:$0xff]
    %v2037 = vld [vmem:[#allocation2 + $0x350] sm:$0xff]
    %v2038 = vld [vmem:[#allocation2 + $0x358] sm:$0xff]
    %v2039 = vld [vmem:[#allocation2 + $0x390] sm:$0xff]
    %v2040 = vld [vmem:[#allocation2 + $0x398] sm:$0xff]
    %v2041 = vld [vmem:[#allocation2 + $0x3d0] sm:$0xff]
    %v2042 = vld [vmem:[#allocation2 + $0x3d8] sm:$0xff]
    %v2043 = vld [vmem:[#allocation2 + $0x410] sm:$0xff]
    %v2044 = vld [vmem:[#allocation2 + $0x418] sm:$0xff]
    %v2045 = vld [vmem:[#allocation2 + $0x450] sm:$0xff]
    %v2046 = vld [vmem:[#allocation2 + $0x458] sm:$0xff]
    %v2047 = vld [vmem:[#allocation2 + $0x490] sm:$0xff]
    %v2048 = vld [vmem:[#allocation2 + $0x498] sm:$0xff]
    %v2049 = vld [vmem:[#allocation2 + $0x4d0] sm:$0xff]
    %v2050 = vld [vmem:[#allocation2 + $0x4d8] sm:$0xff]
    %v2051 = vld [vmem:[#allocation2 + $0x510] sm:$0xff]
    %v2052 = vld [vmem:[#allocation2 + $0x518] sm:$0xff]
    %v2053 = vld [vmem:[#allocation2 + $0x550] sm:$0xff]
    %v2054 = vld [vmem:[#allocation2 + $0x558] sm:$0xff]
    %v2055 = vld [vmem:[#allocation2 + $0x590] sm:$0xff]
    %v2056 = vld [vmem:[#allocation2 + $0x598] sm:$0xff]
    %v2057 = vld [vmem:[#allocation2 + $0x5d0] sm:$0xff]
    %v2058 = vld [vmem:[#allocation2 + $0x5d8] sm:$0xff]
    %v2059 = vld [vmem:[#allocation2 + $0x610] sm:$0xff]
    %v2060 = vld [vmem:[#allocation2 + $0x618] sm:$0xff]
    %v2061 = vld [vmem:[#allocation2 + $0x650] sm:$0xff]
    %v2062 = vld [vmem:[#allocation2 + $0x658] sm:$0xff]
    %v2063 = vld [vmem:[#allocation2 + $0x690] sm:$0xff]
    %v2064 = vld [vmem:[#allocation2 + $0x698] sm:$0xff]
    %v2065 = vld [vmem:[#allocation2 + $0x6d0] sm:$0xff]
    %v2066 = vld [vmem:[#allocation2 + $0x6d8] sm:$0xff]
    %v2067 = vld [vmem:[#allocation2 + $0x710] sm:$0xff]
    %v2068 = vld [vmem:[#allocation2 + $0x718] sm:$0xff]
    %v2069 = vld [vmem:[#allocation2 + $0x750] sm:$0xff]
    %v2070 = vld [vmem:[#allocation2 + $0x758] sm:$0xff]
    %v2071 = vld [vmem:[#allocation2 + $0x790] sm:$0xff]
    %v2072 = vld [vmem:[#allocation2 + $0x798] sm:$0xff]
    %v2073 = vld [vmem:[#allocation2 + $0x7d0] sm:$0xff]
    %v2074 = vld [vmem:[#allocation2 + $0x7d8] sm:$0xff]
    %2075 = vmatprep.subr.mxu0 %v2012
    %2076 = vmatpush1.msra.mxu0 %v2011
    %2077 = vmatprep.subr.mxu0 %v2014
    %2078 = vmatpush1.msra.mxu0 %v2013
    %2079 = vmatprep.subr.mxu0 %v2016
    %2080 = vmatpush1.msra.mxu0 %v2015
    %2081 = vmatprep.subr.mxu0 %v2018
    %2082 = vmatpush1.msra.mxu0 %v2017
    %2083 = vmatprep.subr.mxu0 %v2020
    %2084 = vmatpush1.msra.mxu0 %v2019
    %2085 = vmatprep.subr.mxu0 %v2022
    %2086 = vmatpush1.msra.mxu0 %v2021
    %2087 = vmatprep.subr.mxu0 %v2024
    %2088 = vmatpush1.msra.mxu0 %v2023
    %2089 = vmatprep.subr.mxu0 %v2026
    %2090 = vmatpush1.msra.mxu0 %v2025
    %2091 = vmatprep.subr.mxu0 %v2028
    %2092 = vmatpush1.msra.mxu0 %v2027
    %2093 = vmatprep.subr.mxu0 %v2030
    %2094 = vmatpush1.msra.mxu0 %v2029
    %2095 = vmatprep.subr.mxu0 %v2032
    %2096 = vmatpush1.msra.mxu0 %v2031
    %2097 = vmatprep.subr.mxu0 %v2034
    %2098 = vmatpush1.msra.mxu0 %v2033
    %2099 = vmatprep.subr.mxu0 %v2036
    %2100 = vmatpush1.msra.mxu0 %v2035
    %2101 = vmatprep.subr.mxu0 %v2038
    %2102 = vmatpush1.msra.mxu0 %v2037
    %2103 = vmatprep.subr.mxu0 %v2040
    %2104 = vmatpush1.msra.mxu0 %v2039
    %2105 = vmatprep.subr.mxu0 %v2042
    %2106 = vmatpush1.msra.mxu0 %v2041
    %2107 = vmatprep.subr.mxu0 %v2044
    %2108 = vmatpush1.msra.mxu0 %v2043
    %2109 = vmatprep.subr.mxu0 %v2046
    %2110 = vmatpush1.msra.mxu0 %v2045
    %2111 = vmatprep.subr.mxu0 %v2048
    %2112 = vmatpush1.msra.mxu0 %v2047
    %2113 = vmatprep.subr.mxu0 %v2050
    %2114 = vmatpush1.msra.mxu0 %v2049
    %2115 = vmatprep.subr.mxu0 %v2052
    %2116 = vmatpush1.msra.mxu0 %v2051
    %2117 = vmatprep.subr.mxu0 %v2054
    %2118 = vmatpush1.msra.mxu0 %v2053
    %2119 = vmatprep.subr.mxu0 %v2056
    %2120 = vmatpush1.msra.mxu0 %v2055
    %2121 = vmatprep.subr.mxu0 %v2058
    %2122 = vmatpush1.msra.mxu0 %v2057
    %2123 = vmatprep.subr.mxu0 %v2060
    %2124 = vmatpush1.msra.mxu0 %v2059
    %2125 = vmatprep.subr.mxu0 %v2062
    %2126 = vmatpush1.msra.mxu0 %v2061
    %2127 = vmatprep.subr.mxu0 %v2064
    %2128 = vmatpush1.msra.mxu0 %v2063
    %2129 = vmatprep.subr.mxu0 %v2066
    %2130 = vmatpush1.msra.mxu0 %v2065
    %2131 = vmatprep.subr.mxu0 %v2068
    %2132 = vmatpush1.msra.mxu0 %v2067
    %2133 = vmatprep.subr.mxu0 %v2070
    %2134 = vmatpush1.msra.mxu0 %v2069
    %2135 = vmatprep.subr.mxu0 %v2072
    %2136 = vmatpush1.msra.mxu0 %v2071
    %2137 = vmatprep.subr.mxu0 %v2074
    %2138 = vmatpush1.msra.mxu0 %v2073
    %2139 = vmatprep.mubr.f32.mxu0 %v1916
    %2140 = vmatmul.mubr.f32.gmra.mrb[0].mxu0 %v1912
    %v2141 = vpop.f32.mrb[0].mxu0
    %v2142 = vadd.f32 0.0, %v2141
    %v2143 = vpop.f32.mrb[0].mxu0
    %v2144 = vadd.f32 0.0, %v2143
    %2145 = vdwg.mxu0
    %v2148 = vcombine.low %v2142, %v2144
    %v2150 = vunpack.c.l.s4 1966171168
    %v2151 = vunpack.c.0.s8 %v2150
    %v2152 = vlaneseq
    %v2153 = vshrl.u32 %v2152, 7
    %v2154 = vsub.s32 %v2151, %v2153
    %v2155 = vrot.slane %v2148, %v2154
    %v2157 = vunpack.c.l.s4 1966171168
    %v2158 = vunpack.c.0.s8 %v2157
    %v2159 = vlaneseq
    %v2160 = vshrl.u32 %v2159, 7
    %v2161 = vsub.s32 %v2158, %v2160
    %v2162 = vrot.slane %v2155, %v2161
    %v2164 = vadd.f32 %v2010, %v2162
    %s2165 = scalar_lea.vmem [#allocation3], 34
    %v2166 = vld [vmem:[%s2165] ss:$8 sm:$0x3]
    %v2167 = vld [vmem:[#allocation2 + $0x20] sm:$0xff]
    %v2168 = vld [vmem:[#allocation2 + $0x28] sm:$0xff]
    %v2169 = vld [vmem:[#allocation2 + $0x60] sm:$0xff]
    %v2170 = vld [vmem:[#allocation2 + $0x68] sm:$0xff]
    %v2171 = vld [vmem:[#allocation2 + $0xa0] sm:$0xff]
    %v2172 = vld [vmem:[#allocation2 + $0xa8] sm:$0xff]
    %v2173 = vld [vmem:[#allocation2 + $0xe0] sm:$0xff]
    %v2174 = vld [vmem:[#allocation2 + $0xe8] sm:$0xff]
    %v2175 = vld [vmem:[#allocation2 + $0x120] sm:$0xff]
    %v2176 = vld [vmem:[#allocation2 + $0x128] sm:$0xff]
    %v2177 = vld [vmem:[#allocation2 + $0x160] sm:$0xff]
    %v2178 = vld [vmem:[#allocation2 + $0x168] sm:$0xff]
    %v2179 = vld [vmem:[#allocation2 + $0x1a0] sm:$0xff]
    %v2180 = vld [vmem:[#allocation2 + $0x1a8] sm:$0xff]
    %v2181 = vld [vmem:[#allocation2 + $0x1e0] sm:$0xff]
    %v2182 = vld [vmem:[#allocation2 + $0x1e8] sm:$0xff]
    %v2183 = vld [vmem:[#allocation2 + $0x220] sm:$0xff]
    %v2184 = vld [vmem:[#allocation2 + $0x228] sm:$0xff]
    %v2185 = vld [vmem:[#allocation2 + $0x260] sm:$0xff]
    %v2186 = vld [vmem:[#allocation2 + $0x268] sm:$0xff]
    %v2187 = vld [vmem:[#allocation2 + $0x2a0] sm:$0xff]
    %v2188 = vld [vmem:[#allocation2 + $0x2a8] sm:$0xff]
    %v2189 = vld [vmem:[#allocation2 + $0x2e0] sm:$0xff]
    %v2190 = vld [vmem:[#allocation2 + $0x2e8] sm:$0xff]
    %v2191 = vld [vmem:[#allocation2 + $0x320] sm:$0xff]
    %v2192 = vld [vmem:[#allocation2 + $0x328] sm:$0xff]
    %v2193 = vld [vmem:[#allocation2 + $0x360] sm:$0xff]
    %v2194 = vld [vmem:[#allocation2 + $0x368] sm:$0xff]
    %v2195 = vld [vmem:[#allocation2 + $0x3a0] sm:$0xff]
    %v2196 = vld [vmem:[#allocation2 + $0x3a8] sm:$0xff]
    %v2197 = vld [vmem:[#allocation2 + $0x3e0] sm:$0xff]
    %v2198 = vld [vmem:[#allocation2 + $0x3e8] sm:$0xff]
    %v2199 = vld [vmem:[#allocation2 + $0x420] sm:$0xff]
    %v2200 = vld [vmem:[#allocation2 + $0x428] sm:$0xff]
    %v2201 = vld [vmem:[#allocation2 + $0x460] sm:$0xff]
    %v2202 = vld [vmem:[#allocation2 + $0x468] sm:$0xff]
    %v2203 = vld [vmem:[#allocation2 + $0x4a0] sm:$0xff]
    %v2204 = vld [vmem:[#allocation2 + $0x4a8] sm:$0xff]
    %v2205 = vld [vmem:[#allocation2 + $0x4e0] sm:$0xff]
    %v2206 = vld [vmem:[#allocation2 + $0x4e8] sm:$0xff]
    %v2207 = vld [vmem:[#allocation2 + $0x520] sm:$0xff]
    %v2208 = vld [vmem:[#allocation2 + $0x528] sm:$0xff]
    %v2209 = vld [vmem:[#allocation2 + $0x560] sm:$0xff]
    %v2210 = vld [vmem:[#allocation2 + $0x568] sm:$0xff]
    %v2211 = vld [vmem:[#allocation2 + $0x5a0] sm:$0xff]
    %v2212 = vld [vmem:[#allocation2 + $0x5a8] sm:$0xff]
    %v2213 = vld [vmem:[#allocation2 + $0x5e0] sm:$0xff]
    %v2214 = vld [vmem:[#allocation2 + $0x5e8] sm:$0xff]
    %v2215 = vld [vmem:[#allocation2 + $0x620] sm:$0xff]
    %v2216 = vld [vmem:[#allocation2 + $0x628] sm:$0xff]
    %v2217 = vld [vmem:[#allocation2 + $0x660] sm:$0xff]
    %v2218 = vld [vmem:[#allocation2 + $0x668] sm:$0xff]
    %v2219 = vld [vmem:[#allocation2 + $0x6a0] sm:$0xff]
    %v2220 = vld [vmem:[#allocation2 + $0x6a8] sm:$0xff]
    %v2221 = vld [vmem:[#allocation2 + $0x6e0] sm:$0xff]
    %v2222 = vld [vmem:[#allocation2 + $0x6e8] sm:$0xff]
    %v2223 = vld [vmem:[#allocation2 + $0x720] sm:$0xff]
    %v2224 = vld [vmem:[#allocation2 + $0x728] sm:$0xff]
    %v2225 = vld [vmem:[#allocation2 + $0x760] sm:$0xff]
    %v2226 = vld [vmem:[#allocation2 + $0x768] sm:$0xff]
    %v2227 = vld [vmem:[#allocation2 + $0x7a0] sm:$0xff]
    %v2228 = vld [vmem:[#allocation2 + $0x7a8] sm:$0xff]
    %v2229 = vld [vmem:[#allocation2 + $0x7e0] sm:$0xff]
    %v2230 = vld [vmem:[#allocation2 + $0x7e8] sm:$0xff]
    %2231 = vmatprep.subr.mxu0 %v2168
    %2232 = vmatpush1.msra.mxu0 %v2167
    %2233 = vmatprep.subr.mxu0 %v2170
    %2234 = vmatpush1.msra.mxu0 %v2169
    %2235 = vmatprep.subr.mxu0 %v2172
    %2236 = vmatpush1.msra.mxu0 %v2171
    %2237 = vmatprep.subr.mxu0 %v2174
    %2238 = vmatpush1.msra.mxu0 %v2173
    %2239 = vmatprep.subr.mxu0 %v2176
    %2240 = vmatpush1.msra.mxu0 %v2175
    %2241 = vmatprep.subr.mxu0 %v2178
    %2242 = vmatpush1.msra.mxu0 %v2177
    %2243 = vmatprep.subr.mxu0 %v2180
    %2244 = vmatpush1.msra.mxu0 %v2179
    %2245 = vmatprep.subr.mxu0 %v2182
    %2246 = vmatpush1.msra.mxu0 %v2181
    %2247 = vmatprep.subr.mxu0 %v2184
    %2248 = vmatpush1.msra.mxu0 %v2183
    %2249 = vmatprep.subr.mxu0 %v2186
    %2250 = vmatpush1.msra.mxu0 %v2185
    %2251 = vmatprep.subr.mxu0 %v2188
    %2252 = vmatpush1.msra.mxu0 %v2187
    %2253 = vmatprep.subr.mxu0 %v2190
    %2254 = vmatpush1.msra.mxu0 %v2189
    %2255 = vmatprep.subr.mxu0 %v2192
    %2256 = vmatpush1.msra.mxu0 %v2191
    %2257 = vmatprep.subr.mxu0 %v2194
    %2258 = vmatpush1.msra.mxu0 %v2193
    %2259 = vmatprep.subr.mxu0 %v2196
    %2260 = vmatpush1.msra.mxu0 %v2195
    %2261 = vmatprep.subr.mxu0 %v2198
    %2262 = vmatpush1.msra.mxu0 %v2197
    %2263 = vmatprep.subr.mxu0 %v2200
    %2264 = vmatpush1.msra.mxu0 %v2199
    %2265 = vmatprep.subr.mxu0 %v2202
    %2266 = vmatpush1.msra.mxu0 %v2201
    %2267 = vmatprep.subr.mxu0 %v2204
    %2268 = vmatpush1.msra.mxu0 %v2203
    %2269 = vmatprep.subr.mxu0 %v2206
    %2270 = vmatpush1.msra.mxu0 %v2205
    %2271 = vmatprep.subr.mxu0 %v2208
    %2272 = vmatpush1.msra.mxu0 %v2207
    %2273 = vmatprep.subr.mxu0 %v2210
    %2274 = vmatpush1.msra.mxu0 %v2209
    %2275 = vmatprep.subr.mxu0 %v2212
    %2276 = vmatpush1.msra.mxu0 %v2211
    %2277 = vmatprep.subr.mxu0 %v2214
    %2278 = vmatpush1.msra.mxu0 %v2213
    %2279 = vmatprep.subr.mxu0 %v2216
    %2280 = vmatpush1.msra.mxu0 %v2215
    %2281 = vmatprep.subr.mxu0 %v2218
    %2282 = vmatpush1.msra.mxu0 %v2217
    %2283 = vmatprep.subr.mxu0 %v2220
    %2284 = vmatpush1.msra.mxu0 %v2219
    %2285 = vmatprep.subr.mxu0 %v2222
    %2286 = vmatpush1.msra.mxu0 %v2221
    %2287 = vmatprep.subr.mxu0 %v2224
    %2288 = vmatpush1.msra.mxu0 %v2223
    %2289 = vmatprep.subr.mxu0 %v2226
    %2290 = vmatpush1.msra.mxu0 %v2225
    %2291 = vmatprep.subr.mxu0 %v2228
    %2292 = vmatpush1.msra.mxu0 %v2227
    %2293 = vmatprep.subr.mxu0 %v2230
    %2294 = vmatpush1.msra.mxu0 %v2229
    %2295 = vmatprep.mubr.f32.mxu0 %v1916
    %2296 = vmatmul.mubr.f32.gmra.mrb[0].mxu0 %v1912
    %v2297 = vpop.f32.mrb[0].mxu0
    %v2298 = vadd.f32 0.0, %v2297
    %v2299 = vpop.f32.mrb[0].mxu0
    %v2300 = vadd.f32 0.0, %v2299
    %2301 = vdwg.mxu0
    %v2304 = vcombine.low %v2298, %v2300
    %v2306 = vunpack.c.l.s4 1966171168
    %v2307 = vunpack.c.0.s8 %v2306
    %v2308 = vlaneseq
    %v2309 = vshrl.u32 %v2308, 7
    %v2310 = vsub.s32 %v2307, %v2309
    %v2311 = vrot.slane %v2304, %v2310
    %v2313 = vunpack.c.l.s4 1966171168
    %v2314 = vunpack.c.0.s8 %v2313
    %v2315 = vlaneseq
    %v2316 = vshrl.u32 %v2315, 7
    %v2317 = vsub.s32 %v2314, %v2316
    %v2318 = vrot.slane %v2311, %v2317
    %v2320 = vadd.f32 %v2166, %v2318
    %s2321 = scalar_lea.vmem [#allocation3], 50
    %v2322 = vld [vmem:[%s2321] ss:$8 sm:$0x3]
    %v2323 = vld [vmem:[#allocation2 + $0x30] sm:$0xff]
    %v2324 = vld [vmem:[#allocation2 + $0x38] sm:$0xff]
    %v2325 = vld [vmem:[#allocation2 + $0x70] sm:$0xff]
    %v2326 = vld [vmem:[#allocation2 + $0x78] sm:$0xff]
    %v2327 = vld [vmem:[#allocation2 + $0xb0] sm:$0xff]
    %v2328 = vld [vmem:[#allocation2 + $0xb8] sm:$0xff]
    %v2329 = vld [vmem:[#allocation2 + $0xf0] sm:$0xff]
    %v2330 = vld [vmem:[#allocation2 + $0xf8] sm:$0xff]
    %v2331 = vld [vmem:[#allocation2 + $0x130] sm:$0xff]
    %v2332 = vld [vmem:[#allocation2 + $0x138] sm:$0xff]
    %v2333 = vld [vmem:[#allocation2 + $0x170] sm:$0xff]
    %v2334 = vld [vmem:[#allocation2 + $0x178] sm:$0xff]
    %v2335 = vld [vmem:[#allocation2 + $0x1b0] sm:$0xff]
    %v2336 = vld [vmem:[#allocation2 + $0x1b8] sm:$0xff]
    %v2337 = vld [vmem:[#allocation2 + $0x1f0] sm:$0xff]
    %v2338 = vld [vmem:[#allocation2 + $0x1f8] sm:$0xff]
    %v2339 = vld [vmem:[#allocation2 + $0x230] sm:$0xff]
    %v2340 = vld [vmem:[#allocation2 + $0x238] sm:$0xff]
    %v2341 = vld [vmem:[#allocation2 + $0x270] sm:$0xff]
    %v2342 = vld [vmem:[#allocation2 + $0x278] sm:$0xff]
    %v2343 = vld [vmem:[#allocation2 + $0x2b0] sm:$0xff]
    %v2344 = vld [vmem:[#allocation2 + $0x2b8] sm:$0xff]
    %v2345 = vld [vmem:[#allocation2 + $0x2f0] sm:$0xff]
    %v2346 = vld [vmem:[#allocation2 + $0x2f8] sm:$0xff]
    %v2347 = vld [vmem:[#allocation2 + $0x330] sm:$0xff]
    %v2348 = vld [vmem:[#allocation2 + $0x338] sm:$0xff]
    %v2349 = vld [vmem:[#allocation2 + $0x370] sm:$0xff]
    %v2350 = vld [vmem:[#allocation2 + $0x378] sm:$0xff]
    %v2351 = vld [vmem:[#allocation2 + $0x3b0] sm:$0xff]
    %v2352 = vld [vmem:[#allocation2 + $0x3b8] sm:$0xff]
    %v2353 = vld [vmem:[#allocation2 + $0x3f0] sm:$0xff]
    %v2354 = vld [vmem:[#allocation2 + $0x3f8] sm:$0xff]
    %v2355 = vld [vmem:[#allocation2 + $0x430] sm:$0xff]
    %v2356 = vld [vmem:[#allocation2 + $0x438] sm:$0xff]
    %v2357 = vld [vmem:[#allocation2 + $0x470] sm:$0xff]
    %v2358 = vld [vmem:[#allocation2 + $0x478] sm:$0xff]
    %v2359 = vld [vmem:[#allocation2 + $0x4b0] sm:$0xff]
    %v2360 = vld [vmem:[#allocation2 + $0x4b8] sm:$0xff]
    %v2361 = vld [vmem:[#allocation2 + $0x4f0] sm:$0xff]
    %v2362 = vld [vmem:[#allocation2 + $0x4f8] sm:$0xff]
    %v2363 = vld [vmem:[#allocation2 + $0x530] sm:$0xff]
    %v2364 = vld [vmem:[#allocation2 + $0x538] sm:$0xff]
    %v2365 = vld [vmem:[#allocation2 + $0x570] sm:$0xff]
    %v2366 = vld [vmem:[#allocation2 + $0x578] sm:$0xff]
    %v2367 = vld [vmem:[#allocation2 + $0x5b0] sm:$0xff]
    %v2368 = vld [vmem:[#allocation2 + $0x5b8] sm:$0xff]
    %v2369 = vld [vmem:[#allocation2 + $0x5f0] sm:$0xff]
    %v2370 = vld [vmem:[#allocation2 + $0x5f8] sm:$0xff]
    %v2371 = vld [vmem:[#allocation2 + $0x630] sm:$0xff]
    %v2372 = vld [vmem:[#allocation2 + $0x638] sm:$0xff]
    %v2373 = vld [vmem:[#allocation2 + $0x670] sm:$0xff]
    %v2374 = vld [vmem:[#allocation2 + $0x678] sm:$0xff]
    %v2375 = vld [vmem:[#allocation2 + $0x6b0] sm:$0xff]
    %v2376 = vld [vmem:[#allocation2 + $0x6b8] sm:$0xff]
    %v2377 = vld [vmem:[#allocation2 + $0x6f0] sm:$0xff]
    %v2378 = vld [vmem:[#allocation2 + $0x6f8] sm:$0xff]
    %v2379 = vld [vmem:[#allocation2 + $0x730] sm:$0xff]
    %v2380 = vld [vmem:[#allocation2 + $0x738] sm:$0xff]
    %v2381 = vld [vmem:[#allocation2 + $0x770] sm:$0xff]
    %v2382 = vld [vmem:[#allocation2 + $0x778] sm:$0xff]
    %v2383 = vld [vmem:[#allocation2 + $0x7b0] sm:$0xff]
    %v2384 = vld [vmem:[#allocation2 + $0x7b8] sm:$0xff]
    %v2385 = vld [vmem:[#allocation2 + $0x7f0] sm:$0xff]
    %v2386 = vld [vmem:[#allocation2 + $0x7f8] sm:$0xff]
    %2387 = vmatprep.subr.mxu0 %v2324
    %2388 = vmatpush1.msra.mxu0 %v2323
    %2389 = vmatprep.subr.mxu0 %v2326
    %2390 = vmatpush1.msra.mxu0 %v2325
    %2391 = vmatprep.subr.mxu0 %v2328
    %2392 = vmatpush1.msra.mxu0 %v2327
    %2393 = vmatprep.subr.mxu0 %v2330
    %2394 = vmatpush1.msra.mxu0 %v2329
    %2395 = vmatprep.subr.mxu0 %v2332
    %2396 = vmatpush1.msra.mxu0 %v2331
    %2397 = vmatprep.subr.mxu0 %v2334
    %2398 = vmatpush1.msra.mxu0 %v2333
    %2399 = vmatprep.subr.mxu0 %v2336
    %2400 = vmatpush1.msra.mxu0 %v2335
    %2401 = vmatprep.subr.mxu0 %v2338
    %2402 = vmatpush1.msra.mxu0 %v2337
    %2403 = vmatprep.subr.mxu0 %v2340
    %2404 = vmatpush1.msra.mxu0 %v2339
    %2405 = vmatprep.subr.mxu0 %v2342
    %2406 = vmatpush1.msra.mxu0 %v2341
    %2407 = vmatprep.subr.mxu0 %v2344
    %2408 = vmatpush1.msra.mxu0 %v2343
    %2409 = vmatprep.subr.mxu0 %v2346
    %2410 = vmatpush1.msra.mxu0 %v2345
    %2411 = vmatprep.subr.mxu0 %v2348
    %2412 = vmatpush1.msra.mxu0 %v2347
    %2413 = vmatprep.subr.mxu0 %v2350
    %2414 = vmatpush1.msra.mxu0 %v2349
    %2415 = vmatprep.subr.mxu0 %v2352
    %2416 = vmatpush1.msra.mxu0 %v2351
    %2417 = vmatprep.subr.mxu0 %v2354
    %2418 = vmatpush1.msra.mxu0 %v2353
    %2419 = vmatprep.subr.mxu0 %v2356
    %2420 = vmatpush1.msra.mxu0 %v2355
    %2421 = vmatprep.subr.mxu0 %v2358
    %2422 = vmatpush1.msra.mxu0 %v2357
    %2423 = vmatprep.subr.mxu0 %v2360
    %2424 = vmatpush1.msra.mxu0 %v2359
    %2425 = vmatprep.subr.mxu0 %v2362
    %2426 = vmatpush1.msra.mxu0 %v2361
    %2427 = vmatprep.subr.mxu0 %v2364
    %2428 = vmatpush1.msra.mxu0 %v2363
    %2429 = vmatprep.subr.mxu0 %v2366
    %2430 = vmatpush1.msra.mxu0 %v2365
    %2431 = vmatprep.subr.mxu0 %v2368
    %2432 = vmatpush1.msra.mxu0 %v2367
    %2433 = vmatprep.subr.mxu0 %v2370
    %2434 = vmatpush1.msra.mxu0 %v2369
    %2435 = vmatprep.subr.mxu0 %v2372
    %2436 = vmatpush1.msra.mxu0 %v2371
    %2437 = vmatprep.subr.mxu0 %v2374
    %2438 = vmatpush1.msra.mxu0 %v2373
    %2439 = vmatprep.subr.mxu0 %v2376
    %2440 = vmatpush1.msra.mxu0 %v2375
    %2441 = vmatprep.subr.mxu0 %v2378
    %2442 = vmatpush1.msra.mxu0 %v2377
    %2443 = vmatprep.subr.mxu0 %v2380
    %2444 = vmatpush1.msra.mxu0 %v2379
    %2445 = vmatprep.subr.mxu0 %v2382
    %2446 = vmatpush1.msra.mxu0 %v2381
    %2447 = vmatprep.subr.mxu0 %v2384
    %2448 = vmatpush1.msra.mxu0 %v2383
    %2449 = vmatprep.subr.mxu0 %v2386
    %2450 = vmatpush1.msra.mxu0 %v2385
    %2451 = vmatprep.mubr.f32.mxu0 %v1916
    %2452 = vmatmul.mubr.f32.gmra.mrb[0].mxu0 %v1912
    %v2453 = vpop.f32.mrb[0].mxu0
    %v2454 = vadd.f32 0.0, %v2453
    %v2455 = vpop.f32.mrb[0].mxu0
    %v2456 = vadd.f32 0.0, %v2455
    %2457 = vdwg.mxu0
    %v2460 = vcombine.low %v2454, %v2456
    %v2462 = vunpack.c.l.s4 1966171168
    %v2463 = vunpack.c.0.s8 %v2462
    %v2464 = vlaneseq
    %v2465 = vshrl.u32 %v2464, 7
    %v2466 = vsub.s32 %v2463, %v2465
    %v2467 = vrot.slane %v2460, %v2466
    %v2469 = vunpack.c.l.s4 1966171168
    %v2470 = vunpack.c.0.s8 %v2469
    %v2471 = vlaneseq
    %v2472 = vshrl.u32 %v2471, 7
    %v2473 = vsub.s32 %v2470, %v2472
    %v2474 = vrot.slane %v2467, %v2473
    %v2476 = vadd.f32 %v2322, %v2474
    %v2477 = vxor.u32 %v2008, 2147483648
    %v2478 = vmul.f32 %v2477, 1.442695
    %v2479 = vpow.pop %v2478
    %v2480 = vadd.f32 %v2479, 1.0
    %v2481 = vrcp.pop %v2480
    %v2482 = vmul.f32 1.0, %v2481
    %v2483 = vxor.u32 %v2164, 2147483648
    %v2484 = vmul.f32 %v2483, 1.442695
    %v2485 = vpow.pop %v2484
    %v2486 = vadd.f32 %v2485, 1.0
    %v2487 = vrcp.pop %v2486
    %v2488 = vmul.f32 1.0, %v2487
    %v2489 = vtanh.pop %v2320
    %v2490 = vmul.f32 %v2488, %v1830
    %v2491 = vmul.f32 %v2482, %v2489
    %v2492 = vadd.f32 %v2490, %v2491
    %v2493 = vtanh.pop %v2492
    %v2494 = vxor.u32 %v2476, 2147483648
    %v2495 = vmul.f32 %v2494, 1.442695
    %v2496 = vpow.pop %v2495
    %v2497 = vadd.f32 %v2496, 1.0
    %v2498 = vrcp.pop %v2497
    %v2499 = vmul.f32 1.0, %v2498
    %v2500 = vmul.f32 %v2499, %v2493
    %s2501 = scalar_lea.vmem [#allocation4], 2
    %2502 = vst.msk [vmem:[%s2501] ss:$8 sm:$0x3] %vm1177, %v2500
    %2503 = vst.msk [vmem:[%s2501] ss:$8 sm:$0x0] %vm1177, %v2500
    %s2504 = scalar_lea.vmem [#allocation3], 3
    %v2505 = vld [vmem:[%s2504] ss:$8 sm:$0x3]
    %v2506 = vld [vmem:[#allocation2] sm:$0xff]
    %v2507 = vld [vmem:[#allocation2 + $0x8] sm:$0xff]
    %v2508 = vld [vmem:[#allocation2 + $0x40] sm:$0xff]
    %v2509 = vld [vmem:[#allocation2 + $0x48] sm:$0xff]
    %v2510 = vld [vmem:[#allocation2 + $0x80] sm:$0xff]
    %v2511 = vld [vmem:[#allocation2 + $0x88] sm:$0xff]
    %v2512 = vld [vmem:[#allocation2 + $0xc0] sm:$0xff]
    %v2513 = vld [vmem:[#allocation2 + $0xc8] sm:$0xff]
    %v2514 = vld [vmem:[#allocation2 + $0x100] sm:$0xff]
    %v2515 = vld [vmem:[#allocation2 + $0x108] sm:$0xff]
    %v2516 = vld [vmem:[#allocation2 + $0x140] sm:$0xff]
    %v2517 = vld [vmem:[#allocation2 + $0x148] sm:$0xff]
    %v2518 = vld [vmem:[#allocation2 + $0x180] sm:$0xff]
    %v2519 = vld [vmem:[#allocation2 + $0x188] sm:$0xff]
    %v2520 = vld [vmem:[#allocation2 + $0x1c0] sm:$0xff]
    %v2521 = vld [vmem:[#allocation2 + $0x1c8] sm:$0xff]
    %v2522 = vld [vmem:[#allocation2 + $0x200] sm:$0xff]
    %v2523 = vld [vmem:[#allocation2 + $0x208] sm:$0xff]
    %v2524 = vld [vmem:[#allocation2 + $0x240] sm:$0xff]
    %v2525 = vld [vmem:[#allocation2 + $0x248] sm:$0xff]
    %v2526 = vld [vmem:[#allocation2 + $0x280] sm:$0xff]
    %v2527 = vld [vmem:[#allocation2 + $0x288] sm:$0xff]
    %v2528 = vld [vmem:[#allocation2 + $0x2c0] sm:$0xff]
    %v2529 = vld [vmem:[#allocation2 + $0x2c8] sm:$0xff]
    %v2530 = vld [vmem:[#allocation2 + $0x300] sm:$0xff]
    %v2531 = vld [vmem:[#allocation2 + $0x308] sm:$0xff]
    %v2532 = vld [vmem:[#allocation2 + $0x340] sm:$0xff]
    %v2533 = vld [vmem:[#allocation2 + $0x348] sm:$0xff]
    %v2534 = vld [vmem:[#allocation2 + $0x380] sm:$0xff]
    %v2535 = vld [vmem:[#allocation2 + $0x388] sm:$0xff]
    %v2536 = vld [vmem:[#allocation2 + $0x3c0] sm:$0xff]
    %v2537 = vld [vmem:[#allocation2 + $0x3c8] sm:$0xff]
    %v2538 = vld [vmem:[#allocation2 + $0x400] sm:$0xff]
    %v2539 = vld [vmem:[#allocation2 + $0x408] sm:$0xff]
    %v2540 = vld [vmem:[#allocation2 + $0x440] sm:$0xff]
    %v2541 = vld [vmem:[#allocation2 + $0x448] sm:$0xff]
    %v2542 = vld [vmem:[#allocation2 + $0x480] sm:$0xff]
    %v2543 = vld [vmem:[#allocation2 + $0x488] sm:$0xff]
    %v2544 = vld [vmem:[#allocation2 + $0x4c0] sm:$0xff]
    %v2545 = vld [vmem:[#allocation2 + $0x4c8] sm:$0xff]
    %v2546 = vld [vmem:[#allocation2 + $0x500] sm:$0xff]
    %v2547 = vld [vmem:[#allocation2 + $0x508] sm:$0xff]
    %v2548 = vld [vmem:[#allocation2 + $0x540] sm:$0xff]
    %v2549 = vld [vmem:[#allocation2 + $0x548] sm:$0xff]
    %v2550 = vld [vmem:[#allocation2 + $0x580] sm:$0xff]
    %v2551 = vld [vmem:[#allocation2 + $0x588] sm:$0xff]
    %v2552 = vld [vmem:[#allocation2 + $0x5c0] sm:$0xff]
    %v2553 = vld [vmem:[#allocation2 + $0x5c8] sm:$0xff]
    %v2554 = vld [vmem:[#allocation2 + $0x600] sm:$0xff]
    %v2555 = vld [vmem:[#allocation2 + $0x608] sm:$0xff]
    %v2556 = vld [vmem:[#allocation2 + $0x640] sm:$0xff]
    %v2557 = vld [vmem:[#allocation2 + $0x648] sm:$0xff]
    %v2558 = vld [vmem:[#allocation2 + $0x680] sm:$0xff]
    %v2559 = vld [vmem:[#allocation2 + $0x688] sm:$0xff]
    %v2560 = vld [vmem:[#allocation2 + $0x6c0] sm:$0xff]
    %v2561 = vld [vmem:[#allocation2 + $0x6c8] sm:$0xff]
    %v2562 = vld [vmem:[#allocation2 + $0x700] sm:$0xff]
    %v2563 = vld [vmem:[#allocation2 + $0x708] sm:$0xff]
    %v2564 = vld [vmem:[#allocation2 + $0x740] sm:$0xff]
    %v2565 = vld [vmem:[#allocation2 + $0x748] sm:$0xff]
    %v2566 = vld [vmem:[#allocation2 + $0x780] sm:$0xff]
    %v2567 = vld [vmem:[#allocation2 + $0x788] sm:$0xff]
    %v2568 = vld [vmem:[#allocation2 + $0x7c0] sm:$0xff]
    %v2569 = vld [vmem:[#allocation2 + $0x7c8] sm:$0xff]
    %v2571 = vlaneseq
    %v2572 = vshrl.u32 %v2571, 7
    %v2573 = vsub.s32 0, %v2572
    %v2574 = vrot.slane %v2500, %v2573
    %v2575 = vlaneseq
    %v2576 = vshrl.u32 %v2575, 7
    %v2577 = vsub.s32 1, %v2576
    %v2578 = vrot.slane %v2500, %v2577
    %2581 = vmatprep.subr.mxu0 %v2507
    %2582 = vmatpush1.msra.mxu0 %v2506
    %2583 = vmatprep.subr.mxu0 %v2509
    %2584 = vmatpush1.msra.mxu0 %v2508
    %2585 = vmatprep.subr.mxu0 %v2511
    %2586 = vmatpush1.msra.mxu0 %v2510
    %2587 = vmatprep.subr.mxu0 %v2513
    %2588 = vmatpush1.msra.mxu0 %v2512
    %2589 = vmatprep.subr.mxu0 %v2515
    %2590 = vmatpush1.msra.mxu0 %v2514
    %2591 = vmatprep.subr.mxu0 %v2517
    %2592 = vmatpush1.msra.mxu0 %v2516
    %2593 = vmatprep.subr.mxu0 %v2519
    %2594 = vmatpush1.msra.mxu0 %v2518
    %2595 = vmatprep.subr.mxu0 %v2521
    %2596 = vmatpush1.msra.mxu0 %v2520
    %2597 = vmatprep.subr.mxu0 %v2523
    %2598 = vmatpush1.msra.mxu0 %v2522
    %2599 = vmatprep.subr.mxu0 %v2525
    %2600 = vmatpush1.msra.mxu0 %v2524
    %2601 = vmatprep.subr.mxu0 %v2527
    %2602 = vmatpush1.msra.mxu0 %v2526
    %2603 = vmatprep.subr.mxu0 %v2529
    %2604 = vmatpush1.msra.mxu0 %v2528
    %2605 = vmatprep.subr.mxu0 %v2531
    %2606 = vmatpush1.msra.mxu0 %v2530
    %2607 = vmatprep.subr.mxu0 %v2533
    %2608 = vmatpush1.msra.mxu0 %v2532
    %2609 = vmatprep.subr.mxu0 %v2535
    %2610 = vmatpush1.msra.mxu0 %v2534
    %2611 = vmatprep.subr.mxu0 %v2537
    %2612 = vmatpush1.msra.mxu0 %v2536
    %2613 = vmatprep.subr.mxu0 %v2539
    %2614 = vmatpush1.msra.mxu0 %v2538
    %2615 = vmatprep.subr.mxu0 %v2541
    %2616 = vmatpush1.msra.mxu0 %v2540
    %2617 = vmatprep.subr.mxu0 %v2543
    %2618 = vmatpush1.msra.mxu0 %v2542
    %2619 = vmatprep.subr.mxu0 %v2545
    %2620 = vmatpush1.msra.mxu0 %v2544
    %2621 = vmatprep.subr.mxu0 %v2547
    %2622 = vmatpush1.msra.mxu0 %v2546
    %2623 = vmatprep.subr.mxu0 %v2549
    %2624 = vmatpush1.msra.mxu0 %v2548
    %2625 = vmatprep.subr.mxu0 %v2551
    %2626 = vmatpush1.msra.mxu0 %v2550
    %2627 = vmatprep.subr.mxu0 %v2553
    %2628 = vmatpush1.msra.mxu0 %v2552
    %2629 = vmatprep.subr.mxu0 %v2555
    %2630 = vmatpush1.msra.mxu0 %v2554
    %2631 = vmatprep.subr.mxu0 %v2557
    %2632 = vmatpush1.msra.mxu0 %v2556
    %2633 = vmatprep.subr.mxu0 %v2559
    %2634 = vmatpush1.msra.mxu0 %v2558
    %2635 = vmatprep.subr.mxu0 %v2561
    %2636 = vmatpush1.msra.mxu0 %v2560
    %2637 = vmatprep.subr.mxu0 %v2563
    %2638 = vmatpush1.msra.mxu0 %v2562
    %2639 = vmatprep.subr.mxu0 %v2565
    %2640 = vmatpush1.msra.mxu0 %v2564
    %2641 = vmatprep.subr.mxu0 %v2567
    %2642 = vmatpush1.msra.mxu0 %v2566
    %2643 = vmatprep.subr.mxu0 %v2569
    %2644 = vmatpush1.msra.mxu0 %v2568
    %2645 = vmatprep.mubr.f32.mxu0 %v2578
    %2646 = vmatmul.mubr.f32.gmra.mrb[0].mxu0 %v2574
    %v2647 = vpop.f32.mrb[0].mxu0
    %v2648 = vadd.f32 0.0, %v2647
    %v2649 = vpop.f32.mrb[0].mxu0
    %v2650 = vadd.f32 0.0, %v2649
    %2651 = vdwg.mxu0
    %v2654 = vcombine.low %v2648, %v2650
    %v2656 = vunpack.c.l.s4 1966171168
    %v2657 = vunpack.c.0.s8 %v2656
    %v2658 = vlaneseq
    %v2659 = vshrl.u32 %v2658, 7
    %v2660 = vsub.s32 %v2657, %v2659
    %v2661 = vrot.slane %v2654, %v2660
    %v2663 = vunpack.c.l.s4 1966171168
    %v2664 = vunpack.c.0.s8 %v2663
    %v2665 = vlaneseq
    %v2666 = vshrl.u32 %v2665, 7
    %v2667 = vsub.s32 %v2664, %v2666
    %v2668 = vrot.slane %v2661, %v2667
    %v2670 = vadd.f32 %v2505, %v2668
    %s2671 = scalar_lea.vmem [#allocation3], 19
    %v2672 = vld [vmem:[%s2671] ss:$8 sm:$0x3]
    %v2673 = vld [vmem:[#allocation2 + $0x10] sm:$0xff]
    %v2674 = vld [vmem:[#allocation2 + $0x18] sm:$0xff]
    %v2675 = vld [vmem:[#allocation2 + $0x50] sm:$0xff]
    %v2676 = vld [vmem:[#allocation2 + $0x58] sm:$0xff]
    %v2677 = vld [vmem:[#allocation2 + $0x90] sm:$0xff]
    %v2678 = vld [vmem:[#allocation2 + $0x98] sm:$0xff]
    %v2679 = vld [vmem:[#allocation2 + $0xd0] sm:$0xff]
    %v2680 = vld [vmem:[#allocation2 + $0xd8] sm:$0xff]
    %v2681 = vld [vmem:[#allocation2 + $0x110] sm:$0xff]
    %v2682 = vld [vmem:[#allocation2 + $0x118] sm:$0xff]
    %v2683 = vld [vmem:[#allocation2 + $0x150] sm:$0xff]
    %v2684 = vld [vmem:[#allocation2 + $0x158] sm:$0xff]
    %v2685 = vld [vmem:[#allocation2 + $0x190] sm:$0xff]
    %v2686 = vld [vmem:[#allocation2 + $0x198] sm:$0xff]
    %v2687 = vld [vmem:[#allocation2 + $0x1d0] sm:$0xff]
    %v2688 = vld [vmem:[#allocation2 + $0x1d8] sm:$0xff]
    %v2689 = vld [vmem:[#allocation2 + $0x210] sm:$0xff]
    %v2690 = vld [vmem:[#allocation2 + $0x218] sm:$0xff]
    %v2691 = vld [vmem:[#allocation2 + $0x250] sm:$0xff]
    %v2692 = vld [vmem:[#allocation2 + $0x258] sm:$0xff]
    %v2693 = vld [vmem:[#allocation2 + $0x290] sm:$0xff]
    %v2694 = vld [vmem:[#allocation2 + $0x298] sm:$0xff]
    %v2695 = vld [vmem:[#allocation2 + $0x2d0] sm:$0xff]
    %v2696 = vld [vmem:[#allocation2 + $0x2d8] sm:$0xff]
    %v2697 = vld [vmem:[#allocation2 + $0x310] sm:$0xff]
    %v2698 = vld [vmem:[#allocation2 + $0x318] sm:$0xff]
    %v2699 = vld [vmem:[#allocation2 + $0x350] sm:$0xff]
    %v2700 = vld [vmem:[#allocation2 + $0x358] sm:$0xff]
    %v2701 = vld [vmem:[#allocation2 + $0x390] sm:$0xff]
    %v2702 = vld [vmem:[#allocation2 + $0x398] sm:$0xff]
    %v2703 = vld [vmem:[#allocation2 + $0x3d0] sm:$0xff]
    %v2704 = vld [vmem:[#allocation2 + $0x3d8] sm:$0xff]
    %v2705 = vld [vmem:[#allocation2 + $0x410] sm:$0xff]
    %v2706 = vld [vmem:[#allocation2 + $0x418] sm:$0xff]
    %v2707 = vld [vmem:[#allocation2 + $0x450] sm:$0xff]
    %v2708 = vld [vmem:[#allocation2 + $0x458] sm:$0xff]
    %v2709 = vld [vmem:[#allocation2 + $0x490] sm:$0xff]
    %v2710 = vld [vmem:[#allocation2 + $0x498] sm:$0xff]
    %v2711 = vld [vmem:[#allocation2 + $0x4d0] sm:$0xff]
    %v2712 = vld [vmem:[#allocation2 + $0x4d8] sm:$0xff]
    %v2713 = vld [vmem:[#allocation2 + $0x510] sm:$0xff]
    %v2714 = vld [vmem:[#allocation2 + $0x518] sm:$0xff]
    %v2715 = vld [vmem:[#allocation2 + $0x550] sm:$0xff]
    %v2716 = vld [vmem:[#allocation2 + $0x558] sm:$0xff]
    %v2717 = vld [vmem:[#allocation2 + $0x590] sm:$0xff]
    %v2718 = vld [vmem:[#allocation2 + $0x598] sm:$0xff]
    %v2719 = vld [vmem:[#allocation2 + $0x5d0] sm:$0xff]
    %v2720 = vld [vmem:[#allocation2 + $0x5d8] sm:$0xff]
    %v2721 = vld [vmem:[#allocation2 + $0x610] sm:$0xff]
    %v2722 = vld [vmem:[#allocation2 + $0x618] sm:$0xff]
    %v2723 = vld [vmem:[#allocation2 + $0x650] sm:$0xff]
    %v2724 = vld [vmem:[#allocation2 + $0x658] sm:$0xff]
    %v2725 = vld [vmem:[#allocation2 + $0x690] sm:$0xff]
    %v2726 = vld [vmem:[#allocation2 + $0x698] sm:$0xff]
    %v2727 = vld [vmem:[#allocation2 + $0x6d0] sm:$0xff]
    %v2728 = vld [vmem:[#allocation2 + $0x6d8] sm:$0xff]
    %v2729 = vld [vmem:[#allocation2 + $0x710] sm:$0xff]
    %v2730 = vld [vmem:[#allocation2 + $0x718] sm:$0xff]
    %v2731 = vld [vmem:[#allocation2 + $0x750] sm:$0xff]
    %v2732 = vld [vmem:[#allocation2 + $0x758] sm:$0xff]
    %v2733 = vld [vmem:[#allocation2 + $0x790] sm:$0xff]
    %v2734 = vld [vmem:[#allocation2 + $0x798] sm:$0xff]
    %v2735 = vld [vmem:[#allocation2 + $0x7d0] sm:$0xff]
    %v2736 = vld [vmem:[#allocation2 + $0x7d8] sm:$0xff]
    %2737 = vmatprep.subr.mxu0 %v2674
    %2738 = vmatpush1.msra.mxu0 %v2673
    %2739 = vmatprep.subr.mxu0 %v2676
    %2740 = vmatpush1.msra.mxu0 %v2675
    %2741 = vmatprep.subr.mxu0 %v2678
    %2742 = vmatpush1.msra.mxu0 %v2677
    %2743 = vmatprep.subr.mxu0 %v2680
    %2744 = vmatpush1.msra.mxu0 %v2679
    %2745 = vmatprep.subr.mxu0 %v2682
    %2746 = vmatpush1.msra.mxu0 %v2681
    %2747 = vmatprep.subr.mxu0 %v2684
    %2748 = vmatpush1.msra.mxu0 %v2683
    %2749 = vmatprep.subr.mxu0 %v2686
    %2750 = vmatpush1.msra.mxu0 %v2685
    %2751 = vmatprep.subr.mxu0 %v2688
    %2752 = vmatpush1.msra.mxu0 %v2687
    %2753 = vmatprep.subr.mxu0 %v2690
    %2754 = vmatpush1.msra.mxu0 %v2689
    %2755 = vmatprep.subr.mxu0 %v2692
    %2756 = vmatpush1.msra.mxu0 %v2691
    %2757 = vmatprep.subr.mxu0 %v2694
    %2758 = vmatpush1.msra.mxu0 %v2693
    %2759 = vmatprep.subr.mxu0 %v2696
    %2760 = vmatpush1.msra.mxu0 %v2695
    %2761 = vmatprep.subr.mxu0 %v2698
    %2762 = vmatpush1.msra.mxu0 %v2697
    %2763 = vmatprep.subr.mxu0 %v2700
    %2764 = vmatpush1.msra.mxu0 %v2699
    %2765 = vmatprep.subr.mxu0 %v2702
    %2766 = vmatpush1.msra.mxu0 %v2701
    %2767 = vmatprep.subr.mxu0 %v2704
    %2768 = vmatpush1.msra.mxu0 %v2703
    %2769 = vmatprep.subr.mxu0 %v2706
    %2770 = vmatpush1.msra.mxu0 %v2705
    %2771 = vmatprep.subr.mxu0 %v2708
    %2772 = vmatpush1.msra.mxu0 %v2707
    %2773 = vmatprep.subr.mxu0 %v2710
    %2774 = vmatpush1.msra.mxu0 %v2709
    %2775 = vmatprep.subr.mxu0 %v2712
    %2776 = vmatpush1.msra.mxu0 %v2711
    %2777 = vmatprep.subr.mxu0 %v2714
    %2778 = vmatpush1.msra.mxu0 %v2713
    %2779 = vmatprep.subr.mxu0 %v2716
    %2780 = vmatpush1.msra.mxu0 %v2715
    %2781 = vmatprep.subr.mxu0 %v2718
    %2782 = vmatpush1.msra.mxu0 %v2717
    %2783 = vmatprep.subr.mxu0 %v2720
    %2784 = vmatpush1.msra.mxu0 %v2719
    %2785 = vmatprep.subr.mxu0 %v2722
    %2786 = vmatpush1.msra.mxu0 %v2721
    %2787 = vmatprep.subr.mxu0 %v2724
    %2788 = vmatpush1.msra.mxu0 %v2723
    %2789 = vmatprep.subr.mxu0 %v2726
    %2790 = vmatpush1.msra.mxu0 %v2725
    %2791 = vmatprep.subr.mxu0 %v2728
    %2792 = vmatpush1.msra.mxu0 %v2727
    %2793 = vmatprep.subr.mxu0 %v2730
    %2794 = vmatpush1.msra.mxu0 %v2729
    %2795 = vmatprep.subr.mxu0 %v2732
    %2796 = vmatpush1.msra.mxu0 %v2731
    %2797 = vmatprep.subr.mxu0 %v2734
    %2798 = vmatpush1.msra.mxu0 %v2733
    %2799 = vmatprep.subr.mxu0 %v2736
    %2800 = vmatpush1.msra.mxu0 %v2735
    %2801 = vmatprep.mubr.f32.mxu0 %v2578
    %2802 = vmatmul.mubr.f32.gmra.mrb[0].mxu0 %v2574
    %v2803 = vpop.f32.mrb[0].mxu0
    %v2804 = vadd.f32 0.0, %v2803
    %v2805 = vpop.f32.mrb[0].mxu0
    %v2806 = vadd.f32 0.0, %v2805
    %2807 = vdwg.mxu0
    %v2810 = vcombine.low %v2804, %v2806
    %v2812 = vunpack.c.l.s4 1966171168
    %v2813 = vunpack.c.0.s8 %v2812
    %v2814 = vlaneseq
    %v2815 = vshrl.u32 %v2814, 7
    %v2816 = vsub.s32 %v2813, %v2815
    %v2817 = vrot.slane %v2810, %v2816
    %v2819 = vunpack.c.l.s4 1966171168
    %v2820 = vunpack.c.0.s8 %v2819
    %v2821 = vlaneseq
    %v2822 = vshrl.u32 %v2821, 7
    %v2823 = vsub.s32 %v2820, %v2822
    %v2824 = vrot.slane %v2817, %v2823
    %v2826 = vadd.f32 %v2672, %v2824
    %s2827 = scalar_lea.vmem [#allocation3], 35
    %v2828 = vld [vmem:[%s2827] ss:$8 sm:$0x3]
    %v2829 = vld [vmem:[#allocation2 + $0x20] sm:$0xff]
    %v2830 = vld [vmem:[#allocation2 + $0x28] sm:$0xff]
    %v2831 = vld [vmem:[#allocation2 + $0x60] sm:$0xff]
    %v2832 = vld [vmem:[#allocation2 + $0x68] sm:$0xff]
    %v2833 = vld [vmem:[#allocation2 + $0xa0] sm:$0xff]
    %v2834 = vld [vmem:[#allocation2 + $0xa8] sm:$0xff]
    %v2835 = vld [vmem:[#allocation2 + $0xe0] sm:$0xff]
    %v2836 = vld [vmem:[#allocation2 + $0xe8] sm:$0xff]
    %v2837 = vld [vmem:[#allocation2 + $0x120] sm:$0xff]
    %v2838 = vld [vmem:[#allocation2 + $0x128] sm:$0xff]
    %v2839 = vld [vmem:[#allocation2 + $0x160] sm:$0xff]
    %v2840 = vld [vmem:[#allocation2 + $0x168] sm:$0xff]
    %v2841 = vld [vmem:[#allocation2 + $0x1a0] sm:$0xff]
    %v2842 = vld [vmem:[#allocation2 + $0x1a8] sm:$0xff]
    %v2843 = vld [vmem:[#allocation2 + $0x1e0] sm:$0xff]
    %v2844 = vld [vmem:[#allocation2 + $0x1e8] sm:$0xff]
    %v2845 = vld [vmem:[#allocation2 + $0x220] sm:$0xff]
    %v2846 = vld [vmem:[#allocation2 + $0x228] sm:$0xff]
    %v2847 = vld [vmem:[#allocation2 + $0x260] sm:$0xff]
    %v2848 = vld [vmem:[#allocation2 + $0x268] sm:$0xff]
    %v2849 = vld [vmem:[#allocation2 + $0x2a0] sm:$0xff]
    %v2850 = vld [vmem:[#allocation2 + $0x2a8] sm:$0xff]
    %v2851 = vld [vmem:[#allocation2 + $0x2e0] sm:$0xff]
    %v2852 = vld [vmem:[#allocation2 + $0x2e8] sm:$0xff]
    %v2853 = vld [vmem:[#allocation2 + $0x320] sm:$0xff]
    %v2854 = vld [vmem:[#allocation2 + $0x328] sm:$0xff]
    %v2855 = vld [vmem:[#allocation2 + $0x360] sm:$0xff]
    %v2856 = vld [vmem:[#allocation2 + $0x368] sm:$0xff]
    %v2857 = vld [vmem:[#allocation2 + $0x3a0] sm:$0xff]
    %v2858 = vld [vmem:[#allocation2 + $0x3a8] sm:$0xff]
    %v2859 = vld [vmem:[#allocation2 + $0x3e0] sm:$0xff]
    %v2860 = vld [vmem:[#allocation2 + $0x3e8] sm:$0xff]
    %v2861 = vld [vmem:[#allocation2 + $0x420] sm:$0xff]
    %v2862 = vld [vmem:[#allocation2 + $0x428] sm:$0xff]
    %v2863 = vld [vmem:[#allocation2 + $0x460] sm:$0xff]
    %v2864 = vld [vmem:[#allocation2 + $0x468] sm:$0xff]
    %v2865 = vld [vmem:[#allocation2 + $0x4a0] sm:$0xff]
    %v2866 = vld [vmem:[#allocation2 + $0x4a8] sm:$0xff]
    %v2867 = vld [vmem:[#allocation2 + $0x4e0] sm:$0xff]
    %v2868 = vld [vmem:[#allocation2 + $0x4e8] sm:$0xff]
    %v2869 = vld [vmem:[#allocation2 + $0x520] sm:$0xff]
    %v2870 = vld [vmem:[#allocation2 + $0x528] sm:$0xff]
    %v2871 = vld [vmem:[#allocation2 + $0x560] sm:$0xff]
    %v2872 = vld [vmem:[#allocation2 + $0x568] sm:$0xff]
    %v2873 = vld [vmem:[#allocation2 + $0x5a0] sm:$0xff]
    %v2874 = vld [vmem:[#allocation2 + $0x5a8] sm:$0xff]
    %v2875 = vld [vmem:[#allocation2 + $0x5e0] sm:$0xff]
    %v2876 = vld [vmem:[#allocation2 + $0x5e8] sm:$0xff]
    %v2877 = vld [vmem:[#allocation2 + $0x620] sm:$0xff]
    %v2878 = vld [vmem:[#allocation2 + $0x628] sm:$0xff]
    %v2879 = vld [vmem:[#allocation2 + $0x660] sm:$0xff]
    %v2880 = vld [vmem:[#allocation2 + $0x668] sm:$0xff]
    %v2881 = vld [vmem:[#allocation2 + $0x6a0] sm:$0xff]
    %v2882 = vld [vmem:[#allocation2 + $0x6a8] sm:$0xff]
    %v2883 = vld [vmem:[#allocation2 + $0x6e0] sm:$0xff]
    %v2884 = vld [vmem:[#allocation2 + $0x6e8] sm:$0xff]
    %v2885 = vld [vmem:[#allocation2 + $0x720] sm:$0xff]
    %v2886 = vld [vmem:[#allocation2 + $0x728] sm:$0xff]
    %v2887 = vld [vmem:[#allocation2 + $0x760] sm:$0xff]
    %v2888 = vld [vmem:[#allocation2 + $0x768] sm:$0xff]
    %v2889 = vld [vmem:[#allocation2 + $0x7a0] sm:$0xff]
    %v2890 = vld [vmem:[#allocation2 + $0x7a8] sm:$0xff]
    %v2891 = vld [vmem:[#allocation2 + $0x7e0] sm:$0xff]
    %v2892 = vld [vmem:[#allocation2 + $0x7e8] sm:$0xff]
    %2893 = vmatprep.subr.mxu0 %v2830
    %2894 = vmatpush1.msra.mxu0 %v2829
    %2895 = vmatprep.subr.mxu0 %v2832
    %2896 = vmatpush1.msra.mxu0 %v2831
    %2897 = vmatprep.subr.mxu0 %v2834
    %2898 = vmatpush1.msra.mxu0 %v2833
    %2899 = vmatprep.subr.mxu0 %v2836
    %2900 = vmatpush1.msra.mxu0 %v2835
    %2901 = vmatprep.subr.mxu0 %v2838
    %2902 = vmatpush1.msra.mxu0 %v2837
    %2903 = vmatprep.subr.mxu0 %v2840
    %2904 = vmatpush1.msra.mxu0 %v2839
    %2905 = vmatprep.subr.mxu0 %v2842
    %2906 = vmatpush1.msra.mxu0 %v2841
    %2907 = vmatprep.subr.mxu0 %v2844
    %2908 = vmatpush1.msra.mxu0 %v2843
    %2909 = vmatprep.subr.mxu0 %v2846
    %2910 = vmatpush1.msra.mxu0 %v2845
    %2911 = vmatprep.subr.mxu0 %v2848
    %2912 = vmatpush1.msra.mxu0 %v2847
    %2913 = vmatprep.subr.mxu0 %v2850
    %2914 = vmatpush1.msra.mxu0 %v2849
    %2915 = vmatprep.subr.mxu0 %v2852
    %2916 = vmatpush1.msra.mxu0 %v2851
    %2917 = vmatprep.subr.mxu0 %v2854
    %2918 = vmatpush1.msra.mxu0 %v2853
    %2919 = vmatprep.subr.mxu0 %v2856
    %2920 = vmatpush1.msra.mxu0 %v2855
    %2921 = vmatprep.subr.mxu0 %v2858
    %2922 = vmatpush1.msra.mxu0 %v2857
    %2923 = vmatprep.subr.mxu0 %v2860
    %2924 = vmatpush1.msra.mxu0 %v2859
    %2925 = vmatprep.subr.mxu0 %v2862
    %2926 = vmatpush1.msra.mxu0 %v2861
    %2927 = vmatprep.subr.mxu0 %v2864
    %2928 = vmatpush1.msra.mxu0 %v2863
    %2929 = vmatprep.subr.mxu0 %v2866
    %2930 = vmatpush1.msra.mxu0 %v2865
    %2931 = vmatprep.subr.mxu0 %v2868
    %2932 = vmatpush1.msra.mxu0 %v2867
    %2933 = vmatprep.subr.mxu0 %v2870
    %2934 = vmatpush1.msra.mxu0 %v2869
    %2935 = vmatprep.subr.mxu0 %v2872
    %2936 = vmatpush1.msra.mxu0 %v2871
    %2937 = vmatprep.subr.mxu0 %v2874
    %2938 = vmatpush1.msra.mxu0 %v2873
    %2939 = vmatprep.subr.mxu0 %v2876
    %2940 = vmatpush1.msra.mxu0 %v2875
    %2941 = vmatprep.subr.mxu0 %v2878
    %2942 = vmatpush1.msra.mxu0 %v2877
    %2943 = vmatprep.subr.mxu0 %v2880
    %2944 = vmatpush1.msra.mxu0 %v2879
    %2945 = vmatprep.subr.mxu0 %v2882
    %2946 = vmatpush1.msra.mxu0 %v2881
    %2947 = vmatprep.subr.mxu0 %v2884
    %2948 = vmatpush1.msra.mxu0 %v2883
    %2949 = vmatprep.subr.mxu0 %v2886
    %2950 = vmatpush1.msra.mxu0 %v2885
    %2951 = vmatprep.subr.mxu0 %v2888
    %2952 = vmatpush1.msra.mxu0 %v2887
    %2953 = vmatprep.subr.mxu0 %v2890
    %2954 = vmatpush1.msra.mxu0 %v2889
    %2955 = vmatprep.subr.mxu0 %v2892
    %2956 = vmatpush1.msra.mxu0 %v2891
    %2957 = vmatprep.mubr.f32.mxu0 %v2578
    %2958 = vmatmul.mubr.f32.gmra.mrb[0].mxu0 %v2574
    %v2959 = vpop.f32.mrb[0].mxu0
    %v2960 = vadd.f32 0.0, %v2959
    %v2961 = vpop.f32.mrb[0].mxu0
    %v2962 = vadd.f32 0.0, %v2961
    %2963 = vdwg.mxu0
    %v2966 = vcombine.low %v2960, %v2962
    %v2968 = vunpack.c.l.s4 1966171168
    %v2969 = vunpack.c.0.s8 %v2968
    %v2970 = vlaneseq
    %v2971 = vshrl.u32 %v2970, 7
    %v2972 = vsub.s32 %v2969, %v2971
    %v2973 = vrot.slane %v2966, %v2972
    %v2975 = vunpack.c.l.s4 1966171168
    %v2976 = vunpack.c.0.s8 %v2975
    %v2977 = vlaneseq
    %v2978 = vshrl.u32 %v2977, 7
    %v2979 = vsub.s32 %v2976, %v2978
    %v2980 = vrot.slane %v2973, %v2979
    %v2982 = vadd.f32 %v2828, %v2980
    %s2983 = scalar_lea.vmem [#allocation3], 51
    %v2984 = vld [vmem:[%s2983] ss:$8 sm:$0x3]
    %v2985 = vld [vmem:[#allocation2 + $0x30] sm:$0xff]
    %v2986 = vld [vmem:[#allocation2 + $0x38] sm:$0xff]
    %v2987 = vld [vmem:[#allocation2 + $0x70] sm:$0xff]
    %v2988 = vld [vmem:[#allocation2 + $0x78] sm:$0xff]
    %v2989 = vld [vmem:[#allocation2 + $0xb0] sm:$0xff]
    %v2990 = vld [vmem:[#allocation2 + $0xb8] sm:$0xff]
    %v2991 = vld [vmem:[#allocation2 + $0xf0] sm:$0xff]
    %v2992 = vld [vmem:[#allocation2 + $0xf8] sm:$0xff]
    %v2993 = vld [vmem:[#allocation2 + $0x130] sm:$0xff]
    %v2994 = vld [vmem:[#allocation2 + $0x138] sm:$0xff]
    %v2995 = vld [vmem:[#allocation2 + $0x170] sm:$0xff]
    %v2996 = vld [vmem:[#allocation2 + $0x178] sm:$0xff]
    %v2997 = vld [vmem:[#allocation2 + $0x1b0] sm:$0xff]
    %v2998 = vld [vmem:[#allocation2 + $0x1b8] sm:$0xff]
    %v2999 = vld [vmem:[#allocation2 + $0x1f0] sm:$0xff]
    %v3000 = vld [vmem:[#allocation2 + $0x1f8] sm:$0xff]
    %v3001 = vld [vmem:[#allocation2 + $0x230] sm:$0xff]
    %v3002 = vld [vmem:[#allocation2 + $0x238] sm:$0xff]
    %v3003 = vld [vmem:[#allocation2 + $0x270] sm:$0xff]
    %v3004 = vld [vmem:[#allocation2 + $0x278] sm:$0xff]
    %v3005 = vld [vmem:[#allocation2 + $0x2b0] sm:$0xff]
    %v3006 = vld [vmem:[#allocation2 + $0x2b8] sm:$0xff]
    %v3007 = vld [vmem:[#allocation2 + $0x2f0] sm:$0xff]
    %v3008 = vld [vmem:[#allocation2 + $0x2f8] sm:$0xff]
    %v3009 = vld [vmem:[#allocation2 + $0x330] sm:$0xff]
    %v3010 = vld [vmem:[#allocation2 + $0x338] sm:$0xff]
    %v3011 = vld [vmem:[#allocation2 + $0x370] sm:$0xff]
    %v3012 = vld [vmem:[#allocation2 + $0x378] sm:$0xff]
    %v3013 = vld [vmem:[#allocation2 + $0x3b0] sm:$0xff]
    %v3014 = vld [vmem:[#allocation2 + $0x3b8] sm:$0xff]
    %v3015 = vld [vmem:[#allocation2 + $0x3f0] sm:$0xff]
    %v3016 = vld [vmem:[#allocation2 + $0x3f8] sm:$0xff]
    %v3017 = vld [vmem:[#allocation2 + $0x430] sm:$0xff]
    %v3018 = vld [vmem:[#allocation2 + $0x438] sm:$0xff]
    %v3019 = vld [vmem:[#allocation2 + $0x470] sm:$0xff]
    %v3020 = vld [vmem:[#allocation2 + $0x478] sm:$0xff]
    %v3021 = vld [vmem:[#allocation2 + $0x4b0] sm:$0xff]
    %v3022 = vld [vmem:[#allocation2 + $0x4b8] sm:$0xff]
    %v3023 = vld [vmem:[#allocation2 + $0x4f0] sm:$0xff]
    %v3024 = vld [vmem:[#allocation2 + $0x4f8] sm:$0xff]
    %v3025 = vld [vmem:[#allocation2 + $0x530] sm:$0xff]
    %v3026 = vld [vmem:[#allocation2 + $0x538] sm:$0xff]
    %v3027 = vld [vmem:[#allocation2 + $0x570] sm:$0xff]
    %v3028 = vld [vmem:[#allocation2 + $0x578] sm:$0xff]
    %v3029 = vld [vmem:[#allocation2 + $0x5b0] sm:$0xff]
    %v3030 = vld [vmem:[#allocation2 + $0x5b8] sm:$0xff]
    %v3031 = vld [vmem:[#allocation2 + $0x5f0] sm:$0xff]
    %v3032 = vld [vmem:[#allocation2 + $0x5f8] sm:$0xff]
    %v3033 = vld [vmem:[#allocation2 + $0x630] sm:$0xff]
    %v3034 = vld [vmem:[#allocation2 + $0x638] sm:$0xff]
    %v3035 = vld [vmem:[#allocation2 + $0x670] sm:$0xff]
    %v3036 = vld [vmem:[#allocation2 + $0x678] sm:$0xff]
    %v3037 = vld [vmem:[#allocation2 + $0x6b0] sm:$0xff]
    %v3038 = vld [vmem:[#allocation2 + $0x6b8] sm:$0xff]
    %v3039 = vld [vmem:[#allocation2 + $0x6f0] sm:$0xff]
    %v3040 = vld [vmem:[#allocation2 + $0x6f8] sm:$0xff]
    %v3041 = vld [vmem:[#allocation2 + $0x730] sm:$0xff]
    %v3042 = vld [vmem:[#allocation2 + $0x738] sm:$0xff]
    %v3043 = vld [vmem:[#allocation2 + $0x770] sm:$0xff]
    %v3044 = vld [vmem:[#allocation2 + $0x778] sm:$0xff]
    %v3045 = vld [vmem:[#allocation2 + $0x7b0] sm:$0xff]
    %v3046 = vld [vmem:[#allocation2 + $0x7b8] sm:$0xff]
    %v3047 = vld [vmem:[#allocation2 + $0x7f0] sm:$0xff]
    %v3048 = vld [vmem:[#allocation2 + $0x7f8] sm:$0xff]
    %3049 = vmatprep.subr.mxu0 %v2986
    %3050 = vmatpush1.msra.mxu0 %v2985
    %3051 = vmatprep.subr.mxu0 %v2988
    %3052 = vmatpush1.msra.mxu0 %v2987
    %3053 = vmatprep.subr.mxu0 %v2990
    %3054 = vmatpush1.msra.mxu0 %v2989
    %3055 = vmatprep.subr.mxu0 %v2992
    %3056 = vmatpush1.msra.mxu0 %v2991
    %3057 = vmatprep.subr.mxu0 %v2994
    %3058 = vmatpush1.msra.mxu0 %v2993
    %3059 = vmatprep.subr.mxu0 %v2996
    %3060 = vmatpush1.msra.mxu0 %v2995
    %3061 = vmatprep.subr.mxu0 %v2998
    %3062 = vmatpush1.msra.mxu0 %v2997
    %3063 = vmatprep.subr.mxu0 %v3000
    %3064 = vmatpush1.msra.mxu0 %v2999
    %3065 = vmatprep.subr.mxu0 %v3002
    %3066 = vmatpush1.msra.mxu0 %v3001
    %3067 = vmatprep.subr.mxu0 %v3004
    %3068 = vmatpush1.msra.mxu0 %v3003
    %3069 = vmatprep.subr.mxu0 %v3006
    %3070 = vmatpush1.msra.mxu0 %v3005
    %3071 = vmatprep.subr.mxu0 %v3008
    %3072 = vmatpush1.msra.mxu0 %v3007
    %3073 = vmatprep.subr.mxu0 %v3010
    %3074 = vmatpush1.msra.mxu0 %v3009
    %3075 = vmatprep.subr.mxu0 %v3012
    %3076 = vmatpush1.msra.mxu0 %v3011
    %3077 = vmatprep.subr.mxu0 %v3014
    %3078 = vmatpush1.msra.mxu0 %v3013
    %3079 = vmatprep.subr.mxu0 %v3016
    %3080 = vmatpush1.msra.mxu0 %v3015
    %3081 = vmatprep.subr.mxu0 %v3018
    %3082 = vmatpush1.msra.mxu0 %v3017
    %3083 = vmatprep.subr.mxu0 %v3020
    %3084 = vmatpush1.msra.mxu0 %v3019
    %3085 = vmatprep.subr.mxu0 %v3022
    %3086 = vmatpush1.msra.mxu0 %v3021
    %3087 = vmatprep.subr.mxu0 %v3024
    %3088 = vmatpush1.msra.mxu0 %v3023
    %3089 = vmatprep.subr.mxu0 %v3026
    %3090 = vmatpush1.msra.mxu0 %v3025
    %3091 = vmatprep.subr.mxu0 %v3028
    %3092 = vmatpush1.msra.mxu0 %v3027
    %3093 = vmatprep.subr.mxu0 %v3030
    %3094 = vmatpush1.msra.mxu0 %v3029
    %3095 = vmatprep.subr.mxu0 %v3032
    %3096 = vmatpush1.msra.mxu0 %v3031
    %3097 = vmatprep.subr.mxu0 %v3034
    %3098 = vmatpush1.msra.mxu0 %v3033
    %3099 = vmatprep.subr.mxu0 %v3036
    %3100 = vmatpush1.msra.mxu0 %v3035
    %3101 = vmatprep.subr.mxu0 %v3038
    %3102 = vmatpush1.msra.mxu0 %v3037
    %3103 = vmatprep.subr.mxu0 %v3040
    %3104 = vmatpush1.msra.mxu0 %v3039
    %3105 = vmatprep.subr.mxu0 %v3042
    %3106 = vmatpush1.msra.mxu0 %v3041
    %3107 = vmatprep.subr.mxu0 %v3044
    %3108 = vmatpush1.msra.mxu0 %v3043
    %3109 = vmatprep.subr.mxu0 %v3046
    %3110 = vmatpush1.msra.mxu0 %v3045
    %3111 = vmatprep.subr.mxu0 %v3048
    %3112 = vmatpush1.msra.mxu0 %v3047
    %3113 = vmatprep.mubr.f32.mxu0 %v2578
    %3114 = vmatmul.mubr.f32.gmra.mrb[0].mxu0 %v2574
    %v3115 = vpop.f32.mrb[0].mxu0
    %v3116 = vadd.f32 0.0, %v3115
    %v3117 = vpop.f32.mrb[0].mxu0
    %v3118 = vadd.f32 0.0, %v3117
    %3119 = vdwg.mxu0
    %v3122 = vcombine.low %v3116, %v3118
    %v3124 = vunpack.c.l.s4 1966171168
    %v3125 = vunpack.c.0.s8 %v3124
    %v3126 = vlaneseq
    %v3127 = vshrl.u32 %v3126, 7
    %v3128 = vsub.s32 %v3125, %v3127
    %v3129 = vrot.slane %v3122, %v3128
    %v3131 = vunpack.c.l.s4 1966171168
    %v3132 = vunpack.c.0.s8 %v3131
    %v3133 = vlaneseq
    %v3134 = vshrl.u32 %v3133, 7
    %v3135 = vsub.s32 %v3132, %v3134
    %v3136 = vrot.slane %v3129, %v3135
    %v3138 = vadd.f32 %v2984, %v3136
    %v3139 = vxor.u32 %v2670, 2147483648
    %v3140 = vmul.f32 %v3139, 1.442695
    %v3141 = vpow.pop %v3140
    %v3142 = vadd.f32 %v3141, 1.0
    %v3143 = vrcp.pop %v3142
    %v3144 = vmul.f32 1.0, %v3143
    %v3145 = vxor.u32 %v2826, 2147483648
    %v3146 = vmul.f32 %v3145, 1.442695
    %v3147 = vpow.pop %v3146
    %v3148 = vadd.f32 %v3147, 1.0
    %v3149 = vrcp.pop %v3148
    %v3150 = vmul.f32 1.0, %v3149
    %v3151 = vtanh.pop %v2982
    %v3152 = vmul.f32 %v3150, %v2492
    %v3153 = vmul.f32 %v3144, %v3151
    %v3154 = vadd.f32 %v3152, %v3153
    %v3155 = vtanh.pop %v3154
    %v3156 = vxor.u32 %v3138, 2147483648
    %v3157 = vmul.f32 %v3156, 1.442695
    %v3158 = vpow.pop %v3157
    %v3159 = vadd.f32 %v3158, 1.0
    %v3160 = vrcp.pop %v3159
    %v3161 = vmul.f32 1.0, %v3160
    %v3162 = vmul.f32 %v3161, %v3155
    %s3163 = scalar_lea.vmem [#allocation4], 3
    %3164 = vst.msk [vmem:[%s3163] ss:$8 sm:$0x3] %vm1177, %v3162
    %3165 = vst.msk [vmem:[%s3163] ss:$8 sm:$0x0] %vm1177, %v3162
    %s3166 = scalar_lea.vmem [#allocation3], 4
    %v3167 = vld [vmem:[%s3166] ss:$8 sm:$0x3]
    %v3168 = vld [vmem:[#allocation2] sm:$0xff]
    %v3169 = vld [vmem:[#allocation2 + $0x8] sm:$0xff]
    %v3170 = vld [vmem:[#allocation2 + $0x40] sm:$0xff]
    %v3171 = vld [vmem:[#allocation2 + $0x48] sm:$0xff]
    %v3172 = vld [vmem:[#allocation2 + $0x80] sm:$0xff]
    %v3173 = vld [vmem:[#allocation2 + $0x88] sm:$0xff]
    %v3174 = vld [vmem:[#allocation2 + $0xc0] sm:$0xff]
    %v3175 = vld [vmem:[#allocation2 + $0xc8] sm:$0xff]
    %v3176 = vld [vmem:[#allocation2 + $0x100] sm:$0xff]
    %v3177 = vld [vmem:[#allocation2 + $0x108] sm:$0xff]
    %v3178 = vld [vmem:[#allocation2 + $0x140] sm:$0xff]
    %v3179 = vld [vmem:[#allocation2 + $0x148] sm:$0xff]
    %v3180 = vld [vmem:[#allocation2 + $0x180] sm:$0xff]
    %v3181 = vld [vmem:[#allocation2 + $0x188] sm:$0xff]
    %v3182 = vld [vmem:[#allocation2 + $0x1c0] sm:$0xff]
    %v3183 = vld [vmem:[#allocation2 + $0x1c8] sm:$0xff]
    %v3184 = vld [vmem:[#allocation2 + $0x200] sm:$0xff]
    %v3185 = vld [vmem:[#allocation2 + $0x208] sm:$0xff]
    %v3186 = vld [vmem:[#allocation2 + $0x240] sm:$0xff]
    %v3187 = vld [vmem:[#allocation2 + $0x248] sm:$0xff]
    %v3188 = vld [vmem:[#allocation2 + $0x280] sm:$0xff]
    %v3189 = vld [vmem:[#allocation2 + $0x288] sm:$0xff]
    %v3190 = vld [vmem:[#allocation2 + $0x2c0] sm:$0xff]
    %v3191 = vld [vmem:[#allocation2 + $0x2c8] sm:$0xff]
    %v3192 = vld [vmem:[#allocation2 + $0x300] sm:$0xff]
    %v3193 = vld [vmem:[#allocation2 + $0x308] sm:$0xff]
    %v3194 = vld [vmem:[#allocation2 + $0x340] sm:$0xff]
    %v3195 = vld [vmem:[#allocation2 + $0x348] sm:$0xff]
    %v3196 = vld [vmem:[#allocation2 + $0x380] sm:$0xff]
    %v3197 = vld [vmem:[#allocation2 + $0x388] sm:$0xff]
    %v3198 = vld [vmem:[#allocation2 + $0x3c0] sm:$0xff]
    %v3199 = vld [vmem:[#allocation2 + $0x3c8] sm:$0xff]
    %v3200 = vld [vmem:[#allocation2 + $0x400] sm:$0xff]
    %v3201 = vld [vmem:[#allocation2 + $0x408] sm:$0xff]
    %v3202 = vld [vmem:[#allocation2 + $0x440] sm:$0xff]
    %v3203 = vld [vmem:[#allocation2 + $0x448] sm:$0xff]
    %v3204 = vld [vmem:[#allocation2 + $0x480] sm:$0xff]
    %v3205 = vld [vmem:[#allocation2 + $0x488] sm:$0xff]
    %v3206 = vld [vmem:[#allocation2 + $0x4c0] sm:$0xff]
    %v3207 = vld [vmem:[#allocation2 + $0x4c8] sm:$0xff]
    %v3208 = vld [vmem:[#allocation2 + $0x500] sm:$0xff]
    %v3209 = vld [vmem:[#allocation2 + $0x508] sm:$0xff]
    %v3210 = vld [vmem:[#allocation2 + $0x540] sm:$0xff]
    %v3211 = vld [vmem:[#allocation2 + $0x548] sm:$0xff]
    %v3212 = vld [vmem:[#allocation2 + $0x580] sm:$0xff]
    %v3213 = vld [vmem:[#allocation2 + $0x588] sm:$0xff]
    %v3214 = vld [vmem:[#allocation2 + $0x5c0] sm:$0xff]
    %v3215 = vld [vmem:[#allocation2 + $0x5c8] sm:$0xff]
    %v3216 = vld [vmem:[#allocation2 + $0x600] sm:$0xff]
    %v3217 = vld [vmem:[#allocation2 + $0x608] sm:$0xff]
    %v3218 = vld [vmem:[#allocation2 + $0x640] sm:$0xff]
    %v3219 = vld [vmem:[#allocation2 + $0x648] sm:$0xff]
    %v3220 = vld [vmem:[#allocation2 + $0x680] sm:$0xff]
    %v3221 = vld [vmem:[#allocation2 + $0x688] sm:$0xff]
    %v3222 = vld [vmem:[#allocation2 + $0x6c0] sm:$0xff]
    %v3223 = vld [vmem:[#allocation2 + $0x6c8] sm:$0xff]
    %v3224 = vld [vmem:[#allocation2 + $0x700] sm:$0xff]
    %v3225 = vld [vmem:[#allocation2 + $0x708] sm:$0xff]
    %v3226 = vld [vmem:[#allocation2 + $0x740] sm:$0xff]
    %v3227 = vld [vmem:[#allocation2 + $0x748] sm:$0xff]
    %v3228 = vld [vmem:[#allocation2 + $0x780] sm:$0xff]
    %v3229 = vld [vmem:[#allocation2 + $0x788] sm:$0xff]
    %v3230 = vld [vmem:[#allocation2 + $0x7c0] sm:$0xff]
    %v3231 = vld [vmem:[#allocation2 + $0x7c8] sm:$0xff]
    %v3233 = vlaneseq
    %v3234 = vshrl.u32 %v3233, 7
    %v3235 = vsub.s32 0, %v3234
    %v3236 = vrot.slane %v3162, %v3235
    %v3237 = vlaneseq
    %v3238 = vshrl.u32 %v3237, 7
    %v3239 = vsub.s32 1, %v3238
    %v3240 = vrot.slane %v3162, %v3239
    %3243 = vmatprep.subr.mxu0 %v3169
    %3244 = vmatpush1.msra.mxu0 %v3168
    %3245 = vmatprep.subr.mxu0 %v3171
    %3246 = vmatpush1.msra.mxu0 %v3170
    %3247 = vmatprep.subr.mxu0 %v3173
    %3248 = vmatpush1.msra.mxu0 %v3172
    %3249 = vmatprep.subr.mxu0 %v3175
    %3250 = vmatpush1.msra.mxu0 %v3174
    %3251 = vmatprep.subr.mxu0 %v3177
    %3252 = vmatpush1.msra.mxu0 %v3176
    %3253 = vmatprep.subr.mxu0 %v3179
    %3254 = vmatpush1.msra.mxu0 %v3178
    %3255 = vmatprep.subr.mxu0 %v3181
    %3256 = vmatpush1.msra.mxu0 %v3180
    %3257 = vmatprep.subr.mxu0 %v3183
    %3258 = vmatpush1.msra.mxu0 %v3182
    %3259 = vmatprep.subr.mxu0 %v3185
    %3260 = vmatpush1.msra.mxu0 %v3184
    %3261 = vmatprep.subr.mxu0 %v3187
    %3262 = vmatpush1.msra.mxu0 %v3186
    %3263 = vmatprep.subr.mxu0 %v3189
    %3264 = vmatpush1.msra.mxu0 %v3188
    %3265 = vmatprep.subr.mxu0 %v3191
    %3266 = vmatpush1.msra.mxu0 %v3190
    %3267 = vmatprep.subr.mxu0 %v3193
    %3268 = vmatpush1.msra.mxu0 %v3192
    %3269 = vmatprep.subr.mxu0 %v3195
    %3270 = vmatpush1.msra.mxu0 %v3194
    %3271 = vmatprep.subr.mxu0 %v3197
    %3272 = vmatpush1.msra.mxu0 %v3196
    %3273 = vmatprep.subr.mxu0 %v3199
    %3274 = vmatpush1.msra.mxu0 %v3198
    %3275 = vmatprep.subr.mxu0 %v3201
    %3276 = vmatpush1.msra.mxu0 %v3200
    %3277 = vmatprep.subr.mxu0 %v3203
    %3278 = vmatpush1.msra.mxu0 %v3202
    %3279 = vmatprep.subr.mxu0 %v3205
    %3280 = vmatpush1.msra.mxu0 %v3204
    %3281 = vmatprep.subr.mxu0 %v3207
    %3282 = vmatpush1.msra.mxu0 %v3206
    %3283 = vmatprep.subr.mxu0 %v3209
    %3284 = vmatpush1.msra.mxu0 %v3208
    %3285 = vmatprep.subr.mxu0 %v3211
    %3286 = vmatpush1.msra.mxu0 %v3210
    %3287 = vmatprep.subr.mxu0 %v3213
    %3288 = vmatpush1.msra.mxu0 %v3212
    %3289 = vmatprep.subr.mxu0 %v3215
    %3290 = vmatpush1.msra.mxu0 %v3214
    %3291 = vmatprep.subr.mxu0 %v3217
    %3292 = vmatpush1.msra.mxu0 %v3216
    %3293 = vmatprep.subr.mxu0 %v3219
    %3294 = vmatpush1.msra.mxu0 %v3218
    %3295 = vmatprep.subr.mxu0 %v3221
    %3296 = vmatpush1.msra.mxu0 %v3220
    %3297 = vmatprep.subr.mxu0 %v3223
    %3298 = vmatpush1.msra.mxu0 %v3222
    %3299 = vmatprep.subr.mxu0 %v3225
    %3300 = vmatpush1.msra.mxu0 %v3224
    %3301 = vmatprep.subr.mxu0 %v3227
    %3302 = vmatpush1.msra.mxu0 %v3226
    %3303 = vmatprep.subr.mxu0 %v3229
    %3304 = vmatpush1.msra.mxu0 %v3228
    %3305 = vmatprep.subr.mxu0 %v3231
    %3306 = vmatpush1.msra.mxu0 %v3230
    %3307 = vmatprep.mubr.f32.mxu0 %v3240
    %3308 = vmatmul.mubr.f32.gmra.mrb[0].mxu0 %v3236
    %v3309 = vpop.f32.mrb[0].mxu0
    %v3310 = vadd.f32 0.0, %v3309
    %v3311 = vpop.f32.mrb[0].mxu0
    %v3312 = vadd.f32 0.0, %v3311
    %3313 = vdwg.mxu0
    %v3316 = vcombine.low %v3310, %v3312
    %v3318 = vunpack.c.l.s4 1966171168
    %v3319 = vunpack.c.0.s8 %v3318
    %v3320 = vlaneseq
    %v3321 = vshrl.u32 %v3320, 7
    %v3322 = vsub.s32 %v3319, %v3321
    %v3323 = vrot.slane %v3316, %v3322
    %v3325 = vunpack.c.l.s4 1966171168
    %v3326 = vunpack.c.0.s8 %v3325
    %v3327 = vlaneseq
    %v3328 = vshrl.u32 %v3327, 7
    %v3329 = vsub.s32 %v3326, %v3328
    %v3330 = vrot.slane %v3323, %v3329
    %v3332 = vadd.f32 %v3167, %v3330
    %s3333 = scalar_lea.vmem [#allocation3], 20
    %v3334 = vld [vmem:[%s3333] ss:$8 sm:$0x3]
    %v3335 = vld [vmem:[#allocation2 + $0x10] sm:$0xff]
    %v3336 = vld [vmem:[#allocation2 + $0x18] sm:$0xff]
    %v3337 = vld [vmem:[#allocation2 + $0x50] sm:$0xff]
    %v3338 = vld [vmem:[#allocation2 + $0x58] sm:$0xff]
    %v3339 = vld [vmem:[#allocation2 + $0x90] sm:$0xff]
    %v3340 = vld [vmem:[#allocation2 + $0x98] sm:$0xff]
    %v3341 = vld [vmem:[#allocation2 + $0xd0] sm:$0xff]
    %v3342 = vld [vmem:[#allocation2 + $0xd8] sm:$0xff]
    %v3343 = vld [vmem:[#allocation2 + $0x110] sm:$0xff]
    %v3344 = vld [vmem:[#allocation2 + $0x118] sm:$0xff]
    %v3345 = vld [vmem:[#allocation2 + $0x150] sm:$0xff]
    %v3346 = vld [vmem:[#allocation2 + $0x158] sm:$0xff]
    %v3347 = vld [vmem:[#allocation2 + $0x190] sm:$0xff]
    %v3348 = vld [vmem:[#allocation2 + $0x198] sm:$0xff]
    %v3349 = vld [vmem:[#allocation2 + $0x1d0] sm:$0xff]
    %v3350 = vld [vmem:[#allocation2 + $0x1d8] sm:$0xff]
    %v3351 = vld [vmem:[#allocation2 + $0x210] sm:$0xff]
    %v3352 = vld [vmem:[#allocation2 + $0x218] sm:$0xff]
    %v3353 = vld [vmem:[#allocation2 + $0x250] sm:$0xff]
    %v3354 = vld [vmem:[#allocation2 + $0x258] sm:$0xff]
    %v3355 = vld [vmem:[#allocation2 + $0x290] sm:$0xff]
    %v3356 = vld [vmem:[#allocation2 + $0x298] sm:$0xff]
    %v3357 = vld [vmem:[#allocation2 + $0x2d0] sm:$0xff]
    %v3358 = vld [vmem:[#allocation2 + $0x2d8] sm:$0xff]
    %v3359 = vld [vmem:[#allocation2 + $0x310] sm:$0xff]
    %v3360 = vld [vmem:[#allocation2 + $0x318] sm:$0xff]
    %v3361 = vld [vmem:[#allocation2 + $0x350] sm:$0xff]
    %v3362 = vld [vmem:[#allocation2 + $0x358] sm:$0xff]
    %v3363 = vld [vmem:[#allocation2 + $0x390] sm:$0xff]
    %v3364 = vld [vmem:[#allocation2 + $0x398] sm:$0xff]
    %v3365 = vld [vmem:[#allocation2 + $0x3d0] sm:$0xff]
    %v3366 = vld [vmem:[#allocation2 + $0x3d8] sm:$0xff]
    %v3367 = vld [vmem:[#allocation2 + $0x410] sm:$0xff]
    %v3368 = vld [vmem:[#allocation2 + $0x418] sm:$0xff]
    %v3369 = vld [vmem:[#allocation2 + $0x450] sm:$0xff]
    %v3370 = vld [vmem:[#allocation2 + $0x458] sm:$0xff]
    %v3371 = vld [vmem:[#allocation2 + $0x490] sm:$0xff]
    %v3372 = vld [vmem:[#allocation2 + $0x498] sm:$0xff]
    %v3373 = vld [vmem:[#allocation2 + $0x4d0] sm:$0xff]
    %v3374 = vld [vmem:[#allocation2 + $0x4d8] sm:$0xff]
    %v3375 = vld [vmem:[#allocation2 + $0x510] sm:$0xff]
    %v3376 = vld [vmem:[#allocation2 + $0x518] sm:$0xff]
    %v3377 = vld [vmem:[#allocation2 + $0x550] sm:$0xff]
    %v3378 = vld [vmem:[#allocation2 + $0x558] sm:$0xff]
    %v3379 = vld [vmem:[#allocation2 + $0x590] sm:$0xff]
    %v3380 = vld [vmem:[#allocation2 + $0x598] sm:$0xff]
    %v3381 = vld [vmem:[#allocation2 + $0x5d0] sm:$0xff]
    %v3382 = vld [vmem:[#allocation2 + $0x5d8] sm:$0xff]
    %v3383 = vld [vmem:[#allocation2 + $0x610] sm:$0xff]
    %v3384 = vld [vmem:[#allocation2 + $0x618] sm:$0xff]
    %v3385 = vld [vmem:[#allocation2 + $0x650] sm:$0xff]
    %v3386 = vld [vmem:[#allocation2 + $0x658] sm:$0xff]
    %v3387 = vld [vmem:[#allocation2 + $0x690] sm:$0xff]
    %v3388 = vld [vmem:[#allocation2 + $0x698] sm:$0xff]
    %v3389 = vld [vmem:[#allocation2 + $0x6d0] sm:$0xff]
    %v3390 = vld [vmem:[#allocation2 + $0x6d8] sm:$0xff]
    %v3391 = vld [vmem:[#allocation2 + $0x710] sm:$0xff]
    %v3392 = vld [vmem:[#allocation2 + $0x718] sm:$0xff]
    %v3393 = vld [vmem:[#allocation2 + $0x750] sm:$0xff]
    %v3394 = vld [vmem:[#allocation2 + $0x758] sm:$0xff]
    %v3395 = vld [vmem:[#allocation2 + $0x790] sm:$0xff]
    %v3396 = vld [vmem:[#allocation2 + $0x798] sm:$0xff]
    %v3397 = vld [vmem:[#allocation2 + $0x7d0] sm:$0xff]
    %v3398 = vld [vmem:[#allocation2 + $0x7d8] sm:$0xff]
    %3399 = vmatprep.subr.mxu0 %v3336
    %3400 = vmatpush1.msra.mxu0 %v3335
    %3401 = vmatprep.subr.mxu0 %v3338
    %3402 = vmatpush1.msra.mxu0 %v3337
    %3403 = vmatprep.subr.mxu0 %v3340
    %3404 = vmatpush1.msra.mxu0 %v3339
    %3405 = vmatprep.subr.mxu0 %v3342
    %3406 = vmatpush1.msra.mxu0 %v3341
    %3407 = vmatprep.subr.mxu0 %v3344
    %3408 = vmatpush1.msra.mxu0 %v3343
    %3409 = vmatprep.subr.mxu0 %v3346
    %3410 = vmatpush1.msra.mxu0 %v3345
    %3411 = vmatprep.subr.mxu0 %v3348
    %3412 = vmatpush1.msra.mxu0 %v3347
    %3413 = vmatprep.subr.mxu0 %v3350
    %3414 = vmatpush1.msra.mxu0 %v3349
    %3415 = vmatprep.subr.mxu0 %v3352
    %3416 = vmatpush1.msra.mxu0 %v3351
    %3417 = vmatprep.subr.mxu0 %v3354
    %3418 = vmatpush1.msra.mxu0 %v3353
    %3419 = vmatprep.subr.mxu0 %v3356
    %3420 = vmatpush1.msra.mxu0 %v3355
    %3421 = vmatprep.subr.mxu0 %v3358
    %3422 = vmatpush1.msra.mxu0 %v3357
    %3423 = vmatprep.subr.mxu0 %v3360
    %3424 = vmatpush1.msra.mxu0 %v3359
    %3425 = vmatprep.subr.mxu0 %v3362
    %3426 = vmatpush1.msra.mxu0 %v3361
    %3427 = vmatprep.subr.mxu0 %v3364
    %3428 = vmatpush1.msra.mxu0 %v3363
    %3429 = vmatprep.subr.mxu0 %v3366
    %3430 = vmatpush1.msra.mxu0 %v3365
    %3431 = vmatprep.subr.mxu0 %v3368
    %3432 = vmatpush1.msra.mxu0 %v3367
    %3433 = vmatprep.subr.mxu0 %v3370
    %3434 = vmatpush1.msra.mxu0 %v3369
    %3435 = vmatprep.subr.mxu0 %v3372
    %3436 = vmatpush1.msra.mxu0 %v3371
    %3437 = vmatprep.subr.mxu0 %v3374
    %3438 = vmatpush1.msra.mxu0 %v3373
    %3439 = vmatprep.subr.mxu0 %v3376
    %3440 = vmatpush1.msra.mxu0 %v3375
    %3441 = vmatprep.subr.mxu0 %v3378
    %3442 = vmatpush1.msra.mxu0 %v3377
    %3443 = vmatprep.subr.mxu0 %v3380
    %3444 = vmatpush1.msra.mxu0 %v3379
    %3445 = vmatprep.subr.mxu0 %v3382
    %3446 = vmatpush1.msra.mxu0 %v3381
    %3447 = vmatprep.subr.mxu0 %v3384
    %3448 = vmatpush1.msra.mxu0 %v3383
    %3449 = vmatprep.subr.mxu0 %v3386
    %3450 = vmatpush1.msra.mxu0 %v3385
    %3451 = vmatprep.subr.mxu0 %v3388
    %3452 = vmatpush1.msra.mxu0 %v3387
    %3453 = vmatprep.subr.mxu0 %v3390
    %3454 = vmatpush1.msra.mxu0 %v3389
    %3455 = vmatprep.subr.mxu0 %v3392
    %3456 = vmatpush1.msra.mxu0 %v3391
    %3457 = vmatprep.subr.mxu0 %v3394
    %3458 = vmatpush1.msra.mxu0 %v3393
    %3459 = vmatprep.subr.mxu0 %v3396
    %3460 = vmatpush1.msra.mxu0 %v3395
    %3461 = vmatprep.subr.mxu0 %v3398
    %3462 = vmatpush1.msra.mxu0 %v3397
    %3463 = vmatprep.mubr.f32.mxu0 %v3240
    %3464 = vmatmul.mubr.f32.gmra.mrb[0].mxu0 %v3236
    %v3465 = vpop.f32.mrb[0].mxu0
    %v3466 = vadd.f32 0.0, %v3465
    %v3467 = vpop.f32.mrb[0].mxu0
    %v3468 = vadd.f32 0.0, %v3467
    %3469 = vdwg.mxu0
    %v3472 = vcombine.low %v3466, %v3468
    %v3474 = vunpack.c.l.s4 1966171168
    %v3475 = vunpack.c.0.s8 %v3474
    %v3476 = vlaneseq
    %v3477 = vshrl.u32 %v3476, 7
    %v3478 = vsub.s32 %v3475, %v3477
    %v3479 = vrot.slane %v3472, %v3478
    %v3481 = vunpack.c.l.s4 1966171168
    %v3482 = vunpack.c.0.s8 %v3481
    %v3483 = vlaneseq
    %v3484 = vshrl.u32 %v3483, 7
    %v3485 = vsub.s32 %v3482, %v3484
    %v3486 = vrot.slane %v3479, %v3485
    %v3488 = vadd.f32 %v3334, %v3486
    %s3489 = scalar_lea.vmem [#allocation3], 36
    %v3490 = vld [vmem:[%s3489] ss:$8 sm:$0x3]
    %v3491 = vld [vmem:[#allocation2 + $0x20] sm:$0xff]
    %v3492 = vld [vmem:[#allocation2 + $0x28] sm:$0xff]
    %v3493 = vld [vmem:[#allocation2 + $0x60] sm:$0xff]
    %v3494 = vld [vmem:[#allocation2 + $0x68] sm:$0xff]
    %v3495 = vld [vmem:[#allocation2 + $0xa0] sm:$0xff]
    %v3496 = vld [vmem:[#allocation2 + $0xa8] sm:$0xff]
    %v3497 = vld [vmem:[#allocation2 + $0xe0] sm:$0xff]
    %v3498 = vld [vmem:[#allocation2 + $0xe8] sm:$0xff]
    %v3499 = vld [vmem:[#allocation2 + $0x120] sm:$0xff]
    %v3500 = vld [vmem:[#allocation2 + $0x128] sm:$0xff]
    %v3501 = vld [vmem:[#allocation2 + $0x160] sm:$0xff]
    %v3502 = vld [vmem:[#allocation2 + $0x168] sm:$0xff]
    %v3503 = vld [vmem:[#allocation2 + $0x1a0] sm:$0xff]
    %v3504 = vld [vmem:[#allocation2 + $0x1a8] sm:$0xff]
    %v3505 = vld [vmem:[#allocation2 + $0x1e0] sm:$0xff]
    %v3506 = vld [vmem:[#allocation2 + $0x1e8] sm:$0xff]
    %v3507 = vld [vmem:[#allocation2 + $0x220] sm:$0xff]
    %v3508 = vld [vmem:[#allocation2 + $0x228] sm:$0xff]
    %v3509 = vld [vmem:[#allocation2 + $0x260] sm:$0xff]
    %v3510 = vld [vmem:[#allocation2 + $0x268] sm:$0xff]
    %v3511 = vld [vmem:[#allocation2 + $0x2a0] sm:$0xff]
    %v3512 = vld [vmem:[#allocation2 + $0x2a8] sm:$0xff]
    %v3513 = vld [vmem:[#allocation2 + $0x2e0] sm:$0xff]
    %v3514 = vld [vmem:[#allocation2 + $0x2e8] sm:$0xff]
    %v3515 = vld [vmem:[#allocation2 + $0x320] sm:$0xff]
    %v3516 = vld [vmem:[#allocation2 + $0x328] sm:$0xff]
    %v3517 = vld [vmem:[#allocation2 + $0x360] sm:$0xff]
    %v3518 = vld [vmem:[#allocation2 + $0x368] sm:$0xff]
    %v3519 = vld [vmem:[#allocation2 + $0x3a0] sm:$0xff]
    %v3520 = vld [vmem:[#allocation2 + $0x3a8] sm:$0xff]
    %v3521 = vld [vmem:[#allocation2 + $0x3e0] sm:$0xff]
    %v3522 = vld [vmem:[#allocation2 + $0x3e8] sm:$0xff]
    %v3523 = vld [vmem:[#allocation2 + $0x420] sm:$0xff]
    %v3524 = vld [vmem:[#allocation2 + $0x428] sm:$0xff]
    %v3525 = vld [vmem:[#allocation2 + $0x460] sm:$0xff]
    %v3526 = vld [vmem:[#allocation2 + $0x468] sm:$0xff]
    %v3527 = vld [vmem:[#allocation2 + $0x4a0] sm:$0xff]
    %v3528 = vld [vmem:[#allocation2 + $0x4a8] sm:$0xff]
    %v3529 = vld [vmem:[#allocation2 + $0x4e0] sm:$0xff]
    %v3530 = vld [vmem:[#allocation2 + $0x4e8] sm:$0xff]
    %v3531 = vld [vmem:[#allocation2 + $0x520] sm:$0xff]
    %v3532 = vld [vmem:[#allocation2 + $0x528] sm:$0xff]
    %v3533 = vld [vmem:[#allocation2 + $0x560] sm:$0xff]
    %v3534 = vld [vmem:[#allocation2 + $0x568] sm:$0xff]
    %v3535 = vld [vmem:[#allocation2 + $0x5a0] sm:$0xff]
    %v3536 = vld [vmem:[#allocation2 + $0x5a8] sm:$0xff]
    %v3537 = vld [vmem:[#allocation2 + $0x5e0] sm:$0xff]
    %v3538 = vld [vmem:[#allocation2 + $0x5e8] sm:$0xff]
    %v3539 = vld [vmem:[#allocation2 + $0x620] sm:$0xff]
    %v3540 = vld [vmem:[#allocation2 + $0x628] sm:$0xff]
    %v3541 = vld [vmem:[#allocation2 + $0x660] sm:$0xff]
    %v3542 = vld [vmem:[#allocation2 + $0x668] sm:$0xff]
    %v3543 = vld [vmem:[#allocation2 + $0x6a0] sm:$0xff]
    %v3544 = vld [vmem:[#allocation2 + $0x6a8] sm:$0xff]
    %v3545 = vld [vmem:[#allocation2 + $0x6e0] sm:$0xff]
    %v3546 = vld [vmem:[#allocation2 + $0x6e8] sm:$0xff]
    %v3547 = vld [vmem:[#allocation2 + $0x720] sm:$0xff]
    %v3548 = vld [vmem:[#allocation2 + $0x728] sm:$0xff]
    %v3549 = vld [vmem:[#allocation2 + $0x760] sm:$0xff]
    %v3550 = vld [vmem:[#allocation2 + $0x768] sm:$0xff]
    %v3551 = vld [vmem:[#allocation2 + $0x7a0] sm:$0xff]
    %v3552 = vld [vmem:[#allocation2 + $0x7a8] sm:$0xff]
    %v3553 = vld [vmem:[#allocation2 + $0x7e0] sm:$0xff]
    %v3554 = vld [vmem:[#allocation2 + $0x7e8] sm:$0xff]
    %3555 = vmatprep.subr.mxu0 %v3492
    %3556 = vmatpush1.msra.mxu0 %v3491
    %3557 = vmatprep.subr.mxu0 %v3494
    %3558 = vmatpush1.msra.mxu0 %v3493
    %3559 = vmatprep.subr.mxu0 %v3496
    %3560 = vmatpush1.msra.mxu0 %v3495
    %3561 = vmatprep.subr.mxu0 %v3498
    %3562 = vmatpush1.msra.mxu0 %v3497
    %3563 = vmatprep.subr.mxu0 %v3500
    %3564 = vmatpush1.msra.mxu0 %v3499
    %3565 = vmatprep.subr.mxu0 %v3502
    %3566 = vmatpush1.msra.mxu0 %v3501
    %3567 = vmatprep.subr.mxu0 %v3504
    %3568 = vmatpush1.msra.mxu0 %v3503
    %3569 = vmatprep.subr.mxu0 %v3506
    %3570 = vmatpush1.msra.mxu0 %v3505
    %3571 = vmatprep.subr.mxu0 %v3508
    %3572 = vmatpush1.msra.mxu0 %v3507
    %3573 = vmatprep.subr.mxu0 %v3510
    %3574 = vmatpush1.msra.mxu0 %v3509
    %3575 = vmatprep.subr.mxu0 %v3512
    %3576 = vmatpush1.msra.mxu0 %v3511
    %3577 = vmatprep.subr.mxu0 %v3514
    %3578 = vmatpush1.msra.mxu0 %v3513
    %3579 = vmatprep.subr.mxu0 %v3516
    %3580 = vmatpush1.msra.mxu0 %v3515
    %3581 = vmatprep.subr.mxu0 %v3518
    %3582 = vmatpush1.msra.mxu0 %v3517
    %3583 = vmatprep.subr.mxu0 %v3520
    %3584 = vmatpush1.msra.mxu0 %v3519
    %3585 = vmatprep.subr.mxu0 %v3522
    %3586 = vmatpush1.msra.mxu0 %v3521
    %3587 = vmatprep.subr.mxu0 %v3524
    %3588 = vmatpush1.msra.mxu0 %v3523
    %3589 = vmatprep.subr.mxu0 %v3526
    %3590 = vmatpush1.msra.mxu0 %v3525
    %3591 = vmatprep.subr.mxu0 %v3528
    %3592 = vmatpush1.msra.mxu0 %v3527
    %3593 = vmatprep.subr.mxu0 %v3530
    %3594 = vmatpush1.msra.mxu0 %v3529
    %3595 = vmatprep.subr.mxu0 %v3532
    %3596 = vmatpush1.msra.mxu0 %v3531
    %3597 = vmatprep.subr.mxu0 %v3534
    %3598 = vmatpush1.msra.mxu0 %v3533
    %3599 = vmatprep.subr.mxu0 %v3536
    %3600 = vmatpush1.msra.mxu0 %v3535
    %3601 = vmatprep.subr.mxu0 %v3538
    %3602 = vmatpush1.msra.mxu0 %v3537
    %3603 = vmatprep.subr.mxu0 %v3540
    %3604 = vmatpush1.msra.mxu0 %v3539
    %3605 = vmatprep.subr.mxu0 %v3542
    %3606 = vmatpush1.msra.mxu0 %v3541
    %3607 = vmatprep.subr.mxu0 %v3544
    %3608 = vmatpush1.msra.mxu0 %v3543
    %3609 = vmatprep.subr.mxu0 %v3546
    %3610 = vmatpush1.msra.mxu0 %v3545
    %3611 = vmatprep.subr.mxu0 %v3548
    %3612 = vmatpush1.msra.mxu0 %v3547
    %3613 = vmatprep.subr.mxu0 %v3550
    %3614 = vmatpush1.msra.mxu0 %v3549
    %3615 = vmatprep.subr.mxu0 %v3552
    %3616 = vmatpush1.msra.mxu0 %v3551
    %3617 = vmatprep.subr.mxu0 %v3554
    %3618 = vmatpush1.msra.mxu0 %v3553
    %3619 = vmatprep.mubr.f32.mxu0 %v3240
    %3620 = vmatmul.mubr.f32.gmra.mrb[0].mxu0 %v3236
    %v3621 = vpop.f32.mrb[0].mxu0
    %v3622 = vadd.f32 0.0, %v3621
    %v3623 = vpop.f32.mrb[0].mxu0
    %v3624 = vadd.f32 0.0, %v3623
    %3625 = vdwg.mxu0
    %v3628 = vcombine.low %v3622, %v3624
    %v3630 = vunpack.c.l.s4 1966171168
    %v3631 = vunpack.c.0.s8 %v3630
    %v3632 = vlaneseq
    %v3633 = vshrl.u32 %v3632, 7
    %v3634 = vsub.s32 %v3631, %v3633
    %v3635 = vrot.slane %v3628, %v3634
    %v3637 = vunpack.c.l.s4 1966171168
    %v3638 = vunpack.c.0.s8 %v3637
    %v3639 = vlaneseq
    %v3640 = vshrl.u32 %v3639, 7
    %v3641 = vsub.s32 %v3638, %v3640
    %v3642 = vrot.slane %v3635, %v3641
    %v3644 = vadd.f32 %v3490, %v3642
    %s3645 = scalar_lea.vmem [#allocation3], 52
    %v3646 = vld [vmem:[%s3645] ss:$8 sm:$0x3]
    %v3647 = vld [vmem:[#allocation2 + $0x30] sm:$0xff]
    %v3648 = vld [vmem:[#allocation2 + $0x38] sm:$0xff]
    %v3649 = vld [vmem:[#allocation2 + $0x70] sm:$0xff]
    %v3650 = vld [vmem:[#allocation2 + $0x78] sm:$0xff]
    %v3651 = vld [vmem:[#allocation2 + $0xb0] sm:$0xff]
    %v3652 = vld [vmem:[#allocation2 + $0xb8] sm:$0xff]
    %v3653 = vld [vmem:[#allocation2 + $0xf0] sm:$0xff]
    %v3654 = vld [vmem:[#allocation2 + $0xf8] sm:$0xff]
    %v3655 = vld [vmem:[#allocation2 + $0x130] sm:$0xff]
    %v3656 = vld [vmem:[#allocation2 + $0x138] sm:$0xff]
    %v3657 = vld [vmem:[#allocation2 + $0x170] sm:$0xff]
    %v3658 = vld [vmem:[#allocation2 + $0x178] sm:$0xff]
    %v3659 = vld [vmem:[#allocation2 + $0x1b0] sm:$0xff]
    %v3660 = vld [vmem:[#allocation2 + $0x1b8] sm:$0xff]
    %v3661 = vld [vmem:[#allocation2 + $0x1f0] sm:$0xff]
    %v3662 = vld [vmem:[#allocation2 + $0x1f8] sm:$0xff]
    %v3663 = vld [vmem:[#allocation2 + $0x230] sm:$0xff]
    %v3664 = vld [vmem:[#allocation2 + $0x238] sm:$0xff]
    %v3665 = vld [vmem:[#allocation2 + $0x270] sm:$0xff]
    %v3666 = vld [vmem:[#allocation2 + $0x278] sm:$0xff]
    %v3667 = vld [vmem:[#allocation2 + $0x2b0] sm:$0xff]
    %v3668 = vld [vmem:[#allocation2 + $0x2b8] sm:$0xff]
    %v3669 = vld [vmem:[#allocation2 + $0x2f0] sm:$0xff]
    %v3670 = vld [vmem:[#allocation2 + $0x2f8] sm:$0xff]
    %v3671 = vld [vmem:[#allocation2 + $0x330] sm:$0xff]
    %v3672 = vld [vmem:[#allocation2 + $0x338] sm:$0xff]
    %v3673 = vld [vmem:[#allocation2 + $0x370] sm:$0xff]
    %v3674 = vld [vmem:[#allocation2 + $0x378] sm:$0xff]
    %v3675 = vld [vmem:[#allocation2 + $0x3b0] sm:$0xff]
    %v3676 = vld [vmem:[#allocation2 + $0x3b8] sm:$0xff]
    %v3677 = vld [vmem:[#allocation2 + $0x3f0] sm:$0xff]
    %v3678 = vld [vmem:[#allocation2 + $0x3f8] sm:$0xff]
    %v3679 = vld [vmem:[#allocation2 + $0x430] sm:$0xff]
    %v3680 = vld [vmem:[#allocation2 + $0x438] sm:$0xff]
    %v3681 = vld [vmem:[#allocation2 + $0x470] sm:$0xff]
    %v3682 = vld [vmem:[#allocation2 + $0x478] sm:$0xff]
    %v3683 = vld [vmem:[#allocation2 + $0x4b0] sm:$0xff]
    %v3684 = vld [vmem:[#allocation2 + $0x4b8] sm:$0xff]
    %v3685 = vld [vmem:[#allocation2 + $0x4f0] sm:$0xff]
    %v3686 = vld [vmem:[#allocation2 + $0x4f8] sm:$0xff]
    %v3687 = vld [vmem:[#allocation2 + $0x530] sm:$0xff]
    %v3688 = vld [vmem:[#allocation2 + $0x538] sm:$0xff]
    %v3689 = vld [vmem:[#allocation2 + $0x570] sm:$0xff]
    %v3690 = vld [vmem:[#allocation2 + $0x578] sm:$0xff]
    %v3691 = vld [vmem:[#allocation2 + $0x5b0] sm:$0xff]
    %v3692 = vld [vmem:[#allocation2 + $0x5b8] sm:$0xff]
    %v3693 = vld [vmem:[#allocation2 + $0x5f0] sm:$0xff]
    %v3694 = vld [vmem:[#allocation2 + $0x5f8] sm:$0xff]
    %v3695 = vld [vmem:[#allocation2 + $0x630] sm:$0xff]
    %v3696 = vld [vmem:[#allocation2 + $0x638] sm:$0xff]
    %v3697 = vld [vmem:[#allocation2 + $0x670] sm:$0xff]
    %v3698 = vld [vmem:[#allocation2 + $0x678] sm:$0xff]
    %v3699 = vld [vmem:[#allocation2 + $0x6b0] sm:$0xff]
    %v3700 = vld [vmem:[#allocation2 + $0x6b8] sm:$0xff]
    %v3701 = vld [vmem:[#allocation2 + $0x6f0] sm:$0xff]
    %v3702 = vld [vmem:[#allocation2 + $0x6f8] sm:$0xff]
    %v3703 = vld [vmem:[#allocation2 + $0x730] sm:$0xff]
    %v3704 = vld [vmem:[#allocation2 + $0x738] sm:$0xff]
    %v3705 = vld [vmem:[#allocation2 + $0x770] sm:$0xff]
    %v3706 = vld [vmem:[#allocation2 + $0x778] sm:$0xff]
    %v3707 = vld [vmem:[#allocation2 + $0x7b0] sm:$0xff]
    %v3708 = vld [vmem:[#allocation2 + $0x7b8] sm:$0xff]
    %v3709 = vld [vmem:[#allocation2 + $0x7f0] sm:$0xff]
    %v3710 = vld [vmem:[#allocation2 + $0x7f8] sm:$0xff]
    %3711 = vmatprep.subr.mxu0 %v3648
    %3712 = vmatpush1.msra.mxu0 %v3647
    %3713 = vmatprep.subr.mxu0 %v3650
    %3714 = vmatpush1.msra.mxu0 %v3649
    %3715 = vmatprep.subr.mxu0 %v3652
    %3716 = vmatpush1.msra.mxu0 %v3651
    %3717 = vmatprep.subr.mxu0 %v3654
    %3718 = vmatpush1.msra.mxu0 %v3653
    %3719 = vmatprep.subr.mxu0 %v3656
    %3720 = vmatpush1.msra.mxu0 %v3655
    %3721 = vmatprep.subr.mxu0 %v3658
    %3722 = vmatpush1.msra.mxu0 %v3657
    %3723 = vmatprep.subr.mxu0 %v3660
    %3724 = vmatpush1.msra.mxu0 %v3659
    %3725 = vmatprep.subr.mxu0 %v3662
    %3726 = vmatpush1.msra.mxu0 %v3661
    %3727 = vmatprep.subr.mxu0 %v3664
    %3728 = vmatpush1.msra.mxu0 %v3663
    %3729 = vmatprep.subr.mxu0 %v3666
    %3730 = vmatpush1.msra.mxu0 %v3665
    %3731 = vmatprep.subr.mxu0 %v3668
    %3732 = vmatpush1.msra.mxu0 %v3667
    %3733 = vmatprep.subr.mxu0 %v3670
    %3734 = vmatpush1.msra.mxu0 %v3669
    %3735 = vmatprep.subr.mxu0 %v3672
    %3736 = vmatpush1.msra.mxu0 %v3671
    %3737 = vmatprep.subr.mxu0 %v3674
    %3738 = vmatpush1.msra.mxu0 %v3673
    %3739 = vmatprep.subr.mxu0 %v3676
    %3740 = vmatpush1.msra.mxu0 %v3675
    %3741 = vmatprep.subr.mxu0 %v3678
    %3742 = vmatpush1.msra.mxu0 %v3677
    %3743 = vmatprep.subr.mxu0 %v3680
    %3744 = vmatpush1.msra.mxu0 %v3679
    %3745 = vmatprep.subr.mxu0 %v3682
    %3746 = vmatpush1.msra.mxu0 %v3681
    %3747 = vmatprep.subr.mxu0 %v3684
    %3748 = vmatpush1.msra.mxu0 %v3683
    %3749 = vmatprep.subr.mxu0 %v3686
    %3750 = vmatpush1.msra.mxu0 %v3685
    %3751 = vmatprep.subr.mxu0 %v3688
    %3752 = vmatpush1.msra.mxu0 %v3687
    %3753 = vmatprep.subr.mxu0 %v3690
    %3754 = vmatpush1.msra.mxu0 %v3689
    %3755 = vmatprep.subr.mxu0 %v3692
    %3756 = vmatpush1.msra.mxu0 %v3691
    %3757 = vmatprep.subr.mxu0 %v3694
    %3758 = vmatpush1.msra.mxu0 %v3693
    %3759 = vmatprep.subr.mxu0 %v3696
    %3760 = vmatpush1.msra.mxu0 %v3695
    %3761 = vmatprep.subr.mxu0 %v3698
    %3762 = vmatpush1.msra.mxu0 %v3697
    %3763 = vmatprep.subr.mxu0 %v3700
    %3764 = vmatpush1.msra.mxu0 %v3699
    %3765 = vmatprep.subr.mxu0 %v3702
    %3766 = vmatpush1.msra.mxu0 %v3701
    %3767 = vmatprep.subr.mxu0 %v3704
    %3768 = vmatpush1.msra.mxu0 %v3703
    %3769 = vmatprep.subr.mxu0 %v3706
    %3770 = vmatpush1.msra.mxu0 %v3705
    %3771 = vmatprep.subr.mxu0 %v3708
    %3772 = vmatpush1.msra.mxu0 %v3707
    %3773 = vmatprep.subr.mxu0 %v3710
    %3774 = vmatpush1.msra.mxu0 %v3709
    %3775 = vmatprep.mubr.f32.mxu0 %v3240
    %3776 = vmatmul.mubr.f32.gmra.mrb[0].mxu0 %v3236
    %v3777 = vpop.f32.mrb[0].mxu0
    %v3778 = vadd.f32 0.0, %v3777
    %v3779 = vpop.f32.mrb[0].mxu0
    %v3780 = vadd.f32 0.0, %v3779
    %3781 = vdwg.mxu0
    %v3784 = vcombine.low %v3778, %v3780
    %v3786 = vunpack.c.l.s4 1966171168
    %v3787 = vunpack.c.0.s8 %v3786
    %v3788 = vlaneseq
    %v3789 = vshrl.u32 %v3788, 7
    %v3790 = vsub.s32 %v3787, %v3789
    %v3791 = vrot.slane %v3784, %v3790
    %v3793 = vunpack.c.l.s4 1966171168
    %v3794 = vunpack.c.0.s8 %v3793
    %v3795 = vlaneseq
    %v3796 = vshrl.u32 %v3795, 7
    %v3797 = vsub.s32 %v3794, %v3796
    %v3798 = vrot.slane %v3791, %v3797
    %v3800 = vadd.f32 %v3646, %v3798
    %v3801 = vxor.u32 %v3332, 2147483648
    %v3802 = vmul.f32 %v3801, 1.442695
    %v3803 = vpow.pop %v3802
    %v3804 = vadd.f32 %v3803, 1.0
    %v3805 = vrcp.pop %v3804
    %v3806 = vmul.f32 1.0, %v3805
    %v3807 = vxor.u32 %v3488, 2147483648
    %v3808 = vmul.f32 %v3807, 1.442695
    %v3809 = vpow.pop %v3808
    %v3810 = vadd.f32 %v3809, 1.0
    %v3811 = vrcp.pop %v3810
    %v3812 = vmul.f32 1.0, %v3811
    %v3813 = vtanh.pop %v3644
    %v3814 = vmul.f32 %v3812, %v3154
    %v3815 = vmul.f32 %v3806, %v3813
    %v3816 = vadd.f32 %v3814, %v3815
    %v3817 = vtanh.pop %v3816
    %v3818 = vxor.u32 %v3800, 2147483648
    %v3819 = vmul.f32 %v3818, 1.442695
    %v3820 = vpow.pop %v3819
    %v3821 = vadd.f32 %v3820, 1.0
    %v3822 = vrcp.pop %v3821
    %v3823 = vmul.f32 1.0, %v3822
    %v3824 = vmul.f32 %v3823, %v3817
    %s3825 = scalar_lea.vmem [#allocation4], 4
    %3826 = vst.msk [vmem:[%s3825] ss:$8 sm:$0x3] %vm1177, %v3824
    %3827 = vst.msk [vmem:[%s3825] ss:$8 sm:$0x0] %vm1177, %v3824
    %s3828 = scalar_lea.vmem [#allocation3], 5
    %v3829 = vld [vmem:[%s3828] ss:$8 sm:$0x3]
    %v3830 = vld [vmem:[#allocation2] sm:$0xff]
    %v3831 = vld [vmem:[#allocation2 + $0x8] sm:$0xff]
    %v3832 = vld [vmem:[#allocation2 + $0x40] sm:$0xff]
    %v3833 = vld [vmem:[#allocation2 + $0x48] sm:$0xff]
    %v3834 = vld [vmem:[#allocation2 + $0x80] sm:$0xff]
    %v3835 = vld [vmem:[#allocation2 + $0x88] sm:$0xff]
    %v3836 = vld [vmem:[#allocation2 + $0xc0] sm:$0xff]
    %v3837 = vld [vmem:[#allocation2 + $0xc8] sm:$0xff]
    %v3838 = vld [vmem:[#allocation2 + $0x100] sm:$0xff]
    %v3839 = vld [vmem:[#allocation2 + $0x108] sm:$0xff]
    %v3840 = vld [vmem:[#allocation2 + $0x140] sm:$0xff]
    %v3841 = vld [vmem:[#allocation2 + $0x148] sm:$0xff]
    %v3842 = vld [vmem:[#allocation2 + $0x180] sm:$0xff]
    %v3843 = vld [vmem:[#allocation2 + $0x188] sm:$0xff]
    %v3844 = vld [vmem:[#allocation2 + $0x1c0] sm:$0xff]
    %v3845 = vld [vmem:[#allocation2 + $0x1c8] sm:$0xff]
    %v3846 = vld [vmem:[#allocation2 + $0x200] sm:$0xff]
    %v3847 = vld [vmem:[#allocation2 + $0x208] sm:$0xff]
    %v3848 = vld [vmem:[#allocation2 + $0x240] sm:$0xff]
    %v3849 = vld [vmem:[#allocation2 + $0x248] sm:$0xff]
    %v3850 = vld [vmem:[#allocation2 + $0x280] sm:$0xff]
    %v3851 = vld [vmem:[#allocation2 + $0x288] sm:$0xff]
    %v3852 = vld [vmem:[#allocation2 + $0x2c0] sm:$0xff]
    %v3853 = vld [vmem:[#allocation2 + $0x2c8] sm:$0xff]
    %v3854 = vld [vmem:[#allocation2 + $0x300] sm:$0xff]
    %v3855 = vld [vmem:[#allocation2 + $0x308] sm:$0xff]
    %v3856 = vld [vmem:[#allocation2 + $0x340] sm:$0xff]
    %v3857 = vld [vmem:[#allocation2 + $0x348] sm:$0xff]
    %v3858 = vld [vmem:[#allocation2 + $0x380] sm:$0xff]
    %v3859 = vld [vmem:[#allocation2 + $0x388] sm:$0xff]
    %v3860 = vld [vmem:[#allocation2 + $0x3c0] sm:$0xff]
    %v3861 = vld [vmem:[#allocation2 + $0x3c8] sm:$0xff]
    %v3862 = vld [vmem:[#allocation2 + $0x400] sm:$0xff]
    %v3863 = vld [vmem:[#allocation2 + $0x408] sm:$0xff]
    %v3864 = vld [vmem:[#allocation2 + $0x440] sm:$0xff]
    %v3865 = vld [vmem:[#allocation2 + $0x448] sm:$0xff]
    %v3866 = vld [vmem:[#allocation2 + $0x480] sm:$0xff]
    %v3867 = vld [vmem:[#allocation2 + $0x488] sm:$0xff]
    %v3868 = vld [vmem:[#allocation2 + $0x4c0] sm:$0xff]
    %v3869 = vld [vmem:[#allocation2 + $0x4c8] sm:$0xff]
    %v3870 = vld [vmem:[#allocation2 + $0x500] sm:$0xff]
    %v3871 = vld [vmem:[#allocation2 + $0x508] sm:$0xff]
    %v3872 = vld [vmem:[#allocation2 + $0x540] sm:$0xff]
    %v3873 = vld [vmem:[#allocation2 + $0x548] sm:$0xff]
    %v3874 = vld [vmem:[#allocation2 + $0x580] sm:$0xff]
    %v3875 = vld [vmem:[#allocation2 + $0x588] sm:$0xff]
    %v3876 = vld [vmem:[#allocation2 + $0x5c0] sm:$0xff]
    %v3877 = vld [vmem:[#allocation2 + $0x5c8] sm:$0xff]
    %v3878 = vld [vmem:[#allocation2 + $0x600] sm:$0xff]
    %v3879 = vld [vmem:[#allocation2 + $0x608] sm:$0xff]
    %v3880 = vld [vmem:[#allocation2 + $0x640] sm:$0xff]
    %v3881 = vld [vmem:[#allocation2 + $0x648] sm:$0xff]
    %v3882 = vld [vmem:[#allocation2 + $0x680] sm:$0xff]
    %v3883 = vld [vmem:[#allocation2 + $0x688] sm:$0xff]
    %v3884 = vld [vmem:[#allocation2 + $0x6c0] sm:$0xff]
    %v3885 = vld [vmem:[#allocation2 + $0x6c8] sm:$0xff]
    %v3886 = vld [vmem:[#allocation2 + $0x700] sm:$0xff]
    %v3887 = vld [vmem:[#allocation2 + $0x708] sm:$0xff]
    %v3888 = vld [vmem:[#allocation2 + $0x740] sm:$0xff]
    %v3889 = vld [vmem:[#allocation2 + $0x748] sm:$0xff]
    %v3890 = vld [vmem:[#allocation2 + $0x780] sm:$0xff]
    %v3891 = vld [vmem:[#allocation2 + $0x788] sm:$0xff]
    %v3892 = vld [vmem:[#allocation2 + $0x7c0] sm:$0xff]
    %v3893 = vld [vmem:[#allocation2 + $0x7c8] sm:$0xff]
    %v3895 = vlaneseq
    %v3896 = vshrl.u32 %v3895, 7
    %v3897 = vsub.s32 0, %v3896
    %v3898 = vrot.slane %v3824, %v3897
    %v3899 = vlaneseq
    %v3900 = vshrl.u32 %v3899, 7
    %v3901 = vsub.s32 1, %v3900
    %v3902 = vrot.slane %v3824, %v3901
    %3905 = vmatprep.subr.mxu0 %v3831
    %3906 = vmatpush1.msra.mxu0 %v3830
    %3907 = vmatprep.subr.mxu0 %v3833
    %3908 = vmatpush1.msra.mxu0 %v3832
    %3909 = vmatprep.subr.mxu0 %v3835
    %3910 = vmatpush1.msra.mxu0 %v3834
    %3911 = vmatprep.subr.mxu0 %v3837
    %3912 = vmatpush1.msra.mxu0 %v3836
    %3913 = vmatprep.subr.mxu0 %v3839
    %3914 = vmatpush1.msra.mxu0 %v3838
    %3915 = vmatprep.subr.mxu0 %v3841
    %3916 = vmatpush1.msra.mxu0 %v3840
    %3917 = vmatprep.subr.mxu0 %v3843
    %3918 = vmatpush1.msra.mxu0 %v3842
    %3919 = vmatprep.subr.mxu0 %v3845
    %3920 = vmatpush1.msra.mxu0 %v3844
    %3921 = vmatprep.subr.mxu0 %v3847
    %3922 = vmatpush1.msra.mxu0 %v3846
    %3923 = vmatprep.subr.mxu0 %v3849
    %3924 = vmatpush1.msra.mxu0 %v3848
    %3925 = vmatprep.subr.mxu0 %v3851
    %3926 = vmatpush1.msra.mxu0 %v3850
    %3927 = vmatprep.subr.mxu0 %v3853
    %3928 = vmatpush1.msra.mxu0 %v3852
    %3929 = vmatprep.subr.mxu0 %v3855
    %3930 = vmatpush1.msra.mxu0 %v3854
    %3931 = vmatprep.subr.mxu0 %v3857
    %3932 = vmatpush1.msra.mxu0 %v3856
    %3933 = vmatprep.subr.mxu0 %v3859
    %3934 = vmatpush1.msra.mxu0 %v3858
    %3935 = vmatprep.subr.mxu0 %v3861
    %3936 = vmatpush1.msra.mxu0 %v3860
    %3937 = vmatprep.subr.mxu0 %v3863
    %3938 = vmatpush1.msra.mxu0 %v3862
    %3939 = vmatprep.subr.mxu0 %v3865
    %3940 = vmatpush1.msra.mxu0 %v3864
    %3941 = vmatprep.subr.mxu0 %v3867
    %3942 = vmatpush1.msra.mxu0 %v3866
    %3943 = vmatprep.subr.mxu0 %v3869
    %3944 = vmatpush1.msra.mxu0 %v3868
    %3945 = vmatprep.subr.mxu0 %v3871
    %3946 = vmatpush1.msra.mxu0 %v3870
    %3947 = vmatprep.subr.mxu0 %v3873
    %3948 = vmatpush1.msra.mxu0 %v3872
    %3949 = vmatprep.subr.mxu0 %v3875
    %3950 = vmatpush1.msra.mxu0 %v3874
    %3951 = vmatprep.subr.mxu0 %v3877
    %3952 = vmatpush1.msra.mxu0 %v3876
    %3953 = vmatprep.subr.mxu0 %v3879
    %3954 = vmatpush1.msra.mxu0 %v3878
    %3955 = vmatprep.subr.mxu0 %v3881
    %3956 = vmatpush1.msra.mxu0 %v3880
    %3957 = vmatprep.subr.mxu0 %v3883
    %3958 = vmatpush1.msra.mxu0 %v3882
    %3959 = vmatprep.subr.mxu0 %v3885
    %3960 = vmatpush1.msra.mxu0 %v3884
    %3961 = vmatprep.subr.mxu0 %v3887
    %3962 = vmatpush1.msra.mxu0 %v3886
    %3963 = vmatprep.subr.mxu0 %v3889
    %3964 = vmatpush1.msra.mxu0 %v3888
    %3965 = vmatprep.subr.mxu0 %v3891
    %3966 = vmatpush1.msra.mxu0 %v3890
    %3967 = vmatprep.subr.mxu0 %v3893
    %3968 = vmatpush1.msra.mxu0 %v3892
    %3969 = vmatprep.mubr.f32.mxu0 %v3902
    %3970 = vmatmul.mubr.f32.gmra.mrb[0].mxu0 %v3898
    %v3971 = vpop.f32.mrb[0].mxu0
    %v3972 = vadd.f32 0.0, %v3971
    %v3973 = vpop.f32.mrb[0].mxu0
    %v3974 = vadd.f32 0.0, %v3973
    %3975 = vdwg.mxu0
    %v3978 = vcombine.low %v3972, %v3974
    %v3980 = vunpack.c.l.s4 1966171168
    %v3981 = vunpack.c.0.s8 %v3980
    %v3982 = vlaneseq
    %v3983 = vshrl.u32 %v3982, 7
    %v3984 = vsub.s32 %v3981, %v3983
    %v3985 = vrot.slane %v3978, %v3984
    %v3987 = vunpack.c.l.s4 1966171168
    %v3988 = vunpack.c.0.s8 %v3987
    %v3989 = vlaneseq
    %v3990 = vshrl.u32 %v3989, 7
    %v3991 = vsub.s32 %v3988, %v3990
    %v3992 = vrot.slane %v3985, %v3991
    %v3994 = vadd.f32 %v3829, %v3992
    %s3995 = scalar_lea.vmem [#allocation3], 21
    %v3996 = vld [vmem:[%s3995] ss:$8 sm:$0x3]
    %v3997 = vld [vmem:[#allocation2 + $0x10] sm:$0xff]
    %v3998 = vld [vmem:[#allocation2 + $0x18] sm:$0xff]
    %v3999 = vld [vmem:[#allocation2 + $0x50] sm:$0xff]
    %v4000 = vld [vmem:[#allocation2 + $0x58] sm:$0xff]
    %v4001 = vld [vmem:[#allocation2 + $0x90] sm:$0xff]
    %v4002 = vld [vmem:[#allocation2 + $0x98] sm:$0xff]
    %v4003 = vld [vmem:[#allocation2 + $0xd0] sm:$0xff]
    %v4004 = vld [vmem:[#allocation2 + $0xd8] sm:$0xff]
    %v4005 = vld [vmem:[#allocation2 + $0x110] sm:$0xff]
    %v4006 = vld [vmem:[#allocation2 + $0x118] sm:$0xff]
    %v4007 = vld [vmem:[#allocation2 + $0x150] sm:$0xff]
    %v4008 = vld [vmem:[#allocation2 + $0x158] sm:$0xff]
    %v4009 = vld [vmem:[#allocation2 + $0x190] sm:$0xff]
    %v4010 = vld [vmem:[#allocation2 + $0x198] sm:$0xff]
    %v4011 = vld [vmem:[#allocation2 + $0x1d0] sm:$0xff]
    %v4012 = vld [vmem:[#allocation2 + $0x1d8] sm:$0xff]
    %v4013 = vld [vmem:[#allocation2 + $0x210] sm:$0xff]
    %v4014 = vld [vmem:[#allocation2 + $0x218] sm:$0xff]
    %v4015 = vld [vmem:[#allocation2 + $0x250] sm:$0xff]
    %v4016 = vld [vmem:[#allocation2 + $0x258] sm:$0xff]
    %v4017 = vld [vmem:[#allocation2 + $0x290] sm:$0xff]
    %v4018 = vld [vmem:[#allocation2 + $0x298] sm:$0xff]
    %v4019 = vld [vmem:[#allocation2 + $0x2d0] sm:$0xff]
    %v4020 = vld [vmem:[#allocation2 + $0x2d8] sm:$0xff]
    %v4021 = vld [vmem:[#allocation2 + $0x310] sm:$0xff]
    %v4022 = vld [vmem:[#allocation2 + $0x318] sm:$0xff]
    %v4023 = vld [vmem:[#allocation2 + $0x350] sm:$0xff]
    %v4024 = vld [vmem:[#allocation2 + $0x358] sm:$0xff]
    %v4025 = vld [vmem:[#allocation2 + $0x390] sm:$0xff]
    %v4026 = vld [vmem:[#allocation2 + $0x398] sm:$0xff]
    %v4027 = vld [vmem:[#allocation2 + $0x3d0] sm:$0xff]
    %v4028 = vld [vmem:[#allocation2 + $0x3d8] sm:$0xff]
    %v4029 = vld [vmem:[#allocation2 + $0x410] sm:$0xff]
    %v4030 = vld [vmem:[#allocation2 + $0x418] sm:$0xff]
    %v4031 = vld [vmem:[#allocation2 + $0x450] sm:$0xff]
    %v4032 = vld [vmem:[#allocation2 + $0x458] sm:$0xff]
    %v4033 = vld [vmem:[#allocation2 + $0x490] sm:$0xff]
    %v4034 = vld [vmem:[#allocation2 + $0x498] sm:$0xff]
    %v4035 = vld [vmem:[#allocation2 + $0x4d0] sm:$0xff]
    %v4036 = vld [vmem:[#allocation2 + $0x4d8] sm:$0xff]
    %v4037 = vld [vmem:[#allocation2 + $0x510] sm:$0xff]
    %v4038 = vld [vmem:[#allocation2 + $0x518] sm:$0xff]
    %v4039 = vld [vmem:[#allocation2 + $0x550] sm:$0xff]
    %v4040 = vld [vmem:[#allocation2 + $0x558] sm:$0xff]
    %v4041 = vld [vmem:[#allocation2 + $0x590] sm:$0xff]
    %v4042 = vld [vmem:[#allocation2 + $0x598] sm:$0xff]
    %v4043 = vld [vmem:[#allocation2 + $0x5d0] sm:$0xff]
    %v4044 = vld [vmem:[#allocation2 + $0x5d8] sm:$0xff]
    %v4045 = vld [vmem:[#allocation2 + $0x610] sm:$0xff]
    %v4046 = vld [vmem:[#allocation2 + $0x618] sm:$0xff]
    %v4047 = vld [vmem:[#allocation2 + $0x650] sm:$0xff]
    %v4048 = vld [vmem:[#allocation2 + $0x658] sm:$0xff]
    %v4049 = vld [vmem:[#allocation2 + $0x690] sm:$0xff]
    %v4050 = vld [vmem:[#allocation2 + $0x698] sm:$0xff]
    %v4051 = vld [vmem:[#allocation2 + $0x6d0] sm:$0xff]
    %v4052 = vld [vmem:[#allocation2 + $0x6d8] sm:$0xff]
    %v4053 = vld [vmem:[#allocation2 + $0x710] sm:$0xff]
    %v4054 = vld [vmem:[#allocation2 + $0x718] sm:$0xff]
    %v4055 = vld [vmem:[#allocation2 + $0x750] sm:$0xff]
    %v4056 = vld [vmem:[#allocation2 + $0x758] sm:$0xff]
    %v4057 = vld [vmem:[#allocation2 + $0x790] sm:$0xff]
    %v4058 = vld [vmem:[#allocation2 + $0x798] sm:$0xff]
    %v4059 = vld [vmem:[#allocation2 + $0x7d0] sm:$0xff]
    %v4060 = vld [vmem:[#allocation2 + $0x7d8] sm:$0xff]
    %4061 = vmatprep.subr.mxu0 %v3998
    %4062 = vmatpush1.msra.mxu0 %v3997
    %4063 = vmatprep.subr.mxu0 %v4000
    %4064 = vmatpush1.msra.mxu0 %v3999
    %4065 = vmatprep.subr.mxu0 %v4002
    %4066 = vmatpush1.msra.mxu0 %v4001
    %4067 = vmatprep.subr.mxu0 %v4004
    %4068 = vmatpush1.msra.mxu0 %v4003
    %4069 = vmatprep.subr.mxu0 %v4006
    %4070 = vmatpush1.msra.mxu0 %v4005
    %4071 = vmatprep.subr.mxu0 %v4008
    %4072 = vmatpush1.msra.mxu0 %v4007
    %4073 = vmatprep.subr.mxu0 %v4010
    %4074 = vmatpush1.msra.mxu0 %v4009
    %4075 = vmatprep.subr.mxu0 %v4012
    %4076 = vmatpush1.msra.mxu0 %v4011
    %4077 = vmatprep.subr.mxu0 %v4014
    %4078 = vmatpush1.msra.mxu0 %v4013
    %4079 = vmatprep.subr.mxu0 %v4016
    %4080 = vmatpush1.msra.mxu0 %v4015
    %4081 = vmatprep.subr.mxu0 %v4018
    %4082 = vmatpush1.msra.mxu0 %v4017
    %4083 = vmatprep.subr.mxu0 %v4020
    %4084 = vmatpush1.msra.mxu0 %v4019
    %4085 = vmatprep.subr.mxu0 %v4022
    %4086 = vmatpush1.msra.mxu0 %v4021
    %4087 = vmatprep.subr.mxu0 %v4024
    %4088 = vmatpush1.msra.mxu0 %v4023
    %4089 = vmatprep.subr.mxu0 %v4026
    %4090 = vmatpush1.msra.mxu0 %v4025
    %4091 = vmatprep.subr.mxu0 %v4028
    %4092 = vmatpush1.msra.mxu0 %v4027
    %4093 = vmatprep.subr.mxu0 %v4030
    %4094 = vmatpush1.msra.mxu0 %v4029
    %4095 = vmatprep.subr.mxu0 %v4032
    %4096 = vmatpush1.msra.mxu0 %v4031
    %4097 = vmatprep.subr.mxu0 %v4034
    %4098 = vmatpush1.msra.mxu0 %v4033
    %4099 = vmatprep.subr.mxu0 %v4036
    %4100 = vmatpush1.msra.mxu0 %v4035
    %4101 = vmatprep.subr.mxu0 %v4038
    %4102 = vmatpush1.msra.mxu0 %v4037
    %4103 = vmatprep.subr.mxu0 %v4040
    %4104 = vmatpush1.msra.mxu0 %v4039
    %4105 = vmatprep.subr.mxu0 %v4042
    %4106 = vmatpush1.msra.mxu0 %v4041
    %4107 = vmatprep.subr.mxu0 %v4044
    %4108 = vmatpush1.msra.mxu0 %v4043
    %4109 = vmatprep.subr.mxu0 %v4046
    %4110 = vmatpush1.msra.mxu0 %v4045
    %4111 = vmatprep.subr.mxu0 %v4048
    %4112 = vmatpush1.msra.mxu0 %v4047
    %4113 = vmatprep.subr.mxu0 %v4050
    %4114 = vmatpush1.msra.mxu0 %v4049
    %4115 = vmatprep.subr.mxu0 %v4052
    %4116 = vmatpush1.msra.mxu0 %v4051
    %4117 = vmatprep.subr.mxu0 %v4054
    %4118 = vmatpush1.msra.mxu0 %v4053
    %4119 = vmatprep.subr.mxu0 %v4056
    %4120 = vmatpush1.msra.mxu0 %v4055
    %4121 = vmatprep.subr.mxu0 %v4058
    %4122 = vmatpush1.msra.mxu0 %v4057
    %4123 = vmatprep.subr.mxu0 %v4060
    %4124 = vmatpush1.msra.mxu0 %v4059
    %4125 = vmatprep.mubr.f32.mxu0 %v3902
    %4126 = vmatmul.mubr.f32.gmra.mrb[0].mxu0 %v3898
    %v4127 = vpop.f32.mrb[0].mxu0
    %v4128 = vadd.f32 0.0, %v4127
    %v4129 = vpop.f32.mrb[0].mxu0
    %v4130 = vadd.f32 0.0, %v4129
    %4131 = vdwg.mxu0
    %v4134 = vcombine.low %v4128, %v4130
    %v4136 = vunpack.c.l.s4 1966171168
    %v4137 = vunpack.c.0.s8 %v4136
    %v4138 = vlaneseq
    %v4139 = vshrl.u32 %v4138, 7
    %v4140 = vsub.s32 %v4137, %v4139
    %v4141 = vrot.slane %v4134, %v4140
    %v4143 = vunpack.c.l.s4 1966171168
    %v4144 = vunpack.c.0.s8 %v4143
    %v4145 = vlaneseq
    %v4146 = vshrl.u32 %v4145, 7
    %v4147 = vsub.s32 %v4144, %v4146
    %v4148 = vrot.slane %v4141, %v4147
    %v4150 = vadd.f32 %v3996, %v4148
    %s4151 = scalar_lea.vmem [#allocation3], 37
    %v4152 = vld [vmem:[%s4151] ss:$8 sm:$0x3]
    %v4153 = vld [vmem:[#allocation2 + $0x20] sm:$0xff]
    %v4154 = vld [vmem:[#allocation2 + $0x28] sm:$0xff]
    %v4155 = vld [vmem:[#allocation2 + $0x60] sm:$0xff]
    %v4156 = vld [vmem:[#allocation2 + $0x68] sm:$0xff]
    %v4157 = vld [vmem:[#allocation2 + $0xa0] sm:$0xff]
    %v4158 = vld [vmem:[#allocation2 + $0xa8] sm:$0xff]
    %v4159 = vld [vmem:[#allocation2 + $0xe0] sm:$0xff]
    %v4160 = vld [vmem:[#allocation2 + $0xe8] sm:$0xff]
    %v4161 = vld [vmem:[#allocation2 + $0x120] sm:$0xff]
    %v4162 = vld [vmem:[#allocation2 + $0x128] sm:$0xff]
    %v4163 = vld [vmem:[#allocation2 + $0x160] sm:$0xff]
    %v4164 = vld [vmem:[#allocation2 + $0x168] sm:$0xff]
    %v4165 = vld [vmem:[#allocation2 + $0x1a0] sm:$0xff]
    %v4166 = vld [vmem:[#allocation2 + $0x1a8] sm:$0xff]
    %v4167 = vld [vmem:[#allocation2 + $0x1e0] sm:$0xff]
    %v4168 = vld [vmem:[#allocation2 + $0x1e8] sm:$0xff]
    %v4169 = vld [vmem:[#allocation2 + $0x220] sm:$0xff]
    %v4170 = vld [vmem:[#allocation2 + $0x228] sm:$0xff]
    %v4171 = vld [vmem:[#allocation2 + $0x260] sm:$0xff]
    %v4172 = vld [vmem:[#allocation2 + $0x268] sm:$0xff]
    %v4173 = vld [vmem:[#allocation2 + $0x2a0] sm:$0xff]
    %v4174 = vld [vmem:[#allocation2 + $0x2a8] sm:$0xff]
    %v4175 = vld [vmem:[#allocation2 + $0x2e0] sm:$0xff]
    %v4176 = vld [vmem:[#allocation2 + $0x2e8] sm:$0xff]
    %v4177 = vld [vmem:[#allocation2 + $0x320] sm:$0xff]
    %v4178 = vld [vmem:[#allocation2 + $0x328] sm:$0xff]
    %v4179 = vld [vmem:[#allocation2 + $0x360] sm:$0xff]
    %v4180 = vld [vmem:[#allocation2 + $0x368] sm:$0xff]
    %v4181 = vld [vmem:[#allocation2 + $0x3a0] sm:$0xff]
    %v4182 = vld [vmem:[#allocation2 + $0x3a8] sm:$0xff]
    %v4183 = vld [vmem:[#allocation2 + $0x3e0] sm:$0xff]
    %v4184 = vld [vmem:[#allocation2 + $0x3e8] sm:$0xff]
    %v4185 = vld [vmem:[#allocation2 + $0x420] sm:$0xff]
    %v4186 = vld [vmem:[#allocation2 + $0x428] sm:$0xff]
    %v4187 = vld [vmem:[#allocation2 + $0x460] sm:$0xff]
    %v4188 = vld [vmem:[#allocation2 + $0x468] sm:$0xff]
    %v4189 = vld [vmem:[#allocation2 + $0x4a0] sm:$0xff]
    %v4190 = vld [vmem:[#allocation2 + $0x4a8] sm:$0xff]
    %v4191 = vld [vmem:[#allocation2 + $0x4e0] sm:$0xff]
    %v4192 = vld [vmem:[#allocation2 + $0x4e8] sm:$0xff]
    %v4193 = vld [vmem:[#allocation2 + $0x520] sm:$0xff]
    %v4194 = vld [vmem:[#allocation2 + $0x528] sm:$0xff]
    %v4195 = vld [vmem:[#allocation2 + $0x560] sm:$0xff]
    %v4196 = vld [vmem:[#allocation2 + $0x568] sm:$0xff]
    %v4197 = vld [vmem:[#allocation2 + $0x5a0] sm:$0xff]
    %v4198 = vld [vmem:[#allocation2 + $0x5a8] sm:$0xff]
    %v4199 = vld [vmem:[#allocation2 + $0x5e0] sm:$0xff]
    %v4200 = vld [vmem:[#allocation2 + $0x5e8] sm:$0xff]
    %v4201 = vld [vmem:[#allocation2 + $0x620] sm:$0xff]
    %v4202 = vld [vmem:[#allocation2 + $0x628] sm:$0xff]
    %v4203 = vld [vmem:[#allocation2 + $0x660] sm:$0xff]
    %v4204 = vld [vmem:[#allocation2 + $0x668] sm:$0xff]
    %v4205 = vld [vmem:[#allocation2 + $0x6a0] sm:$0xff]
    %v4206 = vld [vmem:[#allocation2 + $0x6a8] sm:$0xff]
    %v4207 = vld [vmem:[#allocation2 + $0x6e0] sm:$0xff]
    %v4208 = vld [vmem:[#allocation2 + $0x6e8] sm:$0xff]
    %v4209 = vld [vmem:[#allocation2 + $0x720] sm:$0xff]
    %v4210 = vld [vmem:[#allocation2 + $0x728] sm:$0xff]
    %v4211 = vld [vmem:[#allocation2 + $0x760] sm:$0xff]
    %v4212 = vld [vmem:[#allocation2 + $0x768] sm:$0xff]
    %v4213 = vld [vmem:[#allocation2 + $0x7a0] sm:$0xff]
    %v4214 = vld [vmem:[#allocation2 + $0x7a8] sm:$0xff]
    %v4215 = vld [vmem:[#allocation2 + $0x7e0] sm:$0xff]
    %v4216 = vld [vmem:[#allocation2 + $0x7e8] sm:$0xff]
    %4217 = vmatprep.subr.mxu0 %v4154
    %4218 = vmatpush1.msra.mxu0 %v4153
    %4219 = vmatprep.subr.mxu0 %v4156
    %4220 = vmatpush1.msra.mxu0 %v4155
    %4221 = vmatprep.subr.mxu0 %v4158
    %4222 = vmatpush1.msra.mxu0 %v4157
    %4223 = vmatprep.subr.mxu0 %v4160
    %4224 = vmatpush1.msra.mxu0 %v4159
    %4225 = vmatprep.subr.mxu0 %v4162
    %4226 = vmatpush1.msra.mxu0 %v4161
    %4227 = vmatprep.subr.mxu0 %v4164
    %4228 = vmatpush1.msra.mxu0 %v4163
    %4229 = vmatprep.subr.mxu0 %v4166
    %4230 = vmatpush1.msra.mxu0 %v4165
    %4231 = vmatprep.subr.mxu0 %v4168
    %4232 = vmatpush1.msra.mxu0 %v4167
    %4233 = vmatprep.subr.mxu0 %v4170
    %4234 = vmatpush1.msra.mxu0 %v4169
    %4235 = vmatprep.subr.mxu0 %v4172
    %4236 = vmatpush1.msra.mxu0 %v4171
    %4237 = vmatprep.subr.mxu0 %v4174
    %4238 = vmatpush1.msra.mxu0 %v4173
    %4239 = vmatprep.subr.mxu0 %v4176
    %4240 = vmatpush1.msra.mxu0 %v4175
    %4241 = vmatprep.subr.mxu0 %v4178
    %4242 = vmatpush1.msra.mxu0 %v4177
    %4243 = vmatprep.subr.mxu0 %v4180
    %4244 = vmatpush1.msra.mxu0 %v4179
    %4245 = vmatprep.subr.mxu0 %v4182
    %4246 = vmatpush1.msra.mxu0 %v4181
    %4247 = vmatprep.subr.mxu0 %v4184
    %4248 = vmatpush1.msra.mxu0 %v4183
    %4249 = vmatprep.subr.mxu0 %v4186
    %4250 = vmatpush1.msra.mxu0 %v4185
    %4251 = vmatprep.subr.mxu0 %v4188
    %4252 = vmatpush1.msra.mxu0 %v4187
    %4253 = vmatprep.subr.mxu0 %v4190
    %4254 = vmatpush1.msra.mxu0 %v4189
    %4255 = vmatprep.subr.mxu0 %v4192
    %4256 = vmatpush1.msra.mxu0 %v4191
    %4257 = vmatprep.subr.mxu0 %v4194
    %4258 = vmatpush1.msra.mxu0 %v4193
    %4259 = vmatprep.subr.mxu0 %v4196
    %4260 = vmatpush1.msra.mxu0 %v4195
    %4261 = vmatprep.subr.mxu0 %v4198
    %4262 = vmatpush1.msra.mxu0 %v4197
    %4263 = vmatprep.subr.mxu0 %v4200
    %4264 = vmatpush1.msra.mxu0 %v4199
    %4265 = vmatprep.subr.mxu0 %v4202
    %4266 = vmatpush1.msra.mxu0 %v4201
    %4267 = vmatprep.subr.mxu0 %v4204
    %4268 = vmatpush1.msra.mxu0 %v4203
    %4269 = vmatprep.subr.mxu0 %v4206
    %4270 = vmatpush1.msra.mxu0 %v4205
    %4271 = vmatprep.subr.mxu0 %v4208
    %4272 = vmatpush1.msra.mxu0 %v4207
    %4273 = vmatprep.subr.mxu0 %v4210
    %4274 = vmatpush1.msra.mxu0 %v4209
    %4275 = vmatprep.subr.mxu0 %v4212
    %4276 = vmatpush1.msra.mxu0 %v4211
    %4277 = vmatprep.subr.mxu0 %v4214
    %4278 = vmatpush1.msra.mxu0 %v4213
    %4279 = vmatprep.subr.mxu0 %v4216
    %4280 = vmatpush1.msra.mxu0 %v4215
    %4281 = vmatprep.mubr.f32.mxu0 %v3902
    %4282 = vmatmul.mubr.f32.gmra.mrb[0].mxu0 %v3898
    %v4283 = vpop.f32.mrb[0].mxu0
    %v4284 = vadd.f32 0.0, %v4283
    %v4285 = vpop.f32.mrb[0].mxu0
    %v4286 = vadd.f32 0.0, %v4285
    %4287 = vdwg.mxu0
    %v4290 = vcombine.low %v4284, %v4286
    %v4292 = vunpack.c.l.s4 1966171168
    %v4293 = vunpack.c.0.s8 %v4292
    %v4294 = vlaneseq
    %v4295 = vshrl.u32 %v4294, 7
    %v4296 = vsub.s32 %v4293, %v4295
    %v4297 = vrot.slane %v4290, %v4296
    %v4299 = vunpack.c.l.s4 1966171168
    %v4300 = vunpack.c.0.s8 %v4299
    %v4301 = vlaneseq
    %v4302 = vshrl.u32 %v4301, 7
    %v4303 = vsub.s32 %v4300, %v4302
    %v4304 = vrot.slane %v4297, %v4303
    %v4306 = vadd.f32 %v4152, %v4304
    %s4307 = scalar_lea.vmem [#allocation3], 53
    %v4308 = vld [vmem:[%s4307] ss:$8 sm:$0x3]
    %v4309 = vld [vmem:[#allocation2 + $0x30] sm:$0xff]
    %v4310 = vld [vmem:[#allocation2 + $0x38] sm:$0xff]
    %v4311 = vld [vmem:[#allocation2 + $0x70] sm:$0xff]
    %v4312 = vld [vmem:[#allocation2 + $0x78] sm:$0xff]
    %v4313 = vld [vmem:[#allocation2 + $0xb0] sm:$0xff]
    %v4314 = vld [vmem:[#allocation2 + $0xb8] sm:$0xff]
    %v4315 = vld [vmem:[#allocation2 + $0xf0] sm:$0xff]
    %v4316 = vld [vmem:[#allocation2 + $0xf8] sm:$0xff]
    %v4317 = vld [vmem:[#allocation2 + $0x130] sm:$0xff]
    %v4318 = vld [vmem:[#allocation2 + $0x138] sm:$0xff]
    %v4319 = vld [vmem:[#allocation2 + $0x170] sm:$0xff]
    %v4320 = vld [vmem:[#allocation2 + $0x178] sm:$0xff]
    %v4321 = vld [vmem:[#allocation2 + $0x1b0] sm:$0xff]
    %v4322 = vld [vmem:[#allocation2 + $0x1b8] sm:$0xff]
    %v4323 = vld [vmem:[#allocation2 + $0x1f0] sm:$0xff]
    %v4324 = vld [vmem:[#allocation2 + $0x1f8] sm:$0xff]
    %v4325 = vld [vmem:[#allocation2 + $0x230] sm:$0xff]
    %v4326 = vld [vmem:[#allocation2 + $0x238] sm:$0xff]
    %v4327 = vld [vmem:[#allocation2 + $0x270] sm:$0xff]
    %v4328 = vld [vmem:[#allocation2 + $0x278] sm:$0xff]
    %v4329 = vld [vmem:[#allocation2 + $0x2b0] sm:$0xff]
    %v4330 = vld [vmem:[#allocation2 + $0x2b8] sm:$0xff]
    %v4331 = vld [vmem:[#allocation2 + $0x2f0] sm:$0xff]
    %v4332 = vld [vmem:[#allocation2 + $0x2f8] sm:$0xff]
    %v4333 = vld [vmem:[#allocation2 + $0x330] sm:$0xff]
    %v4334 = vld [vmem:[#allocation2 + $0x338] sm:$0xff]
    %v4335 = vld [vmem:[#allocation2 + $0x370] sm:$0xff]
    %v4336 = vld [vmem:[#allocation2 + $0x378] sm:$0xff]
    %v4337 = vld [vmem:[#allocation2 + $0x3b0] sm:$0xff]
    %v4338 = vld [vmem:[#allocation2 + $0x3b8] sm:$0xff]
    %v4339 = vld [vmem:[#allocation2 + $0x3f0] sm:$0xff]
    %v4340 = vld [vmem:[#allocation2 + $0x3f8] sm:$0xff]
    %v4341 = vld [vmem:[#allocation2 + $0x430] sm:$0xff]
    %v4342 = vld [vmem:[#allocation2 + $0x438] sm:$0xff]
    %v4343 = vld [vmem:[#allocation2 + $0x470] sm:$0xff]
    %v4344 = vld [vmem:[#allocation2 + $0x478] sm:$0xff]
    %v4345 = vld [vmem:[#allocation2 + $0x4b0] sm:$0xff]
    %v4346 = vld [vmem:[#allocation2 + $0x4b8] sm:$0xff]
    %v4347 = vld [vmem:[#allocation2 + $0x4f0] sm:$0xff]
    %v4348 = vld [vmem:[#allocation2 + $0x4f8] sm:$0xff]
    %v4349 = vld [vmem:[#allocation2 + $0x530] sm:$0xff]
    %v4350 = vld [vmem:[#allocation2 + $0x538] sm:$0xff]
    %v4351 = vld [vmem:[#allocation2 + $0x570] sm:$0xff]
    %v4352 = vld [vmem:[#allocation2 + $0x578] sm:$0xff]
    %v4353 = vld [vmem:[#allocation2 + $0x5b0] sm:$0xff]
    %v4354 = vld [vmem:[#allocation2 + $0x5b8] sm:$0xff]
    %v4355 = vld [vmem:[#allocation2 + $0x5f0] sm:$0xff]
    %v4356 = vld [vmem:[#allocation2 + $0x5f8] sm:$0xff]
    %v4357 = vld [vmem:[#allocation2 + $0x630] sm:$0xff]
    %v4358 = vld [vmem:[#allocation2 + $0x638] sm:$0xff]
    %v4359 = vld [vmem:[#allocation2 + $0x670] sm:$0xff]
    %v4360 = vld [vmem:[#allocation2 + $0x678] sm:$0xff]
    %v4361 = vld [vmem:[#allocation2 + $0x6b0] sm:$0xff]
    %v4362 = vld [vmem:[#allocation2 + $0x6b8] sm:$0xff]
    %v4363 = vld [vmem:[#allocation2 + $0x6f0] sm:$0xff]
    %v4364 = vld [vmem:[#allocation2 + $0x6f8] sm:$0xff]
    %v4365 = vld [vmem:[#allocation2 + $0x730] sm:$0xff]
    %v4366 = vld [vmem:[#allocation2 + $0x738] sm:$0xff]
    %v4367 = vld [vmem:[#allocation2 + $0x770] sm:$0xff]
    %v4368 = vld [vmem:[#allocation2 + $0x778] sm:$0xff]
    %v4369 = vld [vmem:[#allocation2 + $0x7b0] sm:$0xff]
    %v4370 = vld [vmem:[#allocation2 + $0x7b8] sm:$0xff]
    %v4371 = vld [vmem:[#allocation2 + $0x7f0] sm:$0xff]
    %v4372 = vld [vmem:[#allocation2 + $0x7f8] sm:$0xff]
    %4373 = vmatprep.subr.mxu0 %v4310
    %4374 = vmatpush1.msra.mxu0 %v4309
    %4375 = vmatprep.subr.mxu0 %v4312
    %4376 = vmatpush1.msra.mxu0 %v4311
    %4377 = vmatprep.subr.mxu0 %v4314
    %4378 = vmatpush1.msra.mxu0 %v4313
    %4379 = vmatprep.subr.mxu0 %v4316
    %4380 = vmatpush1.msra.mxu0 %v4315
    %4381 = vmatprep.subr.mxu0 %v4318
    %4382 = vmatpush1.msra.mxu0 %v4317
    %4383 = vmatprep.subr.mxu0 %v4320
    %4384 = vmatpush1.msra.mxu0 %v4319
    %4385 = vmatprep.subr.mxu0 %v4322
    %4386 = vmatpush1.msra.mxu0 %v4321
    %4387 = vmatprep.subr.mxu0 %v4324
    %4388 = vmatpush1.msra.mxu0 %v4323
    %4389 = vmatprep.subr.mxu0 %v4326
    %4390 = vmatpush1.msra.mxu0 %v4325
    %4391 = vmatprep.subr.mxu0 %v4328
    %4392 = vmatpush1.msra.mxu0 %v4327
    %4393 = vmatprep.subr.mxu0 %v4330
    %4394 = vmatpush1.msra.mxu0 %v4329
    %4395 = vmatprep.subr.mxu0 %v4332
    %4396 = vmatpush1.msra.mxu0 %v4331
    %4397 = vmatprep.subr.mxu0 %v4334
    %4398 = vmatpush1.msra.mxu0 %v4333
    %4399 = vmatprep.subr.mxu0 %v4336
    %4400 = vmatpush1.msra.mxu0 %v4335
    %4401 = vmatprep.subr.mxu0 %v4338
    %4402 = vmatpush1.msra.mxu0 %v4337
    %4403 = vmatprep.subr.mxu0 %v4340
    %4404 = vmatpush1.msra.mxu0 %v4339
    %4405 = vmatprep.subr.mxu0 %v4342
    %4406 = vmatpush1.msra.mxu0 %v4341
    %4407 = vmatprep.subr.mxu0 %v4344
    %4408 = vmatpush1.msra.mxu0 %v4343
    %4409 = vmatprep.subr.mxu0 %v4346
    %4410 = vmatpush1.msra.mxu0 %v4345
    %4411 = vmatprep.subr.mxu0 %v4348
    %4412 = vmatpush1.msra.mxu0 %v4347
    %4413 = vmatprep.subr.mxu0 %v4350
    %4414 = vmatpush1.msra.mxu0 %v4349
    %4415 = vmatprep.subr.mxu0 %v4352
    %4416 = vmatpush1.msra.mxu0 %v4351
    %4417 = vmatprep.subr.mxu0 %v4354
    %4418 = vmatpush1.msra.mxu0 %v4353
    %4419 = vmatprep.subr.mxu0 %v4356
    %4420 = vmatpush1.msra.mxu0 %v4355
    %4421 = vmatprep.subr.mxu0 %v4358
    %4422 = vmatpush1.msra.mxu0 %v4357
    %4423 = vmatprep.subr.mxu0 %v4360
    %4424 = vmatpush1.msra.mxu0 %v4359
    %4425 = vmatprep.subr.mxu0 %v4362
    %4426 = vmatpush1.msra.mxu0 %v4361
    %4427 = vmatprep.subr.mxu0 %v4364
    %4428 = vmatpush1.msra.mxu0 %v4363
    %4429 = vmatprep.subr.mxu0 %v4366
    %4430 = vmatpush1.msra.mxu0 %v4365
    %4431 = vmatprep.subr.mxu0 %v4368
    %4432 = vmatpush1.msra.mxu0 %v4367
    %4433 = vmatprep.subr.mxu0 %v4370
    %4434 = vmatpush1.msra.mxu0 %v4369
    %4435 = vmatprep.subr.mxu0 %v4372
    %4436 = vmatpush1.msra.mxu0 %v4371
    %4437 = vmatprep.mubr.f32.mxu0 %v3902
    %4438 = vmatmul.mubr.f32.gmra.mrb[0].mxu0 %v3898
    %v4439 = vpop.f32.mrb[0].mxu0
    %v4440 = vadd.f32 0.0, %v4439
    %v4441 = vpop.f32.mrb[0].mxu0
    %v4442 = vadd.f32 0.0, %v4441
    %4443 = vdwg.mxu0
    %v4446 = vcombine.low %v4440, %v4442
    %v4448 = vunpack.c.l.s4 1966171168
    %v4449 = vunpack.c.0.s8 %v4448
    %v4450 = vlaneseq
    %v4451 = vshrl.u32 %v4450, 7
    %v4452 = vsub.s32 %v4449, %v4451
    %v4453 = vrot.slane %v4446, %v4452
    %v4455 = vunpack.c.l.s4 1966171168
    %v4456 = vunpack.c.0.s8 %v4455
    %v4457 = vlaneseq
    %v4458 = vshrl.u32 %v4457, 7
    %v4459 = vsub.s32 %v4456, %v4458
    %v4460 = vrot.slane %v4453, %v4459
    %v4462 = vadd.f32 %v4308, %v4460
    %v4463 = vxor.u32 %v3994, 2147483648
    %v4464 = vmul.f32 %v4463, 1.442695
    %v4465 = vpow.pop %v4464
    %v4466 = vadd.f32 %v4465, 1.0
    %v4467 = vrcp.pop %v4466
    %v4468 = vmul.f32 1.0, %v4467
    %v4469 = vxor.u32 %v4150, 2147483648
    %v4470 = vmul.f32 %v4469, 1.442695
    %v4471 = vpow.pop %v4470
    %v4472 = vadd.f32 %v4471, 1.0
    %v4473 = vrcp.pop %v4472
    %v4474 = vmul.f32 1.0, %v4473
    %v4475 = vtanh.pop %v4306
    %v4476 = vmul.f32 %v4474, %v3816
    %v4477 = vmul.f32 %v4468, %v4475
    %v4478 = vadd.f32 %v4476, %v4477
    %v4479 = vtanh.pop %v4478
    %v4480 = vxor.u32 %v4462, 2147483648
    %v4481 = vmul.f32 %v4480, 1.442695
    %v4482 = vpow.pop %v4481
    %v4483 = vadd.f32 %v4482, 1.0
    %v4484 = vrcp.pop %v4483
    %v4485 = vmul.f32 1.0, %v4484
    %v4486 = vmul.f32 %v4485, %v4479
    %s4487 = scalar_lea.vmem [#allocation4], 5
    %4488 = vst.msk [vmem:[%s4487] ss:$8 sm:$0x3] %vm1177, %v4486
    %4489 = vst.msk [vmem:[%s4487] ss:$8 sm:$0x0] %vm1177, %v4486
    %s4490 = scalar_lea.vmem [#allocation3], 6
    %v4491 = vld [vmem:[%s4490] ss:$8 sm:$0x3]
    %v4492 = vld [vmem:[#allocation2] sm:$0xff]
    %v4493 = vld [vmem:[#allocation2 + $0x8] sm:$0xff]
    %v4494 = vld [vmem:[#allocation2 + $0x40] sm:$0xff]
    %v4495 = vld [vmem:[#allocation2 + $0x48] sm:$0xff]
    %v4496 = vld [vmem:[#allocation2 + $0x80] sm:$0xff]
    %v4497 = vld [vmem:[#allocation2 + $0x88] sm:$0xff]
    %v4498 = vld [vmem:[#allocation2 + $0xc0] sm:$0xff]
    %v4499 = vld [vmem:[#allocation2 + $0xc8] sm:$0xff]
    %v4500 = vld [vmem:[#allocation2 + $0x100] sm:$0xff]
    %v4501 = vld [vmem:[#allocation2 + $0x108] sm:$0xff]
    %v4502 = vld [vmem:[#allocation2 + $0x140] sm:$0xff]
    %v4503 = vld [vmem:[#allocation2 + $0x148] sm:$0xff]
    %v4504 = vld [vmem:[#allocation2 + $0x180] sm:$0xff]
    %v4505 = vld [vmem:[#allocation2 + $0x188] sm:$0xff]
    %v4506 = vld [vmem:[#allocation2 + $0x1c0] sm:$0xff]
    %v4507 = vld [vmem:[#allocation2 + $0x1c8] sm:$0xff]
    %v4508 = vld [vmem:[#allocation2 + $0x200] sm:$0xff]
    %v4509 = vld [vmem:[#allocation2 + $0x208] sm:$0xff]
    %v4510 = vld [vmem:[#allocation2 + $0x240] sm:$0xff]
    %v4511 = vld [vmem:[#allocation2 + $0x248] sm:$0xff]
    %v4512 = vld [vmem:[#allocation2 + $0x280] sm:$0xff]
    %v4513 = vld [vmem:[#allocation2 + $0x288] sm:$0xff]
    %v4514 = vld [vmem:[#allocation2 + $0x2c0] sm:$0xff]
    %v4515 = vld [vmem:[#allocation2 + $0x2c8] sm:$0xff]
    %v4516 = vld [vmem:[#allocation2 + $0x300] sm:$0xff]
    %v4517 = vld [vmem:[#allocation2 + $0x308] sm:$0xff]
    %v4518 = vld [vmem:[#allocation2 + $0x340] sm:$0xff]
    %v4519 = vld [vmem:[#allocation2 + $0x348] sm:$0xff]
    %v4520 = vld [vmem:[#allocation2 + $0x380] sm:$0xff]
    %v4521 = vld [vmem:[#allocation2 + $0x388] sm:$0xff]
    %v4522 = vld [vmem:[#allocation2 + $0x3c0] sm:$0xff]
    %v4523 = vld [vmem:[#allocation2 + $0x3c8] sm:$0xff]
    %v4524 = vld [vmem:[#allocation2 + $0x400] sm:$0xff]
    %v4525 = vld [vmem:[#allocation2 + $0x408] sm:$0xff]
    %v4526 = vld [vmem:[#allocation2 + $0x440] sm:$0xff]
    %v4527 = vld [vmem:[#allocation2 + $0x448] sm:$0xff]
    %v4528 = vld [vmem:[#allocation2 + $0x480] sm:$0xff]
    %v4529 = vld [vmem:[#allocation2 + $0x488] sm:$0xff]
    %v4530 = vld [vmem:[#allocation2 + $0x4c0] sm:$0xff]
    %v4531 = vld [vmem:[#allocation2 + $0x4c8] sm:$0xff]
    %v4532 = vld [vmem:[#allocation2 + $0x500] sm:$0xff]
    %v4533 = vld [vmem:[#allocation2 + $0x508] sm:$0xff]
    %v4534 = vld [vmem:[#allocation2 + $0x540] sm:$0xff]
    %v4535 = vld [vmem:[#allocation2 + $0x548] sm:$0xff]
    %v4536 = vld [vmem:[#allocation2 + $0x580] sm:$0xff]
    %v4537 = vld [vmem:[#allocation2 + $0x588] sm:$0xff]
    %v4538 = vld [vmem:[#allocation2 + $0x5c0] sm:$0xff]
    %v4539 = vld [vmem:[#allocation2 + $0x5c8] sm:$0xff]
    %v4540 = vld [vmem:[#allocation2 + $0x600] sm:$0xff]
    %v4541 = vld [vmem:[#allocation2 + $0x608] sm:$0xff]
    %v4542 = vld [vmem:[#allocation2 + $0x640] sm:$0xff]
    %v4543 = vld [vmem:[#allocation2 + $0x648] sm:$0xff]
    %v4544 = vld [vmem:[#allocation2 + $0x680] sm:$0xff]
    %v4545 = vld [vmem:[#allocation2 + $0x688] sm:$0xff]
    %v4546 = vld [vmem:[#allocation2 + $0x6c0] sm:$0xff]
    %v4547 = vld [vmem:[#allocation2 + $0x6c8] sm:$0xff]
    %v4548 = vld [vmem:[#allocation2 + $0x700] sm:$0xff]
    %v4549 = vld [vmem:[#allocation2 + $0x708] sm:$0xff]
    %v4550 = vld [vmem:[#allocation2 + $0x740] sm:$0xff]
    %v4551 = vld [vmem:[#allocation2 + $0x748] sm:$0xff]
    %v4552 = vld [vmem:[#allocation2 + $0x780] sm:$0xff]
    %v4553 = vld [vmem:[#allocation2 + $0x788] sm:$0xff]
    %v4554 = vld [vmem:[#allocation2 + $0x7c0] sm:$0xff]
    %v4555 = vld [vmem:[#allocation2 + $0x7c8] sm:$0xff]
    %v4557 = vlaneseq
    %v4558 = vshrl.u32 %v4557, 7
    %v4559 = vsub.s32 0, %v4558
    %v4560 = vrot.slane %v4486, %v4559
    %v4561 = vlaneseq
    %v4562 = vshrl.u32 %v4561, 7
    %v4563 = vsub.s32 1, %v4562
    %v4564 = vrot.slane %v4486, %v4563
    %4567 = vmatprep.subr.mxu0 %v4493
    %4568 = vmatpush1.msra.mxu0 %v4492
    %4569 = vmatprep.subr.mxu0 %v4495
    %4570 = vmatpush1.msra.mxu0 %v4494
    %4571 = vmatprep.subr.mxu0 %v4497
    %4572 = vmatpush1.msra.mxu0 %v4496
    %4573 = vmatprep.subr.mxu0 %v4499
    %4574 = vmatpush1.msra.mxu0 %v4498
    %4575 = vmatprep.subr.mxu0 %v4501
    %4576 = vmatpush1.msra.mxu0 %v4500
    %4577 = vmatprep.subr.mxu0 %v4503
    %4578 = vmatpush1.msra.mxu0 %v4502
    %4579 = vmatprep.subr.mxu0 %v4505
    %4580 = vmatpush1.msra.mxu0 %v4504
    %4581 = vmatprep.subr.mxu0 %v4507
    %4582 = vmatpush1.msra.mxu0 %v4506
    %4583 = vmatprep.subr.mxu0 %v4509
    %4584 = vmatpush1.msra.mxu0 %v4508
    %4585 = vmatprep.subr.mxu0 %v4511
    %4586 = vmatpush1.msra.mxu0 %v4510
    %4587 = vmatprep.subr.mxu0 %v4513
    %4588 = vmatpush1.msra.mxu0 %v4512
    %4589 = vmatprep.subr.mxu0 %v4515
    %4590 = vmatpush1.msra.mxu0 %v4514
    %4591 = vmatprep.subr.mxu0 %v4517
    %4592 = vmatpush1.msra.mxu0 %v4516
    %4593 = vmatprep.subr.mxu0 %v4519
    %4594 = vmatpush1.msra.mxu0 %v4518
    %4595 = vmatprep.subr.mxu0 %v4521
    %4596 = vmatpush1.msra.mxu0 %v4520
    %4597 = vmatprep.subr.mxu0 %v4523
    %4598 = vmatpush1.msra.mxu0 %v4522
    %4599 = vmatprep.subr.mxu0 %v4525
    %4600 = vmatpush1.msra.mxu0 %v4524
    %4601 = vmatprep.subr.mxu0 %v4527
    %4602 = vmatpush1.msra.mxu0 %v4526
    %4603 = vmatprep.subr.mxu0 %v4529
    %4604 = vmatpush1.msra.mxu0 %v4528
    %4605 = vmatprep.subr.mxu0 %v4531
    %4606 = vmatpush1.msra.mxu0 %v4530
    %4607 = vmatprep.subr.mxu0 %v4533
    %4608 = vmatpush1.msra.mxu0 %v4532
    %4609 = vmatprep.subr.mxu0 %v4535
    %4610 = vmatpush1.msra.mxu0 %v4534
    %4611 = vmatprep.subr.mxu0 %v4537
    %4612 = vmatpush1.msra.mxu0 %v4536
    %4613 = vmatprep.subr.mxu0 %v4539
    %4614 = vmatpush1.msra.mxu0 %v4538
    %4615 = vmatprep.subr.mxu0 %v4541
    %4616 = vmatpush1.msra.mxu0 %v4540
    %4617 = vmatprep.subr.mxu0 %v4543
    %4618 = vmatpush1.msra.mxu0 %v4542
    %4619 = vmatprep.subr.mxu0 %v4545
    %4620 = vmatpush1.msra.mxu0 %v4544
    %4621 = vmatprep.subr.mxu0 %v4547
    %4622 = vmatpush1.msra.mxu0 %v4546
    %4623 = vmatprep.subr.mxu0 %v4549
    %4624 = vmatpush1.msra.mxu0 %v4548
    %4625 = vmatprep.subr.mxu0 %v4551
    %4626 = vmatpush1.msra.mxu0 %v4550
    %4627 = vmatprep.subr.mxu0 %v4553
    %4628 = vmatpush1.msra.mxu0 %v4552
    %4629 = vmatprep.subr.mxu0 %v4555
    %4630 = vmatpush1.msra.mxu0 %v4554
    %4631 = vmatprep.mubr.f32.mxu0 %v4564
    %4632 = vmatmul.mubr.f32.gmra.mrb[0].mxu0 %v4560
    %v4633 = vpop.f32.mrb[0].mxu0
    %v4634 = vadd.f32 0.0, %v4633
    %v4635 = vpop.f32.mrb[0].mxu0
    %v4636 = vadd.f32 0.0, %v4635
    %4637 = vdwg.mxu0
    %v4640 = vcombine.low %v4634, %v4636
    %v4642 = vunpack.c.l.s4 1966171168
    %v4643 = vunpack.c.0.s8 %v4642
    %v4644 = vlaneseq
    %v4645 = vshrl.u32 %v4644, 7
    %v4646 = vsub.s32 %v4643, %v4645
    %v4647 = vrot.slane %v4640, %v4646
    %v4649 = vunpack.c.l.s4 1966171168
    %v4650 = vunpack.c.0.s8 %v4649
    %v4651 = vlaneseq
    %v4652 = vshrl.u32 %v4651, 7
    %v4653 = vsub.s32 %v4650, %v4652
    %v4654 = vrot.slane %v4647, %v4653
    %v4656 = vadd.f32 %v4491, %v4654
    %s4657 = scalar_lea.vmem [#allocation3], 22
    %v4658 = vld [vmem:[%s4657] ss:$8 sm:$0x3]
    %v4659 = vld [vmem:[#allocation2 + $0x10] sm:$0xff]
    %v4660 = vld [vmem:[#allocation2 + $0x18] sm:$0xff]
    %v4661 = vld [vmem:[#allocation2 + $0x50] sm:$0xff]
    %v4662 = vld [vmem:[#allocation2 + $0x58] sm:$0xff]
    %v4663 = vld [vmem:[#allocation2 + $0x90] sm:$0xff]
    %v4664 = vld [vmem:[#allocation2 + $0x98] sm:$0xff]
    %v4665 = vld [vmem:[#allocation2 + $0xd0] sm:$0xff]
    %v4666 = vld [vmem:[#allocation2 + $0xd8] sm:$0xff]
    %v4667 = vld [vmem:[#allocation2 + $0x110] sm:$0xff]
    %v4668 = vld [vmem:[#allocation2 + $0x118] sm:$0xff]
    %v4669 = vld [vmem:[#allocation2 + $0x150] sm:$0xff]
    %v4670 = vld [vmem:[#allocation2 + $0x158] sm:$0xff]
    %v4671 = vld [vmem:[#allocation2 + $0x190] sm:$0xff]
    %v4672 = vld [vmem:[#allocation2 + $0x198] sm:$0xff]
    %v4673 = vld [vmem:[#allocation2 + $0x1d0] sm:$0xff]
    %v4674 = vld [vmem:[#allocation2 + $0x1d8] sm:$0xff]
    %v4675 = vld [vmem:[#allocation2 + $0x210] sm:$0xff]
    %v4676 = vld [vmem:[#allocation2 + $0x218] sm:$0xff]
    %v4677 = vld [vmem:[#allocation2 + $0x250] sm:$0xff]
    %v4678 = vld [vmem:[#allocation2 + $0x258] sm:$0xff]
    %v4679 = vld [vmem:[#allocation2 + $0x290] sm:$0xff]
    %v4680 = vld [vmem:[#allocation2 + $0x298] sm:$0xff]
    %v4681 = vld [vmem:[#allocation2 + $0x2d0] sm:$0xff]
    %v4682 = vld [vmem:[#allocation2 + $0x2d8] sm:$0xff]
    %v4683 = vld [vmem:[#allocation2 + $0x310] sm:$0xff]
    %v4684 = vld [vmem:[#allocation2 + $0x318] sm:$0xff]
    %v4685 = vld [vmem:[#allocation2 + $0x350] sm:$0xff]
    %v4686 = vld [vmem:[#allocation2 + $0x358] sm:$0xff]
    %v4687 = vld [vmem:[#allocation2 + $0x390] sm:$0xff]
    %v4688 = vld [vmem:[#allocation2 + $0x398] sm:$0xff]
    %v4689 = vld [vmem:[#allocation2 + $0x3d0] sm:$0xff]
    %v4690 = vld [vmem:[#allocation2 + $0x3d8] sm:$0xff]
    %v4691 = vld [vmem:[#allocation2 + $0x410] sm:$0xff]
    %v4692 = vld [vmem:[#allocation2 + $0x418] sm:$0xff]
    %v4693 = vld [vmem:[#allocation2 + $0x450] sm:$0xff]
    %v4694 = vld [vmem:[#allocation2 + $0x458] sm:$0xff]
    %v4695 = vld [vmem:[#allocation2 + $0x490] sm:$0xff]
    %v4696 = vld [vmem:[#allocation2 + $0x498] sm:$0xff]
    %v4697 = vld [vmem:[#allocation2 + $0x4d0] sm:$0xff]
    %v4698 = vld [vmem:[#allocation2 + $0x4d8] sm:$0xff]
    %v4699 = vld [vmem:[#allocation2 + $0x510] sm:$0xff]
    %v4700 = vld [vmem:[#allocation2 + $0x518] sm:$0xff]
    %v4701 = vld [vmem:[#allocation2 + $0x550] sm:$0xff]
    %v4702 = vld [vmem:[#allocation2 + $0x558] sm:$0xff]
    %v4703 = vld [vmem:[#allocation2 + $0x590] sm:$0xff]
    %v4704 = vld [vmem:[#allocation2 + $0x598] sm:$0xff]
    %v4705 = vld [vmem:[#allocation2 + $0x5d0] sm:$0xff]
    %v4706 = vld [vmem:[#allocation2 + $0x5d8] sm:$0xff]
    %v4707 = vld [vmem:[#allocation2 + $0x610] sm:$0xff]
    %v4708 = vld [vmem:[#allocation2 + $0x618] sm:$0xff]
    %v4709 = vld [vmem:[#allocation2 + $0x650] sm:$0xff]
    %v4710 = vld [vmem:[#allocation2 + $0x658] sm:$0xff]
    %v4711 = vld [vmem:[#allocation2 + $0x690] sm:$0xff]
    %v4712 = vld [vmem:[#allocation2 + $0x698] sm:$0xff]
    %v4713 = vld [vmem:[#allocation2 + $0x6d0] sm:$0xff]
    %v4714 = vld [vmem:[#allocation2 + $0x6d8] sm:$0xff]
    %v4715 = vld [vmem:[#allocation2 + $0x710] sm:$0xff]
    %v4716 = vld [vmem:[#allocation2 + $0x718] sm:$0xff]
    %v4717 = vld [vmem:[#allocation2 + $0x750] sm:$0xff]
    %v4718 = vld [vmem:[#allocation2 + $0x758] sm:$0xff]
    %v4719 = vld [vmem:[#allocation2 + $0x790] sm:$0xff]
    %v4720 = vld [vmem:[#allocation2 + $0x798] sm:$0xff]
    %v4721 = vld [vmem:[#allocation2 + $0x7d0] sm:$0xff]
    %v4722 = vld [vmem:[#allocation2 + $0x7d8] sm:$0xff]
    %4723 = vmatprep.subr.mxu0 %v4660
    %4724 = vmatpush1.msra.mxu0 %v4659
    %4725 = vmatprep.subr.mxu0 %v4662
    %4726 = vmatpush1.msra.mxu0 %v4661
    %4727 = vmatprep.subr.mxu0 %v4664
    %4728 = vmatpush1.msra.mxu0 %v4663
    %4729 = vmatprep.subr.mxu0 %v4666
    %4730 = vmatpush1.msra.mxu0 %v4665
    %4731 = vmatprep.subr.mxu0 %v4668
    %4732 = vmatpush1.msra.mxu0 %v4667
    %4733 = vmatprep.subr.mxu0 %v4670
    %4734 = vmatpush1.msra.mxu0 %v4669
    %4735 = vmatprep.subr.mxu0 %v4672
    %4736 = vmatpush1.msra.mxu0 %v4671
    %4737 = vmatprep.subr.mxu0 %v4674
    %4738 = vmatpush1.msra.mxu0 %v4673
    %4739 = vmatprep.subr.mxu0 %v4676
    %4740 = vmatpush1.msra.mxu0 %v4675
    %4741 = vmatprep.subr.mxu0 %v4678
    %4742 = vmatpush1.msra.mxu0 %v4677
    %4743 = vmatprep.subr.mxu0 %v4680
    %4744 = vmatpush1.msra.mxu0 %v4679
    %4745 = vmatprep.subr.mxu0 %v4682
    %4746 = vmatpush1.msra.mxu0 %v4681
    %4747 = vmatprep.subr.mxu0 %v4684
    %4748 = vmatpush1.msra.mxu0 %v4683
    %4749 = vmatprep.subr.mxu0 %v4686
    %4750 = vmatpush1.msra.mxu0 %v4685
    %4751 = vmatprep.subr.mxu0 %v4688
    %4752 = vmatpush1.msra.mxu0 %v4687
    %4753 = vmatprep.subr.mxu0 %v4690
    %4754 = vmatpush1.msra.mxu0 %v4689
    %4755 = vmatprep.subr.mxu0 %v4692
    %4756 = vmatpush1.msra.mxu0 %v4691
    %4757 = vmatprep.subr.mxu0 %v4694
    %4758 = vmatpush1.msra.mxu0 %v4693
    %4759 = vmatprep.subr.mxu0 %v4696
    %4760 = vmatpush1.msra.mxu0 %v4695
    %4761 = vmatprep.subr.mxu0 %v4698
    %4762 = vmatpush1.msra.mxu0 %v4697
    %4763 = vmatprep.subr.mxu0 %v4700
    %4764 = vmatpush1.msra.mxu0 %v4699
    %4765 = vmatprep.subr.mxu0 %v4702
    %4766 = vmatpush1.msra.mxu0 %v4701
    %4767 = vmatprep.subr.mxu0 %v4704
    %4768 = vmatpush1.msra.mxu0 %v4703
    %4769 = vmatprep.subr.mxu0 %v4706
    %4770 = vmatpush1.msra.mxu0 %v4705
    %4771 = vmatprep.subr.mxu0 %v4708
    %4772 = vmatpush1.msra.mxu0 %v4707
    %4773 = vmatprep.subr.mxu0 %v4710
    %4774 = vmatpush1.msra.mxu0 %v4709
    %4775 = vmatprep.subr.mxu0 %v4712
    %4776 = vmatpush1.msra.mxu0 %v4711
    %4777 = vmatprep.subr.mxu0 %v4714
    %4778 = vmatpush1.msra.mxu0 %v4713
    %4779 = vmatprep.subr.mxu0 %v4716
    %4780 = vmatpush1.msra.mxu0 %v4715
    %4781 = vmatprep.subr.mxu0 %v4718
    %4782 = vmatpush1.msra.mxu0 %v4717
    %4783 = vmatprep.subr.mxu0 %v4720
    %4784 = vmatpush1.msra.mxu0 %v4719
    %4785 = vmatprep.subr.mxu0 %v4722
    %4786 = vmatpush1.msra.mxu0 %v4721
    %4787 = vmatprep.mubr.f32.mxu0 %v4564
    %4788 = vmatmul.mubr.f32.gmra.mrb[0].mxu0 %v4560
    %v4789 = vpop.f32.mrb[0].mxu0
    %v4790 = vadd.f32 0.0, %v4789
    %v4791 = vpop.f32.mrb[0].mxu0
    %v4792 = vadd.f32 0.0, %v4791
    %4793 = vdwg.mxu0
    %v4796 = vcombine.low %v4790, %v4792
    %v4798 = vunpack.c.l.s4 1966171168
    %v4799 = vunpack.c.0.s8 %v4798
    %v4800 = vlaneseq
    %v4801 = vshrl.u32 %v4800, 7
    %v4802 = vsub.s32 %v4799, %v4801
    %v4803 = vrot.slane %v4796, %v4802
    %v4805 = vunpack.c.l.s4 1966171168
    %v4806 = vunpack.c.0.s8 %v4805
    %v4807 = vlaneseq
    %v4808 = vshrl.u32 %v4807, 7
    %v4809 = vsub.s32 %v4806, %v4808
    %v4810 = vrot.slane %v4803, %v4809
    %v4812 = vadd.f32 %v4658, %v4810
    %s4813 = scalar_lea.vmem [#allocation3], 38
    %v4814 = vld [vmem:[%s4813] ss:$8 sm:$0x3]
    %v4815 = vld [vmem:[#allocation2 + $0x20] sm:$0xff]
    %v4816 = vld [vmem:[#allocation2 + $0x28] sm:$0xff]
    %v4817 = vld [vmem:[#allocation2 + $0x60] sm:$0xff]
    %v4818 = vld [vmem:[#allocation2 + $0x68] sm:$0xff]
    %v4819 = vld [vmem:[#allocation2 + $0xa0] sm:$0xff]
    %v4820 = vld [vmem:[#allocation2 + $0xa8] sm:$0xff]
    %v4821 = vld [vmem:[#allocation2 + $0xe0] sm:$0xff]
    %v4822 = vld [vmem:[#allocation2 + $0xe8] sm:$0xff]
    %v4823 = vld [vmem:[#allocation2 + $0x120] sm:$0xff]
    %v4824 = vld [vmem:[#allocation2 + $0x128] sm:$0xff]
    %v4825 = vld [vmem:[#allocation2 + $0x160] sm:$0xff]
    %v4826 = vld [vmem:[#allocation2 + $0x168] sm:$0xff]
    %v4827 = vld [vmem:[#allocation2 + $0x1a0] sm:$0xff]
    %v4828 = vld [vmem:[#allocation2 + $0x1a8] sm:$0xff]
    %v4829 = vld [vmem:[#allocation2 + $0x1e0] sm:$0xff]
    %v4830 = vld [vmem:[#allocation2 + $0x1e8] sm:$0xff]
    %v4831 = vld [vmem:[#allocation2 + $0x220] sm:$0xff]
    %v4832 = vld [vmem:[#allocation2 + $0x228] sm:$0xff]
    %v4833 = vld [vmem:[#allocation2 + $0x260] sm:$0xff]
    %v4834 = vld [vmem:[#allocation2 + $0x268] sm:$0xff]
    %v4835 = vld [vmem:[#allocation2 + $0x2a0] sm:$0xff]
    %v4836 = vld [vmem:[#allocation2 + $0x2a8] sm:$0xff]
    %v4837 = vld [vmem:[#allocation2 + $0x2e0] sm:$0xff]
    %v4838 = vld [vmem:[#allocation2 + $0x2e8] sm:$0xff]
    %v4839 = vld [vmem:[#allocation2 + $0x320] sm:$0xff]
    %v4840 = vld [vmem:[#allocation2 + $0x328] sm:$0xff]
    %v4841 = vld [vmem:[#allocation2 + $0x360] sm:$0xff]
    %v4842 = vld [vmem:[#allocation2 + $0x368] sm:$0xff]
    %v4843 = vld [vmem:[#allocation2 + $0x3a0] sm:$0xff]
    %v4844 = vld [vmem:[#allocation2 + $0x3a8] sm:$0xff]
    %v4845 = vld [vmem:[#allocation2 + $0x3e0] sm:$0xff]
    %v4846 = vld [vmem:[#allocation2 + $0x3e8] sm:$0xff]
    %v4847 = vld [vmem:[#allocation2 + $0x420] sm:$0xff]
    %v4848 = vld [vmem:[#allocation2 + $0x428] sm:$0xff]
    %v4849 = vld [vmem:[#allocation2 + $0x460] sm:$0xff]
    %v4850 = vld [vmem:[#allocation2 + $0x468] sm:$0xff]
    %v4851 = vld [vmem:[#allocation2 + $0x4a0] sm:$0xff]
    %v4852 = vld [vmem:[#allocation2 + $0x4a8] sm:$0xff]
    %v4853 = vld [vmem:[#allocation2 + $0x4e0] sm:$0xff]
    %v4854 = vld [vmem:[#allocation2 + $0x4e8] sm:$0xff]
    %v4855 = vld [vmem:[#allocation2 + $0x520] sm:$0xff]
    %v4856 = vld [vmem:[#allocation2 + $0x528] sm:$0xff]
    %v4857 = vld [vmem:[#allocation2 + $0x560] sm:$0xff]
    %v4858 = vld [vmem:[#allocation2 + $0x568] sm:$0xff]
    %v4859 = vld [vmem:[#allocation2 + $0x5a0] sm:$0xff]
    %v4860 = vld [vmem:[#allocation2 + $0x5a8] sm:$0xff]
    %v4861 = vld [vmem:[#allocation2 + $0x5e0] sm:$0xff]
    %v4862 = vld [vmem:[#allocation2 + $0x5e8] sm:$0xff]
    %v4863 = vld [vmem:[#allocation2 + $0x620] sm:$0xff]
    %v4864 = vld [vmem:[#allocation2 + $0x628] sm:$0xff]
    %v4865 = vld [vmem:[#allocation2 + $0x660] sm:$0xff]
    %v4866 = vld [vmem:[#allocation2 + $0x668] sm:$0xff]
    %v4867 = vld [vmem:[#allocation2 + $0x6a0] sm:$0xff]
    %v4868 = vld [vmem:[#allocation2 + $0x6a8] sm:$0xff]
    %v4869 = vld [vmem:[#allocation2 + $0x6e0] sm:$0xff]
    %v4870 = vld [vmem:[#allocation2 + $0x6e8] sm:$0xff]
    %v4871 = vld [vmem:[#allocation2 + $0x720] sm:$0xff]
    %v4872 = vld [vmem:[#allocation2 + $0x728] sm:$0xff]
    %v4873 = vld [vmem:[#allocation2 + $0x760] sm:$0xff]
    %v4874 = vld [vmem:[#allocation2 + $0x768] sm:$0xff]
    %v4875 = vld [vmem:[#allocation2 + $0x7a0] sm:$0xff]
    %v4876 = vld [vmem:[#allocation2 + $0x7a8] sm:$0xff]
    %v4877 = vld [vmem:[#allocation2 + $0x7e0] sm:$0xff]
    %v4878 = vld [vmem:[#allocation2 + $0x7e8] sm:$0xff]
    %4879 = vmatprep.subr.mxu0 %v4816
    %4880 = vmatpush1.msra.mxu0 %v4815
    %4881 = vmatprep.subr.mxu0 %v4818
    %4882 = vmatpush1.msra.mxu0 %v4817
    %4883 = vmatprep.subr.mxu0 %v4820
    %4884 = vmatpush1.msra.mxu0 %v4819
    %4885 = vmatprep.subr.mxu0 %v4822
    %4886 = vmatpush1.msra.mxu0 %v4821
    %4887 = vmatprep.subr.mxu0 %v4824
    %4888 = vmatpush1.msra.mxu0 %v4823
    %4889 = vmatprep.subr.mxu0 %v4826
    %4890 = vmatpush1.msra.mxu0 %v4825
    %4891 = vmatprep.subr.mxu0 %v4828
    %4892 = vmatpush1.msra.mxu0 %v4827
    %4893 = vmatprep.subr.mxu0 %v4830
    %4894 = vmatpush1.msra.mxu0 %v4829
    %4895 = vmatprep.subr.mxu0 %v4832
    %4896 = vmatpush1.msra.mxu0 %v4831
    %4897 = vmatprep.subr.mxu0 %v4834
    %4898 = vmatpush1.msra.mxu0 %v4833
    %4899 = vmatprep.subr.mxu0 %v4836
    %4900 = vmatpush1.msra.mxu0 %v4835
    %4901 = vmatprep.subr.mxu0 %v4838
    %4902 = vmatpush1.msra.mxu0 %v4837
    %4903 = vmatprep.subr.mxu0 %v4840
    %4904 = vmatpush1.msra.mxu0 %v4839
    %4905 = vmatprep.subr.mxu0 %v4842
    %4906 = vmatpush1.msra.mxu0 %v4841
    %4907 = vmatprep.subr.mxu0 %v4844
    %4908 = vmatpush1.msra.mxu0 %v4843
    %4909 = vmatprep.subr.mxu0 %v4846
    %4910 = vmatpush1.msra.mxu0 %v4845
    %4911 = vmatprep.subr.mxu0 %v4848
    %4912 = vmatpush1.msra.mxu0 %v4847
    %4913 = vmatprep.subr.mxu0 %v4850
    %4914 = vmatpush1.msra.mxu0 %v4849
    %4915 = vmatprep.subr.mxu0 %v4852
    %4916 = vmatpush1.msra.mxu0 %v4851
    %4917 = vmatprep.subr.mxu0 %v4854
    %4918 = vmatpush1.msra.mxu0 %v4853
    %4919 = vmatprep.subr.mxu0 %v4856
    %4920 = vmatpush1.msra.mxu0 %v4855
    %4921 = vmatprep.subr.mxu0 %v4858
    %4922 = vmatpush1.msra.mxu0 %v4857
    %4923 = vmatprep.subr.mxu0 %v4860
    %4924 = vmatpush1.msra.mxu0 %v4859
    %4925 = vmatprep.subr.mxu0 %v4862
    %4926 = vmatpush1.msra.mxu0 %v4861
    %4927 = vmatprep.subr.mxu0 %v4864
    %4928 = vmatpush1.msra.mxu0 %v4863
    %4929 = vmatprep.subr.mxu0 %v4866
    %4930 = vmatpush1.msra.mxu0 %v4865
    %4931 = vmatprep.subr.mxu0 %v4868
    %4932 = vmatpush1.msra.mxu0 %v4867
    %4933 = vmatprep.subr.mxu0 %v4870
    %4934 = vmatpush1.msra.mxu0 %v4869
    %4935 = vmatprep.subr.mxu0 %v4872
    %4936 = vmatpush1.msra.mxu0 %v4871
    %4937 = vmatprep.subr.mxu0 %v4874
    %4938 = vmatpush1.msra.mxu0 %v4873
    %4939 = vmatprep.subr.mxu0 %v4876
    %4940 = vmatpush1.msra.mxu0 %v4875
    %4941 = vmatprep.subr.mxu0 %v4878
    %4942 = vmatpush1.msra.mxu0 %v4877
    %4943 = vmatprep.mubr.f32.mxu0 %v4564
    %4944 = vmatmul.mubr.f32.gmra.mrb[0].mxu0 %v4560
    %v4945 = vpop.f32.mrb[0].mxu0
    %v4946 = vadd.f32 0.0, %v4945
    %v4947 = vpop.f32.mrb[0].mxu0
    %v4948 = vadd.f32 0.0, %v4947
    %4949 = vdwg.mxu0
    %v4952 = vcombine.low %v4946, %v4948
    %v4954 = vunpack.c.l.s4 1966171168
    %v4955 = vunpack.c.0.s8 %v4954
    %v4956 = vlaneseq
    %v4957 = vshrl.u32 %v4956, 7
    %v4958 = vsub.s32 %v4955, %v4957
    %v4959 = vrot.slane %v4952, %v4958
    %v4961 = vunpack.c.l.s4 1966171168
    %v4962 = vunpack.c.0.s8 %v4961
    %v4963 = vlaneseq
    %v4964 = vshrl.u32 %v4963, 7
    %v4965 = vsub.s32 %v4962, %v4964
    %v4966 = vrot.slane %v4959, %v4965
    %v4968 = vadd.f32 %v4814, %v4966
    %s4969 = scalar_lea.vmem [#allocation3], 54
    %v4970 = vld [vmem:[%s4969] ss:$8 sm:$0x3]
    %v4971 = vld [vmem:[#allocation2 + $0x30] sm:$0xff]
    %v4972 = vld [vmem:[#allocation2 + $0x38] sm:$0xff]
    %v4973 = vld [vmem:[#allocation2 + $0x70] sm:$0xff]
    %v4974 = vld [vmem:[#allocation2 + $0x78] sm:$0xff]
    %v4975 = vld [vmem:[#allocation2 + $0xb0] sm:$0xff]
    %v4976 = vld [vmem:[#allocation2 + $0xb8] sm:$0xff]
    %v4977 = vld [vmem:[#allocation2 + $0xf0] sm:$0xff]
    %v4978 = vld [vmem:[#allocation2 + $0xf8] sm:$0xff]
    %v4979 = vld [vmem:[#allocation2 + $0x130] sm:$0xff]
    %v4980 = vld [vmem:[#allocation2 + $0x138] sm:$0xff]
    %v4981 = vld [vmem:[#allocation2 + $0x170] sm:$0xff]
    %v4982 = vld [vmem:[#allocation2 + $0x178] sm:$0xff]
    %v4983 = vld [vmem:[#allocation2 + $0x1b0] sm:$0xff]
    %v4984 = vld [vmem:[#allocation2 + $0x1b8] sm:$0xff]
    %v4985 = vld [vmem:[#allocation2 + $0x1f0] sm:$0xff]
    %v4986 = vld [vmem:[#allocation2 + $0x1f8] sm:$0xff]
    %v4987 = vld [vmem:[#allocation2 + $0x230] sm:$0xff]
    %v4988 = vld [vmem:[#allocation2 + $0x238] sm:$0xff]
    %v4989 = vld [vmem:[#allocation2 + $0x270] sm:$0xff]
    %v4990 = vld [vmem:[#allocation2 + $0x278] sm:$0xff]
    %v4991 = vld [vmem:[#allocation2 + $0x2b0] sm:$0xff]
    %v4992 = vld [vmem:[#allocation2 + $0x2b8] sm:$0xff]
    %v4993 = vld [vmem:[#allocation2 + $0x2f0] sm:$0xff]
    %v4994 = vld [vmem:[#allocation2 + $0x2f8] sm:$0xff]
    %v4995 = vld [vmem:[#allocation2 + $0x330] sm:$0xff]
    %v4996 = vld [vmem:[#allocation2 + $0x338] sm:$0xff]
    %v4997 = vld [vmem:[#allocation2 + $0x370] sm:$0xff]
    %v4998 = vld [vmem:[#allocation2 + $0x378] sm:$0xff]
    %v4999 = vld [vmem:[#allocation2 + $0x3b0] sm:$0xff]
    %v5000 = vld [vmem:[#allocation2 + $0x3b8] sm:$0xff]
    %v5001 = vld [vmem:[#allocation2 + $0x3f0] sm:$0xff]
    %v5002 = vld [vmem:[#allocation2 + $0x3f8] sm:$0xff]
    %v5003 = vld [vmem:[#allocation2 + $0x430] sm:$0xff]
    %v5004 = vld [vmem:[#allocation2 + $0x438] sm:$0xff]
    %v5005 = vld [vmem:[#allocation2 + $0x470] sm:$0xff]
    %v5006 = vld [vmem:[#allocation2 + $0x478] sm:$0xff]
    %v5007 = vld [vmem:[#allocation2 + $0x4b0] sm:$0xff]
    %v5008 = vld [vmem:[#allocation2 + $0x4b8] sm:$0xff]
    %v5009 = vld [vmem:[#allocation2 + $0x4f0] sm:$0xff]
    %v5010 = vld [vmem:[#allocation2 + $0x4f8] sm:$0xff]
    %v5011 = vld [vmem:[#allocation2 + $0x530] sm:$0xff]
    %v5012 = vld [vmem:[#allocation2 + $0x538] sm:$0xff]
    %v5013 = vld [vmem:[#allocation2 + $0x570] sm:$0xff]
    %v5014 = vld [vmem:[#allocation2 + $0x578] sm:$0xff]
    %v5015 = vld [vmem:[#allocation2 + $0x5b0] sm:$0xff]
    %v5016 = vld [vmem:[#allocation2 + $0x5b8] sm:$0xff]
    %v5017 = vld [vmem:[#allocation2 + $0x5f0] sm:$0xff]
    %v5018 = vld [vmem:[#allocation2 + $0x5f8] sm:$0xff]
    %v5019 = vld [vmem:[#allocation2 + $0x630] sm:$0xff]
    %v5020 = vld [vmem:[#allocation2 + $0x638] sm:$0xff]
    %v5021 = vld [vmem:[#allocation2 + $0x670] sm:$0xff]
    %v5022 = vld [vmem:[#allocation2 + $0x678] sm:$0xff]
    %v5023 = vld [vmem:[#allocation2 + $0x6b0] sm:$0xff]
    %v5024 = vld [vmem:[#allocation2 + $0x6b8] sm:$0xff]
    %v5025 = vld [vmem:[#allocation2 + $0x6f0] sm:$0xff]
    %v5026 = vld [vmem:[#allocation2 + $0x6f8] sm:$0xff]
    %v5027 = vld [vmem:[#allocation2 + $0x730] sm:$0xff]
    %v5028 = vld [vmem:[#allocation2 + $0x738] sm:$0xff]
    %v5029 = vld [vmem:[#allocation2 + $0x770] sm:$0xff]
    %v5030 = vld [vmem:[#allocation2 + $0x778] sm:$0xff]
    %v5031 = vld [vmem:[#allocation2 + $0x7b0] sm:$0xff]
    %v5032 = vld [vmem:[#allocation2 + $0x7b8] sm:$0xff]
    %v5033 = vld [vmem:[#allocation2 + $0x7f0] sm:$0xff]
    %v5034 = vld [vmem:[#allocation2 + $0x7f8] sm:$0xff]
    %5035 = vmatprep.subr.mxu0 %v4972
    %5036 = vmatpush1.msra.mxu0 %v4971
    %5037 = vmatprep.subr.mxu0 %v4974
    %5038 = vmatpush1.msra.mxu0 %v4973
    %5039 = vmatprep.subr.mxu0 %v4976
    %5040 = vmatpush1.msra.mxu0 %v4975
    %5041 = vmatprep.subr.mxu0 %v4978
    %5042 = vmatpush1.msra.mxu0 %v4977
    %5043 = vmatprep.subr.mxu0 %v4980
    %5044 = vmatpush1.msra.mxu0 %v4979
    %5045 = vmatprep.subr.mxu0 %v4982
    %5046 = vmatpush1.msra.mxu0 %v4981
    %5047 = vmatprep.subr.mxu0 %v4984
    %5048 = vmatpush1.msra.mxu0 %v4983
    %5049 = vmatprep.subr.mxu0 %v4986
    %5050 = vmatpush1.msra.mxu0 %v4985
    %5051 = vmatprep.subr.mxu0 %v4988
    %5052 = vmatpush1.msra.mxu0 %v4987
    %5053 = vmatprep.subr.mxu0 %v4990
    %5054 = vmatpush1.msra.mxu0 %v4989
    %5055 = vmatprep.subr.mxu0 %v4992
    %5056 = vmatpush1.msra.mxu0 %v4991
    %5057 = vmatprep.subr.mxu0 %v4994
    %5058 = vmatpush1.msra.mxu0 %v4993
    %5059 = vmatprep.subr.mxu0 %v4996
    %5060 = vmatpush1.msra.mxu0 %v4995
    %5061 = vmatprep.subr.mxu0 %v4998
    %5062 = vmatpush1.msra.mxu0 %v4997
    %5063 = vmatprep.subr.mxu0 %v5000
    %5064 = vmatpush1.msra.mxu0 %v4999
    %5065 = vmatprep.subr.mxu0 %v5002
    %5066 = vmatpush1.msra.mxu0 %v5001
    %5067 = vmatprep.subr.mxu0 %v5004
    %5068 = vmatpush1.msra.mxu0 %v5003
    %5069 = vmatprep.subr.mxu0 %v5006
    %5070 = vmatpush1.msra.mxu0 %v5005
    %5071 = vmatprep.subr.mxu0 %v5008
    %5072 = vmatpush1.msra.mxu0 %v5007
    %5073 = vmatprep.subr.mxu0 %v5010
    %5074 = vmatpush1.msra.mxu0 %v5009
    %5075 = vmatprep.subr.mxu0 %v5012
    %5076 = vmatpush1.msra.mxu0 %v5011
    %5077 = vmatprep.subr.mxu0 %v5014
    %5078 = vmatpush1.msra.mxu0 %v5013
    %5079 = vmatprep.subr.mxu0 %v5016
    %5080 = vmatpush1.msra.mxu0 %v5015
    %5081 = vmatprep.subr.mxu0 %v5018
    %5082 = vmatpush1.msra.mxu0 %v5017
    %5083 = vmatprep.subr.mxu0 %v5020
    %5084 = vmatpush1.msra.mxu0 %v5019
    %5085 = vmatprep.subr.mxu0 %v5022
    %5086 = vmatpush1.msra.mxu0 %v5021
    %5087 = vmatprep.subr.mxu0 %v5024
    %5088 = vmatpush1.msra.mxu0 %v5023
    %5089 = vmatprep.subr.mxu0 %v5026
    %5090 = vmatpush1.msra.mxu0 %v5025
    %5091 = vmatprep.subr.mxu0 %v5028
    %5092 = vmatpush1.msra.mxu0 %v5027
    %5093 = vmatprep.subr.mxu0 %v5030
    %5094 = vmatpush1.msra.mxu0 %v5029
    %5095 = vmatprep.subr.mxu0 %v5032
    %5096 = vmatpush1.msra.mxu0 %v5031
    %5097 = vmatprep.subr.mxu0 %v5034
    %5098 = vmatpush1.msra.mxu0 %v5033
    %5099 = vmatprep.mubr.f32.mxu0 %v4564
    %5100 = vmatmul.mubr.f32.gmra.mrb[0].mxu0 %v4560
    %v5101 = vpop.f32.mrb[0].mxu0
    %v5102 = vadd.f32 0.0, %v5101
    %v5103 = vpop.f32.mrb[0].mxu0
    %v5104 = vadd.f32 0.0, %v5103
    %5105 = vdwg.mxu0
    %v5108 = vcombine.low %v5102, %v5104
    %v5110 = vunpack.c.l.s4 1966171168
    %v5111 = vunpack.c.0.s8 %v5110
    %v5112 = vlaneseq
    %v5113 = vshrl.u32 %v5112, 7
    %v5114 = vsub.s32 %v5111, %v5113
    %v5115 = vrot.slane %v5108, %v5114
    %v5117 = vunpack.c.l.s4 1966171168
    %v5118 = vunpack.c.0.s8 %v5117
    %v5119 = vlaneseq
    %v5120 = vshrl.u32 %v5119, 7
    %v5121 = vsub.s32 %v5118, %v5120
    %v5122 = vrot.slane %v5115, %v5121
    %v5124 = vadd.f32 %v4970, %v5122
    %v5125 = vxor.u32 %v4656, 2147483648
    %v5126 = vmul.f32 %v5125, 1.442695
    %v5127 = vpow.pop %v5126
    %v5128 = vadd.f32 %v5127, 1.0
    %v5129 = vrcp.pop %v5128
    %v5130 = vmul.f32 1.0, %v5129
    %v5131 = vxor.u32 %v4812, 2147483648
    %v5132 = vmul.f32 %v5131, 1.442695
    %v5133 = vpow.pop %v5132
    %v5134 = vadd.f32 %v5133, 1.0
    %v5135 = vrcp.pop %v5134
    %v5136 = vmul.f32 1.0, %v5135
    %v5137 = vtanh.pop %v4968
    %v5138 = vmul.f32 %v5136, %v4478
    %v5139 = vmul.f32 %v5130, %v5137
    %v5140 = vadd.f32 %v5138, %v5139
    %v5141 = vtanh.pop %v5140
    %v5142 = vxor.u32 %v5124, 2147483648
    %v5143 = vmul.f32 %v5142, 1.442695
    %v5144 = vpow.pop %v5143
    %v5145 = vadd.f32 %v5144, 1.0
    %v5146 = vrcp.pop %v5145
    %v5147 = vmul.f32 1.0, %v5146
    %v5148 = vmul.f32 %v5147, %v5141
    %s5149 = scalar_lea.vmem [#allocation4], 6
    %5150 = vst.msk [vmem:[%s5149] ss:$8 sm:$0x3] %vm1177, %v5148
    %5151 = vst.msk [vmem:[%s5149] ss:$8 sm:$0x0] %vm1177, %v5148
    %s5152 = scalar_lea.vmem [#allocation3], 7
    %v5153 = vld [vmem:[%s5152] ss:$8 sm:$0x3]
    %v5154 = vld [vmem:[#allocation2] sm:$0xff]
    %v5155 = vld [vmem:[#allocation2 + $0x8] sm:$0xff]
    %v5156 = vld [vmem:[#allocation2 + $0x40] sm:$0xff]
    %v5157 = vld [vmem:[#allocation2 + $0x48] sm:$0xff]
    %v5158 = vld [vmem:[#allocation2 + $0x80] sm:$0xff]
    %v5159 = vld [vmem:[#allocation2 + $0x88] sm:$0xff]
    %v5160 = vld [vmem:[#allocation2 + $0xc0] sm:$0xff]
    %v5161 = vld [vmem:[#allocation2 + $0xc8] sm:$0xff]
    %v5162 = vld [vmem:[#allocation2 + $0x100] sm:$0xff]
    %v5163 = vld [vmem:[#allocation2 + $0x108] sm:$0xff]
    %v5164 = vld [vmem:[#allocation2 + $0x140] sm:$0xff]
    %v5165 = vld [vmem:[#allocation2 + $0x148] sm:$0xff]
    %v5166 = vld [vmem:[#allocation2 + $0x180] sm:$0xff]
    %v5167 = vld [vmem:[#allocation2 + $0x188] sm:$0xff]
    %v5168 = vld [vmem:[#allocation2 + $0x1c0] sm:$0xff]
    %v5169 = vld [vmem:[#allocation2 + $0x1c8] sm:$0xff]
    %v5170 = vld [vmem:[#allocation2 + $0x200] sm:$0xff]
    %v5171 = vld [vmem:[#allocation2 + $0x208] sm:$0xff]
    %v5172 = vld [vmem:[#allocation2 + $0x240] sm:$0xff]
    %v5173 = vld [vmem:[#allocation2 + $0x248] sm:$0xff]
    %v5174 = vld [vmem:[#allocation2 + $0x280] sm:$0xff]
    %v5175 = vld [vmem:[#allocation2 + $0x288] sm:$0xff]
    %v5176 = vld [vmem:[#allocation2 + $0x2c0] sm:$0xff]
    %v5177 = vld [vmem:[#allocation2 + $0x2c8] sm:$0xff]
    %v5178 = vld [vmem:[#allocation2 + $0x300] sm:$0xff]
    %v5179 = vld [vmem:[#allocation2 + $0x308] sm:$0xff]
    %v5180 = vld [vmem:[#allocation2 + $0x340] sm:$0xff]
    %v5181 = vld [vmem:[#allocation2 + $0x348] sm:$0xff]
    %v5182 = vld [vmem:[#allocation2 + $0x380] sm:$0xff]
    %v5183 = vld [vmem:[#allocation2 + $0x388] sm:$0xff]
    %v5184 = vld [vmem:[#allocation2 + $0x3c0] sm:$0xff]
    %v5185 = vld [vmem:[#allocation2 + $0x3c8] sm:$0xff]
    %v5186 = vld [vmem:[#allocation2 + $0x400] sm:$0xff]
    %v5187 = vld [vmem:[#allocation2 + $0x408] sm:$0xff]
    %v5188 = vld [vmem:[#allocation2 + $0x440] sm:$0xff]
    %v5189 = vld [vmem:[#allocation2 + $0x448] sm:$0xff]
    %v5190 = vld [vmem:[#allocation2 + $0x480] sm:$0xff]
    %v5191 = vld [vmem:[#allocation2 + $0x488] sm:$0xff]
    %v5192 = vld [vmem:[#allocation2 + $0x4c0] sm:$0xff]
    %v5193 = vld [vmem:[#allocation2 + $0x4c8] sm:$0xff]
    %v5194 = vld [vmem:[#allocation2 + $0x500] sm:$0xff]
    %v5195 = vld [vmem:[#allocation2 + $0x508] sm:$0xff]
    %v5196 = vld [vmem:[#allocation2 + $0x540] sm:$0xff]
    %v5197 = vld [vmem:[#allocation2 + $0x548] sm:$0xff]
    %v5198 = vld [vmem:[#allocation2 + $0x580] sm:$0xff]
    %v5199 = vld [vmem:[#allocation2 + $0x588] sm:$0xff]
    %v5200 = vld [vmem:[#allocation2 + $0x5c0] sm:$0xff]
    %v5201 = vld [vmem:[#allocation2 + $0x5c8] sm:$0xff]
    %v5202 = vld [vmem:[#allocation2 + $0x600] sm:$0xff]
    %v5203 = vld [vmem:[#allocation2 + $0x608] sm:$0xff]
    %v5204 = vld [vmem:[#allocation2 + $0x640] sm:$0xff]
    %v5205 = vld [vmem:[#allocation2 + $0x648] sm:$0xff]
    %v5206 = vld [vmem:[#allocation2 + $0x680] sm:$0xff]
    %v5207 = vld [vmem:[#allocation2 + $0x688] sm:$0xff]
    %v5208 = vld [vmem:[#allocation2 + $0x6c0] sm:$0xff]
    %v5209 = vld [vmem:[#allocation2 + $0x6c8] sm:$0xff]
    %v5210 = vld [vmem:[#allocation2 + $0x700] sm:$0xff]
    %v5211 = vld [vmem:[#allocation2 + $0x708] sm:$0xff]
    %v5212 = vld [vmem:[#allocation2 + $0x740] sm:$0xff]
    %v5213 = vld [vmem:[#allocation2 + $0x748] sm:$0xff]
    %v5214 = vld [vmem:[#allocation2 + $0x780] sm:$0xff]
    %v5215 = vld [vmem:[#allocation2 + $0x788] sm:$0xff]
    %v5216 = vld [vmem:[#allocation2 + $0x7c0] sm:$0xff]
    %v5217 = vld [vmem:[#allocation2 + $0x7c8] sm:$0xff]
    %v5219 = vlaneseq
    %v5220 = vshrl.u32 %v5219, 7
    %v5221 = vsub.s32 0, %v5220
    %v5222 = vrot.slane %v5148, %v5221
    %v5223 = vlaneseq
    %v5224 = vshrl.u32 %v5223, 7
    %v5225 = vsub.s32 1, %v5224
    %v5226 = vrot.slane %v5148, %v5225
    %5229 = vmatprep.subr.mxu0 %v5155
    %5230 = vmatpush1.msra.mxu0 %v5154
    %5231 = vmatprep.subr.mxu0 %v5157
    %5232 = vmatpush1.msra.mxu0 %v5156
    %5233 = vmatprep.subr.mxu0 %v5159
    %5234 = vmatpush1.msra.mxu0 %v5158
    %5235 = vmatprep.subr.mxu0 %v5161
    %5236 = vmatpush1.msra.mxu0 %v5160
    %5237 = vmatprep.subr.mxu0 %v5163
    %5238 = vmatpush1.msra.mxu0 %v5162
    %5239 = vmatprep.subr.mxu0 %v5165
    %5240 = vmatpush1.msra.mxu0 %v5164
    %5241 = vmatprep.subr.mxu0 %v5167
    %5242 = vmatpush1.msra.mxu0 %v5166
    %5243 = vmatprep.subr.mxu0 %v5169
    %5244 = vmatpush1.msra.mxu0 %v5168
    %5245 = vmatprep.subr.mxu0 %v5171
    %5246 = vmatpush1.msra.mxu0 %v5170
    %5247 = vmatprep.subr.mxu0 %v5173
    %5248 = vmatpush1.msra.mxu0 %v5172
    %5249 = vmatprep.subr.mxu0 %v5175
    %5250 = vmatpush1.msra.mxu0 %v5174
    %5251 = vmatprep.subr.mxu0 %v5177
    %5252 = vmatpush1.msra.mxu0 %v5176
    %5253 = vmatprep.subr.mxu0 %v5179
    %5254 = vmatpush1.msra.mxu0 %v5178
    %5255 = vmatprep.subr.mxu0 %v5181
    %5256 = vmatpush1.msra.mxu0 %v5180
    %5257 = vmatprep.subr.mxu0 %v5183
    %5258 = vmatpush1.msra.mxu0 %v5182
    %5259 = vmatprep.subr.mxu0 %v5185
    %5260 = vmatpush1.msra.mxu0 %v5184
    %5261 = vmatprep.subr.mxu0 %v5187
    %5262 = vmatpush1.msra.mxu0 %v5186
    %5263 = vmatprep.subr.mxu0 %v5189
    %5264 = vmatpush1.msra.mxu0 %v5188
    %5265 = vmatprep.subr.mxu0 %v5191
    %5266 = vmatpush1.msra.mxu0 %v5190
    %5267 = vmatprep.subr.mxu0 %v5193
    %5268 = vmatpush1.msra.mxu0 %v5192
    %5269 = vmatprep.subr.mxu0 %v5195
    %5270 = vmatpush1.msra.mxu0 %v5194
    %5271 = vmatprep.subr.mxu0 %v5197
    %5272 = vmatpush1.msra.mxu0 %v5196
    %5273 = vmatprep.subr.mxu0 %v5199
    %5274 = vmatpush1.msra.mxu0 %v5198
    %5275 = vmatprep.subr.mxu0 %v5201
    %5276 = vmatpush1.msra.mxu0 %v5200
    %5277 = vmatprep.subr.mxu0 %v5203
    %5278 = vmatpush1.msra.mxu0 %v5202
    %5279 = vmatprep.subr.mxu0 %v5205
    %5280 = vmatpush1.msra.mxu0 %v5204
    %5281 = vmatprep.subr.mxu0 %v5207
    %5282 = vmatpush1.msra.mxu0 %v5206
    %5283 = vmatprep.subr.mxu0 %v5209
    %5284 = vmatpush1.msra.mxu0 %v5208
    %5285 = vmatprep.subr.mxu0 %v5211
    %5286 = vmatpush1.msra.mxu0 %v5210
    %5287 = vmatprep.subr.mxu0 %v5213
    %5288 = vmatpush1.msra.mxu0 %v5212
    %5289 = vmatprep.subr.mxu0 %v5215
    %5290 = vmatpush1.msra.mxu0 %v5214
    %5291 = vmatprep.subr.mxu0 %v5217
    %5292 = vmatpush1.msra.mxu0 %v5216
    %5293 = vmatprep.mubr.f32.mxu0 %v5226
    %5294 = vmatmul.mubr.f32.gmra.mrb[0].mxu0 %v5222
    %v5295 = vpop.f32.mrb[0].mxu0
    %v5296 = vadd.f32 0.0, %v5295
    %v5297 = vpop.f32.mrb[0].mxu0
    %v5298 = vadd.f32 0.0, %v5297
    %5299 = vdwg.mxu0
    %v5302 = vcombine.low %v5296, %v5298
    %v5304 = vunpack.c.l.s4 1966171168
    %v5305 = vunpack.c.0.s8 %v5304
    %v5306 = vlaneseq
    %v5307 = vshrl.u32 %v5306, 7
    %v5308 = vsub.s32 %v5305, %v5307
    %v5309 = vrot.slane %v5302, %v5308
    %v5311 = vunpack.c.l.s4 1966171168
    %v5312 = vunpack.c.0.s8 %v5311
    %v5313 = vlaneseq
    %v5314 = vshrl.u32 %v5313, 7
    %v5315 = vsub.s32 %v5312, %v5314
    %v5316 = vrot.slane %v5309, %v5315
    %v5318 = vadd.f32 %v5153, %v5316
    %s5319 = scalar_lea.vmem [#allocation3], 23
    %v5320 = vld [vmem:[%s5319] ss:$8 sm:$0x3]
    %v5321 = vld [vmem:[#allocation2 + $0x10] sm:$0xff]
    %v5322 = vld [vmem:[#allocation2 + $0x18] sm:$0xff]
    %v5323 = vld [vmem:[#allocation2 + $0x50] sm:$0xff]
    %v5324 = vld [vmem:[#allocation2 + $0x58] sm:$0xff]
    %v5325 = vld [vmem:[#allocation2 + $0x90] sm:$0xff]
    %v5326 = vld [vmem:[#allocation2 + $0x98] sm:$0xff]
    %v5327 = vld [vmem:[#allocation2 + $0xd0] sm:$0xff]
    %v5328 = vld [vmem:[#allocation2 + $0xd8] sm:$0xff]
    %v5329 = vld [vmem:[#allocation2 + $0x110] sm:$0xff]
    %v5330 = vld [vmem:[#allocation2 + $0x118] sm:$0xff]
    %v5331 = vld [vmem:[#allocation2 + $0x150] sm:$0xff]
    %v5332 = vld [vmem:[#allocation2 + $0x158] sm:$0xff]
    %v5333 = vld [vmem:[#allocation2 + $0x190] sm:$0xff]
    %v5334 = vld [vmem:[#allocation2 + $0x198] sm:$0xff]
    %v5335 = vld [vmem:[#allocation2 + $0x1d0] sm:$0xff]
    %v5336 = vld [vmem:[#allocation2 + $0x1d8] sm:$0xff]
    %v5337 = vld [vmem:[#allocation2 + $0x210] sm:$0xff]
    %v5338 = vld [vmem:[#allocation2 + $0x218] sm:$0xff]
    %v5339 = vld [vmem:[#allocation2 + $0x250] sm:$0xff]
    %v5340 = vld [vmem:[#allocation2 + $0x258] sm:$0xff]
    %v5341 = vld [vmem:[#allocation2 + $0x290] sm:$0xff]
    %v5342 = vld [vmem:[#allocation2 + $0x298] sm:$0xff]
    %v5343 = vld [vmem:[#allocation2 + $0x2d0] sm:$0xff]
    %v5344 = vld [vmem:[#allocation2 + $0x2d8] sm:$0xff]
    %v5345 = vld [vmem:[#allocation2 + $0x310] sm:$0xff]
    %v5346 = vld [vmem:[#allocation2 + $0x318] sm:$0xff]
    %v5347 = vld [vmem:[#allocation2 + $0x350] sm:$0xff]
    %v5348 = vld [vmem:[#allocation2 + $0x358] sm:$0xff]
    %v5349 = vld [vmem:[#allocation2 + $0x390] sm:$0xff]
    %v5350 = vld [vmem:[#allocation2 + $0x398] sm:$0xff]
    %v5351 = vld [vmem:[#allocation2 + $0x3d0] sm:$0xff]
    %v5352 = vld [vmem:[#allocation2 + $0x3d8] sm:$0xff]
    %v5353 = vld [vmem:[#allocation2 + $0x410] sm:$0xff]
    %v5354 = vld [vmem:[#allocation2 + $0x418] sm:$0xff]
    %v5355 = vld [vmem:[#allocation2 + $0x450] sm:$0xff]
    %v5356 = vld [vmem:[#allocation2 + $0x458] sm:$0xff]
    %v5357 = vld [vmem:[#allocation2 + $0x490] sm:$0xff]
    %v5358 = vld [vmem:[#allocation2 + $0x498] sm:$0xff]
    %v5359 = vld [vmem:[#allocation2 + $0x4d0] sm:$0xff]
    %v5360 = vld [vmem:[#allocation2 + $0x4d8] sm:$0xff]
    %v5361 = vld [vmem:[#allocation2 + $0x510] sm:$0xff]
    %v5362 = vld [vmem:[#allocation2 + $0x518] sm:$0xff]
    %v5363 = vld [vmem:[#allocation2 + $0x550] sm:$0xff]
    %v5364 = vld [vmem:[#allocation2 + $0x558] sm:$0xff]
    %v5365 = vld [vmem:[#allocation2 + $0x590] sm:$0xff]
    %v5366 = vld [vmem:[#allocation2 + $0x598] sm:$0xff]
    %v5367 = vld [vmem:[#allocation2 + $0x5d0] sm:$0xff]
    %v5368 = vld [vmem:[#allocation2 + $0x5d8] sm:$0xff]
    %v5369 = vld [vmem:[#allocation2 + $0x610] sm:$0xff]
    %v5370 = vld [vmem:[#allocation2 + $0x618] sm:$0xff]
    %v5371 = vld [vmem:[#allocation2 + $0x650] sm:$0xff]
    %v5372 = vld [vmem:[#allocation2 + $0x658] sm:$0xff]
    %v5373 = vld [vmem:[#allocation2 + $0x690] sm:$0xff]
    %v5374 = vld [vmem:[#allocation2 + $0x698] sm:$0xff]
    %v5375 = vld [vmem:[#allocation2 + $0x6d0] sm:$0xff]
    %v5376 = vld [vmem:[#allocation2 + $0x6d8] sm:$0xff]
    %v5377 = vld [vmem:[#allocation2 + $0x710] sm:$0xff]
    %v5378 = vld [vmem:[#allocation2 + $0x718] sm:$0xff]
    %v5379 = vld [vmem:[#allocation2 + $0x750] sm:$0xff]
    %v5380 = vld [vmem:[#allocation2 + $0x758] sm:$0xff]
    %v5381 = vld [vmem:[#allocation2 + $0x790] sm:$0xff]
    %v5382 = vld [vmem:[#allocation2 + $0x798] sm:$0xff]
    %v5383 = vld [vmem:[#allocation2 + $0x7d0] sm:$0xff]
    %v5384 = vld [vmem:[#allocation2 + $0x7d8] sm:$0xff]
    %5385 = vmatprep.subr.mxu0 %v5322
    %5386 = vmatpush1.msra.mxu0 %v5321
    %5387 = vmatprep.subr.mxu0 %v5324
    %5388 = vmatpush1.msra.mxu0 %v5323
    %5389 = vmatprep.subr.mxu0 %v5326
    %5390 = vmatpush1.msra.mxu0 %v5325
    %5391 = vmatprep.subr.mxu0 %v5328
    %5392 = vmatpush1.msra.mxu0 %v5327
    %5393 = vmatprep.subr.mxu0 %v5330
    %5394 = vmatpush1.msra.mxu0 %v5329
    %5395 = vmatprep.subr.mxu0 %v5332
    %5396 = vmatpush1.msra.mxu0 %v5331
    %5397 = vmatprep.subr.mxu0 %v5334
    %5398 = vmatpush1.msra.mxu0 %v5333
    %5399 = vmatprep.subr.mxu0 %v5336
    %5400 = vmatpush1.msra.mxu0 %v5335
    %5401 = vmatprep.subr.mxu0 %v5338
    %5402 = vmatpush1.msra.mxu0 %v5337
    %5403 = vmatprep.subr.mxu0 %v5340
    %5404 = vmatpush1.msra.mxu0 %v5339
    %5405 = vmatprep.subr.mxu0 %v5342
    %5406 = vmatpush1.msra.mxu0 %v5341
    %5407 = vmatprep.subr.mxu0 %v5344
    %5408 = vmatpush1.msra.mxu0 %v5343
    %5409 = vmatprep.subr.mxu0 %v5346
    %5410 = vmatpush1.msra.mxu0 %v5345
    %5411 = vmatprep.subr.mxu0 %v5348
    %5412 = vmatpush1.msra.mxu0 %v5347
    %5413 = vmatprep.subr.mxu0 %v5350
    %5414 = vmatpush1.msra.mxu0 %v5349
    %5415 = vmatprep.subr.mxu0 %v5352
    %5416 = vmatpush1.msra.mxu0 %v5351
    %5417 = vmatprep.subr.mxu0 %v5354
    %5418 = vmatpush1.msra.mxu0 %v5353
    %5419 = vmatprep.subr.mxu0 %v5356
    %5420 = vmatpush1.msra.mxu0 %v5355
    %5421 = vmatprep.subr.mxu0 %v5358
    %5422 = vmatpush1.msra.mxu0 %v5357
    %5423 = vmatprep.subr.mxu0 %v5360
    %5424 = vmatpush1.msra.mxu0 %v5359
    %5425 = vmatprep.subr.mxu0 %v5362
    %5426 = vmatpush1.msra.mxu0 %v5361
    %5427 = vmatprep.subr.mxu0 %v5364
    %5428 = vmatpush1.msra.mxu0 %v5363
    %5429 = vmatprep.subr.mxu0 %v5366
    %5430 = vmatpush1.msra.mxu0 %v5365
    %5431 = vmatprep.subr.mxu0 %v5368
    %5432 = vmatpush1.msra.mxu0 %v5367
    %5433 = vmatprep.subr.mxu0 %v5370
    %5434 = vmatpush1.msra.mxu0 %v5369
    %5435 = vmatprep.subr.mxu0 %v5372
    %5436 = vmatpush1.msra.mxu0 %v5371
    %5437 = vmatprep.subr.mxu0 %v5374
    %5438 = vmatpush1.msra.mxu0 %v5373
    %5439 = vmatprep.subr.mxu0 %v5376
    %5440 = vmatpush1.msra.mxu0 %v5375
    %5441 = vmatprep.subr.mxu0 %v5378
    %5442 = vmatpush1.msra.mxu0 %v5377
    %5443 = vmatprep.subr.mxu0 %v5380
    %5444 = vmatpush1.msra.mxu0 %v5379
    %5445 = vmatprep.subr.mxu0 %v5382
    %5446 = vmatpush1.msra.mxu0 %v5381
    %5447 = vmatprep.subr.mxu0 %v5384
    %5448 = vmatpush1.msra.mxu0 %v5383
    %5449 = vmatprep.mubr.f32.mxu0 %v5226
    %5450 = vmatmul.mubr.f32.gmra.mrb[0].mxu0 %v5222
    %v5451 = vpop.f32.mrb[0].mxu0
    %v5452 = vadd.f32 0.0, %v5451
    %v5453 = vpop.f32.mrb[0].mxu0
    %v5454 = vadd.f32 0.0, %v5453
    %5455 = vdwg.mxu0
    %v5458 = vcombine.low %v5452, %v5454
    %v5460 = vunpack.c.l.s4 1966171168
    %v5461 = vunpack.c.0.s8 %v5460
    %v5462 = vlaneseq
    %v5463 = vshrl.u32 %v5462, 7
    %v5464 = vsub.s32 %v5461, %v5463
    %v5465 = vrot.slane %v5458, %v5464
    %v5467 = vunpack.c.l.s4 1966171168
    %v5468 = vunpack.c.0.s8 %v5467
    %v5469 = vlaneseq
    %v5470 = vshrl.u32 %v5469, 7
    %v5471 = vsub.s32 %v5468, %v5470
    %v5472 = vrot.slane %v5465, %v5471
    %v5474 = vadd.f32 %v5320, %v5472
    %s5475 = scalar_lea.vmem [#allocation3], 39
    %v5476 = vld [vmem:[%s5475] ss:$8 sm:$0x3]
    %v5477 = vld [vmem:[#allocation2 + $0x20] sm:$0xff]
    %v5478 = vld [vmem:[#allocation2 + $0x28] sm:$0xff]
    %v5479 = vld [vmem:[#allocation2 + $0x60] sm:$0xff]
    %v5480 = vld [vmem:[#allocation2 + $0x68] sm:$0xff]
    %v5481 = vld [vmem:[#allocation2 + $0xa0] sm:$0xff]
    %v5482 = vld [vmem:[#allocation2 + $0xa8] sm:$0xff]
    %v5483 = vld [vmem:[#allocation2 + $0xe0] sm:$0xff]
    %v5484 = vld [vmem:[#allocation2 + $0xe8] sm:$0xff]
    %v5485 = vld [vmem:[#allocation2 + $0x120] sm:$0xff]
    %v5486 = vld [vmem:[#allocation2 + $0x128] sm:$0xff]
    %v5487 = vld [vmem:[#allocation2 + $0x160] sm:$0xff]
    %v5488 = vld [vmem:[#allocation2 + $0x168] sm:$0xff]
    %v5489 = vld [vmem:[#allocation2 + $0x1a0] sm:$0xff]
    %v5490 = vld [vmem:[#allocation2 + $0x1a8] sm:$0xff]
    %v5491 = vld [vmem:[#allocation2 + $0x1e0] sm:$0xff]
    %v5492 = vld [vmem:[#allocation2 + $0x1e8] sm:$0xff]
    %v5493 = vld [vmem:[#allocation2 + $0x220] sm:$0xff]
    %v5494 = vld [vmem:[#allocation2 + $0x228] sm:$0xff]
    %v5495 = vld [vmem:[#allocation2 + $0x260] sm:$0xff]
    %v5496 = vld [vmem:[#allocation2 + $0x268] sm:$0xff]
    %v5497 = vld [vmem:[#allocation2 + $0x2a0] sm:$0xff]
    %v5498 = vld [vmem:[#allocation2 + $0x2a8] sm:$0xff]
    %v5499 = vld [vmem:[#allocation2 + $0x2e0] sm:$0xff]
    %v5500 = vld [vmem:[#allocation2 + $0x2e8] sm:$0xff]
    %v5501 = vld [vmem:[#allocation2 + $0x320] sm:$0xff]
    %v5502 = vld [vmem:[#allocation2 + $0x328] sm:$0xff]
    %v5503 = vld [vmem:[#allocation2 + $0x360] sm:$0xff]
    %v5504 = vld [vmem:[#allocation2 + $0x368] sm:$0xff]
    %v5505 = vld [vmem:[#allocation2 + $0x3a0] sm:$0xff]
    %v5506 = vld [vmem:[#allocation2 + $0x3a8] sm:$0xff]
    %v5507 = vld [vmem:[#allocation2 + $0x3e0] sm:$0xff]
    %v5508 = vld [vmem:[#allocation2 + $0x3e8] sm:$0xff]
    %v5509 = vld [vmem:[#allocation2 + $0x420] sm:$0xff]
    %v5510 = vld [vmem:[#allocation2 + $0x428] sm:$0xff]
    %v5511 = vld [vmem:[#allocation2 + $0x460] sm:$0xff]
    %v5512 = vld [vmem:[#allocation2 + $0x468] sm:$0xff]
    %v5513 = vld [vmem:[#allocation2 + $0x4a0] sm:$0xff]
    %v5514 = vld [vmem:[#allocation2 + $0x4a8] sm:$0xff]
    %v5515 = vld [vmem:[#allocation2 + $0x4e0] sm:$0xff]
    %v5516 = vld [vmem:[#allocation2 + $0x4e8] sm:$0xff]
    %v5517 = vld [vmem:[#allocation2 + $0x520] sm:$0xff]
    %v5518 = vld [vmem:[#allocation2 + $0x528] sm:$0xff]
    %v5519 = vld [vmem:[#allocation2 + $0x560] sm:$0xff]
    %v5520 = vld [vmem:[#allocation2 + $0x568] sm:$0xff]
    %v5521 = vld [vmem:[#allocation2 + $0x5a0] sm:$0xff]
    %v5522 = vld [vmem:[#allocation2 + $0x5a8] sm:$0xff]
    %v5523 = vld [vmem:[#allocation2 + $0x5e0] sm:$0xff]
    %v5524 = vld [vmem:[#allocation2 + $0x5e8] sm:$0xff]
    %v5525 = vld [vmem:[#allocation2 + $0x620] sm:$0xff]
    %v5526 = vld [vmem:[#allocation2 + $0x628] sm:$0xff]
    %v5527 = vld [vmem:[#allocation2 + $0x660] sm:$0xff]
    %v5528 = vld [vmem:[#allocation2 + $0x668] sm:$0xff]
    %v5529 = vld [vmem:[#allocation2 + $0x6a0] sm:$0xff]
    %v5530 = vld [vmem:[#allocation2 + $0x6a8] sm:$0xff]
    %v5531 = vld [vmem:[#allocation2 + $0x6e0] sm:$0xff]
    %v5532 = vld [vmem:[#allocation2 + $0x6e8] sm:$0xff]
    %v5533 = vld [vmem:[#allocation2 + $0x720] sm:$0xff]
    %v5534 = vld [vmem:[#allocation2 + $0x728] sm:$0xff]
    %v5535 = vld [vmem:[#allocation2 + $0x760] sm:$0xff]
    %v5536 = vld [vmem:[#allocation2 + $0x768] sm:$0xff]
    %v5537 = vld [vmem:[#allocation2 + $0x7a0] sm:$0xff]
    %v5538 = vld [vmem:[#allocation2 + $0x7a8] sm:$0xff]
    %v5539 = vld [vmem:[#allocation2 + $0x7e0] sm:$0xff]
    %v5540 = vld [vmem:[#allocation2 + $0x7e8] sm:$0xff]
    %5541 = vmatprep.subr.mxu0 %v5478
    %5542 = vmatpush1.msra.mxu0 %v5477
    %5543 = vmatprep.subr.mxu0 %v5480
    %5544 = vmatpush1.msra.mxu0 %v5479
    %5545 = vmatprep.subr.mxu0 %v5482
    %5546 = vmatpush1.msra.mxu0 %v5481
    %5547 = vmatprep.subr.mxu0 %v5484
    %5548 = vmatpush1.msra.mxu0 %v5483
    %5549 = vmatprep.subr.mxu0 %v5486
    %5550 = vmatpush1.msra.mxu0 %v5485
    %5551 = vmatprep.subr.mxu0 %v5488
    %5552 = vmatpush1.msra.mxu0 %v5487
    %5553 = vmatprep.subr.mxu0 %v5490
    %5554 = vmatpush1.msra.mxu0 %v5489
    %5555 = vmatprep.subr.mxu0 %v5492
    %5556 = vmatpush1.msra.mxu0 %v5491
    %5557 = vmatprep.subr.mxu0 %v5494
    %5558 = vmatpush1.msra.mxu0 %v5493
    %5559 = vmatprep.subr.mxu0 %v5496
    %5560 = vmatpush1.msra.mxu0 %v5495
    %5561 = vmatprep.subr.mxu0 %v5498
    %5562 = vmatpush1.msra.mxu0 %v5497
    %5563 = vmatprep.subr.mxu0 %v5500
    %5564 = vmatpush1.msra.mxu0 %v5499
    %5565 = vmatprep.subr.mxu0 %v5502
    %5566 = vmatpush1.msra.mxu0 %v5501
    %5567 = vmatprep.subr.mxu0 %v5504
    %5568 = vmatpush1.msra.mxu0 %v5503
    %5569 = vmatprep.subr.mxu0 %v5506
    %5570 = vmatpush1.msra.mxu0 %v5505
    %5571 = vmatprep.subr.mxu0 %v5508
    %5572 = vmatpush1.msra.mxu0 %v5507
    %5573 = vmatprep.subr.mxu0 %v5510
    %5574 = vmatpush1.msra.mxu0 %v5509
    %5575 = vmatprep.subr.mxu0 %v5512
    %5576 = vmatpush1.msra.mxu0 %v5511
    %5577 = vmatprep.subr.mxu0 %v5514
    %5578 = vmatpush1.msra.mxu0 %v5513
    %5579 = vmatprep.subr.mxu0 %v5516
    %5580 = vmatpush1.msra.mxu0 %v5515
    %5581 = vmatprep.subr.mxu0 %v5518
    %5582 = vmatpush1.msra.mxu0 %v5517
    %5583 = vmatprep.subr.mxu0 %v5520
    %5584 = vmatpush1.msra.mxu0 %v5519
    %5585 = vmatprep.subr.mxu0 %v5522
    %5586 = vmatpush1.msra.mxu0 %v5521
    %5587 = vmatprep.subr.mxu0 %v5524
    %5588 = vmatpush1.msra.mxu0 %v5523
    %5589 = vmatprep.subr.mxu0 %v5526
    %5590 = vmatpush1.msra.mxu0 %v5525
    %5591 = vmatprep.subr.mxu0 %v5528
    %5592 = vmatpush1.msra.mxu0 %v5527
    %5593 = vmatprep.subr.mxu0 %v5530
    %5594 = vmatpush1.msra.mxu0 %v5529
    %5595 = vmatprep.subr.mxu0 %v5532
    %5596 = vmatpush1.msra.mxu0 %v5531
    %5597 = vmatprep.subr.mxu0 %v5534
    %5598 = vmatpush1.msra.mxu0 %v5533
    %5599 = vmatprep.subr.mxu0 %v5536
    %5600 = vmatpush1.msra.mxu0 %v5535
    %5601 = vmatprep.subr.mxu0 %v5538
    %5602 = vmatpush1.msra.mxu0 %v5537
    %5603 = vmatprep.subr.mxu0 %v5540
    %5604 = vmatpush1.msra.mxu0 %v5539
    %5605 = vmatprep.mubr.f32.mxu0 %v5226
    %5606 = vmatmul.mubr.f32.gmra.mrb[0].mxu0 %v5222
    %v5607 = vpop.f32.mrb[0].mxu0
    %v5608 = vadd.f32 0.0, %v5607
    %v5609 = vpop.f32.mrb[0].mxu0
    %v5610 = vadd.f32 0.0, %v5609
    %5611 = vdwg.mxu0
    %v5614 = vcombine.low %v5608, %v5610
    %v5616 = vunpack.c.l.s4 1966171168
    %v5617 = vunpack.c.0.s8 %v5616
    %v5618 = vlaneseq
    %v5619 = vshrl.u32 %v5618, 7
    %v5620 = vsub.s32 %v5617, %v5619
    %v5621 = vrot.slane %v5614, %v5620
    %v5623 = vunpack.c.l.s4 1966171168
    %v5624 = vunpack.c.0.s8 %v5623
    %v5625 = vlaneseq
    %v5626 = vshrl.u32 %v5625, 7
    %v5627 = vsub.s32 %v5624, %v5626
    %v5628 = vrot.slane %v5621, %v5627
    %v5630 = vadd.f32 %v5476, %v5628
    %s5631 = scalar_lea.vmem [#allocation3], 55
    %v5632 = vld [vmem:[%s5631] ss:$8 sm:$0x3]
    %v5633 = vld [vmem:[#allocation2 + $0x30] sm:$0xff]
    %v5634 = vld [vmem:[#allocation2 + $0x38] sm:$0xff]
    %v5635 = vld [vmem:[#allocation2 + $0x70] sm:$0xff]
    %v5636 = vld [vmem:[#allocation2 + $0x78] sm:$0xff]
    %v5637 = vld [vmem:[#allocation2 + $0xb0] sm:$0xff]
    %v5638 = vld [vmem:[#allocation2 + $0xb8] sm:$0xff]
    %v5639 = vld [vmem:[#allocation2 + $0xf0] sm:$0xff]
    %v5640 = vld [vmem:[#allocation2 + $0xf8] sm:$0xff]
    %v5641 = vld [vmem:[#allocation2 + $0x130] sm:$0xff]
    %v5642 = vld [vmem:[#allocation2 + $0x138] sm:$0xff]
    %v5643 = vld [vmem:[#allocation2 + $0x170] sm:$0xff]
    %v5644 = vld [vmem:[#allocation2 + $0x178] sm:$0xff]
    %v5645 = vld [vmem:[#allocation2 + $0x1b0] sm:$0xff]
    %v5646 = vld [vmem:[#allocation2 + $0x1b8] sm:$0xff]
    %v5647 = vld [vmem:[#allocation2 + $0x1f0] sm:$0xff]
    %v5648 = vld [vmem:[#allocation2 + $0x1f8] sm:$0xff]
    %v5649 = vld [vmem:[#allocation2 + $0x230] sm:$0xff]
    %v5650 = vld [vmem:[#allocation2 + $0x238] sm:$0xff]
    %v5651 = vld [vmem:[#allocation2 + $0x270] sm:$0xff]
    %v5652 = vld [vmem:[#allocation2 + $0x278] sm:$0xff]
    %v5653 = vld [vmem:[#allocation2 + $0x2b0] sm:$0xff]
    %v5654 = vld [vmem:[#allocation2 + $0x2b8] sm:$0xff]
    %v5655 = vld [vmem:[#allocation2 + $0x2f0] sm:$0xff]
    %v5656 = vld [vmem:[#allocation2 + $0x2f8] sm:$0xff]
    %v5657 = vld [vmem:[#allocation2 + $0x330] sm:$0xff]
    %v5658 = vld [vmem:[#allocation2 + $0x338] sm:$0xff]
    %v5659 = vld [vmem:[#allocation2 + $0x370] sm:$0xff]
    %v5660 = vld [vmem:[#allocation2 + $0x378] sm:$0xff]
    %v5661 = vld [vmem:[#allocation2 + $0x3b0] sm:$0xff]
    %v5662 = vld [vmem:[#allocation2 + $0x3b8] sm:$0xff]
    %v5663 = vld [vmem:[#allocation2 + $0x3f0] sm:$0xff]
    %v5664 = vld [vmem:[#allocation2 + $0x3f8] sm:$0xff]
    %v5665 = vld [vmem:[#allocation2 + $0x430] sm:$0xff]
    %v5666 = vld [vmem:[#allocation2 + $0x438] sm:$0xff]
    %v5667 = vld [vmem:[#allocation2 + $0x470] sm:$0xff]
    %v5668 = vld [vmem:[#allocation2 + $0x478] sm:$0xff]
    %v5669 = vld [vmem:[#allocation2 + $0x4b0] sm:$0xff]
    %v5670 = vld [vmem:[#allocation2 + $0x4b8] sm:$0xff]
    %v5671 = vld [vmem:[#allocation2 + $0x4f0] sm:$0xff]
    %v5672 = vld [vmem:[#allocation2 + $0x4f8] sm:$0xff]
    %v5673 = vld [vmem:[#allocation2 + $0x530] sm:$0xff]
    %v5674 = vld [vmem:[#allocation2 + $0x538] sm:$0xff]
    %v5675 = vld [vmem:[#allocation2 + $0x570] sm:$0xff]
    %v5676 = vld [vmem:[#allocation2 + $0x578] sm:$0xff]
    %v5677 = vld [vmem:[#allocation2 + $0x5b0] sm:$0xff]
    %v5678 = vld [vmem:[#allocation2 + $0x5b8] sm:$0xff]
    %v5679 = vld [vmem:[#allocation2 + $0x5f0] sm:$0xff]
    %v5680 = vld [vmem:[#allocation2 + $0x5f8] sm:$0xff]
    %v5681 = vld [vmem:[#allocation2 + $0x630] sm:$0xff]
    %v5682 = vld [vmem:[#allocation2 + $0x638] sm:$0xff]
    %v5683 = vld [vmem:[#allocation2 + $0x670] sm:$0xff]
    %v5684 = vld [vmem:[#allocation2 + $0x678] sm:$0xff]
    %v5685 = vld [vmem:[#allocation2 + $0x6b0] sm:$0xff]
    %v5686 = vld [vmem:[#allocation2 + $0x6b8] sm:$0xff]
    %v5687 = vld [vmem:[#allocation2 + $0x6f0] sm:$0xff]
    %v5688 = vld [vmem:[#allocation2 + $0x6f8] sm:$0xff]
    %v5689 = vld [vmem:[#allocation2 + $0x730] sm:$0xff]
    %v5690 = vld [vmem:[#allocation2 + $0x738] sm:$0xff]
    %v5691 = vld [vmem:[#allocation2 + $0x770] sm:$0xff]
    %v5692 = vld [vmem:[#allocation2 + $0x778] sm:$0xff]
    %v5693 = vld [vmem:[#allocation2 + $0x7b0] sm:$0xff]
    %v5694 = vld [vmem:[#allocation2 + $0x7b8] sm:$0xff]
    %v5695 = vld [vmem:[#allocation2 + $0x7f0] sm:$0xff]
    %v5696 = vld [vmem:[#allocation2 + $0x7f8] sm:$0xff]
    %5697 = vmatprep.subr.mxu0 %v5634
    %5698 = vmatpush1.msra.mxu0 %v5633
    %5699 = vmatprep.subr.mxu0 %v5636
    %5700 = vmatpush1.msra.mxu0 %v5635
    %5701 = vmatprep.subr.mxu0 %v5638
    %5702 = vmatpush1.msra.mxu0 %v5637
    %5703 = vmatprep.subr.mxu0 %v5640
    %5704 = vmatpush1.msra.mxu0 %v5639
    %5705 = vmatprep.subr.mxu0 %v5642
    %5706 = vmatpush1.msra.mxu0 %v5641
    %5707 = vmatprep.subr.mxu0 %v5644
    %5708 = vmatpush1.msra.mxu0 %v5643
    %5709 = vmatprep.subr.mxu0 %v5646
    %5710 = vmatpush1.msra.mxu0 %v5645
    %5711 = vmatprep.subr.mxu0 %v5648
    %5712 = vmatpush1.msra.mxu0 %v5647
    %5713 = vmatprep.subr.mxu0 %v5650
    %5714 = vmatpush1.msra.mxu0 %v5649
    %5715 = vmatprep.subr.mxu0 %v5652
    %5716 = vmatpush1.msra.mxu0 %v5651
    %5717 = vmatprep.subr.mxu0 %v5654
    %5718 = vmatpush1.msra.mxu0 %v5653
    %5719 = vmatprep.subr.mxu0 %v5656
    %5720 = vmatpush1.msra.mxu0 %v5655
    %5721 = vmatprep.subr.mxu0 %v5658
    %5722 = vmatpush1.msra.mxu0 %v5657
    %5723 = vmatprep.subr.mxu0 %v5660
    %5724 = vmatpush1.msra.mxu0 %v5659
    %5725 = vmatprep.subr.mxu0 %v5662
    %5726 = vmatpush1.msra.mxu0 %v5661
    %5727 = vmatprep.subr.mxu0 %v5664
    %5728 = vmatpush1.msra.mxu0 %v5663
    %5729 = vmatprep.subr.mxu0 %v5666
    %5730 = vmatpush1.msra.mxu0 %v5665
    %5731 = vmatprep.subr.mxu0 %v5668
    %5732 = vmatpush1.msra.mxu0 %v5667
    %5733 = vmatprep.subr.mxu0 %v5670
    %5734 = vmatpush1.msra.mxu0 %v5669
    %5735 = vmatprep.subr.mxu0 %v5672
    %5736 = vmatpush1.msra.mxu0 %v5671
    %5737 = vmatprep.subr.mxu0 %v5674
    %5738 = vmatpush1.msra.mxu0 %v5673
    %5739 = vmatprep.subr.mxu0 %v5676
    %5740 = vmatpush1.msra.mxu0 %v5675
    %5741 = vmatprep.subr.mxu0 %v5678
    %5742 = vmatpush1.msra.mxu0 %v5677
    %5743 = vmatprep.subr.mxu0 %v5680
    %5744 = vmatpush1.msra.mxu0 %v5679
    %5745 = vmatprep.subr.mxu0 %v5682
    %5746 = vmatpush1.msra.mxu0 %v5681
    %5747 = vmatprep.subr.mxu0 %v5684
    %5748 = vmatpush1.msra.mxu0 %v5683
    %5749 = vmatprep.subr.mxu0 %v5686
    %5750 = vmatpush1.msra.mxu0 %v5685
    %5751 = vmatprep.subr.mxu0 %v5688
    %5752 = vmatpush1.msra.mxu0 %v5687
    %5753 = vmatprep.subr.mxu0 %v5690
    %5754 = vmatpush1.msra.mxu0 %v5689
    %5755 = vmatprep.subr.mxu0 %v5692
    %5756 = vmatpush1.msra.mxu0 %v5691
    %5757 = vmatprep.subr.mxu0 %v5694
    %5758 = vmatpush1.msra.mxu0 %v5693
    %5759 = vmatprep.subr.mxu0 %v5696
    %5760 = vmatpush1.msra.mxu0 %v5695
    %5761 = vmatprep.mubr.f32.mxu0 %v5226
    %5762 = vmatmul.mubr.f32.gmra.mrb[0].mxu0 %v5222
    %v5763 = vpop.f32.mrb[0].mxu0
    %v5764 = vadd.f32 0.0, %v5763
    %v5765 = vpop.f32.mrb[0].mxu0
    %v5766 = vadd.f32 0.0, %v5765
    %5767 = vdwg.mxu0
    %v5770 = vcombine.low %v5764, %v5766
    %v5772 = vunpack.c.l.s4 1966171168
    %v5773 = vunpack.c.0.s8 %v5772
    %v5774 = vlaneseq
    %v5775 = vshrl.u32 %v5774, 7
    %v5776 = vsub.s32 %v5773, %v5775
    %v5777 = vrot.slane %v5770, %v5776
    %v5779 = vunpack.c.l.s4 1966171168
    %v5780 = vunpack.c.0.s8 %v5779
    %v5781 = vlaneseq
    %v5782 = vshrl.u32 %v5781, 7
    %v5783 = vsub.s32 %v5780, %v5782
    %v5784 = vrot.slane %v5777, %v5783
    %v5786 = vadd.f32 %v5632, %v5784
    %v5787 = vxor.u32 %v5318, 2147483648
    %v5788 = vmul.f32 %v5787, 1.442695
    %v5789 = vpow.pop %v5788
    %v5790 = vadd.f32 %v5789, 1.0
    %v5791 = vrcp.pop %v5790
    %v5792 = vmul.f32 1.0, %v5791
    %v5793 = vxor.u32 %v5474, 2147483648
    %v5794 = vmul.f32 %v5793, 1.442695
    %v5795 = vpow.pop %v5794
    %v5796 = vadd.f32 %v5795, 1.0
    %v5797 = vrcp.pop %v5796
    %v5798 = vmul.f32 1.0, %v5797
    %v5799 = vtanh.pop %v5630
    %v5800 = vmul.f32 %v5798, %v5140
    %v5801 = vmul.f32 %v5792, %v5799
    %v5802 = vadd.f32 %v5800, %v5801
    %v5803 = vtanh.pop %v5802
    %v5804 = vxor.u32 %v5786, 2147483648
    %v5805 = vmul.f32 %v5804, 1.442695
    %v5806 = vpow.pop %v5805
    %v5807 = vadd.f32 %v5806, 1.0
    %v5808 = vrcp.pop %v5807
    %v5809 = vmul.f32 1.0, %v5808
    %v5810 = vmul.f32 %v5809, %v5803
    %s5811 = scalar_lea.vmem [#allocation4], 7
    %5812 = vst.msk [vmem:[%s5811] ss:$8 sm:$0x3] %vm1177, %v5810
    %5813 = vst.msk [vmem:[%s5811] ss:$8 sm:$0x0] %vm1177, %v5810
    %v5814 = vld [vmem:[#allocation4] sm:$0xff]
    %v5815 = vld [vmem:[#allocation4 + $0x8] sm:$0xff]
    %v5816 = vld [vmem:[%s3] sm:$0x3]
    %v5818 = vlaneseq
    %v5819 = vshrl.u32 %v5818, 7
    %v5820 = vsub.s32 0, %v5819
    %v5821 = vrot.slane %v5816, %v5820
    %v5822 = vlaneseq
    %v5823 = vshrl.u32 %v5822, 7
    %v5824 = vsub.s32 1, %v5823
    %v5825 = vrot.slane %v5816, %v5824
    %v5828 = vmul.f32 %v5814, %v5821
    %v5829 = vmul.f32 %v5815, %v5825
    %v5830 = vadd.f32 %v5828, %v5829
    %5831 = vadd.xlane.f32.xlu0 %v5830
    %v5832 = vpop.xlane.xlu0 %5831
    %v5833 = vld [vmem:[#allocation6] sm:$0x1]
    %v5835 = vlaneseq
    %v5836 = vshrl.u32 %v5835, 7
    %v5837 = vsub.s32 0, %v5836
    %v5838 = vrot.slane %v5833, %v5837
    %v5840 = vadd.f32 %v5832, %v5838
    %v5841 = vxor.u32 %v5840, 2147483648
    %v5842 = vmul.f32 %v5841, 1.442695
    %v5843 = vpow.pop %v5842
    %v5844 = vadd.f32 %v5843, 1.0
    %v5845 = vrcp.pop %v5844
    %v5846 = vmul.f32 1.0, %v5845
    %vm5847 = vcmask 7168
    %5848 = vst.msk [vmem:[%s6] sm:$0xff] %vm5847, %v5846
    // Predicated region
    $region34: #{tpu_custom_call.1} parent=1 // pred_check
      _
    $region35: #{tpu_custom_call.1} parent=1 // pred_check_branch
      %5850 = sbr.rel (0) target = $region37
    $region36: #{tpu_custom_call.1} parent=1 // pred_region
      _
    $region37: #{tpu_custom_call.1} parent=1 // pred_fallthru
      _
    // Predicated region
    $region38: #{tpu_custom_call.1} parent=1 // pred_check
      _
    $region39: #{tpu_custom_call.1} parent=1 // pred_check_branch
      %5852 = sbr.rel (0) target = $region41
    $region40: #{tpu_custom_call.1} parent=1 // pred_region
      _
    $region41: #{tpu_custom_call.1} parent=1 // pred_fallthru
      _
    %5853 = vsyncpa [#allocation8], 1
    %5854 = vsyncpa [#allocation10], 1
  %5855 = vsyncmov [#allocation5]
  %s5856 = vpop.sfrf %5855
  %p5857 = scmp.eq.s32.totalorder %s5856, 0
  %p5858 = pneg %p5857
  %5860 = shalt.err (%p5858)

</llo_original>
